<compile_context>
chip_gen: v6e
topology: v6e:2x2x1
jax: 0.10.0
libtpu: 0.0.40
codegen_flags: <defaults>
</compile_context>

<pallas_src>
import functools

import jax
import jax.numpy as jnp
from jax.experimental import pallas as pl
from jax.experimental.pallas import tpu as pltpu

NUM_FEAT = 17                    # 3 normals + 9 corners + 3 centers + 1 area + 1 struct
EPS = 1e-5                       # BatchNorm eps (PyTorch default)
OUT_PAD = 128                    # lane-dense padded logits width inside the head kernel
POOL_ROWS = 8                    # sublane-aligned rows of the partial-max accumulator
TN_DEFAULT = 2048                # face tile: amortizes ~0.35 us/step, v7x VMEM-safe
VMEM_LIMIT = 48 * 1024 * 1024    # <= v7x 64 MiB physical; > v5e's 16 MiB scoped default


# ----------------------------------------------------------------------------
# Backbone kernel: descriptors + conv1..3 + running max-pool, tiled over faces.
# grid = (B, n_splits, face_tiles); output block resident per (b, split).
# ----------------------------------------------------------------------------
def _backbone_kernel(faces_ref,
                     wdesc_ref, bdesc_ref, w1_ref, b1_ref,
                     w2_ref, b2_ref, w3_ref, b3_ref,
                     pooled_ref, *,
                     tn, n_faces, tiles_per_split, mask_tail):
    s = pl.program_id(1)
    t = pl.program_id(2)

    @pl.when(t == 0)
    def _():
        pooled_ref[...] = jnp.full(pooled_ref.shape, -jnp.inf, pooled_ref.dtype)

    dot = functools.partial(jnp.dot, preferred_element_type=jnp.float32)

    def layer(v, w_ref, b_ref):
        # Single bf16 materialization per layer: bias-add + relu on the bf16
        # VALU path, one store stream (no separate f32 + bf16 copies).
        return jnp.maximum(dot(v, w_ref[...]).astype(jnp.bfloat16) + b_ref[...], 0)

    x = faces_ref[...]                                        # (tn, 17) bf16 (pre-cast)
    feat = layer(x, wdesc_ref, bdesc_ref)                     # (tn, 192) [corr|rot|spatial]
    h = layer(feat, w1_ref, b1_ref)                           # (tn, 256) conv1+bn1
    h = layer(h, w2_ref, b2_ref)                              # (tn, 512) conv2+bn2
    h = jnp.maximum(dot(h, w3_ref[...]) + b3_ref[...], 0.0)   # (tn, 512) f32 (pooling path)

    def partial_max(v):
        # Sublane-aligned regrouping: element (i, j, k) = v[i*8 + j, k], so the
        # axis-0 max is a pure per-vreg VPU maximum (no cross-sublane XLU work).
        return v.reshape(tn // POOL_ROWS, POOL_ROWS, v.shape[-1]).max(axis=0)

    if mask_tail:
        start = (s * tiles_per_split + t) * tn
        valid = n_faces - start

        @pl.when(valid >= tn)
        def _():
            pooled_ref[...] = jnp.maximum(pooled_ref[...], partial_max(h))

        @pl.when(valid < tn)
        def _():
            # Ragged / out-of-bounds tail rows of the last tile are masked out.
            row = jax.lax.broadcasted_iota(jnp.int32, (tn, 1), 0)
            pooled_ref[...] = jnp.maximum(
                pooled_ref[...],
                partial_max(jnp.where(row < valid, h, -jnp.inf)))
    else:
        pooled_ref[...] = jnp.maximum(pooled_ref[...], partial_max(h))


# ----------------------------------------------------------------------------
# Head kernel: fold the (splits*8 -> 1) max, then fc1+bn4 -> fc2+bn5 -> fc3.
# ----------------------------------------------------------------------------
def _head_kernel(pooled_ref, wf1_ref, bf1_ref, wf2_ref, bf2_ref,
                 wf3_ref, bf3_ref, out_ref):
    dot = functools.partial(jnp.dot, preferred_element_type=jnp.float32)

    pooled = jnp.max(pooled_ref[...], axis=1)                 # (B, 512) f32
    z = pooled.astype(jnp.bfloat16)
    # TODO(synk): dropout1 / dropout2 are identity in eval mode (inference).
    z = jnp.maximum(dot(z, wf1_ref[...]).astype(jnp.bfloat16) + bf1_ref[...], 0)  # (B, 1024)
    z = jnp.maximum(dot(z, wf2_ref[...]).astype(jnp.bfloat16) + bf2_ref[...], 0)  # (B, 512)
    out_ref[...] = dot(z, wf3_ref[...]) + bf3_ref[...]                            # (B, OUT_PAD)


# ----------------------------------------------------------------------------
# Parameter construction (deterministic, mirrors the PyTorch __init__ shapes).
# ----------------------------------------------------------------------------
def init_params(key, num_classes=2):
    ks = iter(jax.random.split(key, 40))

    def lin(cin, cout):
        w = jax.random.normal(next(ks), (cout, cin), jnp.float32) * (0.3 / jnp.sqrt(cin))
        b = jax.random.normal(next(ks), (cout,), jnp.float32) * 0.05
        return w, b

    def bn(c):
        gamma = 1.0 + 0.1 * jax.random.normal(next(ks), (c,), jnp.float32)
        beta = 0.05 * jax.random.normal(next(ks), (c,), jnp.float32)
        mean = 0.02 * jax.random.normal(next(ks), (c,), jnp.float32)
        var = 0.5 + jax.random.uniform(next(ks), (c,), jnp.float32)
        return (gamma, beta, mean, var)

    p = {}
    p['wc'], p['bc'] = lin(3, 64)      # structural_descriptor.fc_correlation
    p['wr'], p['br'] = lin(9, 64)      # structural_descriptor.fc_rotation
    p['ws'], p['bs'] = lin(3, 64)      # spatial_descriptor.mlp
    p['w1'], p['b1'] = lin(192, 256);  p['bn1'] = bn(256)
    p['w2'], p['b2'] = lin(256, 512);  p['bn2'] = bn(512)
    p['w3'], p['b3'] = lin(512, 512);  p['bn3'] = bn(512)
    p['wf1'], p['bf1'] = lin(512, 1024); p['bn4'] = bn(1024)
    p['wf2'], p['bf2'] = lin(1024, 512); p['bn5'] = bn(512)
    p['wf3'], p['bf3'] = lin(512, num_classes)
    return p


def _bn_fold(w, b, bn_params):
    """Fold eval-mode BatchNorm into (C_in, C_out) weight + (1, C_out) bias."""
    gamma, beta, mean, var = bn_params
    scale = gamma / jnp.sqrt(var + EPS)
    w_f = w.T * scale[None, :]
    b_f = (b - mean) * scale + beta
    return w_f, b_f.reshape(1, -1)


def _fuse_params(p):
    """Fold BN, fuse the three descriptor convs, pad fc3, cast to kernel dtypes."""
    to_bf16 = lambda a: a.astype(jnp.bfloat16)

    # Fused descriptor weight (17, 192): input rows follow the PyTorch channel
    # slicing (normals 0:3, corners 3:12, centers 12:15); output columns follow
    # cat([correlation, rotation, spatial]).  relu(concat) == concat(relu).
    wdesc = jnp.zeros((NUM_FEAT, 192), jnp.float32)
    wdesc = wdesc.at[0:3, 0:64].set(p['wc'].T)
    wdesc = wdesc.at[3:12, 64:128].set(p['wr'].T)
    wdesc = wdesc.at[12:15, 128:192].set(p['ws'].T)
    bdesc = jnp.concatenate([p['bc'], p['br'], p['bs']]).reshape(1, -1)

    w1, b1 = _bn_fold(p['w1'], p['b1'], p['bn1'])
    w2, b2 = _bn_fold(p['w2'], p['b2'], p['bn2'])
    w3, b3 = _bn_fold(p['w3'], p['b3'], p['bn3'])
    wf1, hb1 = _bn_fold(p['wf1'], p['bf1'], p['bn4'])
    wf2, hb2 = _bn_fold(p['wf2'], p['bf2'], p['bn5'])

    nc = p['wf3'].shape[0]
    wf3 = jnp.zeros((512, OUT_PAD), jnp.float32).at[:, :nc].set(p['wf3'].T)
    hb3 = jnp.zeros((1, OUT_PAD), jnp.float32).at[0, :nc].set(p['bf3'])

    backbone = [to_bf16(wdesc), to_bf16(bdesc), to_bf16(w1), to_bf16(b1),
                to_bf16(w2), to_bf16(b2), to_bf16(w3), b3]      # conv3 bias f32
    head = [to_bf16(wf1), to_bf16(hb1), to_bf16(wf2), to_bf16(hb2),
            to_bf16(wf3), hb3]                                  # fc3 bias f32
    return backbone, head


def _round_up(a, m):
    return ((a + m - 1) // m) * m


# ----------------------------------------------------------------------------
# Wrapper
# ----------------------------------------------------------------------------
def meshnet_forward(face_features, y, params, tn=TN_DEFAULT):
    B = int(y.shape[0])
    total_faces, feat_dim = face_features.shape
    assert feat_dim == NUM_FEAT, feat_dim
    assert total_faces % B == 0, "total face count must be divisible by batch"
    N = total_faces // B

    # Pre-cast faces to bf16 once: halves the faces HBM->VMEM DMA and the
    # double-buffer footprint; removes the per-tile in-kernel cast.
    faces = face_features.reshape(B, N, feat_dim).astype(jnp.bfloat16)

    # Face tile: multiple of 256 (MXU friendly), capped at TN_DEFAULT (fits
    # v7x's 64 MiB VMEM with the 48 MiB limit), shrunk for small meshes.
    tn = max(256, min(tn, _round_up(N, 256)))
    n_tiles = -(-N // tn)

    # v7x: with B == 1 the batch axis cannot occupy both TensorCores, so split
    # the face reduction into two parallel partial maxima.
    n_splits = 2 if (B == 1 and n_tiles >= 2) else 1
    tiles_per_split = -(-n_tiles // n_splits)
    needs_clamp = n_splits * tiles_per_split > n_tiles     # split over-covers tiles
    mask_tail = n_splits * tiles_per_split * tn != N       # ragged tail present

    backbone_w, head_w = _fuse_params(params)

    def faces_map(b, s, t):
        blk = s * tiles_per_split + t
        if needs_clamp:  # static Python branch; clamped tile is fully masked in-kernel
            blk = jnp.minimum(blk, n_tiles - 1)
        return (b, blk, 0)

    in_specs = [pl.BlockSpec((None, tn, NUM_FEAT), faces_map)]
    in_specs += [pl.BlockSpec(w.shape, lambda b, s, t: (0, 0)) for w in backbone_w]

    flops_per_face = 2 * (NUM_FEAT * 192 + 192 * 256 + 256 * 512 + 512 * 512)
    cost = pl.CostEstimate(
        flops=flops_per_face * B * n_splits * tiles_per_split * tn,
        transcendentals=0,
        bytes_accessed=int(faces.size) * 2
        + B * n_splits * POOL_ROWS * 512 * 4
        + sum(int(w.size) * w.dtype.itemsize for w in backbone_w))

    kernel = functools.partial(
        _backbone_kernel, tn=tn, n_faces=N,
        tiles_per_split=tiles_per_split, mask_tail=mask_tail)

    pooled = pl.pallas_call(
        kernel,
        out_shape=jax.ShapeDtypeStruct((B, n_splits, POOL_ROWS, 512), jnp.float32),
        grid_spec=pltpu.PrefetchScalarGridSpec(
            num_scalar_prefetch=0,
            grid=(B, n_splits, tiles_per_split),
            in_specs=in_specs,
            out_specs=pl.BlockSpec((None, None, POOL_ROWS, 512),
                                   lambda b, s, t: (b, s, 0, 0)),
        ),
        compiler_params=pltpu.CompilerParams(
            dimension_semantics=("parallel", "parallel", "arbitrary"),
            vmem_limit_bytes=VMEM_LIMIT),
        cost_estimate=cost,
    )(faces, *backbone_w)

    # Head consumes the (splits*8, 512) partial maxima directly (final max is
    # folded into the kernel); logits padded to a lane-dense width of 128.
    pooled_rows = pooled.reshape(B, n_splits * POOL_ROWS, 512)
    num_classes = params['wf3'].shape[0]
    logits = pl.pallas_call(
        _head_kernel,
        out_shape=jax.ShapeDtypeStruct((B, OUT_PAD), jnp.float32),
    )(pooled_rows, *head_w)
    return logits[:, :num_classes]


# ----------------------------------------------------------------------------
# Pure-JAX reference (mirrors the PyTorch forward, eval mode) for validation.
# ----------------------------------------------------------------------------
def ref_forward(face_features, y, p):
    B = int(y.shape[0])
    N = face_features.shape[0] // B
    x = face_features.reshape(B, N, NUM_FEAT)
    normal = x[..., 0:3]
    corner = x[..., 3:12]
    center = x[..., 12:15]

    mm = functools.partial(jnp.matmul, precision=jax.lax.Precision.HIGHEST)
    relu = lambda v: jnp.maximum(v, 0.0)

    def bn(v, bn_p):
        gamma, beta, mean, var = bn_p
        return gamma * (v - mean) / jnp.sqrt(var + EPS) + beta

    f_corr = relu(mm(normal, p['wc'].T) + p['bc'])
    f_rot = relu(mm(corner, p['wr'].T) + p['br'])
    f_sp = relu(mm(center, p['ws'].T) + p['bs'])
    feat = jnp.concatenate([f_corr, f_rot, f_sp], axis=-1)      # (B, N, 192)

    h = relu(bn(mm(feat, p['w1'].T) + p['b1'], p['bn1']))
    h = relu(bn(mm(h, p['w2'].T) + p['b2'], p['bn2']))
    h = relu(bn(mm(h, p['w3'].T) + p['b3'], p['bn3']))
    pooled = jnp.max(h, axis=1)                                  # (B, 512)

    z = relu(bn(mm(pooled, p['wf1'].T) + p['bf1'], p['bn4']))
    z = relu(bn(mm(z, p['wf2'].T) + p['bf2'], p['bn5']))
    return mm(z, p['wf3'].T) + p['bf3']


if __name__ == "__main__":
    key = jax.random.PRNGKey(0)
    k_in, k_p = jax.random.split(key)
    num_classes = 2
    params = init_params(k_p, num_classes)

    # (B, N, tn): exercises (1) multi-tile accumulation + ragged-tail mask with
    # B=2, (2) the B==1 two-way face split, (3) the over-covering split whose
    # clamped duplicate tile is fully masked.
    cases = [(2, 900, 512), (1, 900, 256), (1, 700, 256)]

    for B, N, tn in cases:
        k_in, k_case = jax.random.split(k_in)
        face_features = jax.random.normal(k_case, (B * N, NUM_FEAT), jnp.float32)
        y = jnp.zeros((B,), jnp.int32)          # only used for batch size

        out = jax.block_until_ready(meshnet_forward(face_features, y, params, tn=tn))
        ref = jax.block_until_ready(ref_forward(face_features, y, params))
        assert out.shape == (B, num_classes), out.shape

        # bf16 matmul/activation path vs f32 reference: normalized max-abs error.
        err = float(jnp.max(jnp.abs(out - ref)))
        scale = float(jnp.max(jnp.abs(ref))) + 1e-6
        assert err / scale < 5e-2, (B, N, tn, err, scale)

    print("KERNEL_OK")
</pallas_src>

<mosaic_0001>
module attributes {stable_mosaic.version = 11 : i64} {
  func.func @_backbone_kernel(%arg0: i32, %arg1: i32, %arg2: i32, %arg3: memref<1x512x17xbf16, #tpu.memory_space<vmem>>, %arg4: memref<17x192xbf16, #tpu.memory_space<vmem>>, %arg5: memref<1x192xbf16, #tpu.memory_space<vmem>>, %arg6: memref<192x256xbf16, #tpu.memory_space<vmem>>, %arg7: memref<1x256xbf16, #tpu.memory_space<vmem>>, %arg8: memref<256x512xbf16, #tpu.memory_space<vmem>>, %arg9: memref<1x512xbf16, #tpu.memory_space<vmem>>, %arg10: memref<512x512xbf16, #tpu.memory_space<vmem>>, %arg11: memref<1x512xf32, #tpu.memory_space<vmem>>, %arg12: memref<1x1x8x512xf32, #tpu.memory_space<vmem>>) attributes {dimension_semantics = [#tpu.dimension_semantics<parallel>, #tpu.dimension_semantics<parallel>, #tpu.dimension_semantics<arbitrary>], iteration_bounds = array<i64: 2, 1, 2>, scalar_prefetch = 0 : i64, scratch_operands = 0 : i64, tpu.core_type = #tpu.core_type<tc>, window_params = [{transform_indices = @transform_0, window_bounds = array<i64: 1, 512, 17>}, {pipeline_mode = #tpu.pipeline_mode<synchronous>, transform_indices = @transform_1, window_bounds = array<i64: 17, 192>}, {pipeline_mode = #tpu.pipeline_mode<synchronous>, transform_indices = @transform_2, window_bounds = array<i64: 1, 192>}, {pipeline_mode = #tpu.pipeline_mode<synchronous>, transform_indices = @transform_3, window_bounds = array<i64: 192, 256>}, {pipeline_mode = #tpu.pipeline_mode<synchronous>, transform_indices = @transform_4, window_bounds = array<i64: 1, 256>}, {pipeline_mode = #tpu.pipeline_mode<synchronous>, transform_indices = @transform_5, window_bounds = array<i64: 256, 512>}, {pipeline_mode = #tpu.pipeline_mode<synchronous>, transform_indices = @transform_6, window_bounds = array<i64: 1, 512>}, {pipeline_mode = #tpu.pipeline_mode<synchronous>, transform_indices = @transform_7, window_bounds = array<i64: 512, 512>}, {pipeline_mode = #tpu.pipeline_mode<synchronous>, transform_indices = @transform_8, window_bounds = array<i64: 1, 512>}, {transform_indices = @transform_9, window_bounds = array<i64: 1, 1, 8, 512>}]} {
    %c0_i32 = arith.constant 0 : i32
    %0 = arith.cmpi eq, %arg2, %c0_i32 : i32
    %1 = arith.extui %0 : i1 to i32
    %c0_i32_0 = arith.constant 0 : i32
    %2 = arith.cmpi ne, %1, %c0_i32_0 : i32
    scf.if %2 {
      %cst_30 = arith.constant 0xFF800000 : f32
      %46 = vector.broadcast %cst_30 : f32 to vector<8x512xf32>
      %c0_31 = arith.constant 0 : index
      %c0_32 = arith.constant 0 : index
      %c0_33 = arith.constant 0 : index
      %c0_34 = arith.constant 0 : index
      %47 = vector.load %arg12[%c0_31, %c0_32, %c0_33, %c0_34] : memref<1x1x8x512xf32, #tpu.memory_space<vmem>>, vector<1x1x8x512xf32>
      %48 = vector.shape_cast %47 : vector<1x1x8x512xf32> to vector<8x512xf32>
      %49 = vector.shape_cast %46 : vector<8x512xf32> to vector<1x1x8x512xf32>
      tpu.vector_store %arg12[%c0_31, %c0_32, %c0_33, %c0_34], %49 {strides = array<i32>} : memref<1x1x8x512xf32, #tpu.memory_space<vmem>>, vector<1x1x8x512xf32>,
    } else {
    }
    %c0 = arith.constant 0 : index
    %c0_1 = arith.constant 0 : index
    %c0_2 = arith.constant 0 : index
    %3 = vector.load %arg3[%c0, %c0_1, %c0_2] : memref<1x512x17xbf16, #tpu.memory_space<vmem>>, vector<1x512x17xbf16>
    %4 = vector.shape_cast %3 : vector<1x512x17xbf16> to vector<512x17xbf16>
    %c0_3 = arith.constant 0 : index
    %c0_4 = arith.constant 0 : index
    %5 = vector.load %arg4[%c0_3, %c0_4] : memref<17x192xbf16, #tpu.memory_space<vmem>>, vector<17x192xbf16>
    %cst = arith.constant dense<0.000000e+00> : vector<512x192xf32>
    %6 = tpu.matmul %4, %5, %cst {dimension_numbers = #tpu.dot_dimension_numbers<[1], [0], [0], [1], [0, 0, 1, 1], [], []>} : vector<512x17xbf16>, vector<17x192xbf16>, vector<512x192xf32> -> vector<512x192xf32>
    %7 = arith.truncf %6 : vector<512x192xf32> to vector<512x192xbf16>
    %c0_5 = arith.constant 0 : index
    %c0_6 = arith.constant 0 : index
    %8 = vector.load %arg5[%c0_5, %c0_6] : memref<1x192xbf16, #tpu.memory_space<vmem>>, vector<1x192xbf16>
    %9 = vector.broadcast %8 : vector<1x192xbf16> to vector<512x192xbf16>
    %10 = arith.addf %7, %9 : vector<512x192xbf16>
    %cst_7 = arith.constant 0.000000e+00 : bf16
    %11 = vector.broadcast %cst_7 : bf16 to vector<512x192xbf16>
    %12 = arith.maximumf %10, %11 : vector<512x192xbf16>
    %c0_8 = arith.constant 0 : index
    %c0_9 = arith.constant 0 : index
    %13 = vector.load %arg6[%c0_8, %c0_9] : memref<192x256xbf16, #tpu.memory_space<vmem>>, vector<192x256xbf16>
    %cst_10 = arith.constant dense<0.000000e+00> : vector<512x256xf32>
    %14 = tpu.matmul %12, %13, %cst_10 {dimension_numbers = #tpu.dot_dimension_numbers<[1], [0], [0], [1], [0, 0, 1, 1], [], []>} : vector<512x192xbf16>, vector<192x256xbf16>, vector<512x256xf32> -> vector<512x256xf32>
    %15 = arith.truncf %14 : vector<512x256xf32> to vector<512x256xbf16>
    %c0_11 = arith.constant 0 : index
    %c0_12 = arith.constant 0 : index
    %16 = vector.load %arg7[%c0_11, %c0_12] : memref<1x256xbf16, #tpu.memory_space<vmem>>, vector<1x256xbf16>
    %17 = vector.broadcast %16 : vector<1x256xbf16> to vector<512x256xbf16>
    %18 = arith.addf %15, %17 : vector<512x256xbf16>
    %cst_13 = arith.constant 0.000000e+00 : bf16
    %19 = vector.broadcast %cst_13 : bf16 to vector<512x256xbf16>
    %20 = arith.maximumf %18, %19 : vector<512x256xbf16>
    %c0_14 = arith.constant 0 : index
    %c0_15 = arith.constant 0 : index
    %21 = vector.load %arg8[%c0_14, %c0_15] : memref<256x512xbf16, #tpu.memory_space<vmem>>, vector<256x512xbf16>
    %cst_16 = arith.constant dense<0.000000e+00> : vector<512x512xf32>
    %22 = tpu.matmul %20, %21, %cst_16 {dimension_numbers = #tpu.dot_dimension_numbers<[1], [0], [0], [1], [0, 0, 1, 1], [], []>} : vector<512x256xbf16>, vector<256x512xbf16>, vector<512x512xf32> -> vector<512x512xf32>
    %23 = arith.truncf %22 : vector<512x512xf32> to vector<512x512xbf16>
    %c0_17 = arith.constant 0 : index
    %c0_18 = arith.constant 0 : index
    %24 = vector.load %arg9[%c0_17, %c0_18] : memref<1x512xbf16, #tpu.memory_space<vmem>>, vector<1x512xbf16>
    %25 = vector.broadcast %24 : vector<1x512xbf16> to vector<512x512xbf16>
    %26 = arith.addf %23, %25 : vector<512x512xbf16>
    %cst_19 = arith.constant 0.000000e+00 : bf16
    %27 = vector.broadcast %cst_19 : bf16 to vector<512x512xbf16>
    %28 = arith.maximumf %26, %27 : vector<512x512xbf16>
    %c0_20 = arith.constant 0 : index
    %c0_21 = arith.constant 0 : index
    %29 = vector.load %arg10[%c0_20, %c0_21] : memref<512x512xbf16, #tpu.memory_space<vmem>>, vector<512x512xbf16>
    %cst_22 = arith.constant dense<0.000000e+00> : vector<512x512xf32>
    %30 = tpu.matmul %28, %29, %cst_22 {dimension_numbers = #tpu.dot_dimension_numbers<[1], [0], [0], [1], [0, 0, 1, 1], [], []>} : vector<512x512xbf16>, vector<512x512xbf16>, vector<512x512xf32> -> vector<512x512xf32>
    %c0_23 = arith.constant 0 : index
    %c0_24 = arith.constant 0 : index
    %31 = vector.load %arg11[%c0_23, %c0_24] : memref<1x512xf32, #tpu.memory_space<vmem>>, vector<1x512xf32>
    %32 = vector.broadcast %31 : vector<1x512xf32> to vector<512x512xf32>
    %33 = arith.addf %30, %32 : vector<512x512xf32>
    %cst_25 = arith.constant 0.000000e+00 : f32
    %34 = vector.broadcast %cst_25 : f32 to vector<512x512xf32>
    %35 = arith.maximumf %33, %34 : vector<512x512xf32>
    %c2_i32 = arith.constant 2 : i32
    %36 = arith.muli %arg1, %c2_i32 : i32
    %37 = arith.addi %36, %arg2 : i32
    %c512_i32 = arith.constant 512 : i32
    %38 = arith.muli %37, %c512_i32 : i32
    %c900_i32 = arith.constant 900 : i32
    %39 = arith.subi %c900_i32, %38 : i32
    %c512_i32_26 = arith.constant 512 : i32
    %40 = arith.cmpi sge, %39, %c512_i32_26 : i32
    %41 = arith.extui %40 : i1 to i32
    %c0_i32_27 = arith.constant 0 : i32
    %42 = arith.cmpi ne, %41, %c0_i32_27 : i32
    scf.if %42 {
      %c0_30 = arith.constant 0 : index
      %c0_31 = arith.constant 0 : index
      %c0_32 = arith.constant 0 : index
      %c0_33 = arith.constant 0 : index
      %46 = vector.load %arg12[%c0_30, %c0_31, %c0_32, %c0_33] : memref<1x1x8x512xf32, #tpu.memory_space<vmem>>, vector<1x1x8x512xf32>
      %47 = vector.shape_cast %46 : vector<1x1x8x512xf32> to vector<8x512xf32>
      %48 = vector.shape_cast %35 : vector<512x512xf32> to vector<64x8x512xf32>
      %cst_34 = arith.constant dense<0xFF800000> : vector<8x512xf32>
      %49 = vector.multi_reduction <maximumf>, %48, %cst_34 [0] : vector<64x8x512xf32> to vector<8x512xf32>
      %50 = arith.maximumf %47, %49 : vector<8x512xf32>
      %c0_35 = arith.constant 0 : index
      %c0_36 = arith.constant 0 : index
      %c0_37 = arith.constant 0 : index
      %c0_38 = arith.constant 0 : index
      %51 = vector.load %arg12[%c0_35, %c0_36, %c0_37, %c0_38] : memref<1x1x8x512xf32, #tpu.memory_space<vmem>>, vector<1x1x8x512xf32>
      %52 = vector.shape_cast %51 : vector<1x1x8x512xf32> to vector<8x512xf32>
      %53 = vector.shape_cast %50 : vector<8x512xf32> to vector<1x1x8x512xf32>
      tpu.vector_store %arg12[%c0_35, %c0_36, %c0_37, %c0_38], %53 {strides = array<i32>} : memref<1x1x8x512xf32, #tpu.memory_space<vmem>>, vector<1x1x8x512xf32>,
    } else {
    }
    %c512_i32_28 = arith.constant 512 : i32
    %43 = arith.cmpi slt, %39, %c512_i32_28 : i32
    %44 = arith.extui %43 : i1 to i32
    %c0_i32_29 = arith.constant 0 : i32
    %45 = arith.cmpi ne, %44, %c0_i32_29 : i32
    scf.if %45 {
      %46 = tpu.iota {dimensions = array<i32: 0>} : vector<512x1xi32>
      %c0_30 = arith.constant 0 : index
      %c0_31 = arith.constant 0 : index
      %c0_32 = arith.constant 0 : index
      %c0_33 = arith.constant 0 : index
      %47 = vector.load %arg12[%c0_30, %c0_31, %c0_32, %c0_33] : memref<1x1x8x512xf32, #tpu.memory_space<vmem>>, vector<1x1x8x512xf32>
      %48 = vector.shape_cast %47 : vector<1x1x8x512xf32> to vector<8x512xf32>
      %49 = vector.broadcast %39 : i32 to vector<512x1xi32>
      %50 = arith.cmpi slt, %46, %49 : vector<512x1xi32>
      %cst_34 = arith.constant 0xFF800000 : f32
      %51 = vector.shape_cast %50 : vector<512x1xi1> to vector<512x1xi1>
      %52 = vector.broadcast %51 : vector<512x1xi1> to vector<512x512xi1>
      %53 = vector.broadcast %cst_34 : f32 to vector<512x512xf32>
      %54 = arith.select %52, %35, %53 : vector<512x512xi1>, vector<512x512xf32>
      %55 = vector.shape_cast %54 : vector<512x512xf32> to vector<64x8x512xf32>
      %cst_35 = arith.constant dense<0xFF800000> : vector<8x512xf32>
      %56 = vector.multi_reduction <maximumf>, %55, %cst_35 [0] : vector<64x8x512xf32> to vector<8x512xf32>
      %57 = arith.maximumf %48, %56 : vector<8x512xf32>
      %c0_36 = arith.constant 0 : index
      %c0_37 = arith.constant 0 : index
      %c0_38 = arith.constant 0 : index
      %c0_39 = arith.constant 0 : index
      %58 = vector.load %arg12[%c0_36, %c0_37, %c0_38, %c0_39] : memref<1x1x8x512xf32, #tpu.memory_space<vmem>>, vector<1x1x8x512xf32>
      %59 = vector.shape_cast %58 : vector<1x1x8x512xf32> to vector<8x512xf32>
      %60 = vector.shape_cast %57 : vector<8x512xf32> to vector<1x1x8x512xf32>
      tpu.vector_store %arg12[%c0_36, %c0_37, %c0_38, %c0_39], %60 {strides = array<i32>} : memref<1x1x8x512xf32, #tpu.memory_space<vmem>>, vector<1x1x8x512xf32>,
    } else {
    }
    return
  }
  func.func @transform_0(%arg0: i32, %arg1: i32, %arg2: i32) -> (i32, i32, i32) {
    %c2_i32 = arith.constant 2 : i32
    %0 = arith.muli %arg1, %c2_i32 : i32
    %1 = arith.addi %0, %arg2 : i32
    %c0_i32 = arith.constant 0 : i32
    %c0_i32_0 = arith.constant 0 : i32
    return %arg0, %1, %c0_i32 : i32, i32, i32
  }
  func.func @transform_1(%arg0: i32, %arg1: i32, %arg2: i32) -> (i32, i32) {
    %c0_i32 = arith.constant 0 : i32
    %c0_i32_0 = arith.constant 0 : i32
    %c0_i32_1 = arith.constant 0 : i32
    return %c0_i32, %c0_i32_0 : i32, i32
  }
  func.func @transform_2(%arg0: i32, %arg1: i32, %arg2: i32) -> (i32, i32) {
    %c0_i32 = arith.constant 0 : i32
    %c0_i32_0 = arith.constant 0 : i32
    %c0_i32_1 = arith.constant 0 : i32
    return %c0_i32, %c0_i32_0 : i32, i32
  }
  func.func @transform_3(%arg0: i32, %arg1: i32, %arg2: i32) -> (i32, i32) {
    %c0_i32 = arith.constant 0 : i32
    %c0_i32_0 = arith.constant 0 : i32
    %c0_i32_1 = arith.constant 0 : i32
    return %c0_i32, %c0_i32_0 : i32, i32
  }
  func.func @transform_4(%arg0: i32, %arg1: i32, %arg2: i32) -> (i32, i32) {
    %c0_i32 = arith.constant 0 : i32
    %c0_i32_0 = arith.constant 0 : i32
    %c0_i32_1 = arith.constant 0 : i32
    return %c0_i32, %c0_i32_0 : i32, i32
  }
  func.func @transform_5(%arg0: i32, %arg1: i32, %arg2: i32) -> (i32, i32) {
    %c0_i32 = arith.constant 0 : i32
    %c0_i32_0 = arith.constant 0 : i32
    %c0_i32_1 = arith.constant 0 : i32
    return %c0_i32, %c0_i32_0 : i32, i32
  }
  func.func @transform_6(%arg0: i32, %arg1: i32, %arg2: i32) -> (i32, i32) {
    %c0_i32 = arith.constant 0 : i32
    %c0_i32_0 = arith.constant 0 : i32
    %c0_i32_1 = arith.constant 0 : i32
    return %c0_i32, %c0_i32_0 : i32, i32
  }
  func.func @transform_7(%arg0: i32, %arg1: i32, %arg2: i32) -> (i32, i32) {
    %c0_i32 = arith.constant 0 : i32
    %c0_i32_0 = arith.constant 0 : i32
    %c0_i32_1 = arith.constant 0 : i32
    return %c0_i32, %c0_i32_0 : i32, i32
  }
  func.func @transform_8(%arg0: i32, %arg1: i32, %arg2: i32) -> (i32, i32) {
    %c0_i32 = arith.constant 0 : i32
    %c0_i32_0 = arith.constant 0 : i32
    %c0_i32_1 = arith.constant 0 : i32
    return %c0_i32, %c0_i32_0 : i32, i32
  }
  func.func @transform_9(%arg0: i32, %arg1: i32, %arg2: i32) -> (i32, i32, i32, i32) {
    %c0_i32 = arith.constant 0 : i32
    %c0_i32_0 = arith.constant 0 : i32
    %c0_i32_1 = arith.constant 0 : i32
    return %arg0, %arg1, %c0_i32, %c0_i32_0 : i32, i32, i32, i32
  }
}

</mosaic_0001>

<llo_original>
// kernel: tpu_custom_call.1
$region0: #{tpu_custom_call.1}
  #allocation0 [shape = 'u32[]', space=smem, size = 0x4, offset = 0x4, fixed_abs, tag = 'smem constant byte address 0x4 - core index']
  #allocation1 [shape = 'u32[144,128]{1,0:T(1,128)}', space=vmem, size = 0x12000, scoped, tag = 'internal scratch']
  %s0 = inlined_call_operand.vmem [shape: bf16[2,900,17], index: 0, kind: input, shape index: {}]
  %s1 = inlined_call_operand.vmem [shape: bf16[17,192], index: 1, kind: input, shape index: {}]
  %s2 = inlined_call_operand.hbm [shape: bf16[1,192], index: 2, kind: input, shape index: {}]
  %s3 = inlined_call_operand.hbm [shape: bf16[192,256], index: 3, kind: input, shape index: {}]
  %s4 = inlined_call_operand.hbm [shape: bf16[1,256], index: 4, kind: input, shape index: {}]
  %s5 = inlined_call_operand.hbm [shape: bf16[256,512], index: 5, kind: input, shape index: {}]
  %s6 = inlined_call_operand.vmem [shape: bf16[1,512], index: 6, kind: input, shape index: {}]
  %s7 = inlined_call_operand.vmem [shape: bf16[512,512], index: 7, kind: input, shape index: {}]
  %s8 = inlined_call_operand.hbm [shape: f32[1,512], index: 8, kind: input, shape index: {}]
  %s9 = inlined_call_operand.hbm [shape: f32[2,1,8,512], index: 9, kind: output, shape index: {}]
  %s10 = sld [smem:[#allocation0]]
  $region101: #{tpu_custom_call.1} parent=0
    _
  %s12 = ssub.s32 1, %s10
  %s13 = scalar_select 0, %s12, %s10
  $region1: #{tpu_custom_call.1} parent=0
    #allocation2 [shape = 'u8[1024]{0}', space=vmem, size = 0x400, scoped, tag = 'input window, operand 2, single buffered']
    #allocation3 [shape = 's32[2]{0}', space=sflag, size = 0x8, scoped, tag = 'scoped memory for tpu_custom_call.1']
    #allocation4 [shape = 's32[2]{0}', space=sflag, size = 0x8, scoped, tag = 'scoped memory for tpu_custom_call.1']
    #allocation5 [shape = 'u8[98304]{0}', space=vmem, size = 0x18000, scoped, tag = 'input window, operand 3, single buffered']
    #allocation6 [shape = 's32[1]{0}', space=sflag, size = 0x4, scoped, tag = 'scoped memory for tpu_custom_call.1']
    #allocation7 [shape = 'u8[1024]{0}', space=vmem, size = 0x400, scoped, tag = 'input window, operand 4, single buffered']
    #allocation8 [shape = 'u8[262144]{0}', space=vmem, size = 0x40000, scoped, tag = 'input window, operand 5, single buffered']
    #allocation9 [shape = 's32[1]{0}', space=sflag, size = 0x4, scoped, tag = 'scoped memory for tpu_custom_call.1']
    #allocation10 [shape = 'u8[2048]{0}', space=vmem, size = 0x800, scoped, tag = 'input window, operand 8, single buffered']
    #allocation11 [shape = 'u8[32768]{0}', space=vmem, size = 0x8000, scoped, tag = 'output window, operand 0']
    %14 = vsyncpa [#allocation3], 0
    %15 = vsyncpa [#allocation6], 0
    %16 = vsyncpa [#allocation9], 0
    %17 = vsyncpa [#allocation4], 0
    %s18 = scalar_lea.sflag [#allocation4], 1
    %19 = vsyncpa %s18, 0
    loop: start=0, step=1, limit=6
    $region2: #{tpu_custom_call.1} parent=1 // loop_pre_header
      _
    $region3: #{tpu_custom_call.1} parent=1 // loop_header
      %s21 = sphi 0, %s25
      %p22 = scmp.ge.s32.totalorder %s21, 6
      %s28 = sphi 0, %s47
      %s29 = sphi 0, %s43
      %s30 = sphi 0, %s39
      %s31 = sphi 0, %s28
      %s32 = sphi 0, %s29
      %s33 = sphi 0, %s30
      %s34 = sphi 0, %s31
      %s35 = sphi 0, %s32
      %s36 = sphi 0, %s33
      %s56 = sphi 0, %s58
      %s59 = sphi 0, %s56
      %s60 = sphi 0, %s59
      %s76 = sphi 0, %s60
      %s80 = sphi 0, %s80
      %s82 = sphi 0, %s80
      %s83 = sphi 0, %s82
      %s97 = sphi 0, %s83
      %s101 = sphi 0, %s101
      %s103 = sphi 0, %s101
      %s104 = sphi 0, %s103
      %s118 = sphi 0, %s104
      %s122 = sphi 0, %s122
      %s124 = sphi 0, %s122
      %s125 = sphi 0, %s124
      %s139 = sphi 0, %s125
      %s143 = sphi 0, %s143
      %s145 = sphi 0, %s143
      %s146 = sphi 0, %s145
      %s160 = sphi 0, %s146
      %s164 = sphi 0, %s164
      %s166 = sphi 0, %s164
      %s167 = sphi 0, %s166
      %s181 = sphi 0, %s167
      %s185 = sphi 0, %s185
      %s187 = sphi 0, %s185
      %s188 = sphi 0, %s187
      %s202 = sphi 0, %s188
      %s206 = sphi 0, %s206
      %s208 = sphi 0, %s206
      %s209 = sphi 0, %s208
      %s223 = sphi 0, %s209
      %s227 = sphi 0, %s227
      %s229 = sphi 0, %s227
      %s230 = sphi 0, %s229
      %s244 = sphi 0, %s230
      %s252 = sphi 0, %s254
      %s255 = sphi 0, %s252
      %s256 = sphi 0, %s255
      %s272 = sphi 0, %s256
    $region4: #{tpu_custom_call.1} parent=1 // loop_header_branch
      %24 = sbr.rel (%p22) target = $region8
    $region5: #{tpu_custom_call.1} parent=1 // loop_body
      %s26 = ssub.s32 %s21, 1
      %s27 = ssub.s32 %s21, 2
      %s37 = sadd.s32 1, %s30
      %p38 = scmp.ge.s32.totalorder %s37, 2
      %s39 = scalar_select %p38, 0, %s37
      %s40 = sadd.s32 1, %s29
      %s41 = scalar_select %p38, %s40, %s29
      %p42 = scmp.ge.s32.totalorder %s41, 1
      %s43 = scalar_select %p42, 0, %s41
      %s44 = sadd.s32 1, %s28
      %s45 = scalar_select %p42, %s44, %s28
      %p46 = scmp.ge.s32.totalorder %s45, 2
      %s47 = scalar_select %p46, 0, %s45
      %s48 = smul.u32 %s29, 2
      %s49 = sadd.s32 %s48, %s30
      %s50 = smul.u32 %s43, 2
      %s51 = sadd.s32 %s50, %s39
      %s52 = ssub.s32 %s28, %s47
      %s53 = ssub.s32 %s49, %s51
      %s54 = sor.u32 %s52, %s53
      %p55 = scmp.eq.s32.totalorder %s54, 0
      %s57 = sadd.s32 %s56, 1
      %s58 = scalar_select %p55, %s56, %s57
      %p61 = pneg %p55
      %p62 = scmp.eq.s32.totalorder %s21, 3
      %p63 = por %p61, %p62
      %p64 = scmp.ne.s32.totalorder %s56, %s59
      %p65 = scmp.eq.s32.totalorder %s21, 0
      %p66 = por %p64, %p65
      %p67 = scmp.ne.s32.totalorder %s56, %s59
      %p68 = scmp.eq.s32.totalorder %s26, 3
      %p69 = por %p67, %p68
      %p70 = scmp.ne.s32.totalorder %s59, %s60
      %p71 = scmp.eq.s32.totalorder %s26, 0
      %p72 = por %p70, %p71
      %p73 = scmp.ne.s32.totalorder %s59, %s60
      %p74 = scmp.eq.s32.totalorder %s27, 3
      %p75 = por %p73, %p74
      %p77 = scmp.ne.s32.totalorder %s60, %s76
      %p78 = scmp.eq.s32.totalorder %s27, 0
      %p79 = por %p77, %p78
      %s81 = sadd.s32 %s80, 1
      %p84 = scmp.eq.s32.totalorder %s21, 3
      %p85 = scmp.ne.s32.totalorder %s80, %s82
      %p86 = scmp.eq.s32.totalorder %s21, 0
      %p87 = por %p85, %p86
      %p88 = scmp.ne.s32.totalorder %s80, %s82
      %p89 = scmp.eq.s32.totalorder %s26, 3
      %p90 = por %p88, %p89
      %p91 = scmp.ne.s32.totalorder %s82, %s83
      %p92 = scmp.eq.s32.totalorder %s26, 0
      %p93 = por %p91, %p92
      %p94 = scmp.ne.s32.totalorder %s82, %s83
      %p95 = scmp.eq.s32.totalorder %s27, 3
      %p96 = por %p94, %p95
      %p98 = scmp.ne.s32.totalorder %s83, %s97
      %p99 = scmp.eq.s32.totalorder %s27, 0
      %p100 = por %p98, %p99
      %s102 = sadd.s32 %s101, 1
      %p105 = scmp.eq.s32.totalorder %s21, 3
      %p106 = scmp.ne.s32.totalorder %s101, %s103
      %p107 = scmp.eq.s32.totalorder %s21, 0
      %p108 = por %p106, %p107
      %p109 = scmp.ne.s32.totalorder %s101, %s103
      %p110 = scmp.eq.s32.totalorder %s26, 3
      %p111 = por %p109, %p110
      %p112 = scmp.ne.s32.totalorder %s103, %s104
      %p113 = scmp.eq.s32.totalorder %s26, 0
      %p114 = por %p112, %p113
      %p115 = scmp.ne.s32.totalorder %s103, %s104
      %p116 = scmp.eq.s32.totalorder %s27, 3
      %p117 = por %p115, %p116
      %p119 = scmp.ne.s32.totalorder %s104, %s118
      %p120 = scmp.eq.s32.totalorder %s27, 0
      %p121 = por %p119, %p120
      %s123 = sadd.s32 %s122, 1
      %p126 = scmp.eq.s32.totalorder %s21, 3
      %p127 = scmp.ne.s32.totalorder %s122, %s124
      %p128 = scmp.eq.s32.totalorder %s21, 0
      %p129 = por %p127, %p128
      %p130 = scmp.ne.s32.totalorder %s122, %s124
      %p131 = scmp.eq.s32.totalorder %s26, 3
      %p132 = por %p130, %p131
      %p133 = scmp.ne.s32.totalorder %s124, %s125
      %p134 = scmp.eq.s32.totalorder %s26, 0
      %p135 = por %p133, %p134
      %p136 = scmp.ne.s32.totalorder %s124, %s125
      %p137 = scmp.eq.s32.totalorder %s27, 3
      %p138 = por %p136, %p137
      %p140 = scmp.ne.s32.totalorder %s125, %s139
      %p141 = scmp.eq.s32.totalorder %s27, 0
      %p142 = por %p140, %p141
      %s144 = sadd.s32 %s143, 1
      %p147 = scmp.eq.s32.totalorder %s21, 3
      %p148 = scmp.ne.s32.totalorder %s143, %s145
      %p149 = scmp.eq.s32.totalorder %s21, 0
      %p150 = por %p148, %p149
      %p151 = scmp.ne.s32.totalorder %s143, %s145
      %p152 = scmp.eq.s32.totalorder %s26, 3
      %p153 = por %p151, %p152
      %p154 = scmp.ne.s32.totalorder %s145, %s146
      %p155 = scmp.eq.s32.totalorder %s26, 0
      %p156 = por %p154, %p155
      %p157 = scmp.ne.s32.totalorder %s145, %s146
      %p158 = scmp.eq.s32.totalorder %s27, 3
      %p159 = por %p157, %p158
      %p161 = scmp.ne.s32.totalorder %s146, %s160
      %p162 = scmp.eq.s32.totalorder %s27, 0
      %p163 = por %p161, %p162
      %s165 = sadd.s32 %s164, 1
      %p168 = scmp.eq.s32.totalorder %s21, 3
      %p169 = scmp.ne.s32.totalorder %s164, %s166
      %p170 = scmp.eq.s32.totalorder %s21, 0
      %p171 = por %p169, %p170
      %p172 = scmp.ne.s32.totalorder %s164, %s166
      %p173 = scmp.eq.s32.totalorder %s26, 3
      %p174 = por %p172, %p173
      %p175 = scmp.ne.s32.totalorder %s166, %s167
      %p176 = scmp.eq.s32.totalorder %s26, 0
      %p177 = por %p175, %p176
      %p178 = scmp.ne.s32.totalorder %s166, %s167
      %p179 = scmp.eq.s32.totalorder %s27, 3
      %p180 = por %p178, %p179
      %p182 = scmp.ne.s32.totalorder %s167, %s181
      %p183 = scmp.eq.s32.totalorder %s27, 0
      %p184 = por %p182, %p183
      %s186 = sadd.s32 %s185, 1
      %p189 = scmp.eq.s32.totalorder %s21, 3
      %p190 = scmp.ne.s32.totalorder %s185, %s187
      %p191 = scmp.eq.s32.totalorder %s21, 0
      %p192 = por %p190, %p191
      %p193 = scmp.ne.s32.totalorder %s185, %s187
      %p194 = scmp.eq.s32.totalorder %s26, 3
      %p195 = por %p193, %p194
      %p196 = scmp.ne.s32.totalorder %s187, %s188
      %p197 = scmp.eq.s32.totalorder %s26, 0
      %p198 = por %p196, %p197
      %p199 = scmp.ne.s32.totalorder %s187, %s188
      %p200 = scmp.eq.s32.totalorder %s27, 3
      %p201 = por %p199, %p200
      %p203 = scmp.ne.s32.totalorder %s188, %s202
      %p204 = scmp.eq.s32.totalorder %s27, 0
      %p205 = por %p203, %p204
      %s207 = sadd.s32 %s206, 1
      %p210 = scmp.eq.s32.totalorder %s21, 3
      %p211 = scmp.ne.s32.totalorder %s206, %s208
      %p212 = scmp.eq.s32.totalorder %s21, 0
      %p213 = por %p211, %p212
      %p214 = scmp.ne.s32.totalorder %s206, %s208
      %p215 = scmp.eq.s32.totalorder %s26, 3
      %p216 = por %p214, %p215
      %p217 = scmp.ne.s32.totalorder %s208, %s209
      %p218 = scmp.eq.s32.totalorder %s26, 0
      %p219 = por %p217, %p218
      %p220 = scmp.ne.s32.totalorder %s208, %s209
      %p221 = scmp.eq.s32.totalorder %s27, 3
      %p222 = por %p220, %p221
      %p224 = scmp.ne.s32.totalorder %s209, %s223
      %p225 = scmp.eq.s32.totalorder %s27, 0
      %p226 = por %p224, %p225
      %s228 = sadd.s32 %s227, 1
      %p231 = scmp.eq.s32.totalorder %s21, 3
      %p232 = scmp.ne.s32.totalorder %s227, %s229
      %p233 = scmp.eq.s32.totalorder %s21, 0
      %p234 = por %p232, %p233
      %p235 = scmp.ne.s32.totalorder %s227, %s229
      %p236 = scmp.eq.s32.totalorder %s26, 3
      %p237 = por %p235, %p236
      %p238 = scmp.ne.s32.totalorder %s229, %s230
      %p239 = scmp.eq.s32.totalorder %s26, 0
      %p240 = por %p238, %p239
      %p241 = scmp.ne.s32.totalorder %s229, %s230
      %p242 = scmp.eq.s32.totalorder %s27, 3
      %p243 = por %p241, %p242
      %p245 = scmp.ne.s32.totalorder %s230, %s244
      %p246 = scmp.eq.s32.totalorder %s27, 0
      %p247 = por %p245, %p246
      %s248 = ssub.s32 %s28, %s47
      %s249 = ssub.s32 %s29, %s43
      %s250 = sor.u32 %s248, %s249
      %p251 = scmp.eq.s32.totalorder %s250, 0
      %s253 = sadd.s32 %s252, 1
      %s254 = scalar_select %p251, %s252, %s253
      %p257 = pneg %p251
      %p258 = scmp.eq.s32.totalorder %s21, 3
      %p259 = por %p257, %p258
      %p260 = scmp.ne.s32.totalorder %s252, %s255
      %p261 = scmp.eq.s32.totalorder %s21, 0
      %p262 = por %p260, %p261
      %p263 = scmp.ne.s32.totalorder %s252, %s255
      %p264 = scmp.eq.s32.totalorder %s26, 3
      %p265 = por %p263, %p264
      %p266 = scmp.ne.s32.totalorder %s255, %s256
      %p267 = scmp.eq.s32.totalorder %s26, 0
      %p268 = por %p266, %p267
      %p269 = scmp.ne.s32.totalorder %s255, %s256
      %p270 = scmp.eq.s32.totalorder %s27, 3
      %p271 = por %p269, %p270
      %p273 = scmp.ne.s32.totalorder %s256, %s272
      %p274 = scmp.eq.s32.totalorder %s27, 0
      %p275 = por %p273, %p274
      %p276 = scmp.le.s32.totalorder 1, %s21
      %p277 = scmp.lt.s32.totalorder %s21, 5
      %p278 = pnand %p276, %p277
      %p279 = pneg %p278
      // Predicated region
      $region9: #{tpu_custom_call.1} parent=5 // pred_check
        _
      $region10: #{tpu_custom_call.1} parent=5 // pred_check_branch
        %281 = sbr.rel (%p278) target = $region12
      $region11: #{tpu_custom_call.1} parent=5 // pred_region
        %s282 = ssub.s32 %s21, 1
        // Predicated region
        $region13: #{tpu_custom_call.1} parent=11 // pred_check
          %p283 = pneg %p93
        $region14: #{tpu_custom_call.1} parent=11 // pred_check_branch
          %285 = sbr.rel (%p283) target = $region16
        $region15: #{tpu_custom_call.1} parent=11 // pred_region
          _
        $region16: #{tpu_custom_call.1} parent=11 // pred_fallthru
          _
        // Predicated region
        $region17: #{tpu_custom_call.1} parent=11 // pred_check
          %p286 = pneg %p114
        $region18: #{tpu_custom_call.1} parent=11 // pred_check_branch
          %288 = sbr.rel (%p286) target = $region20
        $region19: #{tpu_custom_call.1} parent=11 // pred_region
          %s290 = ssub.s32 32, 32
          %291 = vsyncadd [#allocation3], %s290
          %s293 = sshll.u32 [#allocation2], 4
          %s294 = int_to_ptr.vmem [resolvable:$true] %s293
          %296 = dma.hbm_to_vmem [thread:$0]  %s2, 32, %s294, [#allocation3]
        $region20: #{tpu_custom_call.1} parent=11 // pred_fallthru
          _
        // Predicated region
        $region21: #{tpu_custom_call.1} parent=11 // pred_check
          %p297 = pneg %p135
        $region22: #{tpu_custom_call.1} parent=11 // pred_check_branch
          %299 = sbr.rel (%p297) target = $region24
        $region23: #{tpu_custom_call.1} parent=11 // pred_region
          %s301 = ssub.s32 3072, 3072
          %302 = vsyncadd [#allocation6], %s301
          %s303 = sshll.u32 [#allocation5], 4
          %s304 = int_to_ptr.vmem [resolvable:$true] %s303
          %309 = dma.hbm_to_vmem [thread:$0]  %s3, 3072, %s304, [#allocation6], 128, 128, 8
        $region24: #{tpu_custom_call.1} parent=11 // pred_fallthru
          _
        // Predicated region
        $region25: #{tpu_custom_call.1} parent=11 // pred_check
          %p310 = pneg %p156
        $region26: #{tpu_custom_call.1} parent=11 // pred_check_branch
          %312 = sbr.rel (%p310) target = $region28
        $region27: #{tpu_custom_call.1} parent=11 // pred_region
          %s314 = ssub.s32 32, 32
          %315 = vsyncadd [#allocation6], %s314
          %s317 = sshll.u32 [#allocation7], 4
          %s318 = int_to_ptr.vmem [resolvable:$true] %s317
          %320 = dma.hbm_to_vmem [thread:$0]  %s4, 32, %s318, [#allocation6]
        $region28: #{tpu_custom_call.1} parent=11 // pred_fallthru
          _
        // Predicated region
        $region29: #{tpu_custom_call.1} parent=11 // pred_check
          %p321 = pneg %p177
        $region30: #{tpu_custom_call.1} parent=11 // pred_check_branch
          %323 = sbr.rel (%p321) target = $region32
        $region31: #{tpu_custom_call.1} parent=11 // pred_region
          %s325 = ssub.s32 8192, 8192
          %326 = vsyncadd [#allocation9], %s325
          %s327 = sshll.u32 [#allocation8], 4
          %s328 = int_to_ptr.vmem [resolvable:$true] %s327
          %333 = dma.hbm_to_vmem [thread:$0]  %s5, 8192, %s328, [#allocation9], 256, 256, 16
        $region32: #{tpu_custom_call.1} parent=11 // pred_fallthru
          _
        // Predicated region
        $region33: #{tpu_custom_call.1} parent=11 // pred_check
          %p334 = pneg %p198
        $region34: #{tpu_custom_call.1} parent=11 // pred_check_branch
          %336 = sbr.rel (%p334) target = $region36
        $region35: #{tpu_custom_call.1} parent=11 // pred_region
          _
        $region36: #{tpu_custom_call.1} parent=11 // pred_fallthru
          _
        // Predicated region
        $region37: #{tpu_custom_call.1} parent=11 // pred_check
          %p337 = pneg %p219
        $region38: #{tpu_custom_call.1} parent=11 // pred_check_branch
          %339 = sbr.rel (%p337) target = $region40
        $region39: #{tpu_custom_call.1} parent=11 // pred_region
          _
        $region40: #{tpu_custom_call.1} parent=11 // pred_fallthru
          _
        // Predicated region
        $region41: #{tpu_custom_call.1} parent=11 // pred_check
          %p340 = pneg %p240
        $region42: #{tpu_custom_call.1} parent=11 // pred_check_branch
          %342 = sbr.rel (%p340) target = $region44
        $region43: #{tpu_custom_call.1} parent=11 // pred_region
          %s344 = ssub.s32 64, 64
          %345 = vsyncadd [#allocation9], %s344
          %s347 = sshll.u32 [#allocation10], 4
          %s348 = int_to_ptr.vmem [resolvable:$true] %s347
          %350 = dma.hbm_to_vmem [thread:$0]  %s8, 64, %s348, [#allocation9]
        $region44: #{tpu_custom_call.1} parent=11 // pred_fallthru
          _
      $region12: #{tpu_custom_call.1} parent=5 // pred_fallthru
        _
      %p351 = scmp.lt.s32.totalorder %s21, 4
      // Predicated region
      $region45: #{tpu_custom_call.1} parent=5 // pred_check
        %p352 = pneg %p351
      $region46: #{tpu_custom_call.1} parent=5 // pred_check_branch
        %354 = sbr.rel (%p352) target = $region48
      $region47: #{tpu_custom_call.1} parent=5 // pred_region
        // Predicated region
        $region49: #{tpu_custom_call.1} parent=47 // pred_check
          %p355 = pneg %p66
        $region50: #{tpu_custom_call.1} parent=47 // pred_check_branch
          %357 = sbr.rel (%p355) target = $region52
        $region51: #{tpu_custom_call.1} parent=47 // pred_region
          %s358 = smul.u32 %s29, 2
          %s359 = sadd.s32 %s358, %s30
          %s360 = smul.u32 64, %s359
          %s361 = ssub.s32 113, %s360
          %p362 = scmp.lt.s32.totalorder %s361, 64
          %s363 = scalar_select %p362, %s361, 64
          %s364 = smul.u32 64, %s363
          %p365 = scmp.lt.s32.totalorder %s28, 1
          %s366 = scalar_select %p365, %s28, 1
          %p367 = scmp.lt.s32.totalorder %s360, 112
          %s368 = scalar_select %p367, %s360, 112
          %s369 = smul.addr %s366, 113
          %s370 = sadd.s32 %s368, %s369
          %s371 = smul.addr %s370, 4
          %s372 = scalar_lea.vmem %s0, %s371
          %s373 = smul.u32 %s29, 2
          %s374 = sadd.s32 %s373, %s30
          %s375 = smul.u32 64, %s374
          %s376 = ssub.s32 113, %s375
          %p377 = scmp.lt.s32.totalorder %s376, 64
          %s378 = scalar_select %p377, %s376, 64
          %s379 = smul.u32 64, %s378
        $region52: #{tpu_custom_call.1} parent=47 // pred_fallthru
          _
      $region48: #{tpu_custom_call.1} parent=5 // pred_fallthru
        _
      %p380 = scmp.le.s32.totalorder 1, %s21
      %p381 = scmp.lt.s32.totalorder %s21, 5
      %p382 = pnand %p380, %p381
      %p383 = pneg %p382
      // Predicated region
      $region53: #{tpu_custom_call.1} parent=5 // pred_check
        _
      $region54: #{tpu_custom_call.1} parent=5 // pred_check_branch
        %385 = sbr.rel (%p382) target = $region56
      $region55: #{tpu_custom_call.1} parent=5 // pred_region
        %s386 = ssub.s32 %s21, 1
        // Predicated region
        $region57: #{tpu_custom_call.1} parent=55 // pred_check
          %p387 = pneg %p114
        $region58: #{tpu_custom_call.1} parent=55 // pred_check_branch
          %389 = sbr.rel (%p387) target = $region60
        $region59: #{tpu_custom_call.1} parent=55 // pred_region
          %390 = dma.done [#allocation3], 32
        $region60: #{tpu_custom_call.1} parent=55 // pred_fallthru
          _
        // Predicated region
        $region61: #{tpu_custom_call.1} parent=55 // pred_check
          %p391 = pneg %p135
        $region62: #{tpu_custom_call.1} parent=55 // pred_check_branch
          %393 = sbr.rel (%p391) target = $region64
        $region63: #{tpu_custom_call.1} parent=55 // pred_region
          %394 = dma.done [#allocation6], 3072
        $region64: #{tpu_custom_call.1} parent=55 // pred_fallthru
          _
        // Predicated region
        $region65: #{tpu_custom_call.1} parent=55 // pred_check
          %p395 = pneg %p156
        $region66: #{tpu_custom_call.1} parent=55 // pred_check_branch
          %397 = sbr.rel (%p395) target = $region68
        $region67: #{tpu_custom_call.1} parent=55 // pred_region
          %398 = dma.done [#allocation6], 32
        $region68: #{tpu_custom_call.1} parent=55 // pred_fallthru
          _
        // Predicated region
        $region69: #{tpu_custom_call.1} parent=55 // pred_check
          %p399 = pneg %p177
        $region70: #{tpu_custom_call.1} parent=55 // pred_check_branch
          %401 = sbr.rel (%p399) target = $region72
        $region71: #{tpu_custom_call.1} parent=55 // pred_region
          %402 = dma.done [#allocation9], 8192
        $region72: #{tpu_custom_call.1} parent=55 // pred_fallthru
          _
        // Predicated region
        $region73: #{tpu_custom_call.1} parent=55 // pred_check
          %p403 = pneg %p240
        $region74: #{tpu_custom_call.1} parent=55 // pred_check_branch
          %405 = sbr.rel (%p403) target = $region76
        $region75: #{tpu_custom_call.1} parent=55 // pred_region
          %406 = dma.done [#allocation9], 64
        $region76: #{tpu_custom_call.1} parent=55 // pred_fallthru
          _
        %s407 = smul.u32 %s32, 2
        %s408 = sadd.s32 %s407, %s33
        %s409 = smul.u32 64, %s408
        %s410 = ssub.s32 113, %s409
        %p411 = scmp.lt.s32.totalorder %s410, 64
        %s412 = scalar_select %p411, %s410, 64
        %s413 = smul.u32 64, %s412
        %p414 = scmp.lt.s32.totalorder %s31, 1
        %s415 = scalar_select %p414, %s31, 1
        %p416 = scmp.lt.s32.totalorder %s409, 112
        %s417 = scalar_select %p416, %s409, 112
        %s418 = smul.addr %s415, 113
        %s419 = sadd.s32 %s417, %s418
        %s420 = smul.addr %s419, 4
        %s421 = scalar_lea.vmem %s0, %s420
        %p422 = pneg %p72
        %p423 = pneg %p69
        %p424 = pneg %p93
        %p425 = pneg %p90
        %p426 = pneg %p114
        %p427 = pneg %p111
        %p428 = pneg %p135
        %p429 = pneg %p132
        %p430 = pneg %p156
        %p431 = pneg %p153
        %p432 = pneg %p177
        %p433 = pneg %p174
        %p434 = pneg %p198
        %p435 = pneg %p195
        %p436 = pneg %p219
        %p437 = pneg %p216
        %p438 = pneg %p240
        %p439 = pneg %p237
        %p440 = pneg %p268
        %p441 = pneg %p265
        %s442 = sand.u32 %s255, 1
        %s443 = scalar_lea.sflag [#allocation4], %s442
        %s444 = sand.u32 %s255, 1
        %s445 = smul.addr %s444, 32
        %s446 = scalar_lea.vmem [#allocation11], %s445
        %s447 = smul.u32 %s32, 2
        %s448 = sadd.s32 %s447, %s33
        %s449 = smul.u32 64, %s448
        %s450 = ssub.s32 113, %s449
        %p451 = scmp.lt.s32.totalorder %s450, 64
        %s452 = scalar_select %p451, %s450, 64
        %s453 = smul.u32 64, %s452
        %p454 = scmp.lt.s32.totalorder %s31, 1
        %s455 = scalar_select %p454, %s31, 1
        %p456 = scmp.lt.s32.totalorder %s449, 112
        %s457 = scalar_select %p456, %s449, 112
        %s458 = smul.addr %s455, 113
        %s459 = sadd.s32 %s457, %s458
        %s460 = smul.addr %s459, 4
        %s461 = scalar_lea.vmem %s0, %s460
        %s462 = smul.u32 %s32, 2
        %s463 = sadd.s32 %s462, %s33
        %s464 = smul.u32 64, %s463
        %s465 = ssub.s32 113, %s464
        %p466 = scmp.lt.s32.totalorder %s465, 64
        %s467 = scalar_select %p466, %s465, 64
        %s468 = smul.u32 64, %s467
        %p470 = scmp.eq.s32.totalorder %s33, 0
        // Predicated region
        $region77: #{tpu_custom_call.1} parent=55 // pred_check
          %p471 = pneg %p470
        $region78: #{tpu_custom_call.1} parent=55 // pred_check_branch
          %473 = sbr.rel (%p471) target = $region80
        $region79: #{tpu_custom_call.1} parent=55 // pred_region
          %474 = vst [vmem:[%s446] sm:$0xff] -inf
          %475 = vst [vmem:[%s446 + $0x8] sm:$0xff] -inf
          %476 = vst [vmem:[%s446 + $0x10] sm:$0xff] -inf
          %477 = vst [vmem:[%s446 + $0x18] sm:$0xff] -inf
        $region80: #{tpu_custom_call.1} parent=55 // pred_fallthru
          _
        %v478 = vld [vmem:[%s461] sm:$0xf]
        %v479 = vld [vmem:[%s461 + $0x4] sm:$0xf]
        %v480 = vld [vmem:[%s461 + $0x8] sm:$0xf]
        %v481 = vld [vmem:[%s461 + $0xc] sm:$0xf]
        %v482 = vld [vmem:[%s461 + $0x10] sm:$0xf]
        %v483 = vld [vmem:[%s461 + $0x14] sm:$0xf]
        %v484 = vld [vmem:[%s461 + $0x18] sm:$0xf]
        %v485 = vld [vmem:[%s461 + $0x1c] sm:$0xf]
        %v486 = vld [vmem:[%s461 + $0x20] sm:$0xf]
        %v487 = vld [vmem:[%s461 + $0x24] sm:$0xf]
        %v488 = vld [vmem:[%s461 + $0x28] sm:$0xf]
        %v489 = vld [vmem:[%s461 + $0x2c] sm:$0xf]
        %v490 = vld [vmem:[%s461 + $0x30] sm:$0xf]
        %v491 = vld [vmem:[%s461 + $0x34] sm:$0xf]
        %v492 = vld [vmem:[%s461 + $0x38] sm:$0xf]
        %v493 = vld [vmem:[%s461 + $0x3c] sm:$0xf]
        %v494 = vld [vmem:[%s461 + $0x40] sm:$0xf]
        %v495 = vld [vmem:[%s461 + $0x44] sm:$0xf]
        %v496 = vld [vmem:[%s461 + $0x48] sm:$0xf]
        %v497 = vld [vmem:[%s461 + $0x4c] sm:$0xf]
        %v498 = vld [vmem:[%s461 + $0x50] sm:$0xf]
        %v499 = vld [vmem:[%s461 + $0x54] sm:$0xf]
        %v500 = vld [vmem:[%s461 + $0x58] sm:$0xf]
        %v501 = vld [vmem:[%s461 + $0x5c] sm:$0xf]
        %v502 = vld [vmem:[%s461 + $0x60] sm:$0xf]
        %v503 = vld [vmem:[%s461 + $0x64] sm:$0xf]
        %v504 = vld [vmem:[%s461 + $0x68] sm:$0xf]
        %v505 = vld [vmem:[%s461 + $0x6c] sm:$0xf]
        %v506 = vld [vmem:[%s461 + $0x70] sm:$0xf]
        %v507 = vld [vmem:[%s461 + $0x74] sm:$0xf]
        %v508 = vld [vmem:[%s461 + $0x78] sm:$0xf]
        %v509 = vld [vmem:[%s461 + $0x7c] sm:$0xf]
        %v510 = vld [vmem:[%s461 + $0x80] sm:$0xf]
        %v511 = vld [vmem:[%s461 + $0x84] sm:$0xf]
        %v512 = vld [vmem:[%s461 + $0x88] sm:$0xf]
        %v513 = vld [vmem:[%s461 + $0x8c] sm:$0xf]
        %v514 = vld [vmem:[%s461 + $0x90] sm:$0xf]
        %v515 = vld [vmem:[%s461 + $0x94] sm:$0xf]
        %v516 = vld [vmem:[%s461 + $0x98] sm:$0xf]
        %v517 = vld [vmem:[%s461 + $0x9c] sm:$0xf]
        %v518 = vld [vmem:[%s461 + $0xa0] sm:$0xf]
        %v519 = vld [vmem:[%s461 + $0xa4] sm:$0xf]
        %v520 = vld [vmem:[%s461 + $0xa8] sm:$0xf]
        %v521 = vld [vmem:[%s461 + $0xac] sm:$0xf]
        %v522 = vld [vmem:[%s461 + $0xb0] sm:$0xf]
        %v523 = vld [vmem:[%s461 + $0xb4] sm:$0xf]
        %v524 = vld [vmem:[%s461 + $0xb8] sm:$0xf]
        %v525 = vld [vmem:[%s461 + $0xbc] sm:$0xf]
        %v526 = vld [vmem:[%s461 + $0xc0] sm:$0xf]
        %v527 = vld [vmem:[%s461 + $0xc4] sm:$0xf]
        %v528 = vld [vmem:[%s461 + $0xc8] sm:$0xf]
        %v529 = vld [vmem:[%s461 + $0xcc] sm:$0xf]
        %v530 = vld [vmem:[%s461 + $0xd0] sm:$0xf]
        %v531 = vld [vmem:[%s461 + $0xd4] sm:$0xf]
        %v532 = vld [vmem:[%s461 + $0xd8] sm:$0xf]
        %v533 = vld [vmem:[%s461 + $0xdc] sm:$0xf]
        %v534 = vld [vmem:[%s461 + $0xe0] sm:$0xf]
        %v535 = vld [vmem:[%s461 + $0xe4] sm:$0xf]
        %v536 = vld [vmem:[%s461 + $0xe8] sm:$0xf]
        %v537 = vld [vmem:[%s461 + $0xec] sm:$0xf]
        %v538 = vld [vmem:[%s461 + $0xf0] sm:$0xf]
        %v539 = vld [vmem:[%s461 + $0xf4] sm:$0xf]
        %v540 = vld [vmem:[%s461 + $0xf8] sm:$0xf]
        %v541 = vld [vmem:[%s461 + $0xfc] sm:$0xf]
        %v542 = vld [vmem:[%s1] sm:$0xff]
        %v543 = vld [vmem:[%s1 + $0x8] sm:$0xff]
        %v544 = vld [vmem:[%s1 + $0x10] sm:$0x11]
        %v609 = vunpack.c.l.b16 %v478
        %v610 = vunpack.c.l.b16 %v479
        %v611 = vunpack.c.l.b16 %v480
        %v612 = vunpack.c.l.b16 %v481
        %v613 = vunpack.c.l.b16 %v482
        %v614 = vunpack.c.l.b16 %v483
        %v615 = vunpack.c.l.b16 %v484
        %v616 = vunpack.c.l.b16 %v485
        %v617 = vunpack.c.l.b16 %v486
        %v618 = vunpack.c.l.b16 %v487
        %v619 = vunpack.c.l.b16 %v488
        %v620 = vunpack.c.l.b16 %v489
        %v621 = vunpack.c.l.b16 %v490
        %v622 = vunpack.c.l.b16 %v491
        %v623 = vunpack.c.l.b16 %v492
        %v624 = vunpack.c.l.b16 %v493
        %v625 = vunpack.c.l.b16 %v494
        %v626 = vunpack.c.l.b16 %v495
        %v627 = vunpack.c.l.b16 %v496
        %v628 = vunpack.c.l.b16 %v497
        %v629 = vunpack.c.l.b16 %v498
        %v630 = vunpack.c.l.b16 %v499
        %v631 = vunpack.c.l.b16 %v500
        %v632 = vunpack.c.l.b16 %v501
        %v633 = vunpack.c.l.b16 %v502
        %v634 = vunpack.c.l.b16 %v503
        %v635 = vunpack.c.l.b16 %v504
        %v636 = vunpack.c.l.b16 %v505
        %v637 = vunpack.c.l.b16 %v506
        %v638 = vunpack.c.l.b16 %v507
        %v639 = vunpack.c.l.b16 %v508
        %v640 = vunpack.c.l.b16 %v509
        %v641 = vunpack.c.l.b16 %v510
        %v642 = vunpack.c.l.b16 %v511
        %v643 = vunpack.c.l.b16 %v512
        %v644 = vunpack.c.l.b16 %v513
        %v645 = vunpack.c.l.b16 %v514
        %v646 = vunpack.c.l.b16 %v515
        %v647 = vunpack.c.l.b16 %v516
        %v648 = vunpack.c.l.b16 %v517
        %v649 = vunpack.c.l.b16 %v518
        %v650 = vunpack.c.l.b16 %v519
        %v651 = vunpack.c.l.b16 %v520
        %v652 = vunpack.c.l.b16 %v521
        %v653 = vunpack.c.l.b16 %v522
        %v654 = vunpack.c.l.b16 %v523
        %v655 = vunpack.c.l.b16 %v524
        %v656 = vunpack.c.l.b16 %v525
        %v657 = vunpack.c.l.b16 %v526
        %v658 = vunpack.c.l.b16 %v527
        %v659 = vunpack.c.l.b16 %v528
        %v660 = vunpack.c.l.b16 %v529
        %v661 = vunpack.c.l.b16 %v530
        %v662 = vunpack.c.l.b16 %v531
        %v663 = vunpack.c.l.b16 %v532
        %v664 = vunpack.c.l.b16 %v533
        %v665 = vunpack.c.l.b16 %v534
        %v666 = vunpack.c.l.b16 %v535
        %v667 = vunpack.c.l.b16 %v536
        %v668 = vunpack.c.l.b16 %v537
        %v669 = vunpack.c.l.b16 %v538
        %v670 = vunpack.c.l.b16 %v539
        %v671 = vunpack.c.l.b16 %v540
        %v672 = vunpack.c.l.b16 %v541
        %v673 = vpack.c.b16 %v610, %v609
        %v674 = vpack.c.b16 %v612, %v611
        %v675 = vpack.c.b16 %v614, %v613
        %v676 = vpack.c.b16 %v616, %v615
        %v677 = vpack.c.b16 %v618, %v617
        %v678 = vpack.c.b16 %v620, %v619
        %v679 = vpack.c.b16 %v622, %v621
        %v680 = vpack.c.b16 %v624, %v623
        %v681 = vpack.c.b16 %v626, %v625
        %v682 = vpack.c.b16 %v628, %v627
        %v683 = vpack.c.b16 %v630, %v629
        %v684 = vpack.c.b16 %v632, %v631
        %v685 = vpack.c.b16 %v634, %v633
        %v686 = vpack.c.b16 %v636, %v635
        %v687 = vpack.c.b16 %v638, %v637
        %v688 = vpack.c.b16 %v640, %v639
        %v689 = vpack.c.b16 %v642, %v641
        %v690 = vpack.c.b16 %v644, %v643
        %v691 = vpack.c.b16 %v646, %v645
        %v692 = vpack.c.b16 %v648, %v647
        %v693 = vpack.c.b16 %v650, %v649
        %v694 = vpack.c.b16 %v652, %v651
        %v695 = vpack.c.b16 %v654, %v653
        %v696 = vpack.c.b16 %v656, %v655
        %v697 = vpack.c.b16 %v658, %v657
        %v698 = vpack.c.b16 %v660, %v659
        %v699 = vpack.c.b16 %v662, %v661
        %v700 = vpack.c.b16 %v664, %v663
        %v701 = vpack.c.b16 %v666, %v665
        %v702 = vpack.c.b16 %v668, %v667
        %v703 = vpack.c.b16 %v670, %v669
        %v704 = vpack.c.b16 %v672, %v671
        %v708 = vunpack.c.l.b16 %v542
        %v709 = vunpack.c.h.b16 %v542
        %v710 = vunpack.c.l.b16 %v543
        %v711 = vunpack.c.h.b16 %v543
        %v712 = vunpack.c.l.b16 %v544
        %v713 = vunpack.c.h.b16 %v544
        %v714 = vpack.c.b16 %v710, %v708
        %v715 = vpack.c.b16 %v711, %v709
        %v716 = vpack.c.b16 %v712, %v712
        %v717 = vpack.c.b16 %v713, %v713
        %vm720 = vcmask 138240
        %v722 = vsel %vm720, %v673, 0
        %v725 = vsel %vm720, %v674, 0
        %v728 = vsel %vm720, %v675, 0
        %v731 = vsel %vm720, %v676, 0
        %v734 = vsel %vm720, %v677, 0
        %v737 = vsel %vm720, %v678, 0
        %v740 = vsel %vm720, %v679, 0
        %v743 = vsel %vm720, %v680, 0
        %v746 = vsel %vm720, %v681, 0
        %v749 = vsel %vm720, %v682, 0
        %v752 = vsel %vm720, %v683, 0
        %v755 = vsel %vm720, %v684, 0
        %v758 = vsel %vm720, %v685, 0
        %v761 = vsel %vm720, %v686, 0
        %v764 = vsel %vm720, %v687, 0
        %v767 = vsel %vm720, %v688, 0
        %v770 = vsel %vm720, %v689, 0
        %v773 = vsel %vm720, %v690, 0
        %v776 = vsel %vm720, %v691, 0
        %v779 = vsel %vm720, %v692, 0
        %v782 = vsel %vm720, %v693, 0
        %v785 = vsel %vm720, %v694, 0
        %v788 = vsel %vm720, %v695, 0
        %v791 = vsel %vm720, %v696, 0
        %v794 = vsel %vm720, %v697, 0
        %v797 = vsel %vm720, %v698, 0
        %v800 = vsel %vm720, %v699, 0
        %v803 = vsel %vm720, %v700, 0
        %v806 = vsel %vm720, %v701, 0
        %v809 = vsel %vm720, %v702, 0
        %v812 = vsel %vm720, %v703, 0
        %v815 = vsel %vm720, %v704, 0
        %vm817 = vcmask 1040384
        %v818 = vsel 0, 4294967295, 65535
        %v819 = vsel %vm817, %v818, 0
        %v821 = vand.u32 %v716, %v819
        %v824 = vand.u32 %v717, %v819
        %826 = vmatprep.subr.bf16.mxu0 0
        %827 = vmatpush1.bf16.msra.mxu0 0
        %828 = vmatprep.subr.bf16.mxu0 0
        %829 = vmatpush1.bf16.msra.mxu0 0
        %830 = vmatprep.subr.bf16.mxu0 0
        %831 = vmatpush1.bf16.msra.mxu0 0
        %832 = vmatprep.subr.bf16.mxu0 0
        %833 = vmatpush1.bf16.msra.mxu0 0
        %834 = vmatprep.subr.bf16.mxu0 0
        %835 = vmatpush1.bf16.msra.mxu0 0
        %836 = vmatprep.subr.bf16.mxu0 0
        %837 = vmatpush1.bf16.msra.mxu0 0
        %838 = vmatprep.subr.bf16.mxu0 %v824
        %839 = vmatpush1.bf16.msra.mxu0 %v821
        %840 = vmatprep.subr.bf16.mxu0 %v715
        %841 = vmatpush1.bf16.msra.mxu0 %v714
        %842 = vmatprep.subr.bf16.mxu0 0
        %843 = vmatpush2.bf16.msra.mxu0 0
        %844 = vmatprep.subr.bf16.mxu0 0
        %845 = vmatpush2.bf16.msra.mxu0 0
        %846 = vmatprep.subr.bf16.mxu0 0
        %847 = vmatpush2.bf16.msra.mxu0 0
        %848 = vmatprep.subr.bf16.mxu0 0
        %849 = vmatpush2.bf16.msra.mxu0 0
        %850 = vmatprep.subr.bf16.mxu0 0
        %851 = vmatpush2.bf16.msra.mxu0 0
        %852 = vmatprep.subr.bf16.mxu0 0
        %853 = vmatpush2.bf16.msra.mxu0 0
        %854 = vmatprep.subr.bf16.mxu0 0
        %855 = vmatpush2.bf16.msra.mxu0 0
        %856 = vmatprep.subr.bf16.mxu0 0
        %857 = vmatpush2.bf16.msra.mxu0 0
        %858 = vmatprep.mubr.bf16.mxu0 0
        %859 = vmatmul.mubr.bf16.gmra.mxu0 %v722
        %v860 = vpop.f32.mrf.mxu0
        %v861 = vadd.f32 0.0, %v860
        %v862 = vpop.f32.mrf.mxu0
        %v863 = vadd.f32 0.0, %v862
        %v864 = vpop.f32.mrf.mxu0
        %v865 = vadd.f32 0.0, %v864
        %v866 = vpop.f32.mrf.mxu0
        %v867 = vadd.f32 0.0, %v866
        %868 = vmatprep.mubr.bf16.mxu0 0
        %869 = vmatmul.mubr.bf16.gmra.mxu0 %v725
        %v870 = vpop.f32.mrf.mxu0
        %v871 = vadd.f32 0.0, %v870
        %v872 = vpop.f32.mrf.mxu0
        %v873 = vadd.f32 0.0, %v872
        %v874 = vpop.f32.mrf.mxu0
        %v875 = vadd.f32 0.0, %v874
        %v876 = vpop.f32.mrf.mxu0
        %v877 = vadd.f32 0.0, %v876
        %878 = vmatprep.mubr.bf16.mxu0 0
        %879 = vmatmul.mubr.bf16.gmra.mxu0 %v728
        %v880 = vpop.f32.mrf.mxu0
        %v881 = vadd.f32 0.0, %v880
        %v882 = vpop.f32.mrf.mxu0
        %v883 = vadd.f32 0.0, %v882
        %v884 = vpop.f32.mrf.mxu0
        %v885 = vadd.f32 0.0, %v884
        %v886 = vpop.f32.mrf.mxu0
        %v887 = vadd.f32 0.0, %v886
        %888 = vmatprep.mubr.bf16.mxu0 0
        %889 = vmatmul.mubr.bf16.gmra.mxu0 %v731
        %v890 = vpop.f32.mrf.mxu0
        %v891 = vadd.f32 0.0, %v890
        %v892 = vpop.f32.mrf.mxu0
        %v893 = vadd.f32 0.0, %v892
        %v894 = vpop.f32.mrf.mxu0
        %v895 = vadd.f32 0.0, %v894
        %v896 = vpop.f32.mrf.mxu0
        %v897 = vadd.f32 0.0, %v896
        %898 = vmatprep.mubr.bf16.mxu0 0
        %899 = vmatmul.mubr.bf16.gmra.mxu0 %v734
        %v900 = vpop.f32.mrf.mxu0
        %v901 = vadd.f32 0.0, %v900
        %v902 = vpop.f32.mrf.mxu0
        %v903 = vadd.f32 0.0, %v902
        %v904 = vpop.f32.mrf.mxu0
        %v905 = vadd.f32 0.0, %v904
        %v906 = vpop.f32.mrf.mxu0
        %v907 = vadd.f32 0.0, %v906
        %908 = vmatprep.mubr.bf16.mxu0 0
        %909 = vmatmul.mubr.bf16.gmra.mxu0 %v737
        %v910 = vpop.f32.mrf.mxu0
        %v911 = vadd.f32 0.0, %v910
        %v912 = vpop.f32.mrf.mxu0
        %v913 = vadd.f32 0.0, %v912
        %v914 = vpop.f32.mrf.mxu0
        %v915 = vadd.f32 0.0, %v914
        %v916 = vpop.f32.mrf.mxu0
        %v917 = vadd.f32 0.0, %v916
        %918 = vmatprep.mubr.bf16.mxu0 0
        %919 = vmatmul.mubr.bf16.gmra.mxu0 %v740
        %v920 = vpop.f32.mrf.mxu0
        %v921 = vadd.f32 0.0, %v920
        %v922 = vpop.f32.mrf.mxu0
        %v923 = vadd.f32 0.0, %v922
        %v924 = vpop.f32.mrf.mxu0
        %v925 = vadd.f32 0.0, %v924
        %v926 = vpop.f32.mrf.mxu0
        %v927 = vadd.f32 0.0, %v926
        %928 = vmatprep.mubr.bf16.mxu0 0
        %929 = vmatmul.mubr.bf16.gmra.mxu0 %v743
        %v930 = vpop.f32.mrf.mxu0
        %v931 = vadd.f32 0.0, %v930
        %v932 = vpop.f32.mrf.mxu0
        %v933 = vadd.f32 0.0, %v932
        %v934 = vpop.f32.mrf.mxu0
        %v935 = vadd.f32 0.0, %v934
        %v936 = vpop.f32.mrf.mxu0
        %v937 = vadd.f32 0.0, %v936
        %938 = vmatprep.mubr.bf16.mxu0 0
        %939 = vmatmul.mubr.bf16.gmra.mxu0 %v746
        %v940 = vpop.f32.mrf.mxu0
        %v941 = vadd.f32 0.0, %v940
        %v942 = vpop.f32.mrf.mxu0
        %v943 = vadd.f32 0.0, %v942
        %v944 = vpop.f32.mrf.mxu0
        %v945 = vadd.f32 0.0, %v944
        %v946 = vpop.f32.mrf.mxu0
        %v947 = vadd.f32 0.0, %v946
        %948 = vmatprep.mubr.bf16.mxu0 0
        %949 = vmatmul.mubr.bf16.gmra.mxu0 %v749
        %v950 = vpop.f32.mrf.mxu0
        %v951 = vadd.f32 0.0, %v950
        %v952 = vpop.f32.mrf.mxu0
        %v953 = vadd.f32 0.0, %v952
        %v954 = vpop.f32.mrf.mxu0
        %v955 = vadd.f32 0.0, %v954
        %v956 = vpop.f32.mrf.mxu0
        %v957 = vadd.f32 0.0, %v956
        %958 = vmatprep.mubr.bf16.mxu0 0
        %959 = vmatmul.mubr.bf16.gmra.mxu0 %v752
        %v960 = vpop.f32.mrf.mxu0
        %v961 = vadd.f32 0.0, %v960
        %v962 = vpop.f32.mrf.mxu0
        %v963 = vadd.f32 0.0, %v962
        %v964 = vpop.f32.mrf.mxu0
        %v965 = vadd.f32 0.0, %v964
        %v966 = vpop.f32.mrf.mxu0
        %v967 = vadd.f32 0.0, %v966
        %968 = vmatprep.mubr.bf16.mxu0 0
        %969 = vmatmul.mubr.bf16.gmra.mxu0 %v755
        %v970 = vpop.f32.mrf.mxu0
        %v971 = vadd.f32 0.0, %v970
        %v972 = vpop.f32.mrf.mxu0
        %v973 = vadd.f32 0.0, %v972
        %v974 = vpop.f32.mrf.mxu0
        %v975 = vadd.f32 0.0, %v974
        %v976 = vpop.f32.mrf.mxu0
        %v977 = vadd.f32 0.0, %v976
        %978 = vmatprep.mubr.bf16.mxu0 0
        %979 = vmatmul.mubr.bf16.gmra.mxu0 %v758
        %v980 = vpop.f32.mrf.mxu0
        %v981 = vadd.f32 0.0, %v980
        %v982 = vpop.f32.mrf.mxu0
        %v983 = vadd.f32 0.0, %v982
        %v984 = vpop.f32.mrf.mxu0
        %v985 = vadd.f32 0.0, %v984
        %v986 = vpop.f32.mrf.mxu0
        %v987 = vadd.f32 0.0, %v986
        %988 = vmatprep.mubr.bf16.mxu0 0
        %989 = vmatmul.mubr.bf16.gmra.mxu0 %v761
        %v990 = vpop.f32.mrf.mxu0
        %v991 = vadd.f32 0.0, %v990
        %v992 = vpop.f32.mrf.mxu0
        %v993 = vadd.f32 0.0, %v992
        %v994 = vpop.f32.mrf.mxu0
        %v995 = vadd.f32 0.0, %v994
        %v996 = vpop.f32.mrf.mxu0
        %v997 = vadd.f32 0.0, %v996
        %998 = vmatprep.mubr.bf16.mxu0 0
        %999 = vmatmul.mubr.bf16.gmra.mxu0 %v764
        %v1000 = vpop.f32.mrf.mxu0
        %v1001 = vadd.f32 0.0, %v1000
        %v1002 = vpop.f32.mrf.mxu0
        %v1003 = vadd.f32 0.0, %v1002
        %v1004 = vpop.f32.mrf.mxu0
        %v1005 = vadd.f32 0.0, %v1004
        %v1006 = vpop.f32.mrf.mxu0
        %v1007 = vadd.f32 0.0, %v1006
        %1008 = vmatprep.mubr.bf16.mxu0 0
        %1009 = vmatmul.mubr.bf16.gmra.mxu0 %v767
        %v1010 = vpop.f32.mrf.mxu0
        %v1011 = vadd.f32 0.0, %v1010
        %v1012 = vpop.f32.mrf.mxu0
        %v1013 = vadd.f32 0.0, %v1012
        %v1014 = vpop.f32.mrf.mxu0
        %v1015 = vadd.f32 0.0, %v1014
        %v1016 = vpop.f32.mrf.mxu0
        %v1017 = vadd.f32 0.0, %v1016
        %1018 = vmatprep.mubr.bf16.mxu0 0
        %1019 = vmatmul.mubr.bf16.gmra.mxu0 %v770
        %v1020 = vpop.f32.mrf.mxu0
        %v1021 = vadd.f32 0.0, %v1020
        %v1022 = vpop.f32.mrf.mxu0
        %v1023 = vadd.f32 0.0, %v1022
        %v1024 = vpop.f32.mrf.mxu0
        %v1025 = vadd.f32 0.0, %v1024
        %v1026 = vpop.f32.mrf.mxu0
        %v1027 = vadd.f32 0.0, %v1026
        %1028 = vmatprep.mubr.bf16.mxu0 0
        %1029 = vmatmul.mubr.bf16.gmra.mxu0 %v773
        %v1030 = vpop.f32.mrf.mxu0
        %v1031 = vadd.f32 0.0, %v1030
        %v1032 = vpop.f32.mrf.mxu0
        %v1033 = vadd.f32 0.0, %v1032
        %v1034 = vpop.f32.mrf.mxu0
        %v1035 = vadd.f32 0.0, %v1034
        %v1036 = vpop.f32.mrf.mxu0
        %v1037 = vadd.f32 0.0, %v1036
        %1038 = vmatprep.mubr.bf16.mxu0 0
        %1039 = vmatmul.mubr.bf16.gmra.mxu0 %v776
        %v1040 = vpop.f32.mrf.mxu0
        %v1041 = vadd.f32 0.0, %v1040
        %v1042 = vpop.f32.mrf.mxu0
        %v1043 = vadd.f32 0.0, %v1042
        %v1044 = vpop.f32.mrf.mxu0
        %v1045 = vadd.f32 0.0, %v1044
        %v1046 = vpop.f32.mrf.mxu0
        %v1047 = vadd.f32 0.0, %v1046
        %1048 = vmatprep.mubr.bf16.mxu0 0
        %1049 = vmatmul.mubr.bf16.gmra.mxu0 %v779
        %v1050 = vpop.f32.mrf.mxu0
        %v1051 = vadd.f32 0.0, %v1050
        %v1052 = vpop.f32.mrf.mxu0
        %v1053 = vadd.f32 0.0, %v1052
        %v1054 = vpop.f32.mrf.mxu0
        %v1055 = vadd.f32 0.0, %v1054
        %v1056 = vpop.f32.mrf.mxu0
        %v1057 = vadd.f32 0.0, %v1056
        %1058 = vmatprep.mubr.bf16.mxu0 0
        %1059 = vmatmul.mubr.bf16.gmra.mxu0 %v782
        %v1060 = vpop.f32.mrf.mxu0
        %v1061 = vadd.f32 0.0, %v1060
        %v1062 = vpop.f32.mrf.mxu0
        %v1063 = vadd.f32 0.0, %v1062
        %v1064 = vpop.f32.mrf.mxu0
        %v1065 = vadd.f32 0.0, %v1064
        %v1066 = vpop.f32.mrf.mxu0
        %v1067 = vadd.f32 0.0, %v1066
        %1068 = vmatprep.mubr.bf16.mxu0 0
        %1069 = vmatmul.mubr.bf16.gmra.mxu0 %v785
        %v1070 = vpop.f32.mrf.mxu0
        %v1071 = vadd.f32 0.0, %v1070
        %v1072 = vpop.f32.mrf.mxu0
        %v1073 = vadd.f32 0.0, %v1072
        %v1074 = vpop.f32.mrf.mxu0
        %v1075 = vadd.f32 0.0, %v1074
        %v1076 = vpop.f32.mrf.mxu0
        %v1077 = vadd.f32 0.0, %v1076
        %1078 = vmatprep.mubr.bf16.mxu0 0
        %1079 = vmatmul.mubr.bf16.gmra.mxu0 %v788
        %v1080 = vpop.f32.mrf.mxu0
        %v1081 = vadd.f32 0.0, %v1080
        %v1082 = vpop.f32.mrf.mxu0
        %v1083 = vadd.f32 0.0, %v1082
        %v1084 = vpop.f32.mrf.mxu0
        %v1085 = vadd.f32 0.0, %v1084
        %v1086 = vpop.f32.mrf.mxu0
        %v1087 = vadd.f32 0.0, %v1086
        %1088 = vmatprep.mubr.bf16.mxu0 0
        %1089 = vmatmul.mubr.bf16.gmra.mxu0 %v791
        %v1090 = vpop.f32.mrf.mxu0
        %v1091 = vadd.f32 0.0, %v1090
        %v1092 = vpop.f32.mrf.mxu0
        %v1093 = vadd.f32 0.0, %v1092
        %v1094 = vpop.f32.mrf.mxu0
        %v1095 = vadd.f32 0.0, %v1094
        %v1096 = vpop.f32.mrf.mxu0
        %v1097 = vadd.f32 0.0, %v1096
        %1098 = vmatprep.mubr.bf16.mxu0 0
        %1099 = vmatmul.mubr.bf16.gmra.mxu0 %v794
        %v1100 = vpop.f32.mrf.mxu0
        %v1101 = vadd.f32 0.0, %v1100
        %v1102 = vpop.f32.mrf.mxu0
        %v1103 = vadd.f32 0.0, %v1102
        %v1104 = vpop.f32.mrf.mxu0
        %v1105 = vadd.f32 0.0, %v1104
        %v1106 = vpop.f32.mrf.mxu0
        %v1107 = vadd.f32 0.0, %v1106
        %1108 = vmatprep.mubr.bf16.mxu0 0
        %1109 = vmatmul.mubr.bf16.gmra.mxu0 %v797
        %v1110 = vpop.f32.mrf.mxu0
        %v1111 = vadd.f32 0.0, %v1110
        %v1112 = vpop.f32.mrf.mxu0
        %v1113 = vadd.f32 0.0, %v1112
        %v1114 = vpop.f32.mrf.mxu0
        %v1115 = vadd.f32 0.0, %v1114
        %v1116 = vpop.f32.mrf.mxu0
        %v1117 = vadd.f32 0.0, %v1116
        %1118 = vmatprep.mubr.bf16.mxu0 0
        %1119 = vmatmul.mubr.bf16.gmra.mxu0 %v800
        %v1120 = vpop.f32.mrf.mxu0
        %v1121 = vadd.f32 0.0, %v1120
        %v1122 = vpop.f32.mrf.mxu0
        %v1123 = vadd.f32 0.0, %v1122
        %v1124 = vpop.f32.mrf.mxu0
        %v1125 = vadd.f32 0.0, %v1124
        %v1126 = vpop.f32.mrf.mxu0
        %v1127 = vadd.f32 0.0, %v1126
        %1128 = vmatprep.mubr.bf16.mxu0 0
        %1129 = vmatmul.mubr.bf16.gmra.mxu0 %v803
        %v1130 = vpop.f32.mrf.mxu0
        %v1131 = vadd.f32 0.0, %v1130
        %v1132 = vpop.f32.mrf.mxu0
        %v1133 = vadd.f32 0.0, %v1132
        %v1134 = vpop.f32.mrf.mxu0
        %v1135 = vadd.f32 0.0, %v1134
        %v1136 = vpop.f32.mrf.mxu0
        %v1137 = vadd.f32 0.0, %v1136
        %1138 = vmatprep.mubr.bf16.mxu0 0
        %1139 = vmatmul.mubr.bf16.gmra.mxu0 %v806
        %v1140 = vpop.f32.mrf.mxu0
        %v1141 = vadd.f32 0.0, %v1140
        %v1142 = vpop.f32.mrf.mxu0
        %v1143 = vadd.f32 0.0, %v1142
        %v1144 = vpop.f32.mrf.mxu0
        %v1145 = vadd.f32 0.0, %v1144
        %v1146 = vpop.f32.mrf.mxu0
        %v1147 = vadd.f32 0.0, %v1146
        %1148 = vmatprep.mubr.bf16.mxu0 0
        %1149 = vmatmul.mubr.bf16.gmra.mxu0 %v809
        %v1150 = vpop.f32.mrf.mxu0
        %v1151 = vadd.f32 0.0, %v1150
        %v1152 = vpop.f32.mrf.mxu0
        %v1153 = vadd.f32 0.0, %v1152
        %v1154 = vpop.f32.mrf.mxu0
        %v1155 = vadd.f32 0.0, %v1154
        %v1156 = vpop.f32.mrf.mxu0
        %v1157 = vadd.f32 0.0, %v1156
        %1158 = vmatprep.mubr.bf16.mxu0 0
        %1159 = vmatmul.mubr.bf16.gmra.mxu0 %v812
        %v1160 = vpop.f32.mrf.mxu0
        %v1161 = vadd.f32 0.0, %v1160
        %v1162 = vpop.f32.mrf.mxu0
        %v1163 = vadd.f32 0.0, %v1162
        %v1164 = vpop.f32.mrf.mxu0
        %v1165 = vadd.f32 0.0, %v1164
        %v1166 = vpop.f32.mrf.mxu0
        %v1167 = vadd.f32 0.0, %v1166
        %1168 = vmatprep.mubr.bf16.mxu0 0
        %1169 = vmatmul.mubr.bf16.gmra.mxu0 %v815
        %v1170 = vpop.f32.mrf.mxu0
        %v1171 = vadd.f32 0.0, %v1170
        %v1172 = vpop.f32.mrf.mxu0
        %v1173 = vadd.f32 0.0, %v1172
        %v1174 = vpop.f32.mrf.mxu0
        %v1175 = vadd.f32 0.0, %v1174
        %v1176 = vpop.f32.mrf.mxu0
        %v1177 = vadd.f32 0.0, %v1176
        %1178 = vdwg.mxu0
        %v1179 = vpack.c.bf16 %v865, %v861
        %v1180 = vpack.c.bf16 %v867, %v863
        %v1181 = vpack.c.bf16 %v875, %v871
        %v1182 = vpack.c.bf16 %v877, %v873
        %v1183 = vpack.c.bf16 %v885, %v881
        %v1184 = vpack.c.bf16 %v887, %v883
        %v1185 = vpack.c.bf16 %v895, %v891
        %v1186 = vpack.c.bf16 %v897, %v893
        %v1187 = vpack.c.bf16 %v905, %v901
        %v1188 = vpack.c.bf16 %v907, %v903
        %v1189 = vpack.c.bf16 %v915, %v911
        %v1190 = vpack.c.bf16 %v917, %v913
        %v1191 = vpack.c.bf16 %v925, %v921
        %v1192 = vpack.c.bf16 %v927, %v923
        %v1193 = vpack.c.bf16 %v935, %v931
        %v1194 = vpack.c.bf16 %v937, %v933
        %v1195 = vpack.c.bf16 %v945, %v941
        %v1196 = vpack.c.bf16 %v947, %v943
        %v1197 = vpack.c.bf16 %v955, %v951
        %v1198 = vpack.c.bf16 %v957, %v953
        %v1199 = vpack.c.bf16 %v965, %v961
        %v1200 = vpack.c.bf16 %v967, %v963
        %v1201 = vpack.c.bf16 %v975, %v971
        %v1202 = vpack.c.bf16 %v977, %v973
        %v1203 = vpack.c.bf16 %v985, %v981
        %v1204 = vpack.c.bf16 %v987, %v983
        %v1205 = vpack.c.bf16 %v995, %v991
        %v1206 = vpack.c.bf16 %v997, %v993
        %v1207 = vpack.c.bf16 %v1005, %v1001
        %v1208 = vpack.c.bf16 %v1007, %v1003
        %v1209 = vpack.c.bf16 %v1015, %v1011
        %v1210 = vpack.c.bf16 %v1017, %v1013
        %v1211 = vpack.c.bf16 %v1025, %v1021
        %v1212 = vpack.c.bf16 %v1027, %v1023
        %v1213 = vpack.c.bf16 %v1035, %v1031
        %v1214 = vpack.c.bf16 %v1037, %v1033
        %v1215 = vpack.c.bf16 %v1045, %v1041
        %v1216 = vpack.c.bf16 %v1047, %v1043
        %v1217 = vpack.c.bf16 %v1055, %v1051
        %v1218 = vpack.c.bf16 %v1057, %v1053
        %v1219 = vpack.c.bf16 %v1065, %v1061
        %v1220 = vpack.c.bf16 %v1067, %v1063
        %v1221 = vpack.c.bf16 %v1075, %v1071
        %v1222 = vpack.c.bf16 %v1077, %v1073
        %v1223 = vpack.c.bf16 %v1085, %v1081
        %v1224 = vpack.c.bf16 %v1087, %v1083
        %v1225 = vpack.c.bf16 %v1095, %v1091
        %v1226 = vpack.c.bf16 %v1097, %v1093
        %v1227 = vpack.c.bf16 %v1105, %v1101
        %v1228 = vpack.c.bf16 %v1107, %v1103
        %v1229 = vpack.c.bf16 %v1115, %v1111
        %v1230 = vpack.c.bf16 %v1117, %v1113
        %v1231 = vpack.c.bf16 %v1125, %v1121
        %v1232 = vpack.c.bf16 %v1127, %v1123
        %v1233 = vpack.c.bf16 %v1135, %v1131
        %v1234 = vpack.c.bf16 %v1137, %v1133
        %v1235 = vpack.c.bf16 %v1145, %v1141
        %v1236 = vpack.c.bf16 %v1147, %v1143
        %v1237 = vpack.c.bf16 %v1155, %v1151
        %v1238 = vpack.c.bf16 %v1157, %v1153
        %v1239 = vpack.c.bf16 %v1165, %v1161
        %v1240 = vpack.c.bf16 %v1167, %v1163
        %v1241 = vpack.c.bf16 %v1175, %v1171
        %v1242 = vpack.c.bf16 %v1177, %v1173
        %v1243 = vld [vmem:[#allocation2] sm:$0x3]
        %v1246 = vunpack.c.l.s4 1966171168
        %v1247 = vunpack.c.0.s8 %v1246
        %v1248 = vlaneseq
        %v1249 = vshrl.u32 %v1248, 7
        %v1250 = vsub.s32 %v1247, %v1249
        %v1251 = vrot.slane %v1243, %v1250
        %v1252 = vcombine.high %v1251, %v1251
        %v1254 = vunpack.c.l.s4 1966171168
        %v1255 = vunpack.c.0.s8 %v1254
        %v1256 = vlaneseq
        %v1257 = vshrl.u32 %v1256, 7
        %v1258 = vsub.s32 %v1255, %v1257
        %v1259 = vrot.slane %v1251, %v1258
        %v1261 = vunpack.c.l.s4 1966171168
        %v1262 = vunpack.c.0.s8 %v1261
        %v1263 = vlaneseq
        %v1264 = vshrl.u32 %v1263, 7
        %v1265 = vsub.s32 %v1262, %v1264
        %v1266 = vrot.slane %v1252, %v1265
        %v1268 = vpack.i.b16 %v1259, %v1259
        %v1270 = vlaneseq
        %v1271 = vshrl.u32 %v1270, 7
        %v1272 = vsub.s32 0, %v1271
        %v1273 = vrot.slane %v1268, %v1272
        %v1275 = vpack.i.b16 %v1266, %v1266
        %v1277 = vlaneseq
        %v1278 = vshrl.u32 %v1277, 7
        %v1279 = vsub.s32 0, %v1278
        %v1280 = vrot.slane %v1275, %v1279
        %v1281 = vadd.bf16 %v1179, %v1273
        %v1282 = vadd.bf16 %v1180, %v1280
        %v1283 = vadd.bf16 %v1181, %v1273
        %v1284 = vadd.bf16 %v1182, %v1280
        %v1285 = vadd.bf16 %v1183, %v1273
        %v1286 = vadd.bf16 %v1184, %v1280
        %v1287 = vadd.bf16 %v1185, %v1273
        %v1288 = vadd.bf16 %v1186, %v1280
        %v1289 = vadd.bf16 %v1187, %v1273
        %v1290 = vadd.bf16 %v1188, %v1280
        %v1291 = vadd.bf16 %v1189, %v1273
        %v1292 = vadd.bf16 %v1190, %v1280
        %v1293 = vadd.bf16 %v1191, %v1273
        %v1294 = vadd.bf16 %v1192, %v1280
        %v1295 = vadd.bf16 %v1193, %v1273
        %v1296 = vadd.bf16 %v1194, %v1280
        %v1297 = vadd.bf16 %v1195, %v1273
        %v1298 = vadd.bf16 %v1196, %v1280
        %v1299 = vadd.bf16 %v1197, %v1273
        %v1300 = vadd.bf16 %v1198, %v1280
        %v1301 = vadd.bf16 %v1199, %v1273
        %v1302 = vadd.bf16 %v1200, %v1280
        %v1303 = vadd.bf16 %v1201, %v1273
        %v1304 = vadd.bf16 %v1202, %v1280
        %v1305 = vadd.bf16 %v1203, %v1273
        %v1306 = vadd.bf16 %v1204, %v1280
        %v1307 = vadd.bf16 %v1205, %v1273
        %v1308 = vadd.bf16 %v1206, %v1280
        %v1309 = vadd.bf16 %v1207, %v1273
        %v1310 = vadd.bf16 %v1208, %v1280
        %v1311 = vadd.bf16 %v1209, %v1273
        %v1312 = vadd.bf16 %v1210, %v1280
        %v1313 = vadd.bf16 %v1211, %v1273
        %v1314 = vadd.bf16 %v1212, %v1280
        %v1315 = vadd.bf16 %v1213, %v1273
        %v1316 = vadd.bf16 %v1214, %v1280
        %v1317 = vadd.bf16 %v1215, %v1273
        %v1318 = vadd.bf16 %v1216, %v1280
        %v1319 = vadd.bf16 %v1217, %v1273
        %v1320 = vadd.bf16 %v1218, %v1280
        %v1321 = vadd.bf16 %v1219, %v1273
        %v1322 = vadd.bf16 %v1220, %v1280
        %v1323 = vadd.bf16 %v1221, %v1273
        %v1324 = vadd.bf16 %v1222, %v1280
        %v1325 = vadd.bf16 %v1223, %v1273
        %v1326 = vadd.bf16 %v1224, %v1280
        %v1327 = vadd.bf16 %v1225, %v1273
        %v1328 = vadd.bf16 %v1226, %v1280
        %v1329 = vadd.bf16 %v1227, %v1273
        %v1330 = vadd.bf16 %v1228, %v1280
        %v1331 = vadd.bf16 %v1229, %v1273
        %v1332 = vadd.bf16 %v1230, %v1280
        %v1333 = vadd.bf16 %v1231, %v1273
        %v1334 = vadd.bf16 %v1232, %v1280
        %v1335 = vadd.bf16 %v1233, %v1273
        %v1336 = vadd.bf16 %v1234, %v1280
        %v1337 = vadd.bf16 %v1235, %v1273
        %v1338 = vadd.bf16 %v1236, %v1280
        %v1339 = vadd.bf16 %v1237, %v1273
        %v1340 = vadd.bf16 %v1238, %v1280
        %v1341 = vadd.bf16 %v1239, %v1273
        %v1342 = vadd.bf16 %v1240, %v1280
        %v1343 = vadd.bf16 %v1241, %v1273
        %v1344 = vadd.bf16 %v1242, %v1280
        %v1345 = vmax.bf16 %v1281, 0
        %v1346 = vmax.bf16 %v1282, 0
        %v1347 = vmax.bf16 %v1283, 0
        %v1348 = vmax.bf16 %v1284, 0
        %v1349 = vmax.bf16 %v1285, 0
        %v1350 = vmax.bf16 %v1286, 0
        %v1351 = vmax.bf16 %v1287, 0
        %v1352 = vmax.bf16 %v1288, 0
        %v1353 = vmax.bf16 %v1289, 0
        %v1354 = vmax.bf16 %v1290, 0
        %v1355 = vmax.bf16 %v1291, 0
        %v1356 = vmax.bf16 %v1292, 0
        %v1357 = vmax.bf16 %v1293, 0
        %v1358 = vmax.bf16 %v1294, 0
        %v1359 = vmax.bf16 %v1295, 0
        %v1360 = vmax.bf16 %v1296, 0
        %v1361 = vmax.bf16 %v1297, 0
        %v1362 = vmax.bf16 %v1298, 0
        %v1363 = vmax.bf16 %v1299, 0
        %v1364 = vmax.bf16 %v1300, 0
        %v1365 = vmax.bf16 %v1301, 0
        %v1366 = vmax.bf16 %v1302, 0
        %v1367 = vmax.bf16 %v1303, 0
        %v1368 = vmax.bf16 %v1304, 0
        %v1369 = vmax.bf16 %v1305, 0
        %v1370 = vmax.bf16 %v1306, 0
        %v1371 = vmax.bf16 %v1307, 0
        %v1372 = vmax.bf16 %v1308, 0
        %v1373 = vmax.bf16 %v1309, 0
        %v1374 = vmax.bf16 %v1310, 0
        %v1375 = vmax.bf16 %v1311, 0
        %v1376 = vmax.bf16 %v1312, 0
        %v1377 = vmax.bf16 %v1313, 0
        %v1378 = vmax.bf16 %v1314, 0
        %v1379 = vmax.bf16 %v1315, 0
        %v1380 = vmax.bf16 %v1316, 0
        %v1381 = vmax.bf16 %v1317, 0
        %v1382 = vmax.bf16 %v1318, 0
        %v1383 = vmax.bf16 %v1319, 0
        %v1384 = vmax.bf16 %v1320, 0
        %v1385 = vmax.bf16 %v1321, 0
        %v1386 = vmax.bf16 %v1322, 0
        %v1387 = vmax.bf16 %v1323, 0
        %v1388 = vmax.bf16 %v1324, 0
        %v1389 = vmax.bf16 %v1325, 0
        %v1390 = vmax.bf16 %v1326, 0
        %v1391 = vmax.bf16 %v1327, 0
        %v1392 = vmax.bf16 %v1328, 0
        %v1393 = vmax.bf16 %v1329, 0
        %v1394 = vmax.bf16 %v1330, 0
        %v1395 = vmax.bf16 %v1331, 0
        %v1396 = vmax.bf16 %v1332, 0
        %v1397 = vmax.bf16 %v1333, 0
        %v1398 = vmax.bf16 %v1334, 0
        %v1399 = vmax.bf16 %v1335, 0
        %v1400 = vmax.bf16 %v1336, 0
        %v1401 = vmax.bf16 %v1337, 0
        %v1402 = vmax.bf16 %v1338, 0
        %v1403 = vmax.bf16 %v1339, 0
        %v1404 = vmax.bf16 %v1340, 0
        %v1405 = vmax.bf16 %v1341, 0
        %v1406 = vmax.bf16 %v1342, 0
        %v1407 = vmax.bf16 %v1343, 0
        %v1408 = vmax.bf16 %v1344, 0
        %v1409 = vld [vmem:[#allocation5] sm:$0xff]
        %v1410 = vld [vmem:[#allocation5 + $0x8] sm:$0xff]
        %v1411 = vld [vmem:[#allocation5 + $0x10] sm:$0xff]
        %v1412 = vld [vmem:[#allocation5 + $0x18] sm:$0xff]
        %v1413 = vld [vmem:[#allocation5 + $0x20] sm:$0xff]
        %v1414 = vld [vmem:[#allocation5 + $0x28] sm:$0xff]
        %v1415 = vld [vmem:[#allocation5 + $0x30] sm:$0xff]
        %v1416 = vld [vmem:[#allocation5 + $0x38] sm:$0xff]
        %v1417 = vld [vmem:[#allocation5 + $0x40] sm:$0xff]
        %v1418 = vld [vmem:[#allocation5 + $0x48] sm:$0xff]
        %v1419 = vld [vmem:[#allocation5 + $0x50] sm:$0xff]
        %v1420 = vld [vmem:[#allocation5 + $0x58] sm:$0xff]
        %v1421 = vld [vmem:[#allocation5 + $0x60] sm:$0xff]
        %v1422 = vld [vmem:[#allocation5 + $0x68] sm:$0xff]
        %v1423 = vld [vmem:[#allocation5 + $0x70] sm:$0xff]
        %v1424 = vld [vmem:[#allocation5 + $0x78] sm:$0xff]
        %v1425 = vld [vmem:[#allocation5 + $0x80] sm:$0xff]
        %v1426 = vld [vmem:[#allocation5 + $0x88] sm:$0xff]
        %v1427 = vld [vmem:[#allocation5 + $0x90] sm:$0xff]
        %v1428 = vld [vmem:[#allocation5 + $0x98] sm:$0xff]
        %v1429 = vld [vmem:[#allocation5 + $0xa0] sm:$0xff]
        %v1430 = vld [vmem:[#allocation5 + $0xa8] sm:$0xff]
        %v1431 = vld [vmem:[#allocation5 + $0xb0] sm:$0xff]
        %v1432 = vld [vmem:[#allocation5 + $0xb8] sm:$0xff]
        %v1457 = vunpack.c.l.b16 %v1409
        %v1458 = vunpack.c.h.b16 %v1409
        %v1459 = vunpack.c.l.b16 %v1410
        %v1460 = vunpack.c.h.b16 %v1410
        %v1461 = vunpack.c.l.b16 %v1411
        %v1462 = vunpack.c.h.b16 %v1411
        %v1463 = vunpack.c.l.b16 %v1412
        %v1464 = vunpack.c.h.b16 %v1412
        %v1465 = vunpack.c.l.b16 %v1413
        %v1466 = vunpack.c.h.b16 %v1413
        %v1467 = vunpack.c.l.b16 %v1414
        %v1468 = vunpack.c.h.b16 %v1414
        %v1469 = vunpack.c.l.b16 %v1415
        %v1470 = vunpack.c.h.b16 %v1415
        %v1471 = vunpack.c.l.b16 %v1416
        %v1472 = vunpack.c.h.b16 %v1416
        %v1473 = vunpack.c.l.b16 %v1417
        %v1474 = vunpack.c.h.b16 %v1417
        %v1475 = vunpack.c.l.b16 %v1418
        %v1476 = vunpack.c.h.b16 %v1418
        %v1477 = vunpack.c.l.b16 %v1419
        %v1478 = vunpack.c.h.b16 %v1419
        %v1479 = vunpack.c.l.b16 %v1420
        %v1480 = vunpack.c.h.b16 %v1420
        %v1481 = vunpack.c.l.b16 %v1421
        %v1482 = vunpack.c.h.b16 %v1421
        %v1483 = vunpack.c.l.b16 %v1422
        %v1484 = vunpack.c.h.b16 %v1422
        %v1485 = vunpack.c.l.b16 %v1423
        %v1486 = vunpack.c.h.b16 %v1423
        %v1487 = vunpack.c.l.b16 %v1424
        %v1488 = vunpack.c.h.b16 %v1424
        %v1489 = vunpack.c.l.b16 %v1425
        %v1490 = vunpack.c.h.b16 %v1425
        %v1491 = vunpack.c.l.b16 %v1426
        %v1492 = vunpack.c.h.b16 %v1426
        %v1493 = vunpack.c.l.b16 %v1427
        %v1494 = vunpack.c.h.b16 %v1427
        %v1495 = vunpack.c.l.b16 %v1428
        %v1496 = vunpack.c.h.b16 %v1428
        %v1497 = vunpack.c.l.b16 %v1429
        %v1498 = vunpack.c.h.b16 %v1429
        %v1499 = vunpack.c.l.b16 %v1430
        %v1500 = vunpack.c.h.b16 %v1430
        %v1501 = vunpack.c.l.b16 %v1431
        %v1502 = vunpack.c.h.b16 %v1431
        %v1503 = vunpack.c.l.b16 %v1432
        %v1504 = vunpack.c.h.b16 %v1432
        %v1505 = vpack.c.b16 %v1459, %v1457
        %v1506 = vpack.c.b16 %v1460, %v1458
        %v1507 = vpack.c.b16 %v1463, %v1461
        %v1508 = vpack.c.b16 %v1464, %v1462
        %v1509 = vpack.c.b16 %v1467, %v1465
        %v1510 = vpack.c.b16 %v1468, %v1466
        %v1511 = vpack.c.b16 %v1471, %v1469
        %v1512 = vpack.c.b16 %v1472, %v1470
        %v1513 = vpack.c.b16 %v1475, %v1473
        %v1514 = vpack.c.b16 %v1476, %v1474
        %v1515 = vpack.c.b16 %v1479, %v1477
        %v1516 = vpack.c.b16 %v1480, %v1478
        %v1517 = vpack.c.b16 %v1483, %v1481
        %v1518 = vpack.c.b16 %v1484, %v1482
        %v1519 = vpack.c.b16 %v1487, %v1485
        %v1520 = vpack.c.b16 %v1488, %v1486
        %v1521 = vpack.c.b16 %v1491, %v1489
        %v1522 = vpack.c.b16 %v1492, %v1490
        %v1523 = vpack.c.b16 %v1495, %v1493
        %v1524 = vpack.c.b16 %v1496, %v1494
        %v1525 = vpack.c.b16 %v1499, %v1497
        %v1526 = vpack.c.b16 %v1500, %v1498
        %v1527 = vpack.c.b16 %v1503, %v1501
        %v1528 = vpack.c.b16 %v1504, %v1502
        %vm1553 = vcmask 523264
        %v1555 = vsel %vm1553, %v1346, 0
        %v1558 = vsel %vm1553, %v1348, 0
        %v1561 = vsel %vm1553, %v1350, 0
        %v1564 = vsel %vm1553, %v1352, 0
        %v1567 = vsel %vm1553, %v1354, 0
        %v1570 = vsel %vm1553, %v1356, 0
        %v1573 = vsel %vm1553, %v1358, 0
        %v1576 = vsel %vm1553, %v1360, 0
        %v1579 = vsel %vm1553, %v1362, 0
        %v1582 = vsel %vm1553, %v1364, 0
        %v1585 = vsel %vm1553, %v1366, 0
        %v1588 = vsel %vm1553, %v1368, 0
        %v1591 = vsel %vm1553, %v1370, 0
        %v1594 = vsel %vm1553, %v1372, 0
        %v1597 = vsel %vm1553, %v1374, 0
        %v1600 = vsel %vm1553, %v1376, 0
        %v1603 = vsel %vm1553, %v1378, 0
        %v1606 = vsel %vm1553, %v1380, 0
        %v1609 = vsel %vm1553, %v1382, 0
        %v1612 = vsel %vm1553, %v1384, 0
        %v1615 = vsel %vm1553, %v1386, 0
        %v1618 = vsel %vm1553, %v1388, 0
        %v1621 = vsel %vm1553, %v1390, 0
        %v1624 = vsel %vm1553, %v1392, 0
        %v1627 = vsel %vm1553, %v1394, 0
        %v1630 = vsel %vm1553, %v1396, 0
        %v1633 = vsel %vm1553, %v1398, 0
        %v1636 = vsel %vm1553, %v1400, 0
        %v1639 = vsel %vm1553, %v1402, 0
        %v1642 = vsel %vm1553, %v1404, 0
        %v1645 = vsel %vm1553, %v1406, 0
        %v1648 = vsel %vm1553, %v1408, 0
        %1650 = vmatprep.subr.bf16.mxu0 %v1520
        %1651 = vmatpush1.bf16.msra.mxu0 %v1519
        %1652 = vmatprep.subr.bf16.mxu0 %v1518
        %1653 = vmatpush1.bf16.msra.mxu0 %v1517
        %1654 = vmatprep.subr.bf16.mxu0 %v1516
        %1655 = vmatpush1.bf16.msra.mxu0 %v1515
        %1656 = vmatprep.subr.bf16.mxu0 %v1514
        %1657 = vmatpush1.bf16.msra.mxu0 %v1513
        %1658 = vmatprep.subr.bf16.mxu0 %v1512
        %1659 = vmatpush1.bf16.msra.mxu0 %v1511
        %1660 = vmatprep.subr.bf16.mxu0 %v1510
        %1661 = vmatpush1.bf16.msra.mxu0 %v1509
        %1662 = vmatprep.subr.bf16.mxu0 %v1508
        %1663 = vmatpush1.bf16.msra.mxu0 %v1507
        %1664 = vmatprep.subr.bf16.mxu0 %v1506
        %1665 = vmatpush1.bf16.msra.mxu0 %v1505
        %1666 = vmatprep.subr.bf16.mxu0 0
        %1667 = vmatpush2.bf16.msra.mxu0 0
        %1668 = vmatprep.subr.bf16.mxu0 0
        %1669 = vmatpush2.bf16.msra.mxu0 0
        %1670 = vmatprep.subr.bf16.mxu0 0
        %1671 = vmatpush2.bf16.msra.mxu0 0
        %1672 = vmatprep.subr.bf16.mxu0 0
        %1673 = vmatpush2.bf16.msra.mxu0 0
        %1674 = vmatprep.subr.bf16.mxu0 %v1528
        %1675 = vmatpush2.bf16.msra.mxu0 %v1527
        %1676 = vmatprep.subr.bf16.mxu0 %v1526
        %1677 = vmatpush2.bf16.msra.mxu0 %v1525
        %1678 = vmatprep.subr.bf16.mxu0 %v1524
        %1679 = vmatpush2.bf16.msra.mxu0 %v1523
        %1680 = vmatprep.subr.bf16.mxu0 %v1522
        %1681 = vmatpush2.bf16.msra.mxu0 %v1521
        %1682 = vmatprep.mubr.bf16.mxu0 %v1555
        %1683 = vmatmul.mubr.bf16.gmra.mxu0 %v1345
        %v1684 = vpop.f32.mrf.mxu0
        %v1685 = vadd.f32 0.0, %v1684
        %v1686 = vpop.f32.mrf.mxu0
        %v1687 = vadd.f32 0.0, %v1686
        %v1688 = vpop.f32.mrf.mxu0
        %v1689 = vadd.f32 0.0, %v1688
        %v1690 = vpop.f32.mrf.mxu0
        %v1691 = vadd.f32 0.0, %v1690
        %1692 = vmatprep.mubr.bf16.mxu0 %v1558
        %1693 = vmatmul.mubr.bf16.gmra.mxu0 %v1347
        %v1694 = vpop.f32.mrf.mxu0
        %v1695 = vadd.f32 0.0, %v1694
        %v1696 = vpop.f32.mrf.mxu0
        %v1697 = vadd.f32 0.0, %v1696
        %v1698 = vpop.f32.mrf.mxu0
        %v1699 = vadd.f32 0.0, %v1698
        %v1700 = vpop.f32.mrf.mxu0
        %v1701 = vadd.f32 0.0, %v1700
        %1702 = vmatprep.mubr.bf16.mxu0 %v1561
        %1703 = vmatmul.mubr.bf16.gmra.mxu0 %v1349
        %v1704 = vpop.f32.mrf.mxu0
        %v1705 = vadd.f32 0.0, %v1704
        %v1706 = vpop.f32.mrf.mxu0
        %v1707 = vadd.f32 0.0, %v1706
        %v1708 = vpop.f32.mrf.mxu0
        %v1709 = vadd.f32 0.0, %v1708
        %v1710 = vpop.f32.mrf.mxu0
        %v1711 = vadd.f32 0.0, %v1710
        %1712 = vmatprep.mubr.bf16.mxu0 %v1564
        %1713 = vmatmul.mubr.bf16.gmra.mxu0 %v1351
        %v1714 = vpop.f32.mrf.mxu0
        %v1715 = vadd.f32 0.0, %v1714
        %v1716 = vpop.f32.mrf.mxu0
        %v1717 = vadd.f32 0.0, %v1716
        %v1718 = vpop.f32.mrf.mxu0
        %v1719 = vadd.f32 0.0, %v1718
        %v1720 = vpop.f32.mrf.mxu0
        %v1721 = vadd.f32 0.0, %v1720
        %1722 = vmatprep.mubr.bf16.mxu0 %v1567
        %1723 = vmatmul.mubr.bf16.gmra.mxu0 %v1353
        %v1724 = vpop.f32.mrf.mxu0
        %v1725 = vadd.f32 0.0, %v1724
        %v1726 = vpop.f32.mrf.mxu0
        %v1727 = vadd.f32 0.0, %v1726
        %v1728 = vpop.f32.mrf.mxu0
        %v1729 = vadd.f32 0.0, %v1728
        %v1730 = vpop.f32.mrf.mxu0
        %v1731 = vadd.f32 0.0, %v1730
        %1732 = vmatprep.mubr.bf16.mxu0 %v1570
        %1733 = vmatmul.mubr.bf16.gmra.mxu0 %v1355
        %v1734 = vpop.f32.mrf.mxu0
        %v1735 = vadd.f32 0.0, %v1734
        %v1736 = vpop.f32.mrf.mxu0
        %v1737 = vadd.f32 0.0, %v1736
        %v1738 = vpop.f32.mrf.mxu0
        %v1739 = vadd.f32 0.0, %v1738
        %v1740 = vpop.f32.mrf.mxu0
        %v1741 = vadd.f32 0.0, %v1740
        %1742 = vmatprep.mubr.bf16.mxu0 %v1573
        %1743 = vmatmul.mubr.bf16.gmra.mxu0 %v1357
        %v1744 = vpop.f32.mrf.mxu0
        %v1745 = vadd.f32 0.0, %v1744
        %v1746 = vpop.f32.mrf.mxu0
        %v1747 = vadd.f32 0.0, %v1746
        %v1748 = vpop.f32.mrf.mxu0
        %v1749 = vadd.f32 0.0, %v1748
        %v1750 = vpop.f32.mrf.mxu0
        %v1751 = vadd.f32 0.0, %v1750
        %1752 = vmatprep.mubr.bf16.mxu0 %v1576
        %1753 = vmatmul.mubr.bf16.gmra.mxu0 %v1359
        %v1754 = vpop.f32.mrf.mxu0
        %v1755 = vadd.f32 0.0, %v1754
        %v1756 = vpop.f32.mrf.mxu0
        %v1757 = vadd.f32 0.0, %v1756
        %v1758 = vpop.f32.mrf.mxu0
        %v1759 = vadd.f32 0.0, %v1758
        %v1760 = vpop.f32.mrf.mxu0
        %v1761 = vadd.f32 0.0, %v1760
        %1762 = vmatprep.mubr.bf16.mxu0 %v1579
        %1763 = vmatmul.mubr.bf16.gmra.mxu0 %v1361
        %v1764 = vpop.f32.mrf.mxu0
        %v1765 = vadd.f32 0.0, %v1764
        %v1766 = vpop.f32.mrf.mxu0
        %v1767 = vadd.f32 0.0, %v1766
        %v1768 = vpop.f32.mrf.mxu0
        %v1769 = vadd.f32 0.0, %v1768
        %v1770 = vpop.f32.mrf.mxu0
        %v1771 = vadd.f32 0.0, %v1770
        %1772 = vmatprep.mubr.bf16.mxu0 %v1582
        %1773 = vmatmul.mubr.bf16.gmra.mxu0 %v1363
        %v1774 = vpop.f32.mrf.mxu0
        %v1775 = vadd.f32 0.0, %v1774
        %v1776 = vpop.f32.mrf.mxu0
        %v1777 = vadd.f32 0.0, %v1776
        %v1778 = vpop.f32.mrf.mxu0
        %v1779 = vadd.f32 0.0, %v1778
        %v1780 = vpop.f32.mrf.mxu0
        %v1781 = vadd.f32 0.0, %v1780
        %1782 = vmatprep.mubr.bf16.mxu0 %v1585
        %1783 = vmatmul.mubr.bf16.gmra.mxu0 %v1365
        %v1784 = vpop.f32.mrf.mxu0
        %v1785 = vadd.f32 0.0, %v1784
        %v1786 = vpop.f32.mrf.mxu0
        %v1787 = vadd.f32 0.0, %v1786
        %v1788 = vpop.f32.mrf.mxu0
        %v1789 = vadd.f32 0.0, %v1788
        %v1790 = vpop.f32.mrf.mxu0
        %v1791 = vadd.f32 0.0, %v1790
        %1792 = vmatprep.mubr.bf16.mxu0 %v1588
        %1793 = vmatmul.mubr.bf16.gmra.mxu0 %v1367
        %v1794 = vpop.f32.mrf.mxu0
        %v1795 = vadd.f32 0.0, %v1794
        %v1796 = vpop.f32.mrf.mxu0
        %v1797 = vadd.f32 0.0, %v1796
        %v1798 = vpop.f32.mrf.mxu0
        %v1799 = vadd.f32 0.0, %v1798
        %v1800 = vpop.f32.mrf.mxu0
        %v1801 = vadd.f32 0.0, %v1800
        %1802 = vmatprep.mubr.bf16.mxu0 %v1591
        %1803 = vmatmul.mubr.bf16.gmra.mxu0 %v1369
        %v1804 = vpop.f32.mrf.mxu0
        %v1805 = vadd.f32 0.0, %v1804
        %v1806 = vpop.f32.mrf.mxu0
        %v1807 = vadd.f32 0.0, %v1806
        %v1808 = vpop.f32.mrf.mxu0
        %v1809 = vadd.f32 0.0, %v1808
        %v1810 = vpop.f32.mrf.mxu0
        %v1811 = vadd.f32 0.0, %v1810
        %1812 = vmatprep.mubr.bf16.mxu0 %v1594
        %1813 = vmatmul.mubr.bf16.gmra.mxu0 %v1371
        %v1814 = vpop.f32.mrf.mxu0
        %v1815 = vadd.f32 0.0, %v1814
        %v1816 = vpop.f32.mrf.mxu0
        %v1817 = vadd.f32 0.0, %v1816
        %v1818 = vpop.f32.mrf.mxu0
        %v1819 = vadd.f32 0.0, %v1818
        %v1820 = vpop.f32.mrf.mxu0
        %v1821 = vadd.f32 0.0, %v1820
        %1822 = vmatprep.mubr.bf16.mxu0 %v1597
        %1823 = vmatmul.mubr.bf16.gmra.mxu0 %v1373
        %v1824 = vpop.f32.mrf.mxu0
        %v1825 = vadd.f32 0.0, %v1824
        %v1826 = vpop.f32.mrf.mxu0
        %v1827 = vadd.f32 0.0, %v1826
        %v1828 = vpop.f32.mrf.mxu0
        %v1829 = vadd.f32 0.0, %v1828
        %v1830 = vpop.f32.mrf.mxu0
        %v1831 = vadd.f32 0.0, %v1830
        %1832 = vmatprep.mubr.bf16.mxu0 %v1600
        %1833 = vmatmul.mubr.bf16.gmra.mxu0 %v1375
        %v1834 = vpop.f32.mrf.mxu0
        %v1835 = vadd.f32 0.0, %v1834
        %v1836 = vpop.f32.mrf.mxu0
        %v1837 = vadd.f32 0.0, %v1836
        %v1838 = vpop.f32.mrf.mxu0
        %v1839 = vadd.f32 0.0, %v1838
        %v1840 = vpop.f32.mrf.mxu0
        %v1841 = vadd.f32 0.0, %v1840
        %1842 = vmatprep.mubr.bf16.mxu0 %v1603
        %1843 = vmatmul.mubr.bf16.gmra.mxu0 %v1377
        %v1844 = vpop.f32.mrf.mxu0
        %v1845 = vadd.f32 0.0, %v1844
        %v1846 = vpop.f32.mrf.mxu0
        %v1847 = vadd.f32 0.0, %v1846
        %v1848 = vpop.f32.mrf.mxu0
        %v1849 = vadd.f32 0.0, %v1848
        %v1850 = vpop.f32.mrf.mxu0
        %v1851 = vadd.f32 0.0, %v1850
        %1852 = vmatprep.mubr.bf16.mxu0 %v1606
        %1853 = vmatmul.mubr.bf16.gmra.mxu0 %v1379
        %v1854 = vpop.f32.mrf.mxu0
        %v1855 = vadd.f32 0.0, %v1854
        %v1856 = vpop.f32.mrf.mxu0
        %v1857 = vadd.f32 0.0, %v1856
        %v1858 = vpop.f32.mrf.mxu0
        %v1859 = vadd.f32 0.0, %v1858
        %v1860 = vpop.f32.mrf.mxu0
        %v1861 = vadd.f32 0.0, %v1860
        %1862 = vmatprep.mubr.bf16.mxu0 %v1609
        %1863 = vmatmul.mubr.bf16.gmra.mxu0 %v1381
        %v1864 = vpop.f32.mrf.mxu0
        %v1865 = vadd.f32 0.0, %v1864
        %v1866 = vpop.f32.mrf.mxu0
        %v1867 = vadd.f32 0.0, %v1866
        %v1868 = vpop.f32.mrf.mxu0
        %v1869 = vadd.f32 0.0, %v1868
        %v1870 = vpop.f32.mrf.mxu0
        %v1871 = vadd.f32 0.0, %v1870
        %1872 = vmatprep.mubr.bf16.mxu0 %v1612
        %1873 = vmatmul.mubr.bf16.gmra.mxu0 %v1383
        %v1874 = vpop.f32.mrf.mxu0
        %v1875 = vadd.f32 0.0, %v1874
        %v1876 = vpop.f32.mrf.mxu0
        %v1877 = vadd.f32 0.0, %v1876
        %v1878 = vpop.f32.mrf.mxu0
        %v1879 = vadd.f32 0.0, %v1878
        %v1880 = vpop.f32.mrf.mxu0
        %v1881 = vadd.f32 0.0, %v1880
        %1882 = vmatprep.mubr.bf16.mxu0 %v1615
        %1883 = vmatmul.mubr.bf16.gmra.mxu0 %v1385
        %v1884 = vpop.f32.mrf.mxu0
        %v1885 = vadd.f32 0.0, %v1884
        %v1886 = vpop.f32.mrf.mxu0
        %v1887 = vadd.f32 0.0, %v1886
        %v1888 = vpop.f32.mrf.mxu0
        %v1889 = vadd.f32 0.0, %v1888
        %v1890 = vpop.f32.mrf.mxu0
        %v1891 = vadd.f32 0.0, %v1890
        %1892 = vmatprep.mubr.bf16.mxu0 %v1618
        %1893 = vmatmul.mubr.bf16.gmra.mxu0 %v1387
        %v1894 = vpop.f32.mrf.mxu0
        %v1895 = vadd.f32 0.0, %v1894
        %v1896 = vpop.f32.mrf.mxu0
        %v1897 = vadd.f32 0.0, %v1896
        %v1898 = vpop.f32.mrf.mxu0
        %v1899 = vadd.f32 0.0, %v1898
        %v1900 = vpop.f32.mrf.mxu0
        %v1901 = vadd.f32 0.0, %v1900
        %1902 = vmatprep.mubr.bf16.mxu0 %v1621
        %1903 = vmatmul.mubr.bf16.gmra.mxu0 %v1389
        %v1904 = vpop.f32.mrf.mxu0
        %v1905 = vadd.f32 0.0, %v1904
        %v1906 = vpop.f32.mrf.mxu0
        %v1907 = vadd.f32 0.0, %v1906
        %v1908 = vpop.f32.mrf.mxu0
        %v1909 = vadd.f32 0.0, %v1908
        %v1910 = vpop.f32.mrf.mxu0
        %v1911 = vadd.f32 0.0, %v1910
        %1912 = vmatprep.mubr.bf16.mxu0 %v1624
        %1913 = vmatmul.mubr.bf16.gmra.mxu0 %v1391
        %v1914 = vpop.f32.mrf.mxu0
        %v1915 = vadd.f32 0.0, %v1914
        %v1916 = vpop.f32.mrf.mxu0
        %v1917 = vadd.f32 0.0, %v1916
        %v1918 = vpop.f32.mrf.mxu0
        %v1919 = vadd.f32 0.0, %v1918
        %v1920 = vpop.f32.mrf.mxu0
        %v1921 = vadd.f32 0.0, %v1920
        %1922 = vmatprep.mubr.bf16.mxu0 %v1627
        %1923 = vmatmul.mubr.bf16.gmra.mxu0 %v1393
        %v1924 = vpop.f32.mrf.mxu0
        %v1925 = vadd.f32 0.0, %v1924
        %v1926 = vpop.f32.mrf.mxu0
        %v1927 = vadd.f32 0.0, %v1926
        %v1928 = vpop.f32.mrf.mxu0
        %v1929 = vadd.f32 0.0, %v1928
        %v1930 = vpop.f32.mrf.mxu0
        %v1931 = vadd.f32 0.0, %v1930
        %1932 = vmatprep.mubr.bf16.mxu0 %v1630
        %1933 = vmatmul.mubr.bf16.gmra.mxu0 %v1395
        %v1934 = vpop.f32.mrf.mxu0
        %v1935 = vadd.f32 0.0, %v1934
        %v1936 = vpop.f32.mrf.mxu0
        %v1937 = vadd.f32 0.0, %v1936
        %v1938 = vpop.f32.mrf.mxu0
        %v1939 = vadd.f32 0.0, %v1938
        %v1940 = vpop.f32.mrf.mxu0
        %v1941 = vadd.f32 0.0, %v1940
        %1942 = vmatprep.mubr.bf16.mxu0 %v1633
        %1943 = vmatmul.mubr.bf16.gmra.mxu0 %v1397
        %v1944 = vpop.f32.mrf.mxu0
        %v1945 = vadd.f32 0.0, %v1944
        %v1946 = vpop.f32.mrf.mxu0
        %v1947 = vadd.f32 0.0, %v1946
        %v1948 = vpop.f32.mrf.mxu0
        %v1949 = vadd.f32 0.0, %v1948
        %v1950 = vpop.f32.mrf.mxu0
        %v1951 = vadd.f32 0.0, %v1950
        %1952 = vmatprep.mubr.bf16.mxu0 %v1636
        %1953 = vmatmul.mubr.bf16.gmra.mxu0 %v1399
        %v1954 = vpop.f32.mrf.mxu0
        %v1955 = vadd.f32 0.0, %v1954
        %v1956 = vpop.f32.mrf.mxu0
        %v1957 = vadd.f32 0.0, %v1956
        %v1958 = vpop.f32.mrf.mxu0
        %v1959 = vadd.f32 0.0, %v1958
        %v1960 = vpop.f32.mrf.mxu0
        %v1961 = vadd.f32 0.0, %v1960
        %1962 = vmatprep.mubr.bf16.mxu0 %v1639
        %1963 = vmatmul.mubr.bf16.gmra.mxu0 %v1401
        %v1964 = vpop.f32.mrf.mxu0
        %v1965 = vadd.f32 0.0, %v1964
        %v1966 = vpop.f32.mrf.mxu0
        %v1967 = vadd.f32 0.0, %v1966
        %v1968 = vpop.f32.mrf.mxu0
        %v1969 = vadd.f32 0.0, %v1968
        %v1970 = vpop.f32.mrf.mxu0
        %v1971 = vadd.f32 0.0, %v1970
        %1972 = vmatprep.mubr.bf16.mxu0 %v1642
        %1973 = vmatmul.mubr.bf16.gmra.mxu0 %v1403
        %v1974 = vpop.f32.mrf.mxu0
        %v1975 = vadd.f32 0.0, %v1974
        %v1976 = vpop.f32.mrf.mxu0
        %v1977 = vadd.f32 0.0, %v1976
        %v1978 = vpop.f32.mrf.mxu0
        %v1979 = vadd.f32 0.0, %v1978
        %v1980 = vpop.f32.mrf.mxu0
        %v1981 = vadd.f32 0.0, %v1980
        %1982 = vmatprep.mubr.bf16.mxu0 %v1645
        %1983 = vmatmul.mubr.bf16.gmra.mxu0 %v1405
        %v1984 = vpop.f32.mrf.mxu0
        %v1985 = vadd.f32 0.0, %v1984
        %v1986 = vpop.f32.mrf.mxu0
        %v1987 = vadd.f32 0.0, %v1986
        %v1988 = vpop.f32.mrf.mxu0
        %v1989 = vadd.f32 0.0, %v1988
        %v1990 = vpop.f32.mrf.mxu0
        %v1991 = vadd.f32 0.0, %v1990
        %1992 = vmatprep.mubr.bf16.mxu0 %v1648
        %1993 = vmatmul.mubr.bf16.gmra.mxu0 %v1407
        %v1994 = vpop.f32.mrf.mxu0
        %v1995 = vadd.f32 0.0, %v1994
        %v1996 = vpop.f32.mrf.mxu0
        %v1997 = vadd.f32 0.0, %v1996
        %v1998 = vpop.f32.mrf.mxu0
        %v1999 = vadd.f32 0.0, %v1998
        %v2000 = vpop.f32.mrf.mxu0
        %v2001 = vadd.f32 0.0, %v2000
        %2002 = vdwg.mxu0
        %v2003 = vpack.c.bf16 %v1689, %v1685
        %v2004 = vpack.c.bf16 %v1691, %v1687
        %v2005 = vpack.c.bf16 %v1699, %v1695
        %v2006 = vpack.c.bf16 %v1701, %v1697
        %v2007 = vpack.c.bf16 %v1709, %v1705
        %v2008 = vpack.c.bf16 %v1711, %v1707
        %v2009 = vpack.c.bf16 %v1719, %v1715
        %v2010 = vpack.c.bf16 %v1721, %v1717
        %v2011 = vpack.c.bf16 %v1729, %v1725
        %v2012 = vpack.c.bf16 %v1731, %v1727
        %v2013 = vpack.c.bf16 %v1739, %v1735
        %v2014 = vpack.c.bf16 %v1741, %v1737
        %v2015 = vpack.c.bf16 %v1749, %v1745
        %v2016 = vpack.c.bf16 %v1751, %v1747
        %v2017 = vpack.c.bf16 %v1759, %v1755
        %v2018 = vpack.c.bf16 %v1761, %v1757
        %v2019 = vpack.c.bf16 %v1769, %v1765
        %v2020 = vpack.c.bf16 %v1771, %v1767
        %v2021 = vpack.c.bf16 %v1779, %v1775
        %v2022 = vpack.c.bf16 %v1781, %v1777
        %v2023 = vpack.c.bf16 %v1789, %v1785
        %v2024 = vpack.c.bf16 %v1791, %v1787
        %v2025 = vpack.c.bf16 %v1799, %v1795
        %v2026 = vpack.c.bf16 %v1801, %v1797
        %v2027 = vpack.c.bf16 %v1809, %v1805
        %v2028 = vpack.c.bf16 %v1811, %v1807
        %v2029 = vpack.c.bf16 %v1819, %v1815
        %v2030 = vpack.c.bf16 %v1821, %v1817
        %v2031 = vpack.c.bf16 %v1829, %v1825
        %v2032 = vpack.c.bf16 %v1831, %v1827
        %v2033 = vpack.c.bf16 %v1839, %v1835
        %v2034 = vpack.c.bf16 %v1841, %v1837
        %v2035 = vpack.c.bf16 %v1849, %v1845
        %v2036 = vpack.c.bf16 %v1851, %v1847
        %v2037 = vpack.c.bf16 %v1859, %v1855
        %v2038 = vpack.c.bf16 %v1861, %v1857
        %v2039 = vpack.c.bf16 %v1869, %v1865
        %v2040 = vpack.c.bf16 %v1871, %v1867
        %v2041 = vpack.c.bf16 %v1879, %v1875
        %v2042 = vpack.c.bf16 %v1881, %v1877
        %v2043 = vpack.c.bf16 %v1889, %v1885
        %v2044 = vpack.c.bf16 %v1891, %v1887
        %v2045 = vpack.c.bf16 %v1899, %v1895
        %v2046 = vpack.c.bf16 %v1901, %v1897
        %v2047 = vpack.c.bf16 %v1909, %v1905
        %v2048 = vpack.c.bf16 %v1911, %v1907
        %v2049 = vpack.c.bf16 %v1919, %v1915
        %v2050 = vpack.c.bf16 %v1921, %v1917
        %v2051 = vpack.c.bf16 %v1929, %v1925
        %v2052 = vpack.c.bf16 %v1931, %v1927
        %v2053 = vpack.c.bf16 %v1939, %v1935
        %v2054 = vpack.c.bf16 %v1941, %v1937
        %v2055 = vpack.c.bf16 %v1949, %v1945
        %v2056 = vpack.c.bf16 %v1951, %v1947
        %v2057 = vpack.c.bf16 %v1959, %v1955
        %v2058 = vpack.c.bf16 %v1961, %v1957
        %v2059 = vpack.c.bf16 %v1969, %v1965
        %v2060 = vpack.c.bf16 %v1971, %v1967
        %v2061 = vpack.c.bf16 %v1979, %v1975
        %v2062 = vpack.c.bf16 %v1981, %v1977
        %v2063 = vpack.c.bf16 %v1989, %v1985
        %v2064 = vpack.c.bf16 %v1991, %v1987
        %v2065 = vpack.c.bf16 %v1999, %v1995
        %v2066 = vpack.c.bf16 %v2001, %v1997
        %v2067 = vld [vmem:[#allocation7] sm:$0x3]
        %v2070 = vunpack.c.l.s4 1966171168
        %v2071 = vunpack.c.0.s8 %v2070
        %v2072 = vlaneseq
        %v2073 = vshrl.u32 %v2072, 7
        %v2074 = vsub.s32 %v2071, %v2073
        %v2075 = vrot.slane %v2067, %v2074
        %v2076 = vcombine.high %v2075, %v2075
        %v2078 = vunpack.c.l.s4 1966171168
        %v2079 = vunpack.c.0.s8 %v2078
        %v2080 = vlaneseq
        %v2081 = vshrl.u32 %v2080, 7
        %v2082 = vsub.s32 %v2079, %v2081
        %v2083 = vrot.slane %v2075, %v2082
        %v2085 = vunpack.c.l.s4 1966171168
        %v2086 = vunpack.c.0.s8 %v2085
        %v2087 = vlaneseq
        %v2088 = vshrl.u32 %v2087, 7
        %v2089 = vsub.s32 %v2086, %v2088
        %v2090 = vrot.slane %v2076, %v2089
        %v2092 = vpack.i.b16 %v2083, %v2083
        %v2094 = vlaneseq
        %v2095 = vshrl.u32 %v2094, 7
        %v2096 = vsub.s32 0, %v2095
        %v2097 = vrot.slane %v2092, %v2096
        %v2099 = vpack.i.b16 %v2090, %v2090
        %v2101 = vlaneseq
        %v2102 = vshrl.u32 %v2101, 7
        %v2103 = vsub.s32 0, %v2102
        %v2104 = vrot.slane %v2099, %v2103
        %v2105 = vadd.bf16 %v2003, %v2097
        %v2106 = vadd.bf16 %v2004, %v2104
        %v2107 = vadd.bf16 %v2005, %v2097
        %v2108 = vadd.bf16 %v2006, %v2104
        %v2109 = vadd.bf16 %v2007, %v2097
        %v2110 = vadd.bf16 %v2008, %v2104
        %v2111 = vadd.bf16 %v2009, %v2097
        %v2112 = vadd.bf16 %v2010, %v2104
        %v2113 = vadd.bf16 %v2011, %v2097
        %v2114 = vadd.bf16 %v2012, %v2104
        %v2115 = vadd.bf16 %v2013, %v2097
        %v2116 = vadd.bf16 %v2014, %v2104
        %v2117 = vadd.bf16 %v2015, %v2097
        %v2118 = vadd.bf16 %v2016, %v2104
        %v2119 = vadd.bf16 %v2017, %v2097
        %v2120 = vadd.bf16 %v2018, %v2104
        %v2121 = vadd.bf16 %v2019, %v2097
        %v2122 = vadd.bf16 %v2020, %v2104
        %v2123 = vadd.bf16 %v2021, %v2097
        %v2124 = vadd.bf16 %v2022, %v2104
        %v2125 = vadd.bf16 %v2023, %v2097
        %v2126 = vadd.bf16 %v2024, %v2104
        %v2127 = vadd.bf16 %v2025, %v2097
        %v2128 = vadd.bf16 %v2026, %v2104
        %v2129 = vadd.bf16 %v2027, %v2097
        %v2130 = vadd.bf16 %v2028, %v2104
        %v2131 = vadd.bf16 %v2029, %v2097
        %v2132 = vadd.bf16 %v2030, %v2104
        %v2133 = vadd.bf16 %v2031, %v2097
        %v2134 = vadd.bf16 %v2032, %v2104
        %v2135 = vadd.bf16 %v2033, %v2097
        %v2136 = vadd.bf16 %v2034, %v2104
        %v2137 = vadd.bf16 %v2035, %v2097
        %v2138 = vadd.bf16 %v2036, %v2104
        %v2139 = vadd.bf16 %v2037, %v2097
        %v2140 = vadd.bf16 %v2038, %v2104
        %v2141 = vadd.bf16 %v2039, %v2097
        %v2142 = vadd.bf16 %v2040, %v2104
        %v2143 = vadd.bf16 %v2041, %v2097
        %v2144 = vadd.bf16 %v2042, %v2104
        %v2145 = vadd.bf16 %v2043, %v2097
        %v2146 = vadd.bf16 %v2044, %v2104
        %v2147 = vadd.bf16 %v2045, %v2097
        %v2148 = vadd.bf16 %v2046, %v2104
        %v2149 = vadd.bf16 %v2047, %v2097
        %v2150 = vadd.bf16 %v2048, %v2104
        %v2151 = vadd.bf16 %v2049, %v2097
        %v2152 = vadd.bf16 %v2050, %v2104
        %v2153 = vadd.bf16 %v2051, %v2097
        %v2154 = vadd.bf16 %v2052, %v2104
        %v2155 = vadd.bf16 %v2053, %v2097
        %v2156 = vadd.bf16 %v2054, %v2104
        %v2157 = vadd.bf16 %v2055, %v2097
        %v2158 = vadd.bf16 %v2056, %v2104
        %v2159 = vadd.bf16 %v2057, %v2097
        %v2160 = vadd.bf16 %v2058, %v2104
        %v2161 = vadd.bf16 %v2059, %v2097
        %v2162 = vadd.bf16 %v2060, %v2104
        %v2163 = vadd.bf16 %v2061, %v2097
        %v2164 = vadd.bf16 %v2062, %v2104
        %v2165 = vadd.bf16 %v2063, %v2097
        %v2166 = vadd.bf16 %v2064, %v2104
        %v2167 = vadd.bf16 %v2065, %v2097
        %v2168 = vadd.bf16 %v2066, %v2104
        %v2169 = vmax.bf16 %v2105, 0
        %v2170 = vmax.bf16 %v2106, 0
        %v2171 = vmax.bf16 %v2107, 0
        %v2172 = vmax.bf16 %v2108, 0
        %v2173 = vmax.bf16 %v2109, 0
        %v2174 = vmax.bf16 %v2110, 0
        %v2175 = vmax.bf16 %v2111, 0
        %v2176 = vmax.bf16 %v2112, 0
        %v2177 = vmax.bf16 %v2113, 0
        %v2178 = vmax.bf16 %v2114, 0
        %v2179 = vmax.bf16 %v2115, 0
        %v2180 = vmax.bf16 %v2116, 0
        %v2181 = vmax.bf16 %v2117, 0
        %v2182 = vmax.bf16 %v2118, 0
        %v2183 = vmax.bf16 %v2119, 0
        %v2184 = vmax.bf16 %v2120, 0
        %v2185 = vmax.bf16 %v2121, 0
        %v2186 = vmax.bf16 %v2122, 0
        %v2187 = vmax.bf16 %v2123, 0
        %v2188 = vmax.bf16 %v2124, 0
        %v2189 = vmax.bf16 %v2125, 0
        %v2190 = vmax.bf16 %v2126, 0
        %v2191 = vmax.bf16 %v2127, 0
        %v2192 = vmax.bf16 %v2128, 0
        %v2193 = vmax.bf16 %v2129, 0
        %v2194 = vmax.bf16 %v2130, 0
        %v2195 = vmax.bf16 %v2131, 0
        %v2196 = vmax.bf16 %v2132, 0
        %v2197 = vmax.bf16 %v2133, 0
        %v2198 = vmax.bf16 %v2134, 0
        %v2199 = vmax.bf16 %v2135, 0
        %v2200 = vmax.bf16 %v2136, 0
        %v2201 = vmax.bf16 %v2137, 0
        %v2202 = vmax.bf16 %v2138, 0
        %v2203 = vmax.bf16 %v2139, 0
        %v2204 = vmax.bf16 %v2140, 0
        %v2205 = vmax.bf16 %v2141, 0
        %v2206 = vmax.bf16 %v2142, 0
        %v2207 = vmax.bf16 %v2143, 0
        %v2208 = vmax.bf16 %v2144, 0
        %v2209 = vmax.bf16 %v2145, 0
        %v2210 = vmax.bf16 %v2146, 0
        %v2211 = vmax.bf16 %v2147, 0
        %v2212 = vmax.bf16 %v2148, 0
        %v2213 = vmax.bf16 %v2149, 0
        %v2214 = vmax.bf16 %v2150, 0
        %v2215 = vmax.bf16 %v2151, 0
        %v2216 = vmax.bf16 %v2152, 0
        %v2217 = vmax.bf16 %v2153, 0
        %v2218 = vmax.bf16 %v2154, 0
        %v2219 = vmax.bf16 %v2155, 0
        %v2220 = vmax.bf16 %v2156, 0
        %v2221 = vmax.bf16 %v2157, 0
        %v2222 = vmax.bf16 %v2158, 0
        %v2223 = vmax.bf16 %v2159, 0
        %v2224 = vmax.bf16 %v2160, 0
        %v2225 = vmax.bf16 %v2161, 0
        %v2226 = vmax.bf16 %v2162, 0
        %v2227 = vmax.bf16 %v2163, 0
        %v2228 = vmax.bf16 %v2164, 0
        %v2229 = vmax.bf16 %v2165, 0
        %v2230 = vmax.bf16 %v2166, 0
        %v2231 = vmax.bf16 %v2167, 0
        %v2232 = vmax.bf16 %v2168, 0
        %v2233 = vld [vmem:[#allocation8] sm:$0xff]
        %v2234 = vld [vmem:[#allocation8 + $0x8] sm:$0xff]
        %v2235 = vld [vmem:[#allocation8 + $0x10] sm:$0xff]
        %v2236 = vld [vmem:[#allocation8 + $0x18] sm:$0xff]
        %v2237 = vld [vmem:[#allocation8 + $0x20] sm:$0xff]
        %v2238 = vld [vmem:[#allocation8 + $0x28] sm:$0xff]
        %v2239 = vld [vmem:[#allocation8 + $0x30] sm:$0xff]
        %v2240 = vld [vmem:[#allocation8 + $0x38] sm:$0xff]
        %v2241 = vld [vmem:[#allocation8 + $0x40] sm:$0xff]
        %v2242 = vld [vmem:[#allocation8 + $0x48] sm:$0xff]
        %v2243 = vld [vmem:[#allocation8 + $0x50] sm:$0xff]
        %v2244 = vld [vmem:[#allocation8 + $0x58] sm:$0xff]
        %v2245 = vld [vmem:[#allocation8 + $0x60] sm:$0xff]
        %v2246 = vld [vmem:[#allocation8 + $0x68] sm:$0xff]
        %v2247 = vld [vmem:[#allocation8 + $0x70] sm:$0xff]
        %v2248 = vld [vmem:[#allocation8 + $0x78] sm:$0xff]
        %v2249 = vld [vmem:[#allocation8 + $0x80] sm:$0xff]
        %v2250 = vld [vmem:[#allocation8 + $0x88] sm:$0xff]
        %v2251 = vld [vmem:[#allocation8 + $0x90] sm:$0xff]
        %v2252 = vld [vmem:[#allocation8 + $0x98] sm:$0xff]
        %v2253 = vld [vmem:[#allocation8 + $0xa0] sm:$0xff]
        %v2254 = vld [vmem:[#allocation8 + $0xa8] sm:$0xff]
        %v2255 = vld [vmem:[#allocation8 + $0xb0] sm:$0xff]
        %v2256 = vld [vmem:[#allocation8 + $0xb8] sm:$0xff]
        %v2257 = vld [vmem:[#allocation8 + $0xc0] sm:$0xff]
        %v2258 = vld [vmem:[#allocation8 + $0xc8] sm:$0xff]
        %v2259 = vld [vmem:[#allocation8 + $0xd0] sm:$0xff]
        %v2260 = vld [vmem:[#allocation8 + $0xd8] sm:$0xff]
        %v2261 = vld [vmem:[#allocation8 + $0xe0] sm:$0xff]
        %v2262 = vld [vmem:[#allocation8 + $0xe8] sm:$0xff]
        %v2263 = vld [vmem:[#allocation8 + $0xf0] sm:$0xff]
        %v2264 = vld [vmem:[#allocation8 + $0xf8] sm:$0xff]
        %v2265 = vld [vmem:[#allocation8 + $0x100] sm:$0xff]
        %v2266 = vld [vmem:[#allocation8 + $0x108] sm:$0xff]
        %v2267 = vld [vmem:[#allocation8 + $0x110] sm:$0xff]
        %v2268 = vld [vmem:[#allocation8 + $0x118] sm:$0xff]
        %v2269 = vld [vmem:[#allocation8 + $0x120] sm:$0xff]
        %v2270 = vld [vmem:[#allocation8 + $0x128] sm:$0xff]
        %v2271 = vld [vmem:[#allocation8 + $0x130] sm:$0xff]
        %v2272 = vld [vmem:[#allocation8 + $0x138] sm:$0xff]
        %v2273 = vld [vmem:[#allocation8 + $0x140] sm:$0xff]
        %v2274 = vld [vmem:[#allocation8 + $0x148] sm:$0xff]
        %v2275 = vld [vmem:[#allocation8 + $0x150] sm:$0xff]
        %v2276 = vld [vmem:[#allocation8 + $0x158] sm:$0xff]
        %v2277 = vld [vmem:[#allocation8 + $0x160] sm:$0xff]
        %v2278 = vld [vmem:[#allocation8 + $0x168] sm:$0xff]
        %v2279 = vld [vmem:[#allocation8 + $0x170] sm:$0xff]
        %v2280 = vld [vmem:[#allocation8 + $0x178] sm:$0xff]
        %v2281 = vld [vmem:[#allocation8 + $0x180] sm:$0xff]
        %v2282 = vld [vmem:[#allocation8 + $0x188] sm:$0xff]
        %v2283 = vld [vmem:[#allocation8 + $0x190] sm:$0xff]
        %v2284 = vld [vmem:[#allocation8 + $0x198] sm:$0xff]
        %v2285 = vld [vmem:[#allocation8 + $0x1a0] sm:$0xff]
        %v2286 = vld [vmem:[#allocation8 + $0x1a8] sm:$0xff]
        %v2287 = vld [vmem:[#allocation8 + $0x1b0] sm:$0xff]
        %v2288 = vld [vmem:[#allocation8 + $0x1b8] sm:$0xff]
        %v2289 = vld [vmem:[#allocation8 + $0x1c0] sm:$0xff]
        %v2290 = vld [vmem:[#allocation8 + $0x1c8] sm:$0xff]
        %v2291 = vld [vmem:[#allocation8 + $0x1d0] sm:$0xff]
        %v2292 = vld [vmem:[#allocation8 + $0x1d8] sm:$0xff]
        %v2293 = vld [vmem:[#allocation8 + $0x1e0] sm:$0xff]
        %v2294 = vld [vmem:[#allocation8 + $0x1e8] sm:$0xff]
        %v2295 = vld [vmem:[#allocation8 + $0x1f0] sm:$0xff]
        %v2296 = vld [vmem:[#allocation8 + $0x1f8] sm:$0xff]
        %v2361 = vunpack.c.l.b16 %v2233
        %v2362 = vunpack.c.h.b16 %v2233
        %v2363 = vunpack.c.l.b16 %v2234
        %v2364 = vunpack.c.h.b16 %v2234
        %v2365 = vunpack.c.l.b16 %v2235
        %v2366 = vunpack.c.h.b16 %v2235
        %v2367 = vunpack.c.l.b16 %v2236
        %v2368 = vunpack.c.h.b16 %v2236
        %v2369 = vunpack.c.l.b16 %v2237
        %v2370 = vunpack.c.h.b16 %v2237
        %v2371 = vunpack.c.l.b16 %v2238
        %v2372 = vunpack.c.h.b16 %v2238
        %v2373 = vunpack.c.l.b16 %v2239
        %v2374 = vunpack.c.h.b16 %v2239
        %v2375 = vunpack.c.l.b16 %v2240
        %v2376 = vunpack.c.h.b16 %v2240
        %v2377 = vunpack.c.l.b16 %v2241
        %v2378 = vunpack.c.h.b16 %v2241
        %v2379 = vunpack.c.l.b16 %v2242
        %v2380 = vunpack.c.h.b16 %v2242
        %v2381 = vunpack.c.l.b16 %v2243
        %v2382 = vunpack.c.h.b16 %v2243
        %v2383 = vunpack.c.l.b16 %v2244
        %v2384 = vunpack.c.h.b16 %v2244
        %v2385 = vunpack.c.l.b16 %v2245
        %v2386 = vunpack.c.h.b16 %v2245
        %v2387 = vunpack.c.l.b16 %v2246
        %v2388 = vunpack.c.h.b16 %v2246
        %v2389 = vunpack.c.l.b16 %v2247
        %v2390 = vunpack.c.h.b16 %v2247
        %v2391 = vunpack.c.l.b16 %v2248
        %v2392 = vunpack.c.h.b16 %v2248
        %v2393 = vunpack.c.l.b16 %v2249
        %v2394 = vunpack.c.h.b16 %v2249
        %v2395 = vunpack.c.l.b16 %v2250
        %v2396 = vunpack.c.h.b16 %v2250
        %v2397 = vunpack.c.l.b16 %v2251
        %v2398 = vunpack.c.h.b16 %v2251
        %v2399 = vunpack.c.l.b16 %v2252
        %v2400 = vunpack.c.h.b16 %v2252
        %v2401 = vunpack.c.l.b16 %v2253
        %v2402 = vunpack.c.h.b16 %v2253
        %v2403 = vunpack.c.l.b16 %v2254
        %v2404 = vunpack.c.h.b16 %v2254
        %v2405 = vunpack.c.l.b16 %v2255
        %v2406 = vunpack.c.h.b16 %v2255
        %v2407 = vunpack.c.l.b16 %v2256
        %v2408 = vunpack.c.h.b16 %v2256
        %v2409 = vunpack.c.l.b16 %v2257
        %v2410 = vunpack.c.h.b16 %v2257
        %v2411 = vunpack.c.l.b16 %v2258
        %v2412 = vunpack.c.h.b16 %v2258
        %v2413 = vunpack.c.l.b16 %v2259
        %v2414 = vunpack.c.h.b16 %v2259
        %v2415 = vunpack.c.l.b16 %v2260
        %v2416 = vunpack.c.h.b16 %v2260
        %v2417 = vunpack.c.l.b16 %v2261
        %v2418 = vunpack.c.h.b16 %v2261
        %v2419 = vunpack.c.l.b16 %v2262
        %v2420 = vunpack.c.h.b16 %v2262
        %v2421 = vunpack.c.l.b16 %v2263
        %v2422 = vunpack.c.h.b16 %v2263
        %v2423 = vunpack.c.l.b16 %v2264
        %v2424 = vunpack.c.h.b16 %v2264
        %v2425 = vunpack.c.l.b16 %v2265
        %v2426 = vunpack.c.h.b16 %v2265
        %v2427 = vunpack.c.l.b16 %v2266
        %v2428 = vunpack.c.h.b16 %v2266
        %v2429 = vunpack.c.l.b16 %v2267
        %v2430 = vunpack.c.h.b16 %v2267
        %v2431 = vunpack.c.l.b16 %v2268
        %v2432 = vunpack.c.h.b16 %v2268
        %v2433 = vunpack.c.l.b16 %v2269
        %v2434 = vunpack.c.h.b16 %v2269
        %v2435 = vunpack.c.l.b16 %v2270
        %v2436 = vunpack.c.h.b16 %v2270
        %v2437 = vunpack.c.l.b16 %v2271
        %v2438 = vunpack.c.h.b16 %v2271
        %v2439 = vunpack.c.l.b16 %v2272
        %v2440 = vunpack.c.h.b16 %v2272
        %v2441 = vunpack.c.l.b16 %v2273
        %v2442 = vunpack.c.h.b16 %v2273
        %v2443 = vunpack.c.l.b16 %v2274
        %v2444 = vunpack.c.h.b16 %v2274
        %v2445 = vunpack.c.l.b16 %v2275
        %v2446 = vunpack.c.h.b16 %v2275
        %v2447 = vunpack.c.l.b16 %v2276
        %v2448 = vunpack.c.h.b16 %v2276
        %v2449 = vunpack.c.l.b16 %v2277
        %v2450 = vunpack.c.h.b16 %v2277
        %v2451 = vunpack.c.l.b16 %v2278
        %v2452 = vunpack.c.h.b16 %v2278
        %v2453 = vunpack.c.l.b16 %v2279
        %v2454 = vunpack.c.h.b16 %v2279
        %v2455 = vunpack.c.l.b16 %v2280
        %v2456 = vunpack.c.h.b16 %v2280
        %v2457 = vunpack.c.l.b16 %v2281
        %v2458 = vunpack.c.h.b16 %v2281
        %v2459 = vunpack.c.l.b16 %v2282
        %v2460 = vunpack.c.h.b16 %v2282
        %v2461 = vunpack.c.l.b16 %v2283
        %v2462 = vunpack.c.h.b16 %v2283
        %v2463 = vunpack.c.l.b16 %v2284
        %v2464 = vunpack.c.h.b16 %v2284
        %v2465 = vunpack.c.l.b16 %v2285
        %v2466 = vunpack.c.h.b16 %v2285
        %v2467 = vunpack.c.l.b16 %v2286
        %v2468 = vunpack.c.h.b16 %v2286
        %v2469 = vunpack.c.l.b16 %v2287
        %v2470 = vunpack.c.h.b16 %v2287
        %v2471 = vunpack.c.l.b16 %v2288
        %v2472 = vunpack.c.h.b16 %v2288
        %v2473 = vunpack.c.l.b16 %v2289
        %v2474 = vunpack.c.h.b16 %v2289
        %v2475 = vunpack.c.l.b16 %v2290
        %v2476 = vunpack.c.h.b16 %v2290
        %v2477 = vunpack.c.l.b16 %v2291
        %v2478 = vunpack.c.h.b16 %v2291
        %v2479 = vunpack.c.l.b16 %v2292
        %v2480 = vunpack.c.h.b16 %v2292
        %v2481 = vunpack.c.l.b16 %v2293
        %v2482 = vunpack.c.h.b16 %v2293
        %v2483 = vunpack.c.l.b16 %v2294
        %v2484 = vunpack.c.h.b16 %v2294
        %v2485 = vunpack.c.l.b16 %v2295
        %v2486 = vunpack.c.h.b16 %v2295
        %v2487 = vunpack.c.l.b16 %v2296
        %v2488 = vunpack.c.h.b16 %v2296
        %v2489 = vpack.c.b16 %v2365, %v2361
        %v2490 = vpack.c.b16 %v2366, %v2362
        %v2491 = vpack.c.b16 %v2367, %v2363
        %v2492 = vpack.c.b16 %v2368, %v2364
        %v2493 = vpack.c.b16 %v2373, %v2369
        %v2494 = vpack.c.b16 %v2374, %v2370
        %v2495 = vpack.c.b16 %v2375, %v2371
        %v2496 = vpack.c.b16 %v2376, %v2372
        %v2497 = vpack.c.b16 %v2381, %v2377
        %v2498 = vpack.c.b16 %v2382, %v2378
        %v2499 = vpack.c.b16 %v2383, %v2379
        %v2500 = vpack.c.b16 %v2384, %v2380
        %v2501 = vpack.c.b16 %v2389, %v2385
        %v2502 = vpack.c.b16 %v2390, %v2386
        %v2503 = vpack.c.b16 %v2391, %v2387
        %v2504 = vpack.c.b16 %v2392, %v2388
        %v2505 = vpack.c.b16 %v2397, %v2393
        %v2506 = vpack.c.b16 %v2398, %v2394
        %v2507 = vpack.c.b16 %v2399, %v2395
        %v2508 = vpack.c.b16 %v2400, %v2396
        %v2509 = vpack.c.b16 %v2405, %v2401
        %v2510 = vpack.c.b16 %v2406, %v2402
        %v2511 = vpack.c.b16 %v2407, %v2403
        %v2512 = vpack.c.b16 %v2408, %v2404
        %v2513 = vpack.c.b16 %v2413, %v2409
        %v2514 = vpack.c.b16 %v2414, %v2410
        %v2515 = vpack.c.b16 %v2415, %v2411
        %v2516 = vpack.c.b16 %v2416, %v2412
        %v2517 = vpack.c.b16 %v2421, %v2417
        %v2518 = vpack.c.b16 %v2422, %v2418
        %v2519 = vpack.c.b16 %v2423, %v2419
        %v2520 = vpack.c.b16 %v2424, %v2420
        %v2521 = vpack.c.b16 %v2429, %v2425
        %v2522 = vpack.c.b16 %v2430, %v2426
        %v2523 = vpack.c.b16 %v2431, %v2427
        %v2524 = vpack.c.b16 %v2432, %v2428
        %v2525 = vpack.c.b16 %v2437, %v2433
        %v2526 = vpack.c.b16 %v2438, %v2434
        %v2527 = vpack.c.b16 %v2439, %v2435
        %v2528 = vpack.c.b16 %v2440, %v2436
        %v2529 = vpack.c.b16 %v2445, %v2441
        %v2530 = vpack.c.b16 %v2446, %v2442
        %v2531 = vpack.c.b16 %v2447, %v2443
        %v2532 = vpack.c.b16 %v2448, %v2444
        %v2533 = vpack.c.b16 %v2453, %v2449
        %v2534 = vpack.c.b16 %v2454, %v2450
        %v2535 = vpack.c.b16 %v2455, %v2451
        %v2536 = vpack.c.b16 %v2456, %v2452
        %v2537 = vpack.c.b16 %v2461, %v2457
        %v2538 = vpack.c.b16 %v2462, %v2458
        %v2539 = vpack.c.b16 %v2463, %v2459
        %v2540 = vpack.c.b16 %v2464, %v2460
        %v2541 = vpack.c.b16 %v2469, %v2465
        %v2542 = vpack.c.b16 %v2470, %v2466
        %v2543 = vpack.c.b16 %v2471, %v2467
        %v2544 = vpack.c.b16 %v2472, %v2468
        %v2545 = vpack.c.b16 %v2477, %v2473
        %v2546 = vpack.c.b16 %v2478, %v2474
        %v2547 = vpack.c.b16 %v2479, %v2475
        %v2548 = vpack.c.b16 %v2480, %v2476
        %v2549 = vpack.c.b16 %v2485, %v2481
        %v2550 = vpack.c.b16 %v2486, %v2482
        %v2551 = vpack.c.b16 %v2487, %v2483
        %v2552 = vpack.c.b16 %v2488, %v2484
        %2617 = vmatprep.subr.bf16.mxu0 %v2518
        %2618 = vmatpush1.bf16.msra.mxu0 %v2517
        %2619 = vmatprep.subr.bf16.mxu0 %v2514
        %2620 = vmatpush1.bf16.msra.mxu0 %v2513
        %2621 = vmatprep.subr.bf16.mxu0 %v2510
        %2622 = vmatpush1.bf16.msra.mxu0 %v2509
        %2623 = vmatprep.subr.bf16.mxu0 %v2506
        %2624 = vmatpush1.bf16.msra.mxu0 %v2505
        %2625 = vmatprep.subr.bf16.mxu0 %v2502
        %2626 = vmatpush1.bf16.msra.mxu0 %v2501
        %2627 = vmatprep.subr.bf16.mxu0 %v2498
        %2628 = vmatpush1.bf16.msra.mxu0 %v2497
        %2629 = vmatprep.subr.bf16.mxu0 %v2494
        %2630 = vmatpush1.bf16.msra.mxu0 %v2493
        %2631 = vmatprep.subr.bf16.mxu0 %v2490
        %2632 = vmatpush1.bf16.msra.mxu0 %v2489
        %2633 = vmatprep.subr.bf16.mxu0 %v2550
        %2634 = vmatpush2.bf16.msra.mxu0 %v2549
        %2635 = vmatprep.subr.bf16.mxu0 %v2546
        %2636 = vmatpush2.bf16.msra.mxu0 %v2545
        %2637 = vmatprep.subr.bf16.mxu0 %v2542
        %2638 = vmatpush2.bf16.msra.mxu0 %v2541
        %2639 = vmatprep.subr.bf16.mxu0 %v2538
        %2640 = vmatpush2.bf16.msra.mxu0 %v2537
        %2641 = vmatprep.subr.bf16.mxu0 %v2534
        %2642 = vmatpush2.bf16.msra.mxu0 %v2533
        %2643 = vmatprep.subr.bf16.mxu0 %v2530
        %2644 = vmatpush2.bf16.msra.mxu0 %v2529
        %2645 = vmatprep.subr.bf16.mxu0 %v2526
        %2646 = vmatpush2.bf16.msra.mxu0 %v2525
        %2647 = vmatprep.subr.bf16.mxu0 %v2522
        %2648 = vmatpush2.bf16.msra.mxu0 %v2521
        %2649 = vmatprep.mubr.bf16.mxu0 %v2170
        %2650 = vmatmul.mubr.bf16.gmra.mxu0 %v2169
        %v2651 = vpop.f32.mrf.mxu0
        %v2652 = vadd.f32 0.0, %v2651
        %v2653 = vpop.f32.mrf.mxu0
        %v2654 = vadd.f32 0.0, %v2653
        %v2655 = vpop.f32.mrf.mxu0
        %v2656 = vadd.f32 0.0, %v2655
        %v2657 = vpop.f32.mrf.mxu0
        %v2658 = vadd.f32 0.0, %v2657
        %2659 = vmatprep.mubr.bf16.mxu0 %v2172
        %2660 = vmatmul.mubr.bf16.gmra.mxu0 %v2171
        %v2661 = vpop.f32.mrf.mxu0
        %v2662 = vadd.f32 0.0, %v2661
        %v2663 = vpop.f32.mrf.mxu0
        %v2664 = vadd.f32 0.0, %v2663
        %v2665 = vpop.f32.mrf.mxu0
        %v2666 = vadd.f32 0.0, %v2665
        %v2667 = vpop.f32.mrf.mxu0
        %v2668 = vadd.f32 0.0, %v2667
        %2669 = vmatprep.mubr.bf16.mxu0 %v2174
        %2670 = vmatmul.mubr.bf16.gmra.mxu0 %v2173
        %v2671 = vpop.f32.mrf.mxu0
        %v2672 = vadd.f32 0.0, %v2671
        %v2673 = vpop.f32.mrf.mxu0
        %v2674 = vadd.f32 0.0, %v2673
        %v2675 = vpop.f32.mrf.mxu0
        %v2676 = vadd.f32 0.0, %v2675
        %v2677 = vpop.f32.mrf.mxu0
        %v2678 = vadd.f32 0.0, %v2677
        %2679 = vmatprep.mubr.bf16.mxu0 %v2176
        %2680 = vmatmul.mubr.bf16.gmra.mxu0 %v2175
        %v2681 = vpop.f32.mrf.mxu0
        %v2682 = vadd.f32 0.0, %v2681
        %v2683 = vpop.f32.mrf.mxu0
        %v2684 = vadd.f32 0.0, %v2683
        %v2685 = vpop.f32.mrf.mxu0
        %v2686 = vadd.f32 0.0, %v2685
        %v2687 = vpop.f32.mrf.mxu0
        %v2688 = vadd.f32 0.0, %v2687
        %2689 = vmatprep.mubr.bf16.mxu0 %v2178
        %2690 = vmatmul.mubr.bf16.gmra.mxu0 %v2177
        %v2691 = vpop.f32.mrf.mxu0
        %v2692 = vadd.f32 0.0, %v2691
        %v2693 = vpop.f32.mrf.mxu0
        %v2694 = vadd.f32 0.0, %v2693
        %v2695 = vpop.f32.mrf.mxu0
        %v2696 = vadd.f32 0.0, %v2695
        %v2697 = vpop.f32.mrf.mxu0
        %v2698 = vadd.f32 0.0, %v2697
        %2699 = vmatprep.mubr.bf16.mxu0 %v2180
        %2700 = vmatmul.mubr.bf16.gmra.mxu0 %v2179
        %v2701 = vpop.f32.mrf.mxu0
        %v2702 = vadd.f32 0.0, %v2701
        %v2703 = vpop.f32.mrf.mxu0
        %v2704 = vadd.f32 0.0, %v2703
        %v2705 = vpop.f32.mrf.mxu0
        %v2706 = vadd.f32 0.0, %v2705
        %v2707 = vpop.f32.mrf.mxu0
        %v2708 = vadd.f32 0.0, %v2707
        %2709 = vmatprep.mubr.bf16.mxu0 %v2182
        %2710 = vmatmul.mubr.bf16.gmra.mxu0 %v2181
        %v2711 = vpop.f32.mrf.mxu0
        %v2712 = vadd.f32 0.0, %v2711
        %v2713 = vpop.f32.mrf.mxu0
        %v2714 = vadd.f32 0.0, %v2713
        %v2715 = vpop.f32.mrf.mxu0
        %v2716 = vadd.f32 0.0, %v2715
        %v2717 = vpop.f32.mrf.mxu0
        %v2718 = vadd.f32 0.0, %v2717
        %2719 = vmatprep.mubr.bf16.mxu0 %v2184
        %2720 = vmatmul.mubr.bf16.gmra.mxu0 %v2183
        %v2721 = vpop.f32.mrf.mxu0
        %v2722 = vadd.f32 0.0, %v2721
        %v2723 = vpop.f32.mrf.mxu0
        %v2724 = vadd.f32 0.0, %v2723
        %v2725 = vpop.f32.mrf.mxu0
        %v2726 = vadd.f32 0.0, %v2725
        %v2727 = vpop.f32.mrf.mxu0
        %v2728 = vadd.f32 0.0, %v2727
        %2729 = vmatprep.mubr.bf16.mxu0 %v2186
        %2730 = vmatmul.mubr.bf16.gmra.mxu0 %v2185
        %v2731 = vpop.f32.mrf.mxu0
        %v2732 = vadd.f32 0.0, %v2731
        %v2733 = vpop.f32.mrf.mxu0
        %v2734 = vadd.f32 0.0, %v2733
        %v2735 = vpop.f32.mrf.mxu0
        %v2736 = vadd.f32 0.0, %v2735
        %v2737 = vpop.f32.mrf.mxu0
        %v2738 = vadd.f32 0.0, %v2737
        %2739 = vmatprep.mubr.bf16.mxu0 %v2188
        %2740 = vmatmul.mubr.bf16.gmra.mxu0 %v2187
        %v2741 = vpop.f32.mrf.mxu0
        %v2742 = vadd.f32 0.0, %v2741
        %v2743 = vpop.f32.mrf.mxu0
        %v2744 = vadd.f32 0.0, %v2743
        %v2745 = vpop.f32.mrf.mxu0
        %v2746 = vadd.f32 0.0, %v2745
        %v2747 = vpop.f32.mrf.mxu0
        %v2748 = vadd.f32 0.0, %v2747
        %2749 = vmatprep.mubr.bf16.mxu0 %v2190
        %2750 = vmatmul.mubr.bf16.gmra.mxu0 %v2189
        %v2751 = vpop.f32.mrf.mxu0
        %v2752 = vadd.f32 0.0, %v2751
        %v2753 = vpop.f32.mrf.mxu0
        %v2754 = vadd.f32 0.0, %v2753
        %v2755 = vpop.f32.mrf.mxu0
        %v2756 = vadd.f32 0.0, %v2755
        %v2757 = vpop.f32.mrf.mxu0
        %v2758 = vadd.f32 0.0, %v2757
        %2759 = vmatprep.mubr.bf16.mxu0 %v2192
        %2760 = vmatmul.mubr.bf16.gmra.mxu0 %v2191
        %v2761 = vpop.f32.mrf.mxu0
        %v2762 = vadd.f32 0.0, %v2761
        %v2763 = vpop.f32.mrf.mxu0
        %v2764 = vadd.f32 0.0, %v2763
        %v2765 = vpop.f32.mrf.mxu0
        %v2766 = vadd.f32 0.0, %v2765
        %v2767 = vpop.f32.mrf.mxu0
        %v2768 = vadd.f32 0.0, %v2767
        %2769 = vmatprep.mubr.bf16.mxu0 %v2194
        %2770 = vmatmul.mubr.bf16.gmra.mxu0 %v2193
        %v2771 = vpop.f32.mrf.mxu0
        %v2772 = vadd.f32 0.0, %v2771
        %v2773 = vpop.f32.mrf.mxu0
        %v2774 = vadd.f32 0.0, %v2773
        %v2775 = vpop.f32.mrf.mxu0
        %v2776 = vadd.f32 0.0, %v2775
        %v2777 = vpop.f32.mrf.mxu0
        %v2778 = vadd.f32 0.0, %v2777
        %2779 = vmatprep.mubr.bf16.mxu0 %v2196
        %2780 = vmatmul.mubr.bf16.gmra.mxu0 %v2195
        %v2781 = vpop.f32.mrf.mxu0
        %v2782 = vadd.f32 0.0, %v2781
        %v2783 = vpop.f32.mrf.mxu0
        %v2784 = vadd.f32 0.0, %v2783
        %v2785 = vpop.f32.mrf.mxu0
        %v2786 = vadd.f32 0.0, %v2785
        %v2787 = vpop.f32.mrf.mxu0
        %v2788 = vadd.f32 0.0, %v2787
        %2789 = vmatprep.mubr.bf16.mxu0 %v2198
        %2790 = vmatmul.mubr.bf16.gmra.mxu0 %v2197
        %v2791 = vpop.f32.mrf.mxu0
        %v2792 = vadd.f32 0.0, %v2791
        %v2793 = vpop.f32.mrf.mxu0
        %v2794 = vadd.f32 0.0, %v2793
        %v2795 = vpop.f32.mrf.mxu0
        %v2796 = vadd.f32 0.0, %v2795
        %v2797 = vpop.f32.mrf.mxu0
        %v2798 = vadd.f32 0.0, %v2797
        %2799 = vmatprep.mubr.bf16.mxu0 %v2200
        %2800 = vmatmul.mubr.bf16.gmra.mxu0 %v2199
        %v2801 = vpop.f32.mrf.mxu0
        %v2802 = vadd.f32 0.0, %v2801
        %v2803 = vpop.f32.mrf.mxu0
        %v2804 = vadd.f32 0.0, %v2803
        %v2805 = vpop.f32.mrf.mxu0
        %v2806 = vadd.f32 0.0, %v2805
        %v2807 = vpop.f32.mrf.mxu0
        %v2808 = vadd.f32 0.0, %v2807
        %2809 = vmatprep.mubr.bf16.mxu0 %v2202
        %2810 = vmatmul.mubr.bf16.gmra.mxu0 %v2201
        %v2811 = vpop.f32.mrf.mxu0
        %v2812 = vadd.f32 0.0, %v2811
        %v2813 = vpop.f32.mrf.mxu0
        %v2814 = vadd.f32 0.0, %v2813
        %v2815 = vpop.f32.mrf.mxu0
        %v2816 = vadd.f32 0.0, %v2815
        %v2817 = vpop.f32.mrf.mxu0
        %v2818 = vadd.f32 0.0, %v2817
        %2819 = vmatprep.mubr.bf16.mxu0 %v2204
        %2820 = vmatmul.mubr.bf16.gmra.mxu0 %v2203
        %v2821 = vpop.f32.mrf.mxu0
        %v2822 = vadd.f32 0.0, %v2821
        %v2823 = vpop.f32.mrf.mxu0
        %v2824 = vadd.f32 0.0, %v2823
        %v2825 = vpop.f32.mrf.mxu0
        %v2826 = vadd.f32 0.0, %v2825
        %v2827 = vpop.f32.mrf.mxu0
        %v2828 = vadd.f32 0.0, %v2827
        %2829 = vmatprep.mubr.bf16.mxu0 %v2206
        %2830 = vmatmul.mubr.bf16.gmra.mxu0 %v2205
        %v2831 = vpop.f32.mrf.mxu0
        %v2832 = vadd.f32 0.0, %v2831
        %v2833 = vpop.f32.mrf.mxu0
        %v2834 = vadd.f32 0.0, %v2833
        %v2835 = vpop.f32.mrf.mxu0
        %v2836 = vadd.f32 0.0, %v2835
        %v2837 = vpop.f32.mrf.mxu0
        %v2838 = vadd.f32 0.0, %v2837
        %2839 = vmatprep.mubr.bf16.mxu0 %v2208
        %2840 = vmatmul.mubr.bf16.gmra.mxu0 %v2207
        %v2841 = vpop.f32.mrf.mxu0
        %v2842 = vadd.f32 0.0, %v2841
        %v2843 = vpop.f32.mrf.mxu0
        %v2844 = vadd.f32 0.0, %v2843
        %v2845 = vpop.f32.mrf.mxu0
        %v2846 = vadd.f32 0.0, %v2845
        %v2847 = vpop.f32.mrf.mxu0
        %v2848 = vadd.f32 0.0, %v2847
        %2849 = vmatprep.mubr.bf16.mxu0 %v2210
        %2850 = vmatmul.mubr.bf16.gmra.mxu0 %v2209
        %v2851 = vpop.f32.mrf.mxu0
        %v2852 = vadd.f32 0.0, %v2851
        %v2853 = vpop.f32.mrf.mxu0
        %v2854 = vadd.f32 0.0, %v2853
        %v2855 = vpop.f32.mrf.mxu0
        %v2856 = vadd.f32 0.0, %v2855
        %v2857 = vpop.f32.mrf.mxu0
        %v2858 = vadd.f32 0.0, %v2857
        %2859 = vmatprep.mubr.bf16.mxu0 %v2212
        %2860 = vmatmul.mubr.bf16.gmra.mxu0 %v2211
        %v2861 = vpop.f32.mrf.mxu0
        %v2862 = vadd.f32 0.0, %v2861
        %v2863 = vpop.f32.mrf.mxu0
        %v2864 = vadd.f32 0.0, %v2863
        %v2865 = vpop.f32.mrf.mxu0
        %v2866 = vadd.f32 0.0, %v2865
        %v2867 = vpop.f32.mrf.mxu0
        %v2868 = vadd.f32 0.0, %v2867
        %2869 = vmatprep.mubr.bf16.mxu0 %v2214
        %2870 = vmatmul.mubr.bf16.gmra.mxu0 %v2213
        %v2871 = vpop.f32.mrf.mxu0
        %v2872 = vadd.f32 0.0, %v2871
        %v2873 = vpop.f32.mrf.mxu0
        %v2874 = vadd.f32 0.0, %v2873
        %v2875 = vpop.f32.mrf.mxu0
        %v2876 = vadd.f32 0.0, %v2875
        %v2877 = vpop.f32.mrf.mxu0
        %v2878 = vadd.f32 0.0, %v2877
        %2879 = vmatprep.mubr.bf16.mxu0 %v2216
        %2880 = vmatmul.mubr.bf16.gmra.mxu0 %v2215
        %v2881 = vpop.f32.mrf.mxu0
        %v2882 = vadd.f32 0.0, %v2881
        %v2883 = vpop.f32.mrf.mxu0
        %v2884 = vadd.f32 0.0, %v2883
        %v2885 = vpop.f32.mrf.mxu0
        %v2886 = vadd.f32 0.0, %v2885
        %v2887 = vpop.f32.mrf.mxu0
        %v2888 = vadd.f32 0.0, %v2887
        %2889 = vmatprep.mubr.bf16.mxu0 %v2218
        %2890 = vmatmul.mubr.bf16.gmra.mxu0 %v2217
        %v2891 = vpop.f32.mrf.mxu0
        %v2892 = vadd.f32 0.0, %v2891
        %v2893 = vpop.f32.mrf.mxu0
        %v2894 = vadd.f32 0.0, %v2893
        %v2895 = vpop.f32.mrf.mxu0
        %v2896 = vadd.f32 0.0, %v2895
        %v2897 = vpop.f32.mrf.mxu0
        %v2898 = vadd.f32 0.0, %v2897
        %2899 = vmatprep.mubr.bf16.mxu0 %v2220
        %2900 = vmatmul.mubr.bf16.gmra.mxu0 %v2219
        %v2901 = vpop.f32.mrf.mxu0
        %v2902 = vadd.f32 0.0, %v2901
        %v2903 = vpop.f32.mrf.mxu0
        %v2904 = vadd.f32 0.0, %v2903
        %v2905 = vpop.f32.mrf.mxu0
        %v2906 = vadd.f32 0.0, %v2905
        %v2907 = vpop.f32.mrf.mxu0
        %v2908 = vadd.f32 0.0, %v2907
        %2909 = vmatprep.mubr.bf16.mxu0 %v2222
        %2910 = vmatmul.mubr.bf16.gmra.mxu0 %v2221
        %v2911 = vpop.f32.mrf.mxu0
        %v2912 = vadd.f32 0.0, %v2911
        %v2913 = vpop.f32.mrf.mxu0
        %v2914 = vadd.f32 0.0, %v2913
        %v2915 = vpop.f32.mrf.mxu0
        %v2916 = vadd.f32 0.0, %v2915
        %v2917 = vpop.f32.mrf.mxu0
        %v2918 = vadd.f32 0.0, %v2917
        %2919 = vmatprep.mubr.bf16.mxu0 %v2224
        %2920 = vmatmul.mubr.bf16.gmra.mxu0 %v2223
        %v2921 = vpop.f32.mrf.mxu0
        %v2922 = vadd.f32 0.0, %v2921
        %v2923 = vpop.f32.mrf.mxu0
        %v2924 = vadd.f32 0.0, %v2923
        %v2925 = vpop.f32.mrf.mxu0
        %v2926 = vadd.f32 0.0, %v2925
        %v2927 = vpop.f32.mrf.mxu0
        %v2928 = vadd.f32 0.0, %v2927
        %2929 = vmatprep.mubr.bf16.mxu0 %v2226
        %2930 = vmatmul.mubr.bf16.gmra.mxu0 %v2225
        %v2931 = vpop.f32.mrf.mxu0
        %v2932 = vadd.f32 0.0, %v2931
        %v2933 = vpop.f32.mrf.mxu0
        %v2934 = vadd.f32 0.0, %v2933
        %v2935 = vpop.f32.mrf.mxu0
        %v2936 = vadd.f32 0.0, %v2935
        %v2937 = vpop.f32.mrf.mxu0
        %v2938 = vadd.f32 0.0, %v2937
        %2939 = vmatprep.mubr.bf16.mxu0 %v2228
        %2940 = vmatmul.mubr.bf16.gmra.mxu0 %v2227
        %v2941 = vpop.f32.mrf.mxu0
        %v2942 = vadd.f32 0.0, %v2941
        %v2943 = vpop.f32.mrf.mxu0
        %v2944 = vadd.f32 0.0, %v2943
        %v2945 = vpop.f32.mrf.mxu0
        %v2946 = vadd.f32 0.0, %v2945
        %v2947 = vpop.f32.mrf.mxu0
        %v2948 = vadd.f32 0.0, %v2947
        %2949 = vmatprep.mubr.bf16.mxu0 %v2230
        %2950 = vmatmul.mubr.bf16.gmra.mxu0 %v2229
        %v2951 = vpop.f32.mrf.mxu0
        %v2952 = vadd.f32 0.0, %v2951
        %v2953 = vpop.f32.mrf.mxu0
        %v2954 = vadd.f32 0.0, %v2953
        %v2955 = vpop.f32.mrf.mxu0
        %v2956 = vadd.f32 0.0, %v2955
        %v2957 = vpop.f32.mrf.mxu0
        %v2958 = vadd.f32 0.0, %v2957
        %2959 = vmatprep.mubr.bf16.mxu0 %v2232
        %2960 = vmatmul.mubr.bf16.gmra.mxu0 %v2231
        %v2961 = vpop.f32.mrf.mxu0
        %v2962 = vadd.f32 0.0, %v2961
        %v2963 = vpop.f32.mrf.mxu0
        %v2964 = vadd.f32 0.0, %v2963
        %v2965 = vpop.f32.mrf.mxu0
        %v2966 = vadd.f32 0.0, %v2965
        %v2967 = vpop.f32.mrf.mxu0
        %v2968 = vadd.f32 0.0, %v2967
        %2969 = vdwg.mxu0
        %2970 = vmatprep.subr.bf16.mxu0 %v2520
        %2971 = vmatpush1.bf16.msra.mxu0 %v2519
        %2972 = vmatprep.subr.bf16.mxu0 %v2516
        %2973 = vmatpush1.bf16.msra.mxu0 %v2515
        %2974 = vmatprep.subr.bf16.mxu0 %v2512
        %2975 = vmatpush1.bf16.msra.mxu0 %v2511
        %2976 = vmatprep.subr.bf16.mxu0 %v2508
        %2977 = vmatpush1.bf16.msra.mxu0 %v2507
        %2978 = vmatprep.subr.bf16.mxu0 %v2504
        %2979 = vmatpush1.bf16.msra.mxu0 %v2503
        %2980 = vmatprep.subr.bf16.mxu0 %v2500
        %2981 = vmatpush1.bf16.msra.mxu0 %v2499
        %2982 = vmatprep.subr.bf16.mxu0 %v2496
        %2983 = vmatpush1.bf16.msra.mxu0 %v2495
        %2984 = vmatprep.subr.bf16.mxu0 %v2492
        %2985 = vmatpush1.bf16.msra.mxu0 %v2491
        %2986 = vmatprep.subr.bf16.mxu0 %v2552
        %2987 = vmatpush2.bf16.msra.mxu0 %v2551
        %2988 = vmatprep.subr.bf16.mxu0 %v2548
        %2989 = vmatpush2.bf16.msra.mxu0 %v2547
        %2990 = vmatprep.subr.bf16.mxu0 %v2544
        %2991 = vmatpush2.bf16.msra.mxu0 %v2543
        %2992 = vmatprep.subr.bf16.mxu0 %v2540
        %2993 = vmatpush2.bf16.msra.mxu0 %v2539
        %2994 = vmatprep.subr.bf16.mxu0 %v2536
        %2995 = vmatpush2.bf16.msra.mxu0 %v2535
        %2996 = vmatprep.subr.bf16.mxu0 %v2532
        %2997 = vmatpush2.bf16.msra.mxu0 %v2531
        %2998 = vmatprep.subr.bf16.mxu0 %v2528
        %2999 = vmatpush2.bf16.msra.mxu0 %v2527
        %3000 = vmatprep.subr.bf16.mxu0 %v2524
        %3001 = vmatpush2.bf16.msra.mxu0 %v2523
        %3002 = vmatprep.mubr.bf16.mxu0 %v2170
        %3003 = vmatmul.mubr.bf16.gmra.mxu0 %v2169
        %v3004 = vpop.f32.mrf.mxu0
        %v3005 = vadd.f32 0.0, %v3004
        %v3006 = vpop.f32.mrf.mxu0
        %v3007 = vadd.f32 0.0, %v3006
        %v3008 = vpop.f32.mrf.mxu0
        %v3009 = vadd.f32 0.0, %v3008
        %v3010 = vpop.f32.mrf.mxu0
        %v3011 = vadd.f32 0.0, %v3010
        %3012 = vmatprep.mubr.bf16.mxu0 %v2172
        %3013 = vmatmul.mubr.bf16.gmra.mxu0 %v2171
        %v3014 = vpop.f32.mrf.mxu0
        %v3015 = vadd.f32 0.0, %v3014
        %v3016 = vpop.f32.mrf.mxu0
        %v3017 = vadd.f32 0.0, %v3016
        %v3018 = vpop.f32.mrf.mxu0
        %v3019 = vadd.f32 0.0, %v3018
        %v3020 = vpop.f32.mrf.mxu0
        %v3021 = vadd.f32 0.0, %v3020
        %3022 = vmatprep.mubr.bf16.mxu0 %v2174
        %3023 = vmatmul.mubr.bf16.gmra.mxu0 %v2173
        %v3024 = vpop.f32.mrf.mxu0
        %v3025 = vadd.f32 0.0, %v3024
        %v3026 = vpop.f32.mrf.mxu0
        %v3027 = vadd.f32 0.0, %v3026
        %v3028 = vpop.f32.mrf.mxu0
        %v3029 = vadd.f32 0.0, %v3028
        %v3030 = vpop.f32.mrf.mxu0
        %v3031 = vadd.f32 0.0, %v3030
        %3032 = vmatprep.mubr.bf16.mxu0 %v2176
        %3033 = vmatmul.mubr.bf16.gmra.mxu0 %v2175
        %v3034 = vpop.f32.mrf.mxu0
        %v3035 = vadd.f32 0.0, %v3034
        %v3036 = vpop.f32.mrf.mxu0
        %v3037 = vadd.f32 0.0, %v3036
        %v3038 = vpop.f32.mrf.mxu0
        %v3039 = vadd.f32 0.0, %v3038
        %v3040 = vpop.f32.mrf.mxu0
        %v3041 = vadd.f32 0.0, %v3040
        %3042 = vmatprep.mubr.bf16.mxu0 %v2178
        %3043 = vmatmul.mubr.bf16.gmra.mxu0 %v2177
        %v3044 = vpop.f32.mrf.mxu0
        %v3045 = vadd.f32 0.0, %v3044
        %v3046 = vpop.f32.mrf.mxu0
        %v3047 = vadd.f32 0.0, %v3046
        %v3048 = vpop.f32.mrf.mxu0
        %v3049 = vadd.f32 0.0, %v3048
        %v3050 = vpop.f32.mrf.mxu0
        %v3051 = vadd.f32 0.0, %v3050
        %3052 = vmatprep.mubr.bf16.mxu0 %v2180
        %3053 = vmatmul.mubr.bf16.gmra.mxu0 %v2179
        %v3054 = vpop.f32.mrf.mxu0
        %v3055 = vadd.f32 0.0, %v3054
        %v3056 = vpop.f32.mrf.mxu0
        %v3057 = vadd.f32 0.0, %v3056
        %v3058 = vpop.f32.mrf.mxu0
        %v3059 = vadd.f32 0.0, %v3058
        %v3060 = vpop.f32.mrf.mxu0
        %v3061 = vadd.f32 0.0, %v3060
        %3062 = vmatprep.mubr.bf16.mxu0 %v2182
        %3063 = vmatmul.mubr.bf16.gmra.mxu0 %v2181
        %v3064 = vpop.f32.mrf.mxu0
        %v3065 = vadd.f32 0.0, %v3064
        %v3066 = vpop.f32.mrf.mxu0
        %v3067 = vadd.f32 0.0, %v3066
        %v3068 = vpop.f32.mrf.mxu0
        %v3069 = vadd.f32 0.0, %v3068
        %v3070 = vpop.f32.mrf.mxu0
        %v3071 = vadd.f32 0.0, %v3070
        %3072 = vmatprep.mubr.bf16.mxu0 %v2184
        %3073 = vmatmul.mubr.bf16.gmra.mxu0 %v2183
        %v3074 = vpop.f32.mrf.mxu0
        %v3075 = vadd.f32 0.0, %v3074
        %v3076 = vpop.f32.mrf.mxu0
        %v3077 = vadd.f32 0.0, %v3076
        %v3078 = vpop.f32.mrf.mxu0
        %v3079 = vadd.f32 0.0, %v3078
        %v3080 = vpop.f32.mrf.mxu0
        %v3081 = vadd.f32 0.0, %v3080
        %3082 = vmatprep.mubr.bf16.mxu0 %v2186
        %3083 = vmatmul.mubr.bf16.gmra.mxu0 %v2185
        %v3084 = vpop.f32.mrf.mxu0
        %v3085 = vadd.f32 0.0, %v3084
        %v3086 = vpop.f32.mrf.mxu0
        %v3087 = vadd.f32 0.0, %v3086
        %v3088 = vpop.f32.mrf.mxu0
        %v3089 = vadd.f32 0.0, %v3088
        %v3090 = vpop.f32.mrf.mxu0
        %v3091 = vadd.f32 0.0, %v3090
        %3092 = vmatprep.mubr.bf16.mxu0 %v2188
        %3093 = vmatmul.mubr.bf16.gmra.mxu0 %v2187
        %v3094 = vpop.f32.mrf.mxu0
        %v3095 = vadd.f32 0.0, %v3094
        %v3096 = vpop.f32.mrf.mxu0
        %v3097 = vadd.f32 0.0, %v3096
        %v3098 = vpop.f32.mrf.mxu0
        %v3099 = vadd.f32 0.0, %v3098
        %v3100 = vpop.f32.mrf.mxu0
        %v3101 = vadd.f32 0.0, %v3100
        %3102 = vmatprep.mubr.bf16.mxu0 %v2190
        %3103 = vmatmul.mubr.bf16.gmra.mxu0 %v2189
        %v3104 = vpop.f32.mrf.mxu0
        %v3105 = vadd.f32 0.0, %v3104
        %v3106 = vpop.f32.mrf.mxu0
        %v3107 = vadd.f32 0.0, %v3106
        %v3108 = vpop.f32.mrf.mxu0
        %v3109 = vadd.f32 0.0, %v3108
        %v3110 = vpop.f32.mrf.mxu0
        %v3111 = vadd.f32 0.0, %v3110
        %3112 = vmatprep.mubr.bf16.mxu0 %v2192
        %3113 = vmatmul.mubr.bf16.gmra.mxu0 %v2191
        %v3114 = vpop.f32.mrf.mxu0
        %v3115 = vadd.f32 0.0, %v3114
        %v3116 = vpop.f32.mrf.mxu0
        %v3117 = vadd.f32 0.0, %v3116
        %v3118 = vpop.f32.mrf.mxu0
        %v3119 = vadd.f32 0.0, %v3118
        %v3120 = vpop.f32.mrf.mxu0
        %v3121 = vadd.f32 0.0, %v3120
        %3122 = vmatprep.mubr.bf16.mxu0 %v2194
        %3123 = vmatmul.mubr.bf16.gmra.mxu0 %v2193
        %v3124 = vpop.f32.mrf.mxu0
        %v3125 = vadd.f32 0.0, %v3124
        %v3126 = vpop.f32.mrf.mxu0
        %v3127 = vadd.f32 0.0, %v3126
        %v3128 = vpop.f32.mrf.mxu0
        %v3129 = vadd.f32 0.0, %v3128
        %v3130 = vpop.f32.mrf.mxu0
        %v3131 = vadd.f32 0.0, %v3130
        %3132 = vmatprep.mubr.bf16.mxu0 %v2196
        %3133 = vmatmul.mubr.bf16.gmra.mxu0 %v2195
        %v3134 = vpop.f32.mrf.mxu0
        %v3135 = vadd.f32 0.0, %v3134
        %v3136 = vpop.f32.mrf.mxu0
        %v3137 = vadd.f32 0.0, %v3136
        %v3138 = vpop.f32.mrf.mxu0
        %v3139 = vadd.f32 0.0, %v3138
        %v3140 = vpop.f32.mrf.mxu0
        %v3141 = vadd.f32 0.0, %v3140
        %3142 = vmatprep.mubr.bf16.mxu0 %v2198
        %3143 = vmatmul.mubr.bf16.gmra.mxu0 %v2197
        %v3144 = vpop.f32.mrf.mxu0
        %v3145 = vadd.f32 0.0, %v3144
        %v3146 = vpop.f32.mrf.mxu0
        %v3147 = vadd.f32 0.0, %v3146
        %v3148 = vpop.f32.mrf.mxu0
        %v3149 = vadd.f32 0.0, %v3148
        %v3150 = vpop.f32.mrf.mxu0
        %v3151 = vadd.f32 0.0, %v3150
        %3152 = vmatprep.mubr.bf16.mxu0 %v2200
        %3153 = vmatmul.mubr.bf16.gmra.mxu0 %v2199
        %v3154 = vpop.f32.mrf.mxu0
        %v3155 = vadd.f32 0.0, %v3154
        %v3156 = vpop.f32.mrf.mxu0
        %v3157 = vadd.f32 0.0, %v3156
        %v3158 = vpop.f32.mrf.mxu0
        %v3159 = vadd.f32 0.0, %v3158
        %v3160 = vpop.f32.mrf.mxu0
        %v3161 = vadd.f32 0.0, %v3160
        %3162 = vmatprep.mubr.bf16.mxu0 %v2202
        %3163 = vmatmul.mubr.bf16.gmra.mxu0 %v2201
        %v3164 = vpop.f32.mrf.mxu0
        %v3165 = vadd.f32 0.0, %v3164
        %v3166 = vpop.f32.mrf.mxu0
        %v3167 = vadd.f32 0.0, %v3166
        %v3168 = vpop.f32.mrf.mxu0
        %v3169 = vadd.f32 0.0, %v3168
        %v3170 = vpop.f32.mrf.mxu0
        %v3171 = vadd.f32 0.0, %v3170
        %3172 = vmatprep.mubr.bf16.mxu0 %v2204
        %3173 = vmatmul.mubr.bf16.gmra.mxu0 %v2203
        %v3174 = vpop.f32.mrf.mxu0
        %v3175 = vadd.f32 0.0, %v3174
        %v3176 = vpop.f32.mrf.mxu0
        %v3177 = vadd.f32 0.0, %v3176
        %v3178 = vpop.f32.mrf.mxu0
        %v3179 = vadd.f32 0.0, %v3178
        %v3180 = vpop.f32.mrf.mxu0
        %v3181 = vadd.f32 0.0, %v3180
        %3182 = vmatprep.mubr.bf16.mxu0 %v2206
        %3183 = vmatmul.mubr.bf16.gmra.mxu0 %v2205
        %v3184 = vpop.f32.mrf.mxu0
        %v3185 = vadd.f32 0.0, %v3184
        %v3186 = vpop.f32.mrf.mxu0
        %v3187 = vadd.f32 0.0, %v3186
        %v3188 = vpop.f32.mrf.mxu0
        %v3189 = vadd.f32 0.0, %v3188
        %v3190 = vpop.f32.mrf.mxu0
        %v3191 = vadd.f32 0.0, %v3190
        %3192 = vmatprep.mubr.bf16.mxu0 %v2208
        %3193 = vmatmul.mubr.bf16.gmra.mxu0 %v2207
        %v3194 = vpop.f32.mrf.mxu0
        %v3195 = vadd.f32 0.0, %v3194
        %v3196 = vpop.f32.mrf.mxu0
        %v3197 = vadd.f32 0.0, %v3196
        %v3198 = vpop.f32.mrf.mxu0
        %v3199 = vadd.f32 0.0, %v3198
        %v3200 = vpop.f32.mrf.mxu0
        %v3201 = vadd.f32 0.0, %v3200
        %3202 = vmatprep.mubr.bf16.mxu0 %v2210
        %3203 = vmatmul.mubr.bf16.gmra.mxu0 %v2209
        %v3204 = vpop.f32.mrf.mxu0
        %v3205 = vadd.f32 0.0, %v3204
        %v3206 = vpop.f32.mrf.mxu0
        %v3207 = vadd.f32 0.0, %v3206
        %v3208 = vpop.f32.mrf.mxu0
        %v3209 = vadd.f32 0.0, %v3208
        %v3210 = vpop.f32.mrf.mxu0
        %v3211 = vadd.f32 0.0, %v3210
        %3212 = vmatprep.mubr.bf16.mxu0 %v2212
        %3213 = vmatmul.mubr.bf16.gmra.mxu0 %v2211
        %v3214 = vpop.f32.mrf.mxu0
        %v3215 = vadd.f32 0.0, %v3214
        %v3216 = vpop.f32.mrf.mxu0
        %v3217 = vadd.f32 0.0, %v3216
        %v3218 = vpop.f32.mrf.mxu0
        %v3219 = vadd.f32 0.0, %v3218
        %v3220 = vpop.f32.mrf.mxu0
        %v3221 = vadd.f32 0.0, %v3220
        %3222 = vmatprep.mubr.bf16.mxu0 %v2214
        %3223 = vmatmul.mubr.bf16.gmra.mxu0 %v2213
        %v3224 = vpop.f32.mrf.mxu0
        %v3225 = vadd.f32 0.0, %v3224
        %v3226 = vpop.f32.mrf.mxu0
        %v3227 = vadd.f32 0.0, %v3226
        %v3228 = vpop.f32.mrf.mxu0
        %v3229 = vadd.f32 0.0, %v3228
        %v3230 = vpop.f32.mrf.mxu0
        %v3231 = vadd.f32 0.0, %v3230
        %3232 = vmatprep.mubr.bf16.mxu0 %v2216
        %3233 = vmatmul.mubr.bf16.gmra.mxu0 %v2215
        %v3234 = vpop.f32.mrf.mxu0
        %v3235 = vadd.f32 0.0, %v3234
        %v3236 = vpop.f32.mrf.mxu0
        %v3237 = vadd.f32 0.0, %v3236
        %v3238 = vpop.f32.mrf.mxu0
        %v3239 = vadd.f32 0.0, %v3238
        %v3240 = vpop.f32.mrf.mxu0
        %v3241 = vadd.f32 0.0, %v3240
        %3242 = vmatprep.mubr.bf16.mxu0 %v2218
        %3243 = vmatmul.mubr.bf16.gmra.mxu0 %v2217
        %v3244 = vpop.f32.mrf.mxu0
        %v3245 = vadd.f32 0.0, %v3244
        %v3246 = vpop.f32.mrf.mxu0
        %v3247 = vadd.f32 0.0, %v3246
        %v3248 = vpop.f32.mrf.mxu0
        %v3249 = vadd.f32 0.0, %v3248
        %v3250 = vpop.f32.mrf.mxu0
        %v3251 = vadd.f32 0.0, %v3250
        %3252 = vmatprep.mubr.bf16.mxu0 %v2220
        %3253 = vmatmul.mubr.bf16.gmra.mxu0 %v2219
        %v3254 = vpop.f32.mrf.mxu0
        %v3255 = vadd.f32 0.0, %v3254
        %v3256 = vpop.f32.mrf.mxu0
        %v3257 = vadd.f32 0.0, %v3256
        %v3258 = vpop.f32.mrf.mxu0
        %v3259 = vadd.f32 0.0, %v3258
        %v3260 = vpop.f32.mrf.mxu0
        %v3261 = vadd.f32 0.0, %v3260
        %3262 = vmatprep.mubr.bf16.mxu0 %v2222
        %3263 = vmatmul.mubr.bf16.gmra.mxu0 %v2221
        %v3264 = vpop.f32.mrf.mxu0
        %v3265 = vadd.f32 0.0, %v3264
        %v3266 = vpop.f32.mrf.mxu0
        %v3267 = vadd.f32 0.0, %v3266
        %v3268 = vpop.f32.mrf.mxu0
        %v3269 = vadd.f32 0.0, %v3268
        %v3270 = vpop.f32.mrf.mxu0
        %v3271 = vadd.f32 0.0, %v3270
        %3272 = vmatprep.mubr.bf16.mxu0 %v2224
        %3273 = vmatmul.mubr.bf16.gmra.mxu0 %v2223
        %v3274 = vpop.f32.mrf.mxu0
        %v3275 = vadd.f32 0.0, %v3274
        %v3276 = vpop.f32.mrf.mxu0
        %v3277 = vadd.f32 0.0, %v3276
        %v3278 = vpop.f32.mrf.mxu0
        %v3279 = vadd.f32 0.0, %v3278
        %v3280 = vpop.f32.mrf.mxu0
        %v3281 = vadd.f32 0.0, %v3280
        %3282 = vmatprep.mubr.bf16.mxu0 %v2226
        %3283 = vmatmul.mubr.bf16.gmra.mxu0 %v2225
        %v3284 = vpop.f32.mrf.mxu0
        %v3285 = vadd.f32 0.0, %v3284
        %v3286 = vpop.f32.mrf.mxu0
        %v3287 = vadd.f32 0.0, %v3286
        %v3288 = vpop.f32.mrf.mxu0
        %v3289 = vadd.f32 0.0, %v3288
        %v3290 = vpop.f32.mrf.mxu0
        %v3291 = vadd.f32 0.0, %v3290
        %3292 = vmatprep.mubr.bf16.mxu0 %v2228
        %3293 = vmatmul.mubr.bf16.gmra.mxu0 %v2227
        %v3294 = vpop.f32.mrf.mxu0
        %v3295 = vadd.f32 0.0, %v3294
        %v3296 = vpop.f32.mrf.mxu0
        %v3297 = vadd.f32 0.0, %v3296
        %v3298 = vpop.f32.mrf.mxu0
        %v3299 = vadd.f32 0.0, %v3298
        %v3300 = vpop.f32.mrf.mxu0
        %v3301 = vadd.f32 0.0, %v3300
        %3302 = vmatprep.mubr.bf16.mxu0 %v2230
        %3303 = vmatmul.mubr.bf16.gmra.mxu0 %v2229
        %v3304 = vpop.f32.mrf.mxu0
        %v3305 = vadd.f32 0.0, %v3304
        %v3306 = vpop.f32.mrf.mxu0
        %v3307 = vadd.f32 0.0, %v3306
        %v3308 = vpop.f32.mrf.mxu0
        %v3309 = vadd.f32 0.0, %v3308
        %v3310 = vpop.f32.mrf.mxu0
        %v3311 = vadd.f32 0.0, %v3310
        %3312 = vmatprep.mubr.bf16.mxu0 %v2232
        %3313 = vmatmul.mubr.bf16.gmra.mxu0 %v2231
        %v3314 = vpop.f32.mrf.mxu0
        %v3315 = vadd.f32 0.0, %v3314
        %v3316 = vpop.f32.mrf.mxu0
        %v3317 = vadd.f32 0.0, %v3316
        %v3318 = vpop.f32.mrf.mxu0
        %v3319 = vadd.f32 0.0, %v3318
        %v3320 = vpop.f32.mrf.mxu0
        %v3321 = vadd.f32 0.0, %v3320
        %3322 = vdwg.mxu0
        %v3323 = vpack.c.bf16 %v2656, %v2652
        %v3324 = vpack.c.bf16 %v2658, %v2654
        %v3325 = vpack.c.bf16 %v3009, %v3005
        %v3326 = vpack.c.bf16 %v3011, %v3007
        %v3327 = vpack.c.bf16 %v2666, %v2662
        %v3328 = vpack.c.bf16 %v2668, %v2664
        %v3329 = vpack.c.bf16 %v3019, %v3015
        %v3330 = vpack.c.bf16 %v3021, %v3017
        %v3331 = vpack.c.bf16 %v2676, %v2672
        %v3332 = vpack.c.bf16 %v2678, %v2674
        %v3333 = vpack.c.bf16 %v3029, %v3025
        %v3334 = vpack.c.bf16 %v3031, %v3027
        %v3335 = vpack.c.bf16 %v2686, %v2682
        %v3336 = vpack.c.bf16 %v2688, %v2684
        %v3337 = vpack.c.bf16 %v3039, %v3035
        %v3338 = vpack.c.bf16 %v3041, %v3037
        %v3339 = vpack.c.bf16 %v2696, %v2692
        %v3340 = vpack.c.bf16 %v2698, %v2694
        %v3341 = vpack.c.bf16 %v3049, %v3045
        %v3342 = vpack.c.bf16 %v3051, %v3047
        %v3343 = vpack.c.bf16 %v2706, %v2702
        %v3344 = vpack.c.bf16 %v2708, %v2704
        %v3345 = vpack.c.bf16 %v3059, %v3055
        %v3346 = vpack.c.bf16 %v3061, %v3057
        %v3347 = vpack.c.bf16 %v2716, %v2712
        %v3348 = vpack.c.bf16 %v2718, %v2714
        %v3349 = vpack.c.bf16 %v3069, %v3065
        %v3350 = vpack.c.bf16 %v3071, %v3067
        %v3351 = vpack.c.bf16 %v2726, %v2722
        %v3352 = vpack.c.bf16 %v2728, %v2724
        %v3353 = vpack.c.bf16 %v3079, %v3075
        %v3354 = vpack.c.bf16 %v3081, %v3077
        %v3355 = vpack.c.bf16 %v2736, %v2732
        %v3356 = vpack.c.bf16 %v2738, %v2734
        %v3357 = vpack.c.bf16 %v3089, %v3085
        %v3358 = vpack.c.bf16 %v3091, %v3087
        %v3359 = vpack.c.bf16 %v2746, %v2742
        %v3360 = vpack.c.bf16 %v2748, %v2744
        %v3361 = vpack.c.bf16 %v3099, %v3095
        %v3362 = vpack.c.bf16 %v3101, %v3097
        %v3363 = vpack.c.bf16 %v2756, %v2752
        %v3364 = vpack.c.bf16 %v2758, %v2754
        %v3365 = vpack.c.bf16 %v3109, %v3105
        %v3366 = vpack.c.bf16 %v3111, %v3107
        %v3367 = vpack.c.bf16 %v2766, %v2762
        %v3368 = vpack.c.bf16 %v2768, %v2764
        %v3369 = vpack.c.bf16 %v3119, %v3115
        %v3370 = vpack.c.bf16 %v3121, %v3117
        %v3371 = vpack.c.bf16 %v2776, %v2772
        %v3372 = vpack.c.bf16 %v2778, %v2774
        %v3373 = vpack.c.bf16 %v3129, %v3125
        %v3374 = vpack.c.bf16 %v3131, %v3127
        %v3375 = vpack.c.bf16 %v2786, %v2782
        %v3376 = vpack.c.bf16 %v2788, %v2784
        %v3377 = vpack.c.bf16 %v3139, %v3135
        %v3378 = vpack.c.bf16 %v3141, %v3137
        %v3379 = vpack.c.bf16 %v2796, %v2792
        %v3380 = vpack.c.bf16 %v2798, %v2794
        %v3381 = vpack.c.bf16 %v3149, %v3145
        %v3382 = vpack.c.bf16 %v3151, %v3147
        %v3383 = vpack.c.bf16 %v2806, %v2802
        %v3384 = vpack.c.bf16 %v2808, %v2804
        %v3385 = vpack.c.bf16 %v3159, %v3155
        %v3386 = vpack.c.bf16 %v3161, %v3157
        %v3387 = vpack.c.bf16 %v2816, %v2812
        %v3388 = vpack.c.bf16 %v2818, %v2814
        %v3389 = vpack.c.bf16 %v3169, %v3165
        %v3390 = vpack.c.bf16 %v3171, %v3167
        %v3391 = vpack.c.bf16 %v2826, %v2822
        %v3392 = vpack.c.bf16 %v2828, %v2824
        %v3393 = vpack.c.bf16 %v3179, %v3175
        %v3394 = vpack.c.bf16 %v3181, %v3177
        %v3395 = vpack.c.bf16 %v2836, %v2832
        %v3396 = vpack.c.bf16 %v2838, %v2834
        %v3397 = vpack.c.bf16 %v3189, %v3185
        %v3398 = vpack.c.bf16 %v3191, %v3187
        %v3399 = vpack.c.bf16 %v2846, %v2842
        %v3400 = vpack.c.bf16 %v2848, %v2844
        %v3401 = vpack.c.bf16 %v3199, %v3195
        %v3402 = vpack.c.bf16 %v3201, %v3197
        %v3403 = vpack.c.bf16 %v2856, %v2852
        %v3404 = vpack.c.bf16 %v2858, %v2854
        %v3405 = vpack.c.bf16 %v3209, %v3205
        %v3406 = vpack.c.bf16 %v3211, %v3207
        %v3407 = vpack.c.bf16 %v2866, %v2862
        %v3408 = vpack.c.bf16 %v2868, %v2864
        %v3409 = vpack.c.bf16 %v3219, %v3215
        %v3410 = vpack.c.bf16 %v3221, %v3217
        %v3411 = vpack.c.bf16 %v2876, %v2872
        %v3412 = vpack.c.bf16 %v2878, %v2874
        %v3413 = vpack.c.bf16 %v3229, %v3225
        %v3414 = vpack.c.bf16 %v3231, %v3227
        %v3415 = vpack.c.bf16 %v2886, %v2882
        %v3416 = vpack.c.bf16 %v2888, %v2884
        %v3417 = vpack.c.bf16 %v3239, %v3235
        %v3418 = vpack.c.bf16 %v3241, %v3237
        %v3419 = vpack.c.bf16 %v2896, %v2892
        %v3420 = vpack.c.bf16 %v2898, %v2894
        %v3421 = vpack.c.bf16 %v3249, %v3245
        %v3422 = vpack.c.bf16 %v3251, %v3247
        %v3423 = vpack.c.bf16 %v2906, %v2902
        %v3424 = vpack.c.bf16 %v2908, %v2904
        %v3425 = vpack.c.bf16 %v3259, %v3255
        %v3426 = vpack.c.bf16 %v3261, %v3257
        %v3427 = vpack.c.bf16 %v2916, %v2912
        %v3428 = vpack.c.bf16 %v2918, %v2914
        %v3429 = vpack.c.bf16 %v3269, %v3265
        %v3430 = vpack.c.bf16 %v3271, %v3267
        %v3431 = vpack.c.bf16 %v2926, %v2922
        %v3432 = vpack.c.bf16 %v2928, %v2924
        %v3433 = vpack.c.bf16 %v3279, %v3275
        %v3434 = vpack.c.bf16 %v3281, %v3277
        %v3435 = vpack.c.bf16 %v2936, %v2932
        %v3436 = vpack.c.bf16 %v2938, %v2934
        %v3437 = vpack.c.bf16 %v3289, %v3285
        %v3438 = vpack.c.bf16 %v3291, %v3287
        %v3439 = vpack.c.bf16 %v2946, %v2942
        %v3440 = vpack.c.bf16 %v2948, %v2944
        %v3441 = vpack.c.bf16 %v3299, %v3295
        %v3442 = vpack.c.bf16 %v3301, %v3297
        %v3443 = vpack.c.bf16 %v2956, %v2952
        %v3444 = vpack.c.bf16 %v2958, %v2954
        %v3445 = vpack.c.bf16 %v3309, %v3305
        %v3446 = vpack.c.bf16 %v3311, %v3307
        %v3447 = vpack.c.bf16 %v2966, %v2962
        %v3448 = vpack.c.bf16 %v2968, %v2964
        %v3449 = vpack.c.bf16 %v3319, %v3315
        %v3450 = vpack.c.bf16 %v3321, %v3317
        %v3451 = vld [vmem:[%s6] sm:$0xf]
        %v3454 = vunpack.c.l.s4 1966171168
        %v3455 = vunpack.c.0.s8 %v3454
        %v3456 = vlaneseq
        %v3457 = vshrl.u32 %v3456, 7
        %v3458 = vsub.s32 %v3455, %v3457
        %v3459 = vrot.slane %v3451, %v3458
        %v3460 = vcombine.high %v3459, %v3459
        %v3462 = vunpack.c.l.s4 1966171168
        %v3463 = vunpack.c.0.s8 %v3462
        %v3464 = vlaneseq
        %v3465 = vshrl.u32 %v3464, 7
        %v3466 = vsub.s32 %v3463, %v3465
        %v3467 = vrot.slane %v3459, %v3466
        %v3469 = vunpack.c.l.s4 1966171168
        %v3470 = vunpack.c.0.s8 %v3469
        %v3471 = vlaneseq
        %v3472 = vshrl.u32 %v3471, 7
        %v3473 = vsub.s32 %v3470, %v3472
        %v3474 = vrot.slane %v3460, %v3473
        %v3475 = vcombine.high %v3467, %v3467
        %v3476 = vcombine.high %v3474, %v3474
        %v3478 = vpack.i.b16 %v3467, %v3467
        %v3480 = vlaneseq
        %v3481 = vshrl.u32 %v3480, 7
        %v3482 = vsub.s32 0, %v3481
        %v3483 = vrot.slane %v3478, %v3482
        %v3485 = vpack.i.b16 %v3474, %v3474
        %v3487 = vlaneseq
        %v3488 = vshrl.u32 %v3487, 7
        %v3489 = vsub.s32 0, %v3488
        %v3490 = vrot.slane %v3485, %v3489
        %v3492 = vpack.i.b16 %v3475, %v3475
        %v3494 = vlaneseq
        %v3495 = vshrl.u32 %v3494, 7
        %v3496 = vsub.s32 0, %v3495
        %v3497 = vrot.slane %v3492, %v3496
        %v3499 = vpack.i.b16 %v3476, %v3476
        %v3501 = vlaneseq
        %v3502 = vshrl.u32 %v3501, 7
        %v3503 = vsub.s32 0, %v3502
        %v3504 = vrot.slane %v3499, %v3503
        %v3505 = vadd.bf16 %v3323, %v3483
        %v3506 = vadd.bf16 %v3324, %v3490
        %v3507 = vadd.bf16 %v3325, %v3497
        %v3508 = vadd.bf16 %v3326, %v3504
        %v3509 = vadd.bf16 %v3327, %v3483
        %v3510 = vadd.bf16 %v3328, %v3490
        %v3511 = vadd.bf16 %v3329, %v3497
        %v3512 = vadd.bf16 %v3330, %v3504
        %v3513 = vadd.bf16 %v3331, %v3483
        %v3514 = vadd.bf16 %v3332, %v3490
        %v3515 = vadd.bf16 %v3333, %v3497
        %v3516 = vadd.bf16 %v3334, %v3504
        %v3517 = vadd.bf16 %v3335, %v3483
        %v3518 = vadd.bf16 %v3336, %v3490
        %v3519 = vadd.bf16 %v3337, %v3497
        %v3520 = vadd.bf16 %v3338, %v3504
        %v3521 = vadd.bf16 %v3339, %v3483
        %v3522 = vadd.bf16 %v3340, %v3490
        %v3523 = vadd.bf16 %v3341, %v3497
        %v3524 = vadd.bf16 %v3342, %v3504
        %v3525 = vadd.bf16 %v3343, %v3483
        %v3526 = vadd.bf16 %v3344, %v3490
        %v3527 = vadd.bf16 %v3345, %v3497
        %v3528 = vadd.bf16 %v3346, %v3504
        %v3529 = vadd.bf16 %v3347, %v3483
        %v3530 = vadd.bf16 %v3348, %v3490
        %v3531 = vadd.bf16 %v3349, %v3497
        %v3532 = vadd.bf16 %v3350, %v3504
        %v3533 = vadd.bf16 %v3351, %v3483
        %v3534 = vadd.bf16 %v3352, %v3490
        %v3535 = vadd.bf16 %v3353, %v3497
        %v3536 = vadd.bf16 %v3354, %v3504
        %v3537 = vadd.bf16 %v3355, %v3483
        %v3538 = vadd.bf16 %v3356, %v3490
        %v3539 = vadd.bf16 %v3357, %v3497
        %v3540 = vadd.bf16 %v3358, %v3504
        %v3541 = vadd.bf16 %v3359, %v3483
        %v3542 = vadd.bf16 %v3360, %v3490
        %v3543 = vadd.bf16 %v3361, %v3497
        %v3544 = vadd.bf16 %v3362, %v3504
        %v3545 = vadd.bf16 %v3363, %v3483
        %v3546 = vadd.bf16 %v3364, %v3490
        %v3547 = vadd.bf16 %v3365, %v3497
        %v3548 = vadd.bf16 %v3366, %v3504
        %v3549 = vadd.bf16 %v3367, %v3483
        %v3550 = vadd.bf16 %v3368, %v3490
        %v3551 = vadd.bf16 %v3369, %v3497
        %v3552 = vadd.bf16 %v3370, %v3504
        %v3553 = vadd.bf16 %v3371, %v3483
        %v3554 = vadd.bf16 %v3372, %v3490
        %v3555 = vadd.bf16 %v3373, %v3497
        %v3556 = vadd.bf16 %v3374, %v3504
        %v3557 = vadd.bf16 %v3375, %v3483
        %v3558 = vadd.bf16 %v3376, %v3490
        %v3559 = vadd.bf16 %v3377, %v3497
        %v3560 = vadd.bf16 %v3378, %v3504
        %v3561 = vadd.bf16 %v3379, %v3483
        %v3562 = vadd.bf16 %v3380, %v3490
        %v3563 = vadd.bf16 %v3381, %v3497
        %v3564 = vadd.bf16 %v3382, %v3504
        %v3565 = vadd.bf16 %v3383, %v3483
        %v3566 = vadd.bf16 %v3384, %v3490
        %v3567 = vadd.bf16 %v3385, %v3497
        %v3568 = vadd.bf16 %v3386, %v3504
        %v3569 = vadd.bf16 %v3387, %v3483
        %v3570 = vadd.bf16 %v3388, %v3490
        %v3571 = vadd.bf16 %v3389, %v3497
        %v3572 = vadd.bf16 %v3390, %v3504
        %v3573 = vadd.bf16 %v3391, %v3483
        %v3574 = vadd.bf16 %v3392, %v3490
        %v3575 = vadd.bf16 %v3393, %v3497
        %v3576 = vadd.bf16 %v3394, %v3504
        %v3577 = vadd.bf16 %v3395, %v3483
        %v3578 = vadd.bf16 %v3396, %v3490
        %v3579 = vadd.bf16 %v3397, %v3497
        %v3580 = vadd.bf16 %v3398, %v3504
        %v3581 = vadd.bf16 %v3399, %v3483
        %v3582 = vadd.bf16 %v3400, %v3490
        %v3583 = vadd.bf16 %v3401, %v3497
        %v3584 = vadd.bf16 %v3402, %v3504
        %v3585 = vadd.bf16 %v3403, %v3483
        %v3586 = vadd.bf16 %v3404, %v3490
        %v3587 = vadd.bf16 %v3405, %v3497
        %v3588 = vadd.bf16 %v3406, %v3504
        %v3589 = vadd.bf16 %v3407, %v3483
        %v3590 = vadd.bf16 %v3408, %v3490
        %v3591 = vadd.bf16 %v3409, %v3497
        %v3592 = vadd.bf16 %v3410, %v3504
        %v3593 = vadd.bf16 %v3411, %v3483
        %v3594 = vadd.bf16 %v3412, %v3490
        %v3595 = vadd.bf16 %v3413, %v3497
        %v3596 = vadd.bf16 %v3414, %v3504
        %v3597 = vadd.bf16 %v3415, %v3483
        %v3598 = vadd.bf16 %v3416, %v3490
        %v3599 = vadd.bf16 %v3417, %v3497
        %v3600 = vadd.bf16 %v3418, %v3504
        %v3601 = vadd.bf16 %v3419, %v3483
        %v3602 = vadd.bf16 %v3420, %v3490
        %v3603 = vadd.bf16 %v3421, %v3497
        %v3604 = vadd.bf16 %v3422, %v3504
        %v3605 = vadd.bf16 %v3423, %v3483
        %v3606 = vadd.bf16 %v3424, %v3490
        %v3607 = vadd.bf16 %v3425, %v3497
        %v3608 = vadd.bf16 %v3426, %v3504
        %v3609 = vadd.bf16 %v3427, %v3483
        %v3610 = vadd.bf16 %v3428, %v3490
        %v3611 = vadd.bf16 %v3429, %v3497
        %v3612 = vadd.bf16 %v3430, %v3504
        %v3613 = vadd.bf16 %v3431, %v3483
        %v3614 = vadd.bf16 %v3432, %v3490
        %v3615 = vadd.bf16 %v3433, %v3497
        %v3616 = vadd.bf16 %v3434, %v3504
        %v3617 = vadd.bf16 %v3435, %v3483
        %v3618 = vadd.bf16 %v3436, %v3490
        %v3619 = vadd.bf16 %v3437, %v3497
        %v3620 = vadd.bf16 %v3438, %v3504
        %v3621 = vadd.bf16 %v3439, %v3483
        %v3622 = vadd.bf16 %v3440, %v3490
        %v3623 = vadd.bf16 %v3441, %v3497
        %v3624 = vadd.bf16 %v3442, %v3504
        %v3625 = vadd.bf16 %v3443, %v3483
        %v3626 = vadd.bf16 %v3444, %v3490
        %v3627 = vadd.bf16 %v3445, %v3497
        %v3628 = vadd.bf16 %v3446, %v3504
        %v3629 = vadd.bf16 %v3447, %v3483
        %v3630 = vadd.bf16 %v3448, %v3490
        %v3631 = vadd.bf16 %v3449, %v3497
        %v3632 = vadd.bf16 %v3450, %v3504
        %v3633 = vmax.bf16 %v3505, 0
        %v3634 = vmax.bf16 %v3506, 0
        %v3635 = vmax.bf16 %v3507, 0
        %v3636 = vmax.bf16 %v3508, 0
        %v3637 = vmax.bf16 %v3509, 0
        %v3638 = vmax.bf16 %v3510, 0
        %v3639 = vmax.bf16 %v3511, 0
        %v3640 = vmax.bf16 %v3512, 0
        %v3641 = vmax.bf16 %v3513, 0
        %v3642 = vmax.bf16 %v3514, 0
        %v3643 = vmax.bf16 %v3515, 0
        %v3644 = vmax.bf16 %v3516, 0
        %v3645 = vmax.bf16 %v3517, 0
        %v3646 = vmax.bf16 %v3518, 0
        %v3647 = vmax.bf16 %v3519, 0
        %v3648 = vmax.bf16 %v3520, 0
        %v3649 = vmax.bf16 %v3521, 0
        %v3650 = vmax.bf16 %v3522, 0
        %v3651 = vmax.bf16 %v3523, 0
        %v3652 = vmax.bf16 %v3524, 0
        %v3653 = vmax.bf16 %v3525, 0
        %v3654 = vmax.bf16 %v3526, 0
        %v3655 = vmax.bf16 %v3527, 0
        %v3656 = vmax.bf16 %v3528, 0
        %v3657 = vmax.bf16 %v3529, 0
        %v3658 = vmax.bf16 %v3530, 0
        %v3659 = vmax.bf16 %v3531, 0
        %v3660 = vmax.bf16 %v3532, 0
        %v3661 = vmax.bf16 %v3533, 0
        %v3662 = vmax.bf16 %v3534, 0
        %v3663 = vmax.bf16 %v3535, 0
        %v3664 = vmax.bf16 %v3536, 0
        %v3665 = vmax.bf16 %v3537, 0
        %v3666 = vmax.bf16 %v3538, 0
        %v3667 = vmax.bf16 %v3539, 0
        %v3668 = vmax.bf16 %v3540, 0
        %v3669 = vmax.bf16 %v3541, 0
        %v3670 = vmax.bf16 %v3542, 0
        %v3671 = vmax.bf16 %v3543, 0
        %v3672 = vmax.bf16 %v3544, 0
        %v3673 = vmax.bf16 %v3545, 0
        %v3674 = vmax.bf16 %v3546, 0
        %v3675 = vmax.bf16 %v3547, 0
        %v3676 = vmax.bf16 %v3548, 0
        %v3677 = vmax.bf16 %v3549, 0
        %v3678 = vmax.bf16 %v3550, 0
        %v3679 = vmax.bf16 %v3551, 0
        %v3680 = vmax.bf16 %v3552, 0
        %v3681 = vmax.bf16 %v3553, 0
        %v3682 = vmax.bf16 %v3554, 0
        %v3683 = vmax.bf16 %v3555, 0
        %v3684 = vmax.bf16 %v3556, 0
        %v3685 = vmax.bf16 %v3557, 0
        %v3686 = vmax.bf16 %v3558, 0
        %v3687 = vmax.bf16 %v3559, 0
        %v3688 = vmax.bf16 %v3560, 0
        %v3689 = vmax.bf16 %v3561, 0
        %v3690 = vmax.bf16 %v3562, 0
        %v3691 = vmax.bf16 %v3563, 0
        %v3692 = vmax.bf16 %v3564, 0
        %v3693 = vmax.bf16 %v3565, 0
        %v3694 = vmax.bf16 %v3566, 0
        %v3695 = vmax.bf16 %v3567, 0
        %v3696 = vmax.bf16 %v3568, 0
        %v3697 = vmax.bf16 %v3569, 0
        %v3698 = vmax.bf16 %v3570, 0
        %v3699 = vmax.bf16 %v3571, 0
        %v3700 = vmax.bf16 %v3572, 0
        %v3701 = vmax.bf16 %v3573, 0
        %v3702 = vmax.bf16 %v3574, 0
        %v3703 = vmax.bf16 %v3575, 0
        %v3704 = vmax.bf16 %v3576, 0
        %v3705 = vmax.bf16 %v3577, 0
        %v3706 = vmax.bf16 %v3578, 0
        %v3707 = vmax.bf16 %v3579, 0
        %v3708 = vmax.bf16 %v3580, 0
        %v3709 = vmax.bf16 %v3581, 0
        %v3710 = vmax.bf16 %v3582, 0
        %v3711 = vmax.bf16 %v3583, 0
        %v3712 = vmax.bf16 %v3584, 0
        %v3713 = vmax.bf16 %v3585, 0
        %v3714 = vmax.bf16 %v3586, 0
        %v3715 = vmax.bf16 %v3587, 0
        %v3716 = vmax.bf16 %v3588, 0
        %v3717 = vmax.bf16 %v3589, 0
        %v3718 = vmax.bf16 %v3590, 0
        %v3719 = vmax.bf16 %v3591, 0
        %v3720 = vmax.bf16 %v3592, 0
        %v3721 = vmax.bf16 %v3593, 0
        %v3722 = vmax.bf16 %v3594, 0
        %v3723 = vmax.bf16 %v3595, 0
        %v3724 = vmax.bf16 %v3596, 0
        %v3725 = vmax.bf16 %v3597, 0
        %v3726 = vmax.bf16 %v3598, 0
        %v3727 = vmax.bf16 %v3599, 0
        %v3728 = vmax.bf16 %v3600, 0
        %v3729 = vmax.bf16 %v3601, 0
        %v3730 = vmax.bf16 %v3602, 0
        %v3731 = vmax.bf16 %v3603, 0
        %v3732 = vmax.bf16 %v3604, 0
        %v3733 = vmax.bf16 %v3605, 0
        %v3734 = vmax.bf16 %v3606, 0
        %v3735 = vmax.bf16 %v3607, 0
        %v3736 = vmax.bf16 %v3608, 0
        %v3737 = vmax.bf16 %v3609, 0
        %v3738 = vmax.bf16 %v3610, 0
        %v3739 = vmax.bf16 %v3611, 0
        %v3740 = vmax.bf16 %v3612, 0
        %v3741 = vmax.bf16 %v3613, 0
        %v3742 = vmax.bf16 %v3614, 0
        %v3743 = vmax.bf16 %v3615, 0
        %v3744 = vmax.bf16 %v3616, 0
        %v3745 = vmax.bf16 %v3617, 0
        %v3746 = vmax.bf16 %v3618, 0
        %v3747 = vmax.bf16 %v3619, 0
        %v3748 = vmax.bf16 %v3620, 0
        %v3749 = vmax.bf16 %v3621, 0
        %v3750 = vmax.bf16 %v3622, 0
        %v3751 = vmax.bf16 %v3623, 0
        %v3752 = vmax.bf16 %v3624, 0
        %v3753 = vmax.bf16 %v3625, 0
        %v3754 = vmax.bf16 %v3626, 0
        %v3755 = vmax.bf16 %v3627, 0
        %v3756 = vmax.bf16 %v3628, 0
        %v3757 = vmax.bf16 %v3629, 0
        %v3758 = vmax.bf16 %v3630, 0
        %v3759 = vmax.bf16 %v3631, 0
        %v3760 = vmax.bf16 %v3632, 0
        %v3761 = vld [vmem:[%s7] sm:$0xff]
        %v3762 = vld [vmem:[%s7 + $0x8] sm:$0xff]
        %v3763 = vld [vmem:[%s7 + $0x10] sm:$0xff]
        %v3764 = vld [vmem:[%s7 + $0x18] sm:$0xff]
        %v3765 = vld [vmem:[%s7 + $0x20] sm:$0xff]
        %v3766 = vld [vmem:[%s7 + $0x28] sm:$0xff]
        %v3767 = vld [vmem:[%s7 + $0x30] sm:$0xff]
        %v3768 = vld [vmem:[%s7 + $0x38] sm:$0xff]
        %v3769 = vld [vmem:[%s7 + $0x40] sm:$0xff]
        %v3770 = vld [vmem:[%s7 + $0x48] sm:$0xff]
        %v3771 = vld [vmem:[%s7 + $0x50] sm:$0xff]
        %v3772 = vld [vmem:[%s7 + $0x58] sm:$0xff]
        %v3773 = vld [vmem:[%s7 + $0x60] sm:$0xff]
        %v3774 = vld [vmem:[%s7 + $0x68] sm:$0xff]
        %v3775 = vld [vmem:[%s7 + $0x70] sm:$0xff]
        %v3776 = vld [vmem:[%s7 + $0x78] sm:$0xff]
        %v3777 = vld [vmem:[%s7 + $0x80] sm:$0xff]
        %v3778 = vld [vmem:[%s7 + $0x88] sm:$0xff]
        %v3779 = vld [vmem:[%s7 + $0x90] sm:$0xff]
        %v3780 = vld [vmem:[%s7 + $0x98] sm:$0xff]
        %v3781 = vld [vmem:[%s7 + $0xa0] sm:$0xff]
        %v3782 = vld [vmem:[%s7 + $0xa8] sm:$0xff]
        %v3783 = vld [vmem:[%s7 + $0xb0] sm:$0xff]
        %v3784 = vld [vmem:[%s7 + $0xb8] sm:$0xff]
        %v3785 = vld [vmem:[%s7 + $0xc0] sm:$0xff]
        %v3786 = vld [vmem:[%s7 + $0xc8] sm:$0xff]
        %v3787 = vld [vmem:[%s7 + $0xd0] sm:$0xff]
        %v3788 = vld [vmem:[%s7 + $0xd8] sm:$0xff]
        %v3789 = vld [vmem:[%s7 + $0xe0] sm:$0xff]
        %v3790 = vld [vmem:[%s7 + $0xe8] sm:$0xff]
        %v3791 = vld [vmem:[%s7 + $0xf0] sm:$0xff]
        %v3792 = vld [vmem:[%s7 + $0xf8] sm:$0xff]
        %v3793 = vld [vmem:[%s7 + $0x100] sm:$0xff]
        %v3794 = vld [vmem:[%s7 + $0x108] sm:$0xff]
        %v3795 = vld [vmem:[%s7 + $0x110] sm:$0xff]
        %v3796 = vld [vmem:[%s7 + $0x118] sm:$0xff]
        %v3797 = vld [vmem:[%s7 + $0x120] sm:$0xff]
        %v3798 = vld [vmem:[%s7 + $0x128] sm:$0xff]
        %v3799 = vld [vmem:[%s7 + $0x130] sm:$0xff]
        %v3800 = vld [vmem:[%s7 + $0x138] sm:$0xff]
        %v3801 = vld [vmem:[%s7 + $0x140] sm:$0xff]
        %v3802 = vld [vmem:[%s7 + $0x148] sm:$0xff]
        %v3803 = vld [vmem:[%s7 + $0x150] sm:$0xff]
        %v3804 = vld [vmem:[%s7 + $0x158] sm:$0xff]
        %v3805 = vld [vmem:[%s7 + $0x160] sm:$0xff]
        %v3806 = vld [vmem:[%s7 + $0x168] sm:$0xff]
        %v3807 = vld [vmem:[%s7 + $0x170] sm:$0xff]
        %v3808 = vld [vmem:[%s7 + $0x178] sm:$0xff]
        %v3809 = vld [vmem:[%s7 + $0x180] sm:$0xff]
        %v3810 = vld [vmem:[%s7 + $0x188] sm:$0xff]
        %v3811 = vld [vmem:[%s7 + $0x190] sm:$0xff]
        %v3812 = vld [vmem:[%s7 + $0x198] sm:$0xff]
        %v3813 = vld [vmem:[%s7 + $0x1a0] sm:$0xff]
        %v3814 = vld [vmem:[%s7 + $0x1a8] sm:$0xff]
        %v3815 = vld [vmem:[%s7 + $0x1b0] sm:$0xff]
        %v3816 = vld [vmem:[%s7 + $0x1b8] sm:$0xff]
        %v3817 = vld [vmem:[%s7 + $0x1c0] sm:$0xff]
        %v3818 = vld [vmem:[%s7 + $0x1c8] sm:$0xff]
        %v3819 = vld [vmem:[%s7 + $0x1d0] sm:$0xff]
        %v3820 = vld [vmem:[%s7 + $0x1d8] sm:$0xff]
        %v3821 = vld [vmem:[%s7 + $0x1e0] sm:$0xff]
        %v3822 = vld [vmem:[%s7 + $0x1e8] sm:$0xff]
        %v3823 = vld [vmem:[%s7 + $0x1f0] sm:$0xff]
        %v3824 = vld [vmem:[%s7 + $0x1f8] sm:$0xff]
        %v3825 = vld [vmem:[%s7 + $0x200] sm:$0xff]
        %v3826 = vld [vmem:[%s7 + $0x208] sm:$0xff]
        %v3827 = vld [vmem:[%s7 + $0x210] sm:$0xff]
        %v3828 = vld [vmem:[%s7 + $0x218] sm:$0xff]
        %v3829 = vld [vmem:[%s7 + $0x220] sm:$0xff]
        %v3830 = vld [vmem:[%s7 + $0x228] sm:$0xff]
        %v3831 = vld [vmem:[%s7 + $0x230] sm:$0xff]
        %v3832 = vld [vmem:[%s7 + $0x238] sm:$0xff]
        %v3833 = vld [vmem:[%s7 + $0x240] sm:$0xff]
        %v3834 = vld [vmem:[%s7 + $0x248] sm:$0xff]
        %v3835 = vld [vmem:[%s7 + $0x250] sm:$0xff]
        %v3836 = vld [vmem:[%s7 + $0x258] sm:$0xff]
        %v3837 = vld [vmem:[%s7 + $0x260] sm:$0xff]
        %v3838 = vld [vmem:[%s7 + $0x268] sm:$0xff]
        %v3839 = vld [vmem:[%s7 + $0x270] sm:$0xff]
        %v3840 = vld [vmem:[%s7 + $0x278] sm:$0xff]
        %v3841 = vld [vmem:[%s7 + $0x280] sm:$0xff]
        %v3842 = vld [vmem:[%s7 + $0x288] sm:$0xff]
        %v3843 = vld [vmem:[%s7 + $0x290] sm:$0xff]
        %v3844 = vld [vmem:[%s7 + $0x298] sm:$0xff]
        %v3845 = vld [vmem:[%s7 + $0x2a0] sm:$0xff]
        %v3846 = vld [vmem:[%s7 + $0x2a8] sm:$0xff]
        %v3847 = vld [vmem:[%s7 + $0x2b0] sm:$0xff]
        %v3848 = vld [vmem:[%s7 + $0x2b8] sm:$0xff]
        %v3849 = vld [vmem:[%s7 + $0x2c0] sm:$0xff]
        %v3850 = vld [vmem:[%s7 + $0x2c8] sm:$0xff]
        %v3851 = vld [vmem:[%s7 + $0x2d0] sm:$0xff]
        %v3852 = vld [vmem:[%s7 + $0x2d8] sm:$0xff]
        %v3853 = vld [vmem:[%s7 + $0x2e0] sm:$0xff]
        %v3854 = vld [vmem:[%s7 + $0x2e8] sm:$0xff]
        %v3855 = vld [vmem:[%s7 + $0x2f0] sm:$0xff]
        %v3856 = vld [vmem:[%s7 + $0x2f8] sm:$0xff]
        %v3857 = vld [vmem:[%s7 + $0x300] sm:$0xff]
        %v3858 = vld [vmem:[%s7 + $0x308] sm:$0xff]
        %v3859 = vld [vmem:[%s7 + $0x310] sm:$0xff]
        %v3860 = vld [vmem:[%s7 + $0x318] sm:$0xff]
        %v3861 = vld [vmem:[%s7 + $0x320] sm:$0xff]
        %v3862 = vld [vmem:[%s7 + $0x328] sm:$0xff]
        %v3863 = vld [vmem:[%s7 + $0x330] sm:$0xff]
        %v3864 = vld [vmem:[%s7 + $0x338] sm:$0xff]
        %v3865 = vld [vmem:[%s7 + $0x340] sm:$0xff]
        %v3866 = vld [vmem:[%s7 + $0x348] sm:$0xff]
        %v3867 = vld [vmem:[%s7 + $0x350] sm:$0xff]
        %v3868 = vld [vmem:[%s7 + $0x358] sm:$0xff]
        %v3869 = vld [vmem:[%s7 + $0x360] sm:$0xff]
        %v3870 = vld [vmem:[%s7 + $0x368] sm:$0xff]
        %v3871 = vld [vmem:[%s7 + $0x370] sm:$0xff]
        %v3872 = vld [vmem:[%s7 + $0x378] sm:$0xff]
        %v3873 = vld [vmem:[%s7 + $0x380] sm:$0xff]
        %v3874 = vld [vmem:[%s7 + $0x388] sm:$0xff]
        %v3875 = vld [vmem:[%s7 + $0x390] sm:$0xff]
        %v3876 = vld [vmem:[%s7 + $0x398] sm:$0xff]
        %v3877 = vld [vmem:[%s7 + $0x3a0] sm:$0xff]
        %v3878 = vld [vmem:[%s7 + $0x3a8] sm:$0xff]
        %v3879 = vld [vmem:[%s7 + $0x3b0] sm:$0xff]
        %v3880 = vld [vmem:[%s7 + $0x3b8] sm:$0xff]
        %v3881 = vld [vmem:[%s7 + $0x3c0] sm:$0xff]
        %v3882 = vld [vmem:[%s7 + $0x3c8] sm:$0xff]
        %v3883 = vld [vmem:[%s7 + $0x3d0] sm:$0xff]
        %v3884 = vld [vmem:[%s7 + $0x3d8] sm:$0xff]
        %v3885 = vld [vmem:[%s7 + $0x3e0] sm:$0xff]
        %v3886 = vld [vmem:[%s7 + $0x3e8] sm:$0xff]
        %v3887 = vld [vmem:[%s7 + $0x3f0] sm:$0xff]
        %v3888 = vld [vmem:[%s7 + $0x3f8] sm:$0xff]
        %v3889 = vld [vmem:[#allocation10] sm:$0xf]
        %v3891 = vlaneseq
        %v3892 = vshrl.u32 %v3891, 7
        %v3893 = vsub.s32 0, %v3892
        %v3894 = vrot.slane %v3889, %v3893
        %v3895 = vlaneseq
        %v3896 = vshrl.u32 %v3895, 7
        %v3897 = vsub.s32 1, %v3896
        %v3898 = vrot.slane %v3889, %v3897
        %v3899 = vlaneseq
        %v3900 = vshrl.u32 %v3899, 7
        %v3901 = vsub.s32 2, %v3900
        %v3902 = vrot.slane %v3889, %v3901
        %v3903 = vlaneseq
        %v3904 = vshrl.u32 %v3903, 7
        %v3905 = vsub.s32 3, %v3904
        %v3906 = vrot.slane %v3889, %v3905
        %v4039 = vunpack.c.l.b16 %v3761
        %v4040 = vunpack.c.h.b16 %v3761
        %v4041 = vunpack.c.l.b16 %v3762
        %v4042 = vunpack.c.h.b16 %v3762
        %v4043 = vunpack.c.l.b16 %v3763
        %v4044 = vunpack.c.h.b16 %v3763
        %v4045 = vunpack.c.l.b16 %v3764
        %v4046 = vunpack.c.h.b16 %v3764
        %v4047 = vunpack.c.l.b16 %v3765
        %v4048 = vunpack.c.h.b16 %v3765
        %v4049 = vunpack.c.l.b16 %v3766
        %v4050 = vunpack.c.h.b16 %v3766
        %v4051 = vunpack.c.l.b16 %v3767
        %v4052 = vunpack.c.h.b16 %v3767
        %v4053 = vunpack.c.l.b16 %v3768
        %v4054 = vunpack.c.h.b16 %v3768
        %v4055 = vunpack.c.l.b16 %v3769
        %v4056 = vunpack.c.h.b16 %v3769
        %v4057 = vunpack.c.l.b16 %v3770
        %v4058 = vunpack.c.h.b16 %v3770
        %v4059 = vunpack.c.l.b16 %v3771
        %v4060 = vunpack.c.h.b16 %v3771
        %v4061 = vunpack.c.l.b16 %v3772
        %v4062 = vunpack.c.h.b16 %v3772
        %v4063 = vunpack.c.l.b16 %v3773
        %v4064 = vunpack.c.h.b16 %v3773
        %v4065 = vunpack.c.l.b16 %v3774
        %v4066 = vunpack.c.h.b16 %v3774
        %v4067 = vunpack.c.l.b16 %v3775
        %v4068 = vunpack.c.h.b16 %v3775
        %v4069 = vunpack.c.l.b16 %v3776
        %v4070 = vunpack.c.h.b16 %v3776
        %v4071 = vunpack.c.l.b16 %v3777
        %v4072 = vunpack.c.h.b16 %v3777
        %v4073 = vunpack.c.l.b16 %v3778
        %v4074 = vunpack.c.h.b16 %v3778
        %v4075 = vunpack.c.l.b16 %v3779
        %v4076 = vunpack.c.h.b16 %v3779
        %v4077 = vunpack.c.l.b16 %v3780
        %v4078 = vunpack.c.h.b16 %v3780
        %v4079 = vunpack.c.l.b16 %v3781
        %v4080 = vunpack.c.h.b16 %v3781
        %v4081 = vunpack.c.l.b16 %v3782
        %v4082 = vunpack.c.h.b16 %v3782
        %v4083 = vunpack.c.l.b16 %v3783
        %v4084 = vunpack.c.h.b16 %v3783
        %v4085 = vunpack.c.l.b16 %v3784
        %v4086 = vunpack.c.h.b16 %v3784
        %v4087 = vunpack.c.l.b16 %v3785
        %v4088 = vunpack.c.h.b16 %v3785
        %v4089 = vunpack.c.l.b16 %v3786
        %v4090 = vunpack.c.h.b16 %v3786
        %v4091 = vunpack.c.l.b16 %v3787
        %v4092 = vunpack.c.h.b16 %v3787
        %v4093 = vunpack.c.l.b16 %v3788
        %v4094 = vunpack.c.h.b16 %v3788
        %v4095 = vunpack.c.l.b16 %v3789
        %v4096 = vunpack.c.h.b16 %v3789
        %v4097 = vunpack.c.l.b16 %v3790
        %v4098 = vunpack.c.h.b16 %v3790
        %v4099 = vunpack.c.l.b16 %v3791
        %v4100 = vunpack.c.h.b16 %v3791
        %v4101 = vunpack.c.l.b16 %v3792
        %v4102 = vunpack.c.h.b16 %v3792
        %v4103 = vunpack.c.l.b16 %v3793
        %v4104 = vunpack.c.h.b16 %v3793
        %v4105 = vunpack.c.l.b16 %v3794
        %v4106 = vunpack.c.h.b16 %v3794
        %v4107 = vunpack.c.l.b16 %v3795
        %v4108 = vunpack.c.h.b16 %v3795
        %v4109 = vunpack.c.l.b16 %v3796
        %v4110 = vunpack.c.h.b16 %v3796
        %v4111 = vunpack.c.l.b16 %v3797
        %v4112 = vunpack.c.h.b16 %v3797
        %v4113 = vunpack.c.l.b16 %v3798
        %v4114 = vunpack.c.h.b16 %v3798
        %v4115 = vunpack.c.l.b16 %v3799
        %v4116 = vunpack.c.h.b16 %v3799
        %v4117 = vunpack.c.l.b16 %v3800
        %v4118 = vunpack.c.h.b16 %v3800
        %v4119 = vunpack.c.l.b16 %v3801
        %v4120 = vunpack.c.h.b16 %v3801
        %v4121 = vunpack.c.l.b16 %v3802
        %v4122 = vunpack.c.h.b16 %v3802
        %v4123 = vunpack.c.l.b16 %v3803
        %v4124 = vunpack.c.h.b16 %v3803
        %v4125 = vunpack.c.l.b16 %v3804
        %v4126 = vunpack.c.h.b16 %v3804
        %v4127 = vunpack.c.l.b16 %v3805
        %v4128 = vunpack.c.h.b16 %v3805
        %v4129 = vunpack.c.l.b16 %v3806
        %v4130 = vunpack.c.h.b16 %v3806
        %v4131 = vunpack.c.l.b16 %v3807
        %v4132 = vunpack.c.h.b16 %v3807
        %v4133 = vunpack.c.l.b16 %v3808
        %v4134 = vunpack.c.h.b16 %v3808
        %v4135 = vunpack.c.l.b16 %v3809
        %v4136 = vunpack.c.h.b16 %v3809
        %v4137 = vunpack.c.l.b16 %v3810
        %v4138 = vunpack.c.h.b16 %v3810
        %v4139 = vunpack.c.l.b16 %v3811
        %v4140 = vunpack.c.h.b16 %v3811
        %v4141 = vunpack.c.l.b16 %v3812
        %v4142 = vunpack.c.h.b16 %v3812
        %v4143 = vunpack.c.l.b16 %v3813
        %v4144 = vunpack.c.h.b16 %v3813
        %v4145 = vunpack.c.l.b16 %v3814
        %v4146 = vunpack.c.h.b16 %v3814
        %v4147 = vunpack.c.l.b16 %v3815
        %v4148 = vunpack.c.h.b16 %v3815
        %v4149 = vunpack.c.l.b16 %v3816
        %v4150 = vunpack.c.h.b16 %v3816
        %v4151 = vunpack.c.l.b16 %v3817
        %v4152 = vunpack.c.h.b16 %v3817
        %v4153 = vunpack.c.l.b16 %v3818
        %v4154 = vunpack.c.h.b16 %v3818
        %v4155 = vunpack.c.l.b16 %v3819
        %v4156 = vunpack.c.h.b16 %v3819
        %v4157 = vunpack.c.l.b16 %v3820
        %v4158 = vunpack.c.h.b16 %v3820
        %v4159 = vunpack.c.l.b16 %v3821
        %v4160 = vunpack.c.h.b16 %v3821
        %v4161 = vunpack.c.l.b16 %v3822
        %v4162 = vunpack.c.h.b16 %v3822
        %v4163 = vunpack.c.l.b16 %v3823
        %v4164 = vunpack.c.h.b16 %v3823
        %v4165 = vunpack.c.l.b16 %v3824
        %v4166 = vunpack.c.h.b16 %v3824
        %v4167 = vunpack.c.l.b16 %v3825
        %v4168 = vunpack.c.h.b16 %v3825
        %v4169 = vunpack.c.l.b16 %v3826
        %v4170 = vunpack.c.h.b16 %v3826
        %v4171 = vunpack.c.l.b16 %v3827
        %v4172 = vunpack.c.h.b16 %v3827
        %v4173 = vunpack.c.l.b16 %v3828
        %v4174 = vunpack.c.h.b16 %v3828
        %v4175 = vunpack.c.l.b16 %v3829
        %v4176 = vunpack.c.h.b16 %v3829
        %v4177 = vunpack.c.l.b16 %v3830
        %v4178 = vunpack.c.h.b16 %v3830
        %v4179 = vunpack.c.l.b16 %v3831
        %v4180 = vunpack.c.h.b16 %v3831
        %v4181 = vunpack.c.l.b16 %v3832
        %v4182 = vunpack.c.h.b16 %v3832
        %v4183 = vunpack.c.l.b16 %v3833
        %v4184 = vunpack.c.h.b16 %v3833
        %v4185 = vunpack.c.l.b16 %v3834
        %v4186 = vunpack.c.h.b16 %v3834
        %v4187 = vunpack.c.l.b16 %v3835
        %v4188 = vunpack.c.h.b16 %v3835
        %v4189 = vunpack.c.l.b16 %v3836
        %v4190 = vunpack.c.h.b16 %v3836
        %v4191 = vunpack.c.l.b16 %v3837
        %v4192 = vunpack.c.h.b16 %v3837
        %v4193 = vunpack.c.l.b16 %v3838
        %v4194 = vunpack.c.h.b16 %v3838
        %v4195 = vunpack.c.l.b16 %v3839
        %v4196 = vunpack.c.h.b16 %v3839
        %v4197 = vunpack.c.l.b16 %v3840
        %v4198 = vunpack.c.h.b16 %v3840
        %v4199 = vunpack.c.l.b16 %v3841
        %v4200 = vunpack.c.h.b16 %v3841
        %v4201 = vunpack.c.l.b16 %v3842
        %v4202 = vunpack.c.h.b16 %v3842
        %v4203 = vunpack.c.l.b16 %v3843
        %v4204 = vunpack.c.h.b16 %v3843
        %v4205 = vunpack.c.l.b16 %v3844
        %v4206 = vunpack.c.h.b16 %v3844
        %v4207 = vunpack.c.l.b16 %v3845
        %v4208 = vunpack.c.h.b16 %v3845
        %v4209 = vunpack.c.l.b16 %v3846
        %v4210 = vunpack.c.h.b16 %v3846
        %v4211 = vunpack.c.l.b16 %v3847
        %v4212 = vunpack.c.h.b16 %v3847
        %v4213 = vunpack.c.l.b16 %v3848
        %v4214 = vunpack.c.h.b16 %v3848
        %v4215 = vunpack.c.l.b16 %v3849
        %v4216 = vunpack.c.h.b16 %v3849
        %v4217 = vunpack.c.l.b16 %v3850
        %v4218 = vunpack.c.h.b16 %v3850
        %v4219 = vunpack.c.l.b16 %v3851
        %v4220 = vunpack.c.h.b16 %v3851
        %v4221 = vunpack.c.l.b16 %v3852
        %v4222 = vunpack.c.h.b16 %v3852
        %v4223 = vunpack.c.l.b16 %v3853
        %v4224 = vunpack.c.h.b16 %v3853
        %v4225 = vunpack.c.l.b16 %v3854
        %v4226 = vunpack.c.h.b16 %v3854
        %v4227 = vunpack.c.l.b16 %v3855
        %v4228 = vunpack.c.h.b16 %v3855
        %v4229 = vunpack.c.l.b16 %v3856
        %v4230 = vunpack.c.h.b16 %v3856
        %v4231 = vunpack.c.l.b16 %v3857
        %v4232 = vunpack.c.h.b16 %v3857
        %v4233 = vunpack.c.l.b16 %v3858
        %v4234 = vunpack.c.h.b16 %v3858
        %v4235 = vunpack.c.l.b16 %v3859
        %v4236 = vunpack.c.h.b16 %v3859
        %v4237 = vunpack.c.l.b16 %v3860
        %v4238 = vunpack.c.h.b16 %v3860
        %v4239 = vunpack.c.l.b16 %v3861
        %v4240 = vunpack.c.h.b16 %v3861
        %v4241 = vunpack.c.l.b16 %v3862
        %v4242 = vunpack.c.h.b16 %v3862
        %v4243 = vunpack.c.l.b16 %v3863
        %v4244 = vunpack.c.h.b16 %v3863
        %v4245 = vunpack.c.l.b16 %v3864
        %v4246 = vunpack.c.h.b16 %v3864
        %v4247 = vunpack.c.l.b16 %v3865
        %v4248 = vunpack.c.h.b16 %v3865
        %v4249 = vunpack.c.l.b16 %v3866
        %v4250 = vunpack.c.h.b16 %v3866
        %v4251 = vunpack.c.l.b16 %v3867
        %v4252 = vunpack.c.h.b16 %v3867
        %v4253 = vunpack.c.l.b16 %v3868
        %v4254 = vunpack.c.h.b16 %v3868
        %v4255 = vunpack.c.l.b16 %v3869
        %v4256 = vunpack.c.h.b16 %v3869
        %v4257 = vunpack.c.l.b16 %v3870
        %v4258 = vunpack.c.h.b16 %v3870
        %v4259 = vunpack.c.l.b16 %v3871
        %v4260 = vunpack.c.h.b16 %v3871
        %v4261 = vunpack.c.l.b16 %v3872
        %v4262 = vunpack.c.h.b16 %v3872
        %v4263 = vunpack.c.l.b16 %v3873
        %v4264 = vunpack.c.h.b16 %v3873
        %v4265 = vunpack.c.l.b16 %v3874
        %v4266 = vunpack.c.h.b16 %v3874
        %v4267 = vunpack.c.l.b16 %v3875
        %v4268 = vunpack.c.h.b16 %v3875
        %v4269 = vunpack.c.l.b16 %v3876
        %v4270 = vunpack.c.h.b16 %v3876
        %v4271 = vunpack.c.l.b16 %v3877
        %v4272 = vunpack.c.h.b16 %v3877
        %v4273 = vunpack.c.l.b16 %v3878
        %v4274 = vunpack.c.h.b16 %v3878
        %v4275 = vunpack.c.l.b16 %v3879
        %v4276 = vunpack.c.h.b16 %v3879
        %v4277 = vunpack.c.l.b16 %v3880
        %v4278 = vunpack.c.h.b16 %v3880
        %v4279 = vunpack.c.l.b16 %v3881
        %v4280 = vunpack.c.h.b16 %v3881
        %v4281 = vunpack.c.l.b16 %v3882
        %v4282 = vunpack.c.h.b16 %v3882
        %v4283 = vunpack.c.l.b16 %v3883
        %v4284 = vunpack.c.h.b16 %v3883
        %v4285 = vunpack.c.l.b16 %v3884
        %v4286 = vunpack.c.h.b16 %v3884
        %v4287 = vunpack.c.l.b16 %v3885
        %v4288 = vunpack.c.h.b16 %v3885
        %v4289 = vunpack.c.l.b16 %v3886
        %v4290 = vunpack.c.h.b16 %v3886
        %v4291 = vunpack.c.l.b16 %v3887
        %v4292 = vunpack.c.h.b16 %v3887
        %v4293 = vunpack.c.l.b16 %v3888
        %v4294 = vunpack.c.h.b16 %v3888
        %v4295 = vpack.c.b16 %v4043, %v4039
        %v4296 = vpack.c.b16 %v4044, %v4040
        %v4297 = vpack.c.b16 %v4045, %v4041
        %v4298 = vpack.c.b16 %v4046, %v4042
        %v4299 = vpack.c.b16 %v4051, %v4047
        %v4300 = vpack.c.b16 %v4052, %v4048
        %v4301 = vpack.c.b16 %v4053, %v4049
        %v4302 = vpack.c.b16 %v4054, %v4050
        %v4303 = vpack.c.b16 %v4059, %v4055
        %v4304 = vpack.c.b16 %v4060, %v4056
        %v4305 = vpack.c.b16 %v4061, %v4057
        %v4306 = vpack.c.b16 %v4062, %v4058
        %v4307 = vpack.c.b16 %v4067, %v4063
        %v4308 = vpack.c.b16 %v4068, %v4064
        %v4309 = vpack.c.b16 %v4069, %v4065
        %v4310 = vpack.c.b16 %v4070, %v4066
        %v4311 = vpack.c.b16 %v4075, %v4071
        %v4312 = vpack.c.b16 %v4076, %v4072
        %v4313 = vpack.c.b16 %v4077, %v4073
        %v4314 = vpack.c.b16 %v4078, %v4074
        %v4315 = vpack.c.b16 %v4083, %v4079
        %v4316 = vpack.c.b16 %v4084, %v4080
        %v4317 = vpack.c.b16 %v4085, %v4081
        %v4318 = vpack.c.b16 %v4086, %v4082
        %v4319 = vpack.c.b16 %v4091, %v4087
        %v4320 = vpack.c.b16 %v4092, %v4088
        %v4321 = vpack.c.b16 %v4093, %v4089
        %v4322 = vpack.c.b16 %v4094, %v4090
        %v4323 = vpack.c.b16 %v4099, %v4095
        %v4324 = vpack.c.b16 %v4100, %v4096
        %v4325 = vpack.c.b16 %v4101, %v4097
        %v4326 = vpack.c.b16 %v4102, %v4098
        %v4327 = vpack.c.b16 %v4107, %v4103
        %v4328 = vpack.c.b16 %v4108, %v4104
        %v4329 = vpack.c.b16 %v4109, %v4105
        %v4330 = vpack.c.b16 %v4110, %v4106
        %v4331 = vpack.c.b16 %v4115, %v4111
        %v4332 = vpack.c.b16 %v4116, %v4112
        %v4333 = vpack.c.b16 %v4117, %v4113
        %v4334 = vpack.c.b16 %v4118, %v4114
        %v4335 = vpack.c.b16 %v4123, %v4119
        %v4336 = vpack.c.b16 %v4124, %v4120
        %v4337 = vpack.c.b16 %v4125, %v4121
        %v4338 = vpack.c.b16 %v4126, %v4122
        %v4339 = vpack.c.b16 %v4131, %v4127
        %v4340 = vpack.c.b16 %v4132, %v4128
        %v4341 = vpack.c.b16 %v4133, %v4129
        %v4342 = vpack.c.b16 %v4134, %v4130
        %v4343 = vpack.c.b16 %v4139, %v4135
        %v4344 = vpack.c.b16 %v4140, %v4136
        %v4345 = vpack.c.b16 %v4141, %v4137
        %v4346 = vpack.c.b16 %v4142, %v4138
        %v4347 = vpack.c.b16 %v4147, %v4143
        %v4348 = vpack.c.b16 %v4148, %v4144
        %v4349 = vpack.c.b16 %v4149, %v4145
        %v4350 = vpack.c.b16 %v4150, %v4146
        %v4351 = vpack.c.b16 %v4155, %v4151
        %v4352 = vpack.c.b16 %v4156, %v4152
        %v4353 = vpack.c.b16 %v4157, %v4153
        %v4354 = vpack.c.b16 %v4158, %v4154
        %v4355 = vpack.c.b16 %v4163, %v4159
        %v4356 = vpack.c.b16 %v4164, %v4160
        %v4357 = vpack.c.b16 %v4165, %v4161
        %v4358 = vpack.c.b16 %v4166, %v4162
        %v4359 = vpack.c.b16 %v4171, %v4167
        %v4360 = vpack.c.b16 %v4172, %v4168
        %v4361 = vpack.c.b16 %v4173, %v4169
        %v4362 = vpack.c.b16 %v4174, %v4170
        %v4363 = vpack.c.b16 %v4179, %v4175
        %v4364 = vpack.c.b16 %v4180, %v4176
        %v4365 = vpack.c.b16 %v4181, %v4177
        %v4366 = vpack.c.b16 %v4182, %v4178
        %v4367 = vpack.c.b16 %v4187, %v4183
        %v4368 = vpack.c.b16 %v4188, %v4184
        %v4369 = vpack.c.b16 %v4189, %v4185
        %v4370 = vpack.c.b16 %v4190, %v4186
        %v4371 = vpack.c.b16 %v4195, %v4191
        %v4372 = vpack.c.b16 %v4196, %v4192
        %v4373 = vpack.c.b16 %v4197, %v4193
        %v4374 = vpack.c.b16 %v4198, %v4194
        %v4375 = vpack.c.b16 %v4203, %v4199
        %v4376 = vpack.c.b16 %v4204, %v4200
        %v4377 = vpack.c.b16 %v4205, %v4201
        %v4378 = vpack.c.b16 %v4206, %v4202
        %v4379 = vpack.c.b16 %v4211, %v4207
        %v4380 = vpack.c.b16 %v4212, %v4208
        %v4381 = vpack.c.b16 %v4213, %v4209
        %v4382 = vpack.c.b16 %v4214, %v4210
        %v4383 = vpack.c.b16 %v4219, %v4215
        %v4384 = vpack.c.b16 %v4220, %v4216
        %v4385 = vpack.c.b16 %v4221, %v4217
        %v4386 = vpack.c.b16 %v4222, %v4218
        %v4387 = vpack.c.b16 %v4227, %v4223
        %v4388 = vpack.c.b16 %v4228, %v4224
        %v4389 = vpack.c.b16 %v4229, %v4225
        %v4390 = vpack.c.b16 %v4230, %v4226
        %v4391 = vpack.c.b16 %v4235, %v4231
        %v4392 = vpack.c.b16 %v4236, %v4232
        %v4393 = vpack.c.b16 %v4237, %v4233
        %v4394 = vpack.c.b16 %v4238, %v4234
        %v4395 = vpack.c.b16 %v4243, %v4239
        %v4396 = vpack.c.b16 %v4244, %v4240
        %v4397 = vpack.c.b16 %v4245, %v4241
        %v4398 = vpack.c.b16 %v4246, %v4242
        %v4399 = vpack.c.b16 %v4251, %v4247
        %v4400 = vpack.c.b16 %v4252, %v4248
        %v4401 = vpack.c.b16 %v4253, %v4249
        %v4402 = vpack.c.b16 %v4254, %v4250
        %v4403 = vpack.c.b16 %v4259, %v4255
        %v4404 = vpack.c.b16 %v4260, %v4256
        %v4405 = vpack.c.b16 %v4261, %v4257
        %v4406 = vpack.c.b16 %v4262, %v4258
        %v4407 = vpack.c.b16 %v4267, %v4263
        %v4408 = vpack.c.b16 %v4268, %v4264
        %v4409 = vpack.c.b16 %v4269, %v4265
        %v4410 = vpack.c.b16 %v4270, %v4266
        %v4411 = vpack.c.b16 %v4275, %v4271
        %v4412 = vpack.c.b16 %v4276, %v4272
        %v4413 = vpack.c.b16 %v4277, %v4273
        %v4414 = vpack.c.b16 %v4278, %v4274
        %v4415 = vpack.c.b16 %v4283, %v4279
        %v4416 = vpack.c.b16 %v4284, %v4280
        %v4417 = vpack.c.b16 %v4285, %v4281
        %v4418 = vpack.c.b16 %v4286, %v4282
        %v4419 = vpack.c.b16 %v4291, %v4287
        %v4420 = vpack.c.b16 %v4292, %v4288
        %v4421 = vpack.c.b16 %v4293, %v4289
        %v4422 = vpack.c.b16 %v4294, %v4290
        %4551 = vmatprep.subr.bf16.mxu0 %v4324
        %4552 = vmatpush1.bf16.msra.mxu0 %v4323
        %4553 = vmatprep.subr.bf16.mxu0 %v4320
        %4554 = vmatpush1.bf16.msra.mxu0 %v4319
        %4555 = vmatprep.subr.bf16.mxu0 %v4316
        %4556 = vmatpush1.bf16.msra.mxu0 %v4315
        %4557 = vmatprep.subr.bf16.mxu0 %v4312
        %4558 = vmatpush1.bf16.msra.mxu0 %v4311
        %4559 = vmatprep.subr.bf16.mxu0 %v4308
        %4560 = vmatpush1.bf16.msra.mxu0 %v4307
        %4561 = vmatprep.subr.bf16.mxu0 %v4304
        %4562 = vmatpush1.bf16.msra.mxu0 %v4303
        %4563 = vmatprep.subr.bf16.mxu0 %v4300
        %4564 = vmatpush1.bf16.msra.mxu0 %v4299
        %4565 = vmatprep.subr.bf16.mxu0 %v4296
        %4566 = vmatpush1.bf16.msra.mxu0 %v4295
        %4567 = vmatprep.subr.bf16.mxu0 %v4356
        %4568 = vmatpush2.bf16.msra.mxu0 %v4355
        %4569 = vmatprep.subr.bf16.mxu0 %v4352
        %4570 = vmatpush2.bf16.msra.mxu0 %v4351
        %4571 = vmatprep.subr.bf16.mxu0 %v4348
        %4572 = vmatpush2.bf16.msra.mxu0 %v4347
        %4573 = vmatprep.subr.bf16.mxu0 %v4344
        %4574 = vmatpush2.bf16.msra.mxu0 %v4343
        %4575 = vmatprep.subr.bf16.mxu0 %v4340
        %4576 = vmatpush2.bf16.msra.mxu0 %v4339
        %4577 = vmatprep.subr.bf16.mxu0 %v4336
        %4578 = vmatpush2.bf16.msra.mxu0 %v4335
        %4579 = vmatprep.subr.bf16.mxu0 %v4332
        %4580 = vmatpush2.bf16.msra.mxu0 %v4331
        %4581 = vmatprep.subr.bf16.mxu0 %v4328
        %4582 = vmatpush2.bf16.msra.mxu0 %v4327
        %4583 = vmatprep.mubr.bf16.mxu0 %v3634
        %4584 = vmatmul.mubr.bf16.gmra.mxu0 %v3633
        %v4585 = vpop.f32.mrf.mxu0
        %v4586 = vadd.f32 %v3894, %v4585
        %v4587 = vpop.f32.mrf.mxu0
        %v4588 = vadd.f32 %v3898, %v4587
        %v4589 = vpop.f32.mrf.mxu0
        %v4590 = vadd.f32 %v3894, %v4589
        %v4591 = vpop.f32.mrf.mxu0
        %v4592 = vadd.f32 %v3898, %v4591
        %4593 = vmatprep.mubr.bf16.mxu0 %v3638
        %4594 = vmatmul.mubr.bf16.gmra.mxu0 %v3637
        %v4595 = vpop.f32.mrf.mxu0
        %v4596 = vadd.f32 %v3894, %v4595
        %v4597 = vpop.f32.mrf.mxu0
        %v4598 = vadd.f32 %v3898, %v4597
        %v4599 = vpop.f32.mrf.mxu0
        %v4600 = vadd.f32 %v3894, %v4599
        %v4601 = vpop.f32.mrf.mxu0
        %v4602 = vadd.f32 %v3898, %v4601
        %4603 = vmatprep.mubr.bf16.mxu0 %v3642
        %4604 = vmatmul.mubr.bf16.gmra.mxu0 %v3641
        %v4605 = vpop.f32.mrf.mxu0
        %v4606 = vadd.f32 %v3894, %v4605
        %v4607 = vpop.f32.mrf.mxu0
        %v4608 = vadd.f32 %v3898, %v4607
        %v4609 = vpop.f32.mrf.mxu0
        %v4610 = vadd.f32 %v3894, %v4609
        %v4611 = vpop.f32.mrf.mxu0
        %v4612 = vadd.f32 %v3898, %v4611
        %4613 = vmatprep.mubr.bf16.mxu0 %v3646
        %4614 = vmatmul.mubr.bf16.gmra.mxu0 %v3645
        %v4615 = vpop.f32.mrf.mxu0
        %v4616 = vadd.f32 %v3894, %v4615
        %v4617 = vpop.f32.mrf.mxu0
        %v4618 = vadd.f32 %v3898, %v4617
        %v4619 = vpop.f32.mrf.mxu0
        %v4620 = vadd.f32 %v3894, %v4619
        %v4621 = vpop.f32.mrf.mxu0
        %v4622 = vadd.f32 %v3898, %v4621
        %4623 = vmatprep.mubr.bf16.mxu0 %v3650
        %4624 = vmatmul.mubr.bf16.gmra.mxu0 %v3649
        %v4625 = vpop.f32.mrf.mxu0
        %v4626 = vadd.f32 %v3894, %v4625
        %v4627 = vpop.f32.mrf.mxu0
        %v4628 = vadd.f32 %v3898, %v4627
        %v4629 = vpop.f32.mrf.mxu0
        %v4630 = vadd.f32 %v3894, %v4629
        %v4631 = vpop.f32.mrf.mxu0
        %v4632 = vadd.f32 %v3898, %v4631
        %4633 = vmatprep.mubr.bf16.mxu0 %v3654
        %4634 = vmatmul.mubr.bf16.gmra.mxu0 %v3653
        %v4635 = vpop.f32.mrf.mxu0
        %v4636 = vadd.f32 %v3894, %v4635
        %v4637 = vpop.f32.mrf.mxu0
        %v4638 = vadd.f32 %v3898, %v4637
        %v4639 = vpop.f32.mrf.mxu0
        %v4640 = vadd.f32 %v3894, %v4639
        %v4641 = vpop.f32.mrf.mxu0
        %v4642 = vadd.f32 %v3898, %v4641
        %4643 = vmatprep.mubr.bf16.mxu0 %v3658
        %4644 = vmatmul.mubr.bf16.gmra.mxu0 %v3657
        %v4645 = vpop.f32.mrf.mxu0
        %v4646 = vadd.f32 %v3894, %v4645
        %v4647 = vpop.f32.mrf.mxu0
        %v4648 = vadd.f32 %v3898, %v4647
        %v4649 = vpop.f32.mrf.mxu0
        %v4650 = vadd.f32 %v3894, %v4649
        %v4651 = vpop.f32.mrf.mxu0
        %v4652 = vadd.f32 %v3898, %v4651
        %4653 = vmatprep.mubr.bf16.mxu0 %v3662
        %4654 = vmatmul.mubr.bf16.gmra.mxu0 %v3661
        %v4655 = vpop.f32.mrf.mxu0
        %v4656 = vadd.f32 %v3894, %v4655
        %v4657 = vpop.f32.mrf.mxu0
        %v4658 = vadd.f32 %v3898, %v4657
        %v4659 = vpop.f32.mrf.mxu0
        %v4660 = vadd.f32 %v3894, %v4659
        %v4661 = vpop.f32.mrf.mxu0
        %v4662 = vadd.f32 %v3898, %v4661
        %4663 = vmatprep.mubr.bf16.mxu0 %v3666
        %4664 = vmatmul.mubr.bf16.gmra.mxu0 %v3665
        %v4665 = vpop.f32.mrf.mxu0
        %v4666 = vadd.f32 %v3894, %v4665
        %v4667 = vpop.f32.mrf.mxu0
        %v4668 = vadd.f32 %v3898, %v4667
        %v4669 = vpop.f32.mrf.mxu0
        %v4670 = vadd.f32 %v3894, %v4669
        %v4671 = vpop.f32.mrf.mxu0
        %v4672 = vadd.f32 %v3898, %v4671
        %4673 = vmatprep.mubr.bf16.mxu0 %v3670
        %4674 = vmatmul.mubr.bf16.gmra.mxu0 %v3669
        %v4675 = vpop.f32.mrf.mxu0
        %v4676 = vadd.f32 %v3894, %v4675
        %v4677 = vpop.f32.mrf.mxu0
        %v4678 = vadd.f32 %v3898, %v4677
        %v4679 = vpop.f32.mrf.mxu0
        %v4680 = vadd.f32 %v3894, %v4679
        %v4681 = vpop.f32.mrf.mxu0
        %v4682 = vadd.f32 %v3898, %v4681
        %4683 = vmatprep.mubr.bf16.mxu0 %v3674
        %4684 = vmatmul.mubr.bf16.gmra.mxu0 %v3673
        %v4685 = vpop.f32.mrf.mxu0
        %v4686 = vadd.f32 %v3894, %v4685
        %v4687 = vpop.f32.mrf.mxu0
        %v4688 = vadd.f32 %v3898, %v4687
        %v4689 = vpop.f32.mrf.mxu0
        %v4690 = vadd.f32 %v3894, %v4689
        %v4691 = vpop.f32.mrf.mxu0
        %v4692 = vadd.f32 %v3898, %v4691
        %4693 = vmatprep.mubr.bf16.mxu0 %v3678
        %4694 = vmatmul.mubr.bf16.gmra.mxu0 %v3677
        %v4695 = vpop.f32.mrf.mxu0
        %v4696 = vadd.f32 %v3894, %v4695
        %v4697 = vpop.f32.mrf.mxu0
        %v4698 = vadd.f32 %v3898, %v4697
        %v4699 = vpop.f32.mrf.mxu0
        %v4700 = vadd.f32 %v3894, %v4699
        %v4701 = vpop.f32.mrf.mxu0
        %v4702 = vadd.f32 %v3898, %v4701
        %4703 = vmatprep.mubr.bf16.mxu0 %v3682
        %4704 = vmatmul.mubr.bf16.gmra.mxu0 %v3681
        %v4705 = vpop.f32.mrf.mxu0
        %v4706 = vadd.f32 %v3894, %v4705
        %v4707 = vpop.f32.mrf.mxu0
        %v4708 = vadd.f32 %v3898, %v4707
        %v4709 = vpop.f32.mrf.mxu0
        %v4710 = vadd.f32 %v3894, %v4709
        %v4711 = vpop.f32.mrf.mxu0
        %v4712 = vadd.f32 %v3898, %v4711
        %4713 = vmatprep.mubr.bf16.mxu0 %v3686
        %4714 = vmatmul.mubr.bf16.gmra.mxu0 %v3685
        %v4715 = vpop.f32.mrf.mxu0
        %v4716 = vadd.f32 %v3894, %v4715
        %v4717 = vpop.f32.mrf.mxu0
        %v4718 = vadd.f32 %v3898, %v4717
        %v4719 = vpop.f32.mrf.mxu0
        %v4720 = vadd.f32 %v3894, %v4719
        %v4721 = vpop.f32.mrf.mxu0
        %v4722 = vadd.f32 %v3898, %v4721
        %4723 = vmatprep.mubr.bf16.mxu0 %v3690
        %4724 = vmatmul.mubr.bf16.gmra.mxu0 %v3689
        %v4725 = vpop.f32.mrf.mxu0
        %v4726 = vadd.f32 %v3894, %v4725
        %v4727 = vpop.f32.mrf.mxu0
        %v4728 = vadd.f32 %v3898, %v4727
        %v4729 = vpop.f32.mrf.mxu0
        %v4730 = vadd.f32 %v3894, %v4729
        %v4731 = vpop.f32.mrf.mxu0
        %v4732 = vadd.f32 %v3898, %v4731
        %4733 = vmatprep.mubr.bf16.mxu0 %v3694
        %4734 = vmatmul.mubr.bf16.gmra.mxu0 %v3693
        %v4735 = vpop.f32.mrf.mxu0
        %v4736 = vadd.f32 %v3894, %v4735
        %v4737 = vpop.f32.mrf.mxu0
        %v4738 = vadd.f32 %v3898, %v4737
        %v4739 = vpop.f32.mrf.mxu0
        %v4740 = vadd.f32 %v3894, %v4739
        %v4741 = vpop.f32.mrf.mxu0
        %v4742 = vadd.f32 %v3898, %v4741
        %4743 = vmatprep.mubr.bf16.mxu0 %v3698
        %4744 = vmatmul.mubr.bf16.gmra.mxu0 %v3697
        %v4745 = vpop.f32.mrf.mxu0
        %v4746 = vadd.f32 %v3894, %v4745
        %v4747 = vpop.f32.mrf.mxu0
        %v4748 = vadd.f32 %v3898, %v4747
        %v4749 = vpop.f32.mrf.mxu0
        %v4750 = vadd.f32 %v3894, %v4749
        %v4751 = vpop.f32.mrf.mxu0
        %v4752 = vadd.f32 %v3898, %v4751
        %4753 = vmatprep.mubr.bf16.mxu0 %v3702
        %4754 = vmatmul.mubr.bf16.gmra.mxu0 %v3701
        %v4755 = vpop.f32.mrf.mxu0
        %v4756 = vadd.f32 %v3894, %v4755
        %v4757 = vpop.f32.mrf.mxu0
        %v4758 = vadd.f32 %v3898, %v4757
        %v4759 = vpop.f32.mrf.mxu0
        %v4760 = vadd.f32 %v3894, %v4759
        %v4761 = vpop.f32.mrf.mxu0
        %v4762 = vadd.f32 %v3898, %v4761
        %4763 = vmatprep.mubr.bf16.mxu0 %v3706
        %4764 = vmatmul.mubr.bf16.gmra.mxu0 %v3705
        %v4765 = vpop.f32.mrf.mxu0
        %v4766 = vadd.f32 %v3894, %v4765
        %v4767 = vpop.f32.mrf.mxu0
        %v4768 = vadd.f32 %v3898, %v4767
        %v4769 = vpop.f32.mrf.mxu0
        %v4770 = vadd.f32 %v3894, %v4769
        %v4771 = vpop.f32.mrf.mxu0
        %v4772 = vadd.f32 %v3898, %v4771
        %4773 = vmatprep.mubr.bf16.mxu0 %v3710
        %4774 = vmatmul.mubr.bf16.gmra.mxu0 %v3709
        %v4775 = vpop.f32.mrf.mxu0
        %v4776 = vadd.f32 %v3894, %v4775
        %v4777 = vpop.f32.mrf.mxu0
        %v4778 = vadd.f32 %v3898, %v4777
        %v4779 = vpop.f32.mrf.mxu0
        %v4780 = vadd.f32 %v3894, %v4779
        %v4781 = vpop.f32.mrf.mxu0
        %v4782 = vadd.f32 %v3898, %v4781
        %4783 = vmatprep.mubr.bf16.mxu0 %v3714
        %4784 = vmatmul.mubr.bf16.gmra.mxu0 %v3713
        %v4785 = vpop.f32.mrf.mxu0
        %v4786 = vadd.f32 %v3894, %v4785
        %v4787 = vpop.f32.mrf.mxu0
        %v4788 = vadd.f32 %v3898, %v4787
        %v4789 = vpop.f32.mrf.mxu0
        %v4790 = vadd.f32 %v3894, %v4789
        %v4791 = vpop.f32.mrf.mxu0
        %v4792 = vadd.f32 %v3898, %v4791
        %4793 = vmatprep.mubr.bf16.mxu0 %v3718
        %4794 = vmatmul.mubr.bf16.gmra.mxu0 %v3717
        %v4795 = vpop.f32.mrf.mxu0
        %v4796 = vadd.f32 %v3894, %v4795
        %v4797 = vpop.f32.mrf.mxu0
        %v4798 = vadd.f32 %v3898, %v4797
        %v4799 = vpop.f32.mrf.mxu0
        %v4800 = vadd.f32 %v3894, %v4799
        %v4801 = vpop.f32.mrf.mxu0
        %v4802 = vadd.f32 %v3898, %v4801
        %4803 = vmatprep.mubr.bf16.mxu0 %v3722
        %4804 = vmatmul.mubr.bf16.gmra.mxu0 %v3721
        %v4805 = vpop.f32.mrf.mxu0
        %v4806 = vadd.f32 %v3894, %v4805
        %v4807 = vpop.f32.mrf.mxu0
        %v4808 = vadd.f32 %v3898, %v4807
        %v4809 = vpop.f32.mrf.mxu0
        %v4810 = vadd.f32 %v3894, %v4809
        %v4811 = vpop.f32.mrf.mxu0
        %v4812 = vadd.f32 %v3898, %v4811
        %4813 = vmatprep.mubr.bf16.mxu0 %v3726
        %4814 = vmatmul.mubr.bf16.gmra.mxu0 %v3725
        %v4815 = vpop.f32.mrf.mxu0
        %v4816 = vadd.f32 %v3894, %v4815
        %v4817 = vpop.f32.mrf.mxu0
        %v4818 = vadd.f32 %v3898, %v4817
        %v4819 = vpop.f32.mrf.mxu0
        %v4820 = vadd.f32 %v3894, %v4819
        %v4821 = vpop.f32.mrf.mxu0
        %v4822 = vadd.f32 %v3898, %v4821
        %4823 = vmatprep.mubr.bf16.mxu0 %v3730
        %4824 = vmatmul.mubr.bf16.gmra.mxu0 %v3729
        %v4825 = vpop.f32.mrf.mxu0
        %v4826 = vadd.f32 %v3894, %v4825
        %v4827 = vpop.f32.mrf.mxu0
        %v4828 = vadd.f32 %v3898, %v4827
        %v4829 = vpop.f32.mrf.mxu0
        %v4830 = vadd.f32 %v3894, %v4829
        %v4831 = vpop.f32.mrf.mxu0
        %v4832 = vadd.f32 %v3898, %v4831
        %4833 = vmatprep.mubr.bf16.mxu0 %v3734
        %4834 = vmatmul.mubr.bf16.gmra.mxu0 %v3733
        %v4835 = vpop.f32.mrf.mxu0
        %v4836 = vadd.f32 %v3894, %v4835
        %v4837 = vpop.f32.mrf.mxu0
        %v4838 = vadd.f32 %v3898, %v4837
        %v4839 = vpop.f32.mrf.mxu0
        %v4840 = vadd.f32 %v3894, %v4839
        %v4841 = vpop.f32.mrf.mxu0
        %v4842 = vadd.f32 %v3898, %v4841
        %4843 = vmatprep.mubr.bf16.mxu0 %v3738
        %4844 = vmatmul.mubr.bf16.gmra.mxu0 %v3737
        %v4845 = vpop.f32.mrf.mxu0
        %v4846 = vadd.f32 %v3894, %v4845
        %v4847 = vpop.f32.mrf.mxu0
        %v4848 = vadd.f32 %v3898, %v4847
        %v4849 = vpop.f32.mrf.mxu0
        %v4850 = vadd.f32 %v3894, %v4849
        %v4851 = vpop.f32.mrf.mxu0
        %v4852 = vadd.f32 %v3898, %v4851
        %4853 = vmatprep.mubr.bf16.mxu0 %v3742
        %4854 = vmatmul.mubr.bf16.gmra.mxu0 %v3741
        %v4855 = vpop.f32.mrf.mxu0
        %v4856 = vadd.f32 %v3894, %v4855
        %v4857 = vpop.f32.mrf.mxu0
        %v4858 = vadd.f32 %v3898, %v4857
        %v4859 = vpop.f32.mrf.mxu0
        %v4860 = vadd.f32 %v3894, %v4859
        %v4861 = vpop.f32.mrf.mxu0
        %v4862 = vadd.f32 %v3898, %v4861
        %4863 = vmatprep.mubr.bf16.mxu0 %v3746
        %4864 = vmatmul.mubr.bf16.gmra.mxu0 %v3745
        %v4865 = vpop.f32.mrf.mxu0
        %v4866 = vadd.f32 %v3894, %v4865
        %v4867 = vpop.f32.mrf.mxu0
        %v4868 = vadd.f32 %v3898, %v4867
        %v4869 = vpop.f32.mrf.mxu0
        %v4870 = vadd.f32 %v3894, %v4869
        %v4871 = vpop.f32.mrf.mxu0
        %v4872 = vadd.f32 %v3898, %v4871
        %4873 = vmatprep.mubr.bf16.mxu0 %v3750
        %4874 = vmatmul.mubr.bf16.gmra.mxu0 %v3749
        %v4875 = vpop.f32.mrf.mxu0
        %v4876 = vadd.f32 %v3894, %v4875
        %v4877 = vpop.f32.mrf.mxu0
        %v4878 = vadd.f32 %v3898, %v4877
        %v4879 = vpop.f32.mrf.mxu0
        %v4880 = vadd.f32 %v3894, %v4879
        %v4881 = vpop.f32.mrf.mxu0
        %v4882 = vadd.f32 %v3898, %v4881
        %4883 = vmatprep.mubr.bf16.mxu0 %v3754
        %4884 = vmatmul.mubr.bf16.gmra.mxu0 %v3753
        %v4885 = vpop.f32.mrf.mxu0
        %v4886 = vadd.f32 %v3894, %v4885
        %v4887 = vpop.f32.mrf.mxu0
        %v4888 = vadd.f32 %v3898, %v4887
        %v4889 = vpop.f32.mrf.mxu0
        %v4890 = vadd.f32 %v3894, %v4889
        %v4891 = vpop.f32.mrf.mxu0
        %v4892 = vadd.f32 %v3898, %v4891
        %4893 = vmatprep.mubr.bf16.mxu0 %v3758
        %4894 = vmatmul.mubr.bf16.gmra.mxu0 %v3757
        %v4895 = vpop.f32.mrf.mxu0
        %v4896 = vadd.f32 %v3894, %v4895
        %v4897 = vpop.f32.mrf.mxu0
        %v4898 = vadd.f32 %v3898, %v4897
        %v4899 = vpop.f32.mrf.mxu0
        %v4900 = vadd.f32 %v3894, %v4899
        %v4901 = vpop.f32.mrf.mxu0
        %v4902 = vadd.f32 %v3898, %v4901
        %4903 = vdwg.mxu0
        %4904 = vmatprep.subr.bf16.mxu0 %v4388
        %4905 = vmatpush1.bf16.msra.mxu0 %v4387
        %4906 = vmatprep.subr.bf16.mxu0 %v4384
        %4907 = vmatpush1.bf16.msra.mxu0 %v4383
        %4908 = vmatprep.subr.bf16.mxu0 %v4380
        %4909 = vmatpush1.bf16.msra.mxu0 %v4379
        %4910 = vmatprep.subr.bf16.mxu0 %v4376
        %4911 = vmatpush1.bf16.msra.mxu0 %v4375
        %4912 = vmatprep.subr.bf16.mxu0 %v4372
        %4913 = vmatpush1.bf16.msra.mxu0 %v4371
        %4914 = vmatprep.subr.bf16.mxu0 %v4368
        %4915 = vmatpush1.bf16.msra.mxu0 %v4367
        %4916 = vmatprep.subr.bf16.mxu0 %v4364
        %4917 = vmatpush1.bf16.msra.mxu0 %v4363
        %4918 = vmatprep.subr.bf16.mxu0 %v4360
        %4919 = vmatpush1.bf16.msra.mxu0 %v4359
        %4920 = vmatprep.subr.bf16.mxu0 %v4420
        %4921 = vmatpush2.bf16.msra.mxu0 %v4419
        %4922 = vmatprep.subr.bf16.mxu0 %v4416
        %4923 = vmatpush2.bf16.msra.mxu0 %v4415
        %4924 = vmatprep.subr.bf16.mxu0 %v4412
        %4925 = vmatpush2.bf16.msra.mxu0 %v4411
        %4926 = vmatprep.subr.bf16.mxu0 %v4408
        %4927 = vmatpush2.bf16.msra.mxu0 %v4407
        %4928 = vmatprep.subr.bf16.mxu0 %v4404
        %4929 = vmatpush2.bf16.msra.mxu0 %v4403
        %4930 = vmatprep.subr.bf16.mxu0 %v4400
        %4931 = vmatpush2.bf16.msra.mxu0 %v4399
        %4932 = vmatprep.subr.bf16.mxu0 %v4396
        %4933 = vmatpush2.bf16.msra.mxu0 %v4395
        %4934 = vmatprep.subr.bf16.mxu0 %v4392
        %4935 = vmatpush2.bf16.msra.mxu0 %v4391
        %4936 = vmatprep.mubr.bf16.mxu0 %v3636
        %4937 = vmatmul.mubr.bf16.gmra.mxu0 %v3635
        %v4938 = vpop.f32.mrf.mxu0
        %v4939 = vadd.f32 %v4586, %v4938
        %v4940 = vpop.f32.mrf.mxu0
        %v4941 = vadd.f32 %v4588, %v4940
        %v4942 = vpop.f32.mrf.mxu0
        %v4943 = vadd.f32 %v4590, %v4942
        %v4944 = vpop.f32.mrf.mxu0
        %v4945 = vadd.f32 %v4592, %v4944
        %4946 = vmatprep.mubr.bf16.mxu0 %v3640
        %4947 = vmatmul.mubr.bf16.gmra.mxu0 %v3639
        %v4948 = vpop.f32.mrf.mxu0
        %v4949 = vadd.f32 %v4596, %v4948
        %v4950 = vpop.f32.mrf.mxu0
        %v4951 = vadd.f32 %v4598, %v4950
        %v4952 = vpop.f32.mrf.mxu0
        %v4953 = vadd.f32 %v4600, %v4952
        %v4954 = vpop.f32.mrf.mxu0
        %v4955 = vadd.f32 %v4602, %v4954
        %4956 = vmatprep.mubr.bf16.mxu0 %v3644
        %4957 = vmatmul.mubr.bf16.gmra.mxu0 %v3643
        %v4958 = vpop.f32.mrf.mxu0
        %v4959 = vadd.f32 %v4606, %v4958
        %v4960 = vpop.f32.mrf.mxu0
        %v4961 = vadd.f32 %v4608, %v4960
        %v4962 = vpop.f32.mrf.mxu0
        %v4963 = vadd.f32 %v4610, %v4962
        %v4964 = vpop.f32.mrf.mxu0
        %v4965 = vadd.f32 %v4612, %v4964
        %4966 = vmatprep.mubr.bf16.mxu0 %v3648
        %4967 = vmatmul.mubr.bf16.gmra.mxu0 %v3647
        %v4968 = vpop.f32.mrf.mxu0
        %v4969 = vadd.f32 %v4616, %v4968
        %v4970 = vpop.f32.mrf.mxu0
        %v4971 = vadd.f32 %v4618, %v4970
        %v4972 = vpop.f32.mrf.mxu0
        %v4973 = vadd.f32 %v4620, %v4972
        %v4974 = vpop.f32.mrf.mxu0
        %v4975 = vadd.f32 %v4622, %v4974
        %4976 = vmatprep.mubr.bf16.mxu0 %v3652
        %4977 = vmatmul.mubr.bf16.gmra.mxu0 %v3651
        %v4978 = vpop.f32.mrf.mxu0
        %v4979 = vadd.f32 %v4626, %v4978
        %v4980 = vpop.f32.mrf.mxu0
        %v4981 = vadd.f32 %v4628, %v4980
        %v4982 = vpop.f32.mrf.mxu0
        %v4983 = vadd.f32 %v4630, %v4982
        %v4984 = vpop.f32.mrf.mxu0
        %v4985 = vadd.f32 %v4632, %v4984
        %4986 = vmatprep.mubr.bf16.mxu0 %v3656
        %4987 = vmatmul.mubr.bf16.gmra.mxu0 %v3655
        %v4988 = vpop.f32.mrf.mxu0
        %v4989 = vadd.f32 %v4636, %v4988
        %v4990 = vpop.f32.mrf.mxu0
        %v4991 = vadd.f32 %v4638, %v4990
        %v4992 = vpop.f32.mrf.mxu0
        %v4993 = vadd.f32 %v4640, %v4992
        %v4994 = vpop.f32.mrf.mxu0
        %v4995 = vadd.f32 %v4642, %v4994
        %4996 = vmatprep.mubr.bf16.mxu0 %v3660
        %4997 = vmatmul.mubr.bf16.gmra.mxu0 %v3659
        %v4998 = vpop.f32.mrf.mxu0
        %v4999 = vadd.f32 %v4646, %v4998
        %v5000 = vpop.f32.mrf.mxu0
        %v5001 = vadd.f32 %v4648, %v5000
        %v5002 = vpop.f32.mrf.mxu0
        %v5003 = vadd.f32 %v4650, %v5002
        %v5004 = vpop.f32.mrf.mxu0
        %v5005 = vadd.f32 %v4652, %v5004
        %5006 = vmatprep.mubr.bf16.mxu0 %v3664
        %5007 = vmatmul.mubr.bf16.gmra.mxu0 %v3663
        %v5008 = vpop.f32.mrf.mxu0
        %v5009 = vadd.f32 %v4656, %v5008
        %v5010 = vpop.f32.mrf.mxu0
        %v5011 = vadd.f32 %v4658, %v5010
        %v5012 = vpop.f32.mrf.mxu0
        %v5013 = vadd.f32 %v4660, %v5012
        %v5014 = vpop.f32.mrf.mxu0
        %v5015 = vadd.f32 %v4662, %v5014
        %5016 = vmatprep.mubr.bf16.mxu0 %v3668
        %5017 = vmatmul.mubr.bf16.gmra.mxu0 %v3667
        %v5018 = vpop.f32.mrf.mxu0
        %v5019 = vadd.f32 %v4666, %v5018
        %v5020 = vpop.f32.mrf.mxu0
        %v5021 = vadd.f32 %v4668, %v5020
        %v5022 = vpop.f32.mrf.mxu0
        %v5023 = vadd.f32 %v4670, %v5022
        %v5024 = vpop.f32.mrf.mxu0
        %v5025 = vadd.f32 %v4672, %v5024
        %5026 = vmatprep.mubr.bf16.mxu0 %v3672
        %5027 = vmatmul.mubr.bf16.gmra.mxu0 %v3671
        %v5028 = vpop.f32.mrf.mxu0
        %v5029 = vadd.f32 %v4676, %v5028
        %v5030 = vpop.f32.mrf.mxu0
        %v5031 = vadd.f32 %v4678, %v5030
        %v5032 = vpop.f32.mrf.mxu0
        %v5033 = vadd.f32 %v4680, %v5032
        %v5034 = vpop.f32.mrf.mxu0
        %v5035 = vadd.f32 %v4682, %v5034
        %5036 = vmatprep.mubr.bf16.mxu0 %v3676
        %5037 = vmatmul.mubr.bf16.gmra.mxu0 %v3675
        %v5038 = vpop.f32.mrf.mxu0
        %v5039 = vadd.f32 %v4686, %v5038
        %v5040 = vpop.f32.mrf.mxu0
        %v5041 = vadd.f32 %v4688, %v5040
        %v5042 = vpop.f32.mrf.mxu0
        %v5043 = vadd.f32 %v4690, %v5042
        %v5044 = vpop.f32.mrf.mxu0
        %v5045 = vadd.f32 %v4692, %v5044
        %5046 = vmatprep.mubr.bf16.mxu0 %v3680
        %5047 = vmatmul.mubr.bf16.gmra.mxu0 %v3679
        %v5048 = vpop.f32.mrf.mxu0
        %v5049 = vadd.f32 %v4696, %v5048
        %v5050 = vpop.f32.mrf.mxu0
        %v5051 = vadd.f32 %v4698, %v5050
        %v5052 = vpop.f32.mrf.mxu0
        %v5053 = vadd.f32 %v4700, %v5052
        %v5054 = vpop.f32.mrf.mxu0
        %v5055 = vadd.f32 %v4702, %v5054
        %5056 = vmatprep.mubr.bf16.mxu0 %v3684
        %5057 = vmatmul.mubr.bf16.gmra.mxu0 %v3683
        %v5058 = vpop.f32.mrf.mxu0
        %v5059 = vadd.f32 %v4706, %v5058
        %v5060 = vpop.f32.mrf.mxu0
        %v5061 = vadd.f32 %v4708, %v5060
        %v5062 = vpop.f32.mrf.mxu0
        %v5063 = vadd.f32 %v4710, %v5062
        %v5064 = vpop.f32.mrf.mxu0
        %v5065 = vadd.f32 %v4712, %v5064
        %5066 = vmatprep.mubr.bf16.mxu0 %v3688
        %5067 = vmatmul.mubr.bf16.gmra.mxu0 %v3687
        %v5068 = vpop.f32.mrf.mxu0
        %v5069 = vadd.f32 %v4716, %v5068
        %v5070 = vpop.f32.mrf.mxu0
        %v5071 = vadd.f32 %v4718, %v5070
        %v5072 = vpop.f32.mrf.mxu0
        %v5073 = vadd.f32 %v4720, %v5072
        %v5074 = vpop.f32.mrf.mxu0
        %v5075 = vadd.f32 %v4722, %v5074
        %5076 = vmatprep.mubr.bf16.mxu0 %v3692
        %5077 = vmatmul.mubr.bf16.gmra.mxu0 %v3691
        %v5078 = vpop.f32.mrf.mxu0
        %v5079 = vadd.f32 %v4726, %v5078
        %v5080 = vpop.f32.mrf.mxu0
        %v5081 = vadd.f32 %v4728, %v5080
        %v5082 = vpop.f32.mrf.mxu0
        %v5083 = vadd.f32 %v4730, %v5082
        %v5084 = vpop.f32.mrf.mxu0
        %v5085 = vadd.f32 %v4732, %v5084
        %5086 = vmatprep.mubr.bf16.mxu0 %v3696
        %5087 = vmatmul.mubr.bf16.gmra.mxu0 %v3695
        %v5088 = vpop.f32.mrf.mxu0
        %v5089 = vadd.f32 %v4736, %v5088
        %v5090 = vpop.f32.mrf.mxu0
        %v5091 = vadd.f32 %v4738, %v5090
        %v5092 = vpop.f32.mrf.mxu0
        %v5093 = vadd.f32 %v4740, %v5092
        %v5094 = vpop.f32.mrf.mxu0
        %v5095 = vadd.f32 %v4742, %v5094
        %5096 = vmatprep.mubr.bf16.mxu0 %v3700
        %5097 = vmatmul.mubr.bf16.gmra.mxu0 %v3699
        %v5098 = vpop.f32.mrf.mxu0
        %v5099 = vadd.f32 %v4746, %v5098
        %v5100 = vpop.f32.mrf.mxu0
        %v5101 = vadd.f32 %v4748, %v5100
        %v5102 = vpop.f32.mrf.mxu0
        %v5103 = vadd.f32 %v4750, %v5102
        %v5104 = vpop.f32.mrf.mxu0
        %v5105 = vadd.f32 %v4752, %v5104
        %5106 = vmatprep.mubr.bf16.mxu0 %v3704
        %5107 = vmatmul.mubr.bf16.gmra.mxu0 %v3703
        %v5108 = vpop.f32.mrf.mxu0
        %v5109 = vadd.f32 %v4756, %v5108
        %v5110 = vpop.f32.mrf.mxu0
        %v5111 = vadd.f32 %v4758, %v5110
        %v5112 = vpop.f32.mrf.mxu0
        %v5113 = vadd.f32 %v4760, %v5112
        %v5114 = vpop.f32.mrf.mxu0
        %v5115 = vadd.f32 %v4762, %v5114
        %5116 = vmatprep.mubr.bf16.mxu0 %v3708
        %5117 = vmatmul.mubr.bf16.gmra.mxu0 %v3707
        %v5118 = vpop.f32.mrf.mxu0
        %v5119 = vadd.f32 %v4766, %v5118
        %v5120 = vpop.f32.mrf.mxu0
        %v5121 = vadd.f32 %v4768, %v5120
        %v5122 = vpop.f32.mrf.mxu0
        %v5123 = vadd.f32 %v4770, %v5122
        %v5124 = vpop.f32.mrf.mxu0
        %v5125 = vadd.f32 %v4772, %v5124
        %5126 = vmatprep.mubr.bf16.mxu0 %v3712
        %5127 = vmatmul.mubr.bf16.gmra.mxu0 %v3711
        %v5128 = vpop.f32.mrf.mxu0
        %v5129 = vadd.f32 %v4776, %v5128
        %v5130 = vpop.f32.mrf.mxu0
        %v5131 = vadd.f32 %v4778, %v5130
        %v5132 = vpop.f32.mrf.mxu0
        %v5133 = vadd.f32 %v4780, %v5132
        %v5134 = vpop.f32.mrf.mxu0
        %v5135 = vadd.f32 %v4782, %v5134
        %5136 = vmatprep.mubr.bf16.mxu0 %v3716
        %5137 = vmatmul.mubr.bf16.gmra.mxu0 %v3715
        %v5138 = vpop.f32.mrf.mxu0
        %v5139 = vadd.f32 %v4786, %v5138
        %v5140 = vpop.f32.mrf.mxu0
        %v5141 = vadd.f32 %v4788, %v5140
        %v5142 = vpop.f32.mrf.mxu0
        %v5143 = vadd.f32 %v4790, %v5142
        %v5144 = vpop.f32.mrf.mxu0
        %v5145 = vadd.f32 %v4792, %v5144
        %5146 = vmatprep.mubr.bf16.mxu0 %v3720
        %5147 = vmatmul.mubr.bf16.gmra.mxu0 %v3719
        %v5148 = vpop.f32.mrf.mxu0
        %v5149 = vadd.f32 %v4796, %v5148
        %v5150 = vpop.f32.mrf.mxu0
        %v5151 = vadd.f32 %v4798, %v5150
        %v5152 = vpop.f32.mrf.mxu0
        %v5153 = vadd.f32 %v4800, %v5152
        %v5154 = vpop.f32.mrf.mxu0
        %v5155 = vadd.f32 %v4802, %v5154
        %5156 = vmatprep.mubr.bf16.mxu0 %v3724
        %5157 = vmatmul.mubr.bf16.gmra.mxu0 %v3723
        %v5158 = vpop.f32.mrf.mxu0
        %v5159 = vadd.f32 %v4806, %v5158
        %v5160 = vpop.f32.mrf.mxu0
        %v5161 = vadd.f32 %v4808, %v5160
        %v5162 = vpop.f32.mrf.mxu0
        %v5163 = vadd.f32 %v4810, %v5162
        %v5164 = vpop.f32.mrf.mxu0
        %v5165 = vadd.f32 %v4812, %v5164
        %5166 = vmatprep.mubr.bf16.mxu0 %v3728
        %5167 = vmatmul.mubr.bf16.gmra.mxu0 %v3727
        %v5168 = vpop.f32.mrf.mxu0
        %v5169 = vadd.f32 %v4816, %v5168
        %v5170 = vpop.f32.mrf.mxu0
        %v5171 = vadd.f32 %v4818, %v5170
        %v5172 = vpop.f32.mrf.mxu0
        %v5173 = vadd.f32 %v4820, %v5172
        %v5174 = vpop.f32.mrf.mxu0
        %v5175 = vadd.f32 %v4822, %v5174
        %5176 = vmatprep.mubr.bf16.mxu0 %v3732
        %5177 = vmatmul.mubr.bf16.gmra.mxu0 %v3731
        %v5178 = vpop.f32.mrf.mxu0
        %v5179 = vadd.f32 %v4826, %v5178
        %v5180 = vpop.f32.mrf.mxu0
        %v5181 = vadd.f32 %v4828, %v5180
        %v5182 = vpop.f32.mrf.mxu0
        %v5183 = vadd.f32 %v4830, %v5182
        %v5184 = vpop.f32.mrf.mxu0
        %v5185 = vadd.f32 %v4832, %v5184
        %5186 = vmatprep.mubr.bf16.mxu0 %v3736
        %5187 = vmatmul.mubr.bf16.gmra.mxu0 %v3735
        %v5188 = vpop.f32.mrf.mxu0
        %v5189 = vadd.f32 %v4836, %v5188
        %v5190 = vpop.f32.mrf.mxu0
        %v5191 = vadd.f32 %v4838, %v5190
        %v5192 = vpop.f32.mrf.mxu0
        %v5193 = vadd.f32 %v4840, %v5192
        %v5194 = vpop.f32.mrf.mxu0
        %v5195 = vadd.f32 %v4842, %v5194
        %5196 = vmatprep.mubr.bf16.mxu0 %v3740
        %5197 = vmatmul.mubr.bf16.gmra.mxu0 %v3739
        %v5198 = vpop.f32.mrf.mxu0
        %v5199 = vadd.f32 %v4846, %v5198
        %v5200 = vpop.f32.mrf.mxu0
        %v5201 = vadd.f32 %v4848, %v5200
        %v5202 = vpop.f32.mrf.mxu0
        %v5203 = vadd.f32 %v4850, %v5202
        %v5204 = vpop.f32.mrf.mxu0
        %v5205 = vadd.f32 %v4852, %v5204
        %5206 = vmatprep.mubr.bf16.mxu0 %v3744
        %5207 = vmatmul.mubr.bf16.gmra.mxu0 %v3743
        %v5208 = vpop.f32.mrf.mxu0
        %v5209 = vadd.f32 %v4856, %v5208
        %v5210 = vpop.f32.mrf.mxu0
        %v5211 = vadd.f32 %v4858, %v5210
        %v5212 = vpop.f32.mrf.mxu0
        %v5213 = vadd.f32 %v4860, %v5212
        %v5214 = vpop.f32.mrf.mxu0
        %v5215 = vadd.f32 %v4862, %v5214
        %5216 = vmatprep.mubr.bf16.mxu0 %v3748
        %5217 = vmatmul.mubr.bf16.gmra.mxu0 %v3747
        %v5218 = vpop.f32.mrf.mxu0
        %v5219 = vadd.f32 %v4866, %v5218
        %v5220 = vpop.f32.mrf.mxu0
        %v5221 = vadd.f32 %v4868, %v5220
        %v5222 = vpop.f32.mrf.mxu0
        %v5223 = vadd.f32 %v4870, %v5222
        %v5224 = vpop.f32.mrf.mxu0
        %v5225 = vadd.f32 %v4872, %v5224
        %5226 = vmatprep.mubr.bf16.mxu0 %v3752
        %5227 = vmatmul.mubr.bf16.gmra.mxu0 %v3751
        %v5228 = vpop.f32.mrf.mxu0
        %v5229 = vadd.f32 %v4876, %v5228
        %v5230 = vpop.f32.mrf.mxu0
        %v5231 = vadd.f32 %v4878, %v5230
        %v5232 = vpop.f32.mrf.mxu0
        %v5233 = vadd.f32 %v4880, %v5232
        %v5234 = vpop.f32.mrf.mxu0
        %v5235 = vadd.f32 %v4882, %v5234
        %5236 = vmatprep.mubr.bf16.mxu0 %v3756
        %5237 = vmatmul.mubr.bf16.gmra.mxu0 %v3755
        %v5238 = vpop.f32.mrf.mxu0
        %v5239 = vadd.f32 %v4886, %v5238
        %v5240 = vpop.f32.mrf.mxu0
        %v5241 = vadd.f32 %v4888, %v5240
        %v5242 = vpop.f32.mrf.mxu0
        %v5243 = vadd.f32 %v4890, %v5242
        %v5244 = vpop.f32.mrf.mxu0
        %v5245 = vadd.f32 %v4892, %v5244
        %5246 = vmatprep.mubr.bf16.mxu0 %v3760
        %5247 = vmatmul.mubr.bf16.gmra.mxu0 %v3759
        %v5248 = vpop.f32.mrf.mxu0
        %v5249 = vadd.f32 %v4896, %v5248
        %v5250 = vpop.f32.mrf.mxu0
        %v5251 = vadd.f32 %v4898, %v5250
        %v5252 = vpop.f32.mrf.mxu0
        %v5253 = vadd.f32 %v4900, %v5252
        %v5254 = vpop.f32.mrf.mxu0
        %v5255 = vadd.f32 %v4902, %v5254
        %5256 = vdwg.mxu0
        %5257 = vmatprep.subr.bf16.mxu0 %v4326
        %5258 = vmatpush1.bf16.msra.mxu0 %v4325
        %5259 = vmatprep.subr.bf16.mxu0 %v4322
        %5260 = vmatpush1.bf16.msra.mxu0 %v4321
        %5261 = vmatprep.subr.bf16.mxu0 %v4318
        %5262 = vmatpush1.bf16.msra.mxu0 %v4317
        %5263 = vmatprep.subr.bf16.mxu0 %v4314
        %5264 = vmatpush1.bf16.msra.mxu0 %v4313
        %5265 = vmatprep.subr.bf16.mxu0 %v4310
        %5266 = vmatpush1.bf16.msra.mxu0 %v4309
        %5267 = vmatprep.subr.bf16.mxu0 %v4306
        %5268 = vmatpush1.bf16.msra.mxu0 %v4305
        %5269 = vmatprep.subr.bf16.mxu0 %v4302
        %5270 = vmatpush1.bf16.msra.mxu0 %v4301
        %5271 = vmatprep.subr.bf16.mxu0 %v4298
        %5272 = vmatpush1.bf16.msra.mxu0 %v4297
        %5273 = vmatprep.subr.bf16.mxu0 %v4358
        %5274 = vmatpush2.bf16.msra.mxu0 %v4357
        %5275 = vmatprep.subr.bf16.mxu0 %v4354
        %5276 = vmatpush2.bf16.msra.mxu0 %v4353
        %5277 = vmatprep.subr.bf16.mxu0 %v4350
        %5278 = vmatpush2.bf16.msra.mxu0 %v4349
        %5279 = vmatprep.subr.bf16.mxu0 %v4346
        %5280 = vmatpush2.bf16.msra.mxu0 %v4345
        %5281 = vmatprep.subr.bf16.mxu0 %v4342
        %5282 = vmatpush2.bf16.msra.mxu0 %v4341
        %5283 = vmatprep.subr.bf16.mxu0 %v4338
        %5284 = vmatpush2.bf16.msra.mxu0 %v4337
        %5285 = vmatprep.subr.bf16.mxu0 %v4334
        %5286 = vmatpush2.bf16.msra.mxu0 %v4333
        %5287 = vmatprep.subr.bf16.mxu0 %v4330
        %5288 = vmatpush2.bf16.msra.mxu0 %v4329
        %5289 = vmatprep.mubr.bf16.mxu0 %v3634
        %5290 = vmatmul.mubr.bf16.gmra.mxu0 %v3633
        %v5291 = vpop.f32.mrf.mxu0
        %v5292 = vadd.f32 %v3902, %v5291
        %v5293 = vpop.f32.mrf.mxu0
        %v5294 = vadd.f32 %v3906, %v5293
        %v5295 = vpop.f32.mrf.mxu0
        %v5296 = vadd.f32 %v3902, %v5295
        %v5297 = vpop.f32.mrf.mxu0
        %v5298 = vadd.f32 %v3906, %v5297
        %5299 = vmatprep.mubr.bf16.mxu0 %v3638
        %5300 = vmatmul.mubr.bf16.gmra.mxu0 %v3637
        %v5301 = vpop.f32.mrf.mxu0
        %v5302 = vadd.f32 %v3902, %v5301
        %v5303 = vpop.f32.mrf.mxu0
        %v5304 = vadd.f32 %v3906, %v5303
        %v5305 = vpop.f32.mrf.mxu0
        %v5306 = vadd.f32 %v3902, %v5305
        %v5307 = vpop.f32.mrf.mxu0
        %v5308 = vadd.f32 %v3906, %v5307
        %5309 = vmatprep.mubr.bf16.mxu0 %v3642
        %5310 = vmatmul.mubr.bf16.gmra.mxu0 %v3641
        %v5311 = vpop.f32.mrf.mxu0
        %v5312 = vadd.f32 %v3902, %v5311
        %v5313 = vpop.f32.mrf.mxu0
        %v5314 = vadd.f32 %v3906, %v5313
        %v5315 = vpop.f32.mrf.mxu0
        %v5316 = vadd.f32 %v3902, %v5315
        %v5317 = vpop.f32.mrf.mxu0
        %v5318 = vadd.f32 %v3906, %v5317
        %5319 = vmatprep.mubr.bf16.mxu0 %v3646
        %5320 = vmatmul.mubr.bf16.gmra.mxu0 %v3645
        %v5321 = vpop.f32.mrf.mxu0
        %v5322 = vadd.f32 %v3902, %v5321
        %v5323 = vpop.f32.mrf.mxu0
        %v5324 = vadd.f32 %v3906, %v5323
        %v5325 = vpop.f32.mrf.mxu0
        %v5326 = vadd.f32 %v3902, %v5325
        %v5327 = vpop.f32.mrf.mxu0
        %v5328 = vadd.f32 %v3906, %v5327
        %5329 = vmatprep.mubr.bf16.mxu0 %v3650
        %5330 = vmatmul.mubr.bf16.gmra.mxu0 %v3649
        %v5331 = vpop.f32.mrf.mxu0
        %v5332 = vadd.f32 %v3902, %v5331
        %v5333 = vpop.f32.mrf.mxu0
        %v5334 = vadd.f32 %v3906, %v5333
        %v5335 = vpop.f32.mrf.mxu0
        %v5336 = vadd.f32 %v3902, %v5335
        %v5337 = vpop.f32.mrf.mxu0
        %v5338 = vadd.f32 %v3906, %v5337
        %5339 = vmatprep.mubr.bf16.mxu0 %v3654
        %5340 = vmatmul.mubr.bf16.gmra.mxu0 %v3653
        %v5341 = vpop.f32.mrf.mxu0
        %v5342 = vadd.f32 %v3902, %v5341
        %v5343 = vpop.f32.mrf.mxu0
        %v5344 = vadd.f32 %v3906, %v5343
        %v5345 = vpop.f32.mrf.mxu0
        %v5346 = vadd.f32 %v3902, %v5345
        %v5347 = vpop.f32.mrf.mxu0
        %v5348 = vadd.f32 %v3906, %v5347
        %5349 = vmatprep.mubr.bf16.mxu0 %v3658
        %5350 = vmatmul.mubr.bf16.gmra.mxu0 %v3657
        %v5351 = vpop.f32.mrf.mxu0
        %v5352 = vadd.f32 %v3902, %v5351
        %v5353 = vpop.f32.mrf.mxu0
        %v5354 = vadd.f32 %v3906, %v5353
        %v5355 = vpop.f32.mrf.mxu0
        %v5356 = vadd.f32 %v3902, %v5355
        %v5357 = vpop.f32.mrf.mxu0
        %v5358 = vadd.f32 %v3906, %v5357
        %5359 = vmatprep.mubr.bf16.mxu0 %v3662
        %5360 = vmatmul.mubr.bf16.gmra.mxu0 %v3661
        %v5361 = vpop.f32.mrf.mxu0
        %v5362 = vadd.f32 %v3902, %v5361
        %v5363 = vpop.f32.mrf.mxu0
        %v5364 = vadd.f32 %v3906, %v5363
        %v5365 = vpop.f32.mrf.mxu0
        %v5366 = vadd.f32 %v3902, %v5365
        %v5367 = vpop.f32.mrf.mxu0
        %v5368 = vadd.f32 %v3906, %v5367
        %5369 = vmatprep.mubr.bf16.mxu0 %v3666
        %5370 = vmatmul.mubr.bf16.gmra.mxu0 %v3665
        %v5371 = vpop.f32.mrf.mxu0
        %v5372 = vadd.f32 %v3902, %v5371
        %v5373 = vpop.f32.mrf.mxu0
        %v5374 = vadd.f32 %v3906, %v5373
        %v5375 = vpop.f32.mrf.mxu0
        %v5376 = vadd.f32 %v3902, %v5375
        %v5377 = vpop.f32.mrf.mxu0
        %v5378 = vadd.f32 %v3906, %v5377
        %5379 = vmatprep.mubr.bf16.mxu0 %v3670
        %5380 = vmatmul.mubr.bf16.gmra.mxu0 %v3669
        %v5381 = vpop.f32.mrf.mxu0
        %v5382 = vadd.f32 %v3902, %v5381
        %v5383 = vpop.f32.mrf.mxu0
        %v5384 = vadd.f32 %v3906, %v5383
        %v5385 = vpop.f32.mrf.mxu0
        %v5386 = vadd.f32 %v3902, %v5385
        %v5387 = vpop.f32.mrf.mxu0
        %v5388 = vadd.f32 %v3906, %v5387
        %5389 = vmatprep.mubr.bf16.mxu0 %v3674
        %5390 = vmatmul.mubr.bf16.gmra.mxu0 %v3673
        %v5391 = vpop.f32.mrf.mxu0
        %v5392 = vadd.f32 %v3902, %v5391
        %v5393 = vpop.f32.mrf.mxu0
        %v5394 = vadd.f32 %v3906, %v5393
        %v5395 = vpop.f32.mrf.mxu0
        %v5396 = vadd.f32 %v3902, %v5395
        %v5397 = vpop.f32.mrf.mxu0
        %v5398 = vadd.f32 %v3906, %v5397
        %5399 = vmatprep.mubr.bf16.mxu0 %v3678
        %5400 = vmatmul.mubr.bf16.gmra.mxu0 %v3677
        %v5401 = vpop.f32.mrf.mxu0
        %v5402 = vadd.f32 %v3902, %v5401
        %v5403 = vpop.f32.mrf.mxu0
        %v5404 = vadd.f32 %v3906, %v5403
        %v5405 = vpop.f32.mrf.mxu0
        %v5406 = vadd.f32 %v3902, %v5405
        %v5407 = vpop.f32.mrf.mxu0
        %v5408 = vadd.f32 %v3906, %v5407
        %5409 = vmatprep.mubr.bf16.mxu0 %v3682
        %5410 = vmatmul.mubr.bf16.gmra.mxu0 %v3681
        %v5411 = vpop.f32.mrf.mxu0
        %v5412 = vadd.f32 %v3902, %v5411
        %v5413 = vpop.f32.mrf.mxu0
        %v5414 = vadd.f32 %v3906, %v5413
        %v5415 = vpop.f32.mrf.mxu0
        %v5416 = vadd.f32 %v3902, %v5415
        %v5417 = vpop.f32.mrf.mxu0
        %v5418 = vadd.f32 %v3906, %v5417
        %5419 = vmatprep.mubr.bf16.mxu0 %v3686
        %5420 = vmatmul.mubr.bf16.gmra.mxu0 %v3685
        %v5421 = vpop.f32.mrf.mxu0
        %v5422 = vadd.f32 %v3902, %v5421
        %v5423 = vpop.f32.mrf.mxu0
        %v5424 = vadd.f32 %v3906, %v5423
        %v5425 = vpop.f32.mrf.mxu0
        %v5426 = vadd.f32 %v3902, %v5425
        %v5427 = vpop.f32.mrf.mxu0
        %v5428 = vadd.f32 %v3906, %v5427
        %5429 = vmatprep.mubr.bf16.mxu0 %v3690
        %5430 = vmatmul.mubr.bf16.gmra.mxu0 %v3689
        %v5431 = vpop.f32.mrf.mxu0
        %v5432 = vadd.f32 %v3902, %v5431
        %v5433 = vpop.f32.mrf.mxu0
        %v5434 = vadd.f32 %v3906, %v5433
        %v5435 = vpop.f32.mrf.mxu0
        %v5436 = vadd.f32 %v3902, %v5435
        %v5437 = vpop.f32.mrf.mxu0
        %v5438 = vadd.f32 %v3906, %v5437
        %5439 = vmatprep.mubr.bf16.mxu0 %v3694
        %5440 = vmatmul.mubr.bf16.gmra.mxu0 %v3693
        %v5441 = vpop.f32.mrf.mxu0
        %v5442 = vadd.f32 %v3902, %v5441
        %v5443 = vpop.f32.mrf.mxu0
        %v5444 = vadd.f32 %v3906, %v5443
        %v5445 = vpop.f32.mrf.mxu0
        %v5446 = vadd.f32 %v3902, %v5445
        %v5447 = vpop.f32.mrf.mxu0
        %v5448 = vadd.f32 %v3906, %v5447
        %5449 = vmatprep.mubr.bf16.mxu0 %v3698
        %5450 = vmatmul.mubr.bf16.gmra.mxu0 %v3697
        %v5451 = vpop.f32.mrf.mxu0
        %v5452 = vadd.f32 %v3902, %v5451
        %v5453 = vpop.f32.mrf.mxu0
        %v5454 = vadd.f32 %v3906, %v5453
        %v5455 = vpop.f32.mrf.mxu0
        %v5456 = vadd.f32 %v3902, %v5455
        %v5457 = vpop.f32.mrf.mxu0
        %v5458 = vadd.f32 %v3906, %v5457
        %5459 = vmatprep.mubr.bf16.mxu0 %v3702
        %5460 = vmatmul.mubr.bf16.gmra.mxu0 %v3701
        %v5461 = vpop.f32.mrf.mxu0
        %v5462 = vadd.f32 %v3902, %v5461
        %v5463 = vpop.f32.mrf.mxu0
        %v5464 = vadd.f32 %v3906, %v5463
        %v5465 = vpop.f32.mrf.mxu0
        %v5466 = vadd.f32 %v3902, %v5465
        %v5467 = vpop.f32.mrf.mxu0
        %v5468 = vadd.f32 %v3906, %v5467
        %5469 = vmatprep.mubr.bf16.mxu0 %v3706
        %5470 = vmatmul.mubr.bf16.gmra.mxu0 %v3705
        %v5471 = vpop.f32.mrf.mxu0
        %v5472 = vadd.f32 %v3902, %v5471
        %v5473 = vpop.f32.mrf.mxu0
        %v5474 = vadd.f32 %v3906, %v5473
        %v5475 = vpop.f32.mrf.mxu0
        %v5476 = vadd.f32 %v3902, %v5475
        %v5477 = vpop.f32.mrf.mxu0
        %v5478 = vadd.f32 %v3906, %v5477
        %5479 = vmatprep.mubr.bf16.mxu0 %v3710
        %5480 = vmatmul.mubr.bf16.gmra.mxu0 %v3709
        %v5481 = vpop.f32.mrf.mxu0
        %v5482 = vadd.f32 %v3902, %v5481
        %v5483 = vpop.f32.mrf.mxu0
        %v5484 = vadd.f32 %v3906, %v5483
        %v5485 = vpop.f32.mrf.mxu0
        %v5486 = vadd.f32 %v3902, %v5485
        %v5487 = vpop.f32.mrf.mxu0
        %v5488 = vadd.f32 %v3906, %v5487
        %5489 = vmatprep.mubr.bf16.mxu0 %v3714
        %5490 = vmatmul.mubr.bf16.gmra.mxu0 %v3713
        %v5491 = vpop.f32.mrf.mxu0
        %v5492 = vadd.f32 %v3902, %v5491
        %v5493 = vpop.f32.mrf.mxu0
        %v5494 = vadd.f32 %v3906, %v5493
        %v5495 = vpop.f32.mrf.mxu0
        %v5496 = vadd.f32 %v3902, %v5495
        %v5497 = vpop.f32.mrf.mxu0
        %v5498 = vadd.f32 %v3906, %v5497
        %5499 = vmatprep.mubr.bf16.mxu0 %v3718
        %5500 = vmatmul.mubr.bf16.gmra.mxu0 %v3717
        %v5501 = vpop.f32.mrf.mxu0
        %v5502 = vadd.f32 %v3902, %v5501
        %v5503 = vpop.f32.mrf.mxu0
        %v5504 = vadd.f32 %v3906, %v5503
        %v5505 = vpop.f32.mrf.mxu0
        %v5506 = vadd.f32 %v3902, %v5505
        %v5507 = vpop.f32.mrf.mxu0
        %v5508 = vadd.f32 %v3906, %v5507
        %5509 = vmatprep.mubr.bf16.mxu0 %v3722
        %5510 = vmatmul.mubr.bf16.gmra.mxu0 %v3721
        %v5511 = vpop.f32.mrf.mxu0
        %v5512 = vadd.f32 %v3902, %v5511
        %v5513 = vpop.f32.mrf.mxu0
        %v5514 = vadd.f32 %v3906, %v5513
        %v5515 = vpop.f32.mrf.mxu0
        %v5516 = vadd.f32 %v3902, %v5515
        %v5517 = vpop.f32.mrf.mxu0
        %v5518 = vadd.f32 %v3906, %v5517
        %5519 = vmatprep.mubr.bf16.mxu0 %v3726
        %5520 = vmatmul.mubr.bf16.gmra.mxu0 %v3725
        %v5521 = vpop.f32.mrf.mxu0
        %v5522 = vadd.f32 %v3902, %v5521
        %v5523 = vpop.f32.mrf.mxu0
        %v5524 = vadd.f32 %v3906, %v5523
        %v5525 = vpop.f32.mrf.mxu0
        %v5526 = vadd.f32 %v3902, %v5525
        %v5527 = vpop.f32.mrf.mxu0
        %v5528 = vadd.f32 %v3906, %v5527
        %5529 = vmatprep.mubr.bf16.mxu0 %v3730
        %5530 = vmatmul.mubr.bf16.gmra.mxu0 %v3729
        %v5531 = vpop.f32.mrf.mxu0
        %v5532 = vadd.f32 %v3902, %v5531
        %v5533 = vpop.f32.mrf.mxu0
        %v5534 = vadd.f32 %v3906, %v5533
        %v5535 = vpop.f32.mrf.mxu0
        %v5536 = vadd.f32 %v3902, %v5535
        %v5537 = vpop.f32.mrf.mxu0
        %v5538 = vadd.f32 %v3906, %v5537
        %5539 = vmatprep.mubr.bf16.mxu0 %v3734
        %5540 = vmatmul.mubr.bf16.gmra.mxu0 %v3733
        %v5541 = vpop.f32.mrf.mxu0
        %v5542 = vadd.f32 %v3902, %v5541
        %v5543 = vpop.f32.mrf.mxu0
        %v5544 = vadd.f32 %v3906, %v5543
        %v5545 = vpop.f32.mrf.mxu0
        %v5546 = vadd.f32 %v3902, %v5545
        %v5547 = vpop.f32.mrf.mxu0
        %v5548 = vadd.f32 %v3906, %v5547
        %5549 = vmatprep.mubr.bf16.mxu0 %v3738
        %5550 = vmatmul.mubr.bf16.gmra.mxu0 %v3737
        %v5551 = vpop.f32.mrf.mxu0
        %v5552 = vadd.f32 %v3902, %v5551
        %v5553 = vpop.f32.mrf.mxu0
        %v5554 = vadd.f32 %v3906, %v5553
        %v5555 = vpop.f32.mrf.mxu0
        %v5556 = vadd.f32 %v3902, %v5555
        %v5557 = vpop.f32.mrf.mxu0
        %v5558 = vadd.f32 %v3906, %v5557
        %5559 = vmatprep.mubr.bf16.mxu0 %v3742
        %5560 = vmatmul.mubr.bf16.gmra.mxu0 %v3741
        %v5561 = vpop.f32.mrf.mxu0
        %v5562 = vadd.f32 %v3902, %v5561
        %v5563 = vpop.f32.mrf.mxu0
        %v5564 = vadd.f32 %v3906, %v5563
        %v5565 = vpop.f32.mrf.mxu0
        %v5566 = vadd.f32 %v3902, %v5565
        %v5567 = vpop.f32.mrf.mxu0
        %v5568 = vadd.f32 %v3906, %v5567
        %5569 = vmatprep.mubr.bf16.mxu0 %v3746
        %5570 = vmatmul.mubr.bf16.gmra.mxu0 %v3745
        %v5571 = vpop.f32.mrf.mxu0
        %v5572 = vadd.f32 %v3902, %v5571
        %v5573 = vpop.f32.mrf.mxu0
        %v5574 = vadd.f32 %v3906, %v5573
        %v5575 = vpop.f32.mrf.mxu0
        %v5576 = vadd.f32 %v3902, %v5575
        %v5577 = vpop.f32.mrf.mxu0
        %v5578 = vadd.f32 %v3906, %v5577
        %5579 = vmatprep.mubr.bf16.mxu0 %v3750
        %5580 = vmatmul.mubr.bf16.gmra.mxu0 %v3749
        %v5581 = vpop.f32.mrf.mxu0
        %v5582 = vadd.f32 %v3902, %v5581
        %v5583 = vpop.f32.mrf.mxu0
        %v5584 = vadd.f32 %v3906, %v5583
        %v5585 = vpop.f32.mrf.mxu0
        %v5586 = vadd.f32 %v3902, %v5585
        %v5587 = vpop.f32.mrf.mxu0
        %v5588 = vadd.f32 %v3906, %v5587
        %5589 = vmatprep.mubr.bf16.mxu0 %v3754
        %5590 = vmatmul.mubr.bf16.gmra.mxu0 %v3753
        %v5591 = vpop.f32.mrf.mxu0
        %v5592 = vadd.f32 %v3902, %v5591
        %v5593 = vpop.f32.mrf.mxu0
        %v5594 = vadd.f32 %v3906, %v5593
        %v5595 = vpop.f32.mrf.mxu0
        %v5596 = vadd.f32 %v3902, %v5595
        %v5597 = vpop.f32.mrf.mxu0
        %v5598 = vadd.f32 %v3906, %v5597
        %5599 = vmatprep.mubr.bf16.mxu0 %v3758
        %5600 = vmatmul.mubr.bf16.gmra.mxu0 %v3757
        %v5601 = vpop.f32.mrf.mxu0
        %v5602 = vadd.f32 %v3902, %v5601
        %v5603 = vpop.f32.mrf.mxu0
        %v5604 = vadd.f32 %v3906, %v5603
        %v5605 = vpop.f32.mrf.mxu0
        %v5606 = vadd.f32 %v3902, %v5605
        %v5607 = vpop.f32.mrf.mxu0
        %v5608 = vadd.f32 %v3906, %v5607
        %5609 = vdwg.mxu0
        %5610 = vmatprep.subr.bf16.mxu0 %v4390
        %5611 = vmatpush1.bf16.msra.mxu0 %v4389
        %5612 = vmatprep.subr.bf16.mxu0 %v4386
        %5613 = vmatpush1.bf16.msra.mxu0 %v4385
        %5614 = vmatprep.subr.bf16.mxu0 %v4382
        %5615 = vmatpush1.bf16.msra.mxu0 %v4381
        %5616 = vmatprep.subr.bf16.mxu0 %v4378
        %5617 = vmatpush1.bf16.msra.mxu0 %v4377
        %5618 = vmatprep.subr.bf16.mxu0 %v4374
        %5619 = vmatpush1.bf16.msra.mxu0 %v4373
        %5620 = vmatprep.subr.bf16.mxu0 %v4370
        %5621 = vmatpush1.bf16.msra.mxu0 %v4369
        %5622 = vmatprep.subr.bf16.mxu0 %v4366
        %5623 = vmatpush1.bf16.msra.mxu0 %v4365
        %5624 = vmatprep.subr.bf16.mxu0 %v4362
        %5625 = vmatpush1.bf16.msra.mxu0 %v4361
        %5626 = vmatprep.subr.bf16.mxu0 %v4422
        %5627 = vmatpush2.bf16.msra.mxu0 %v4421
        %5628 = vmatprep.subr.bf16.mxu0 %v4418
        %5629 = vmatpush2.bf16.msra.mxu0 %v4417
        %5630 = vmatprep.subr.bf16.mxu0 %v4414
        %5631 = vmatpush2.bf16.msra.mxu0 %v4413
        %5632 = vmatprep.subr.bf16.mxu0 %v4410
        %5633 = vmatpush2.bf16.msra.mxu0 %v4409
        %5634 = vmatprep.subr.bf16.mxu0 %v4406
        %5635 = vmatpush2.bf16.msra.mxu0 %v4405
        %5636 = vmatprep.subr.bf16.mxu0 %v4402
        %5637 = vmatpush2.bf16.msra.mxu0 %v4401
        %5638 = vmatprep.subr.bf16.mxu0 %v4398
        %5639 = vmatpush2.bf16.msra.mxu0 %v4397
        %5640 = vmatprep.subr.bf16.mxu0 %v4394
        %5641 = vmatpush2.bf16.msra.mxu0 %v4393
        %5642 = vmatprep.mubr.bf16.mxu0 %v3636
        %5643 = vmatmul.mubr.bf16.gmra.mxu0 %v3635
        %v5644 = vpop.f32.mrf.mxu0
        %v5645 = vadd.f32 %v5292, %v5644
        %v5646 = vpop.f32.mrf.mxu0
        %v5647 = vadd.f32 %v5294, %v5646
        %v5648 = vpop.f32.mrf.mxu0
        %v5649 = vadd.f32 %v5296, %v5648
        %v5650 = vpop.f32.mrf.mxu0
        %v5651 = vadd.f32 %v5298, %v5650
        %5652 = vmatprep.mubr.bf16.mxu0 %v3640
        %5653 = vmatmul.mubr.bf16.gmra.mxu0 %v3639
        %v5654 = vpop.f32.mrf.mxu0
        %v5655 = vadd.f32 %v5302, %v5654
        %v5656 = vpop.f32.mrf.mxu0
        %v5657 = vadd.f32 %v5304, %v5656
        %v5658 = vpop.f32.mrf.mxu0
        %v5659 = vadd.f32 %v5306, %v5658
        %v5660 = vpop.f32.mrf.mxu0
        %v5661 = vadd.f32 %v5308, %v5660
        %5662 = vmatprep.mubr.bf16.mxu0 %v3644
        %5663 = vmatmul.mubr.bf16.gmra.mxu0 %v3643
        %v5664 = vpop.f32.mrf.mxu0
        %v5665 = vadd.f32 %v5312, %v5664
        %v5666 = vpop.f32.mrf.mxu0
        %v5667 = vadd.f32 %v5314, %v5666
        %v5668 = vpop.f32.mrf.mxu0
        %v5669 = vadd.f32 %v5316, %v5668
        %v5670 = vpop.f32.mrf.mxu0
        %v5671 = vadd.f32 %v5318, %v5670
        %5672 = vmatprep.mubr.bf16.mxu0 %v3648
        %5673 = vmatmul.mubr.bf16.gmra.mxu0 %v3647
        %v5674 = vpop.f32.mrf.mxu0
        %v5675 = vadd.f32 %v5322, %v5674
        %v5676 = vpop.f32.mrf.mxu0
        %v5677 = vadd.f32 %v5324, %v5676
        %v5678 = vpop.f32.mrf.mxu0
        %v5679 = vadd.f32 %v5326, %v5678
        %v5680 = vpop.f32.mrf.mxu0
        %v5681 = vadd.f32 %v5328, %v5680
        %5682 = vmatprep.mubr.bf16.mxu0 %v3652
        %5683 = vmatmul.mubr.bf16.gmra.mxu0 %v3651
        %v5684 = vpop.f32.mrf.mxu0
        %v5685 = vadd.f32 %v5332, %v5684
        %v5686 = vpop.f32.mrf.mxu0
        %v5687 = vadd.f32 %v5334, %v5686
        %v5688 = vpop.f32.mrf.mxu0
        %v5689 = vadd.f32 %v5336, %v5688
        %v5690 = vpop.f32.mrf.mxu0
        %v5691 = vadd.f32 %v5338, %v5690
        %5692 = vmatprep.mubr.bf16.mxu0 %v3656
        %5693 = vmatmul.mubr.bf16.gmra.mxu0 %v3655
        %v5694 = vpop.f32.mrf.mxu0
        %v5695 = vadd.f32 %v5342, %v5694
        %v5696 = vpop.f32.mrf.mxu0
        %v5697 = vadd.f32 %v5344, %v5696
        %v5698 = vpop.f32.mrf.mxu0
        %v5699 = vadd.f32 %v5346, %v5698
        %v5700 = vpop.f32.mrf.mxu0
        %v5701 = vadd.f32 %v5348, %v5700
        %5702 = vmatprep.mubr.bf16.mxu0 %v3660
        %5703 = vmatmul.mubr.bf16.gmra.mxu0 %v3659
        %v5704 = vpop.f32.mrf.mxu0
        %v5705 = vadd.f32 %v5352, %v5704
        %v5706 = vpop.f32.mrf.mxu0
        %v5707 = vadd.f32 %v5354, %v5706
        %v5708 = vpop.f32.mrf.mxu0
        %v5709 = vadd.f32 %v5356, %v5708
        %v5710 = vpop.f32.mrf.mxu0
        %v5711 = vadd.f32 %v5358, %v5710
        %5712 = vmatprep.mubr.bf16.mxu0 %v3664
        %5713 = vmatmul.mubr.bf16.gmra.mxu0 %v3663
        %v5714 = vpop.f32.mrf.mxu0
        %v5715 = vadd.f32 %v5362, %v5714
        %v5716 = vpop.f32.mrf.mxu0
        %v5717 = vadd.f32 %v5364, %v5716
        %v5718 = vpop.f32.mrf.mxu0
        %v5719 = vadd.f32 %v5366, %v5718
        %v5720 = vpop.f32.mrf.mxu0
        %v5721 = vadd.f32 %v5368, %v5720
        %5722 = vmatprep.mubr.bf16.mxu0 %v3668
        %5723 = vmatmul.mubr.bf16.gmra.mxu0 %v3667
        %v5724 = vpop.f32.mrf.mxu0
        %v5725 = vadd.f32 %v5372, %v5724
        %v5726 = vpop.f32.mrf.mxu0
        %v5727 = vadd.f32 %v5374, %v5726
        %v5728 = vpop.f32.mrf.mxu0
        %v5729 = vadd.f32 %v5376, %v5728
        %v5730 = vpop.f32.mrf.mxu0
        %v5731 = vadd.f32 %v5378, %v5730
        %5732 = vmatprep.mubr.bf16.mxu0 %v3672
        %5733 = vmatmul.mubr.bf16.gmra.mxu0 %v3671
        %v5734 = vpop.f32.mrf.mxu0
        %v5735 = vadd.f32 %v5382, %v5734
        %v5736 = vpop.f32.mrf.mxu0
        %v5737 = vadd.f32 %v5384, %v5736
        %v5738 = vpop.f32.mrf.mxu0
        %v5739 = vadd.f32 %v5386, %v5738
        %v5740 = vpop.f32.mrf.mxu0
        %v5741 = vadd.f32 %v5388, %v5740
        %5742 = vmatprep.mubr.bf16.mxu0 %v3676
        %5743 = vmatmul.mubr.bf16.gmra.mxu0 %v3675
        %v5744 = vpop.f32.mrf.mxu0
        %v5745 = vadd.f32 %v5392, %v5744
        %v5746 = vpop.f32.mrf.mxu0
        %v5747 = vadd.f32 %v5394, %v5746
        %v5748 = vpop.f32.mrf.mxu0
        %v5749 = vadd.f32 %v5396, %v5748
        %v5750 = vpop.f32.mrf.mxu0
        %v5751 = vadd.f32 %v5398, %v5750
        %5752 = vmatprep.mubr.bf16.mxu0 %v3680
        %5753 = vmatmul.mubr.bf16.gmra.mxu0 %v3679
        %v5754 = vpop.f32.mrf.mxu0
        %v5755 = vadd.f32 %v5402, %v5754
        %v5756 = vpop.f32.mrf.mxu0
        %v5757 = vadd.f32 %v5404, %v5756
        %v5758 = vpop.f32.mrf.mxu0
        %v5759 = vadd.f32 %v5406, %v5758
        %v5760 = vpop.f32.mrf.mxu0
        %v5761 = vadd.f32 %v5408, %v5760
        %5762 = vmatprep.mubr.bf16.mxu0 %v3684
        %5763 = vmatmul.mubr.bf16.gmra.mxu0 %v3683
        %v5764 = vpop.f32.mrf.mxu0
        %v5765 = vadd.f32 %v5412, %v5764
        %v5766 = vpop.f32.mrf.mxu0
        %v5767 = vadd.f32 %v5414, %v5766
        %v5768 = vpop.f32.mrf.mxu0
        %v5769 = vadd.f32 %v5416, %v5768
        %v5770 = vpop.f32.mrf.mxu0
        %v5771 = vadd.f32 %v5418, %v5770
        %5772 = vmatprep.mubr.bf16.mxu0 %v3688
        %5773 = vmatmul.mubr.bf16.gmra.mxu0 %v3687
        %v5774 = vpop.f32.mrf.mxu0
        %v5775 = vadd.f32 %v5422, %v5774
        %v5776 = vpop.f32.mrf.mxu0
        %v5777 = vadd.f32 %v5424, %v5776
        %v5778 = vpop.f32.mrf.mxu0
        %v5779 = vadd.f32 %v5426, %v5778
        %v5780 = vpop.f32.mrf.mxu0
        %v5781 = vadd.f32 %v5428, %v5780
        %5782 = vmatprep.mubr.bf16.mxu0 %v3692
        %5783 = vmatmul.mubr.bf16.gmra.mxu0 %v3691
        %v5784 = vpop.f32.mrf.mxu0
        %v5785 = vadd.f32 %v5432, %v5784
        %v5786 = vpop.f32.mrf.mxu0
        %v5787 = vadd.f32 %v5434, %v5786
        %v5788 = vpop.f32.mrf.mxu0
        %v5789 = vadd.f32 %v5436, %v5788
        %v5790 = vpop.f32.mrf.mxu0
        %v5791 = vadd.f32 %v5438, %v5790
        %5792 = vmatprep.mubr.bf16.mxu0 %v3696
        %5793 = vmatmul.mubr.bf16.gmra.mxu0 %v3695
        %v5794 = vpop.f32.mrf.mxu0
        %v5795 = vadd.f32 %v5442, %v5794
        %v5796 = vpop.f32.mrf.mxu0
        %v5797 = vadd.f32 %v5444, %v5796
        %v5798 = vpop.f32.mrf.mxu0
        %v5799 = vadd.f32 %v5446, %v5798
        %v5800 = vpop.f32.mrf.mxu0
        %v5801 = vadd.f32 %v5448, %v5800
        %5802 = vmatprep.mubr.bf16.mxu0 %v3700
        %5803 = vmatmul.mubr.bf16.gmra.mxu0 %v3699
        %v5804 = vpop.f32.mrf.mxu0
        %v5805 = vadd.f32 %v5452, %v5804
        %v5806 = vpop.f32.mrf.mxu0
        %v5807 = vadd.f32 %v5454, %v5806
        %v5808 = vpop.f32.mrf.mxu0
        %v5809 = vadd.f32 %v5456, %v5808
        %v5810 = vpop.f32.mrf.mxu0
        %v5811 = vadd.f32 %v5458, %v5810
        %5812 = vmatprep.mubr.bf16.mxu0 %v3704
        %5813 = vmatmul.mubr.bf16.gmra.mxu0 %v3703
        %v5814 = vpop.f32.mrf.mxu0
        %v5815 = vadd.f32 %v5462, %v5814
        %v5816 = vpop.f32.mrf.mxu0
        %v5817 = vadd.f32 %v5464, %v5816
        %v5818 = vpop.f32.mrf.mxu0
        %v5819 = vadd.f32 %v5466, %v5818
        %v5820 = vpop.f32.mrf.mxu0
        %v5821 = vadd.f32 %v5468, %v5820
        %5822 = vmatprep.mubr.bf16.mxu0 %v3708
        %5823 = vmatmul.mubr.bf16.gmra.mxu0 %v3707
        %v5824 = vpop.f32.mrf.mxu0
        %v5825 = vadd.f32 %v5472, %v5824
        %v5826 = vpop.f32.mrf.mxu0
        %v5827 = vadd.f32 %v5474, %v5826
        %v5828 = vpop.f32.mrf.mxu0
        %v5829 = vadd.f32 %v5476, %v5828
        %v5830 = vpop.f32.mrf.mxu0
        %v5831 = vadd.f32 %v5478, %v5830
        %5832 = vmatprep.mubr.bf16.mxu0 %v3712
        %5833 = vmatmul.mubr.bf16.gmra.mxu0 %v3711
        %v5834 = vpop.f32.mrf.mxu0
        %v5835 = vadd.f32 %v5482, %v5834
        %v5836 = vpop.f32.mrf.mxu0
        %v5837 = vadd.f32 %v5484, %v5836
        %v5838 = vpop.f32.mrf.mxu0
        %v5839 = vadd.f32 %v5486, %v5838
        %v5840 = vpop.f32.mrf.mxu0
        %v5841 = vadd.f32 %v5488, %v5840
        %5842 = vmatprep.mubr.bf16.mxu0 %v3716
        %5843 = vmatmul.mubr.bf16.gmra.mxu0 %v3715
        %v5844 = vpop.f32.mrf.mxu0
        %v5845 = vadd.f32 %v5492, %v5844
        %v5846 = vpop.f32.mrf.mxu0
        %v5847 = vadd.f32 %v5494, %v5846
        %v5848 = vpop.f32.mrf.mxu0
        %v5849 = vadd.f32 %v5496, %v5848
        %v5850 = vpop.f32.mrf.mxu0
        %v5851 = vadd.f32 %v5498, %v5850
        %5852 = vmatprep.mubr.bf16.mxu0 %v3720
        %5853 = vmatmul.mubr.bf16.gmra.mxu0 %v3719
        %v5854 = vpop.f32.mrf.mxu0
        %v5855 = vadd.f32 %v5502, %v5854
        %v5856 = vpop.f32.mrf.mxu0
        %v5857 = vadd.f32 %v5504, %v5856
        %v5858 = vpop.f32.mrf.mxu0
        %v5859 = vadd.f32 %v5506, %v5858
        %v5860 = vpop.f32.mrf.mxu0
        %v5861 = vadd.f32 %v5508, %v5860
        %5862 = vmatprep.mubr.bf16.mxu0 %v3724
        %5863 = vmatmul.mubr.bf16.gmra.mxu0 %v3723
        %v5864 = vpop.f32.mrf.mxu0
        %v5865 = vadd.f32 %v5512, %v5864
        %v5866 = vpop.f32.mrf.mxu0
        %v5867 = vadd.f32 %v5514, %v5866
        %v5868 = vpop.f32.mrf.mxu0
        %v5869 = vadd.f32 %v5516, %v5868
        %v5870 = vpop.f32.mrf.mxu0
        %v5871 = vadd.f32 %v5518, %v5870
        %5872 = vmatprep.mubr.bf16.mxu0 %v3728
        %5873 = vmatmul.mubr.bf16.gmra.mxu0 %v3727
        %v5874 = vpop.f32.mrf.mxu0
        %v5875 = vadd.f32 %v5522, %v5874
        %v5876 = vpop.f32.mrf.mxu0
        %v5877 = vadd.f32 %v5524, %v5876
        %v5878 = vpop.f32.mrf.mxu0
        %v5879 = vadd.f32 %v5526, %v5878
        %v5880 = vpop.f32.mrf.mxu0
        %v5881 = vadd.f32 %v5528, %v5880
        %5882 = vmatprep.mubr.bf16.mxu0 %v3732
        %5883 = vmatmul.mubr.bf16.gmra.mxu0 %v3731
        %v5884 = vpop.f32.mrf.mxu0
        %v5885 = vadd.f32 %v5532, %v5884
        %v5886 = vpop.f32.mrf.mxu0
        %v5887 = vadd.f32 %v5534, %v5886
        %v5888 = vpop.f32.mrf.mxu0
        %v5889 = vadd.f32 %v5536, %v5888
        %v5890 = vpop.f32.mrf.mxu0
        %v5891 = vadd.f32 %v5538, %v5890
        %5892 = vmatprep.mubr.bf16.mxu0 %v3736
        %5893 = vmatmul.mubr.bf16.gmra.mxu0 %v3735
        %v5894 = vpop.f32.mrf.mxu0
        %v5895 = vadd.f32 %v5542, %v5894
        %v5896 = vpop.f32.mrf.mxu0
        %v5897 = vadd.f32 %v5544, %v5896
        %v5898 = vpop.f32.mrf.mxu0
        %v5899 = vadd.f32 %v5546, %v5898
        %v5900 = vpop.f32.mrf.mxu0
        %v5901 = vadd.f32 %v5548, %v5900
        %5902 = vmatprep.mubr.bf16.mxu0 %v3740
        %5903 = vmatmul.mubr.bf16.gmra.mxu0 %v3739
        %v5904 = vpop.f32.mrf.mxu0
        %v5905 = vadd.f32 %v5552, %v5904
        %v5906 = vpop.f32.mrf.mxu0
        %v5907 = vadd.f32 %v5554, %v5906
        %v5908 = vpop.f32.mrf.mxu0
        %v5909 = vadd.f32 %v5556, %v5908
        %v5910 = vpop.f32.mrf.mxu0
        %v5911 = vadd.f32 %v5558, %v5910
        %5912 = vmatprep.mubr.bf16.mxu0 %v3744
        %5913 = vmatmul.mubr.bf16.gmra.mxu0 %v3743
        %v5914 = vpop.f32.mrf.mxu0
        %v5915 = vadd.f32 %v5562, %v5914
        %v5916 = vpop.f32.mrf.mxu0
        %v5917 = vadd.f32 %v5564, %v5916
        %v5918 = vpop.f32.mrf.mxu0
        %v5919 = vadd.f32 %v5566, %v5918
        %v5920 = vpop.f32.mrf.mxu0
        %v5921 = vadd.f32 %v5568, %v5920
        %5922 = vmatprep.mubr.bf16.mxu0 %v3748
        %5923 = vmatmul.mubr.bf16.gmra.mxu0 %v3747
        %v5924 = vpop.f32.mrf.mxu0
        %v5925 = vadd.f32 %v5572, %v5924
        %v5926 = vpop.f32.mrf.mxu0
        %v5927 = vadd.f32 %v5574, %v5926
        %v5928 = vpop.f32.mrf.mxu0
        %v5929 = vadd.f32 %v5576, %v5928
        %v5930 = vpop.f32.mrf.mxu0
        %v5931 = vadd.f32 %v5578, %v5930
        %5932 = vmatprep.mubr.bf16.mxu0 %v3752
        %5933 = vmatmul.mubr.bf16.gmra.mxu0 %v3751
        %v5934 = vpop.f32.mrf.mxu0
        %v5935 = vadd.f32 %v5582, %v5934
        %v5936 = vpop.f32.mrf.mxu0
        %v5937 = vadd.f32 %v5584, %v5936
        %v5938 = vpop.f32.mrf.mxu0
        %v5939 = vadd.f32 %v5586, %v5938
        %v5940 = vpop.f32.mrf.mxu0
        %v5941 = vadd.f32 %v5588, %v5940
        %5942 = vmatprep.mubr.bf16.mxu0 %v3756
        %5943 = vmatmul.mubr.bf16.gmra.mxu0 %v3755
        %v5944 = vpop.f32.mrf.mxu0
        %v5945 = vadd.f32 %v5592, %v5944
        %v5946 = vpop.f32.mrf.mxu0
        %v5947 = vadd.f32 %v5594, %v5946
        %v5948 = vpop.f32.mrf.mxu0
        %v5949 = vadd.f32 %v5596, %v5948
        %v5950 = vpop.f32.mrf.mxu0
        %v5951 = vadd.f32 %v5598, %v5950
        %5952 = vmatprep.mubr.bf16.mxu0 %v3760
        %5953 = vmatmul.mubr.bf16.gmra.mxu0 %v3759
        %v5954 = vpop.f32.mrf.mxu0
        %v5955 = vadd.f32 %v5602, %v5954
        %v5956 = vpop.f32.mrf.mxu0
        %v5957 = vadd.f32 %v5604, %v5956
        %v5958 = vpop.f32.mrf.mxu0
        %v5959 = vadd.f32 %v5606, %v5958
        %v5960 = vpop.f32.mrf.mxu0
        %v5961 = vadd.f32 %v5608, %v5960
        %5962 = vdwg.mxu0
        %v5963 = vmax.f32 %v4939, 0.0
        %v5964 = vmax.f32 %v4941, 0.0
        %v5965 = vmax.f32 %v5645, 0.0
        %v5966 = vmax.f32 %v5647, 0.0
        %v5967 = vmax.f32 %v4943, 0.0
        %v5968 = vmax.f32 %v4945, 0.0
        %v5969 = vmax.f32 %v5649, 0.0
        %v5970 = vmax.f32 %v5651, 0.0
        %v5971 = vmax.f32 %v4949, 0.0
        %v5972 = vmax.f32 %v4951, 0.0
        %v5973 = vmax.f32 %v5655, 0.0
        %v5974 = vmax.f32 %v5657, 0.0
        %v5975 = vmax.f32 %v4953, 0.0
        %v5976 = vmax.f32 %v4955, 0.0
        %v5977 = vmax.f32 %v5659, 0.0
        %v5978 = vmax.f32 %v5661, 0.0
        %v5979 = vmax.f32 %v4959, 0.0
        %v5980 = vmax.f32 %v4961, 0.0
        %v5981 = vmax.f32 %v5665, 0.0
        %v5982 = vmax.f32 %v5667, 0.0
        %v5983 = vmax.f32 %v4963, 0.0
        %v5984 = vmax.f32 %v4965, 0.0
        %v5985 = vmax.f32 %v5669, 0.0
        %v5986 = vmax.f32 %v5671, 0.0
        %v5987 = vmax.f32 %v4969, 0.0
        %v5988 = vmax.f32 %v4971, 0.0
        %v5989 = vmax.f32 %v5675, 0.0
        %v5990 = vmax.f32 %v5677, 0.0
        %v5991 = vmax.f32 %v4973, 0.0
        %v5992 = vmax.f32 %v4975, 0.0
        %v5993 = vmax.f32 %v5679, 0.0
        %v5994 = vmax.f32 %v5681, 0.0
        %v5995 = vmax.f32 %v4979, 0.0
        %v5996 = vmax.f32 %v4981, 0.0
        %v5997 = vmax.f32 %v5685, 0.0
        %v5998 = vmax.f32 %v5687, 0.0
        %v5999 = vmax.f32 %v4983, 0.0
        %v6000 = vmax.f32 %v4985, 0.0
        %v6001 = vmax.f32 %v5689, 0.0
        %v6002 = vmax.f32 %v5691, 0.0
        %v6003 = vmax.f32 %v4989, 0.0
        %v6004 = vmax.f32 %v4991, 0.0
        %v6005 = vmax.f32 %v5695, 0.0
        %v6006 = vmax.f32 %v5697, 0.0
        %v6007 = vmax.f32 %v4993, 0.0
        %v6008 = vmax.f32 %v4995, 0.0
        %v6009 = vmax.f32 %v5699, 0.0
        %v6010 = vmax.f32 %v5701, 0.0
        %v6011 = vmax.f32 %v4999, 0.0
        %v6012 = vmax.f32 %v5001, 0.0
        %v6013 = vmax.f32 %v5705, 0.0
        %v6014 = vmax.f32 %v5707, 0.0
        %v6015 = vmax.f32 %v5003, 0.0
        %v6016 = vmax.f32 %v5005, 0.0
        %v6017 = vmax.f32 %v5709, 0.0
        %v6018 = vmax.f32 %v5711, 0.0
        %v6019 = vmax.f32 %v5009, 0.0
        %v6020 = vmax.f32 %v5011, 0.0
        %v6021 = vmax.f32 %v5715, 0.0
        %v6022 = vmax.f32 %v5717, 0.0
        %v6023 = vmax.f32 %v5013, 0.0
        %v6024 = vmax.f32 %v5015, 0.0
        %v6025 = vmax.f32 %v5719, 0.0
        %v6026 = vmax.f32 %v5721, 0.0
        %v6027 = vmax.f32 %v5019, 0.0
        %v6028 = vmax.f32 %v5021, 0.0
        %v6029 = vmax.f32 %v5725, 0.0
        %v6030 = vmax.f32 %v5727, 0.0
        %v6031 = vmax.f32 %v5023, 0.0
        %v6032 = vmax.f32 %v5025, 0.0
        %v6033 = vmax.f32 %v5729, 0.0
        %v6034 = vmax.f32 %v5731, 0.0
        %v6035 = vmax.f32 %v5029, 0.0
        %v6036 = vmax.f32 %v5031, 0.0
        %v6037 = vmax.f32 %v5735, 0.0
        %v6038 = vmax.f32 %v5737, 0.0
        %v6039 = vmax.f32 %v5033, 0.0
        %v6040 = vmax.f32 %v5035, 0.0
        %v6041 = vmax.f32 %v5739, 0.0
        %v6042 = vmax.f32 %v5741, 0.0
        %v6043 = vmax.f32 %v5039, 0.0
        %v6044 = vmax.f32 %v5041, 0.0
        %v6045 = vmax.f32 %v5745, 0.0
        %v6046 = vmax.f32 %v5747, 0.0
        %v6047 = vmax.f32 %v5043, 0.0
        %v6048 = vmax.f32 %v5045, 0.0
        %v6049 = vmax.f32 %v5749, 0.0
        %v6050 = vmax.f32 %v5751, 0.0
        %v6051 = vmax.f32 %v5049, 0.0
        %v6052 = vmax.f32 %v5051, 0.0
        %v6053 = vmax.f32 %v5755, 0.0
        %v6054 = vmax.f32 %v5757, 0.0
        %v6055 = vmax.f32 %v5053, 0.0
        %v6056 = vmax.f32 %v5055, 0.0
        %v6057 = vmax.f32 %v5759, 0.0
        %v6058 = vmax.f32 %v5761, 0.0
        %v6059 = vmax.f32 %v5059, 0.0
        %v6060 = vmax.f32 %v5061, 0.0
        %v6061 = vmax.f32 %v5765, 0.0
        %v6062 = vmax.f32 %v5767, 0.0
        %v6063 = vmax.f32 %v5063, 0.0
        %v6064 = vmax.f32 %v5065, 0.0
        %v6065 = vmax.f32 %v5769, 0.0
        %v6066 = vmax.f32 %v5771, 0.0
        %v6067 = vmax.f32 %v5069, 0.0
        %v6068 = vmax.f32 %v5071, 0.0
        %v6069 = vmax.f32 %v5775, 0.0
        %v6070 = vmax.f32 %v5777, 0.0
        %v6071 = vmax.f32 %v5073, 0.0
        %v6072 = vmax.f32 %v5075, 0.0
        %v6073 = vmax.f32 %v5779, 0.0
        %v6074 = vmax.f32 %v5781, 0.0
        %v6075 = vmax.f32 %v5079, 0.0
        %v6076 = vmax.f32 %v5081, 0.0
        %v6077 = vmax.f32 %v5785, 0.0
        %v6078 = vmax.f32 %v5787, 0.0
        %v6079 = vmax.f32 %v5083, 0.0
        %v6080 = vmax.f32 %v5085, 0.0
        %v6081 = vmax.f32 %v5789, 0.0
        %v6082 = vmax.f32 %v5791, 0.0
        %v6083 = vmax.f32 %v5089, 0.0
        %v6084 = vmax.f32 %v5091, 0.0
        %v6085 = vmax.f32 %v5795, 0.0
        %v6086 = vmax.f32 %v5797, 0.0
        %v6087 = vmax.f32 %v5093, 0.0
        %v6088 = vmax.f32 %v5095, 0.0
        %v6089 = vmax.f32 %v5799, 0.0
        %v6090 = vmax.f32 %v5801, 0.0
        %v6091 = vmax.f32 %v5099, 0.0
        %v6092 = vmax.f32 %v5101, 0.0
        %v6093 = vmax.f32 %v5805, 0.0
        %v6094 = vmax.f32 %v5807, 0.0
        %v6095 = vmax.f32 %v5103, 0.0
        %v6096 = vmax.f32 %v5105, 0.0
        %v6097 = vmax.f32 %v5809, 0.0
        %v6098 = vmax.f32 %v5811, 0.0
        %v6099 = vmax.f32 %v5109, 0.0
        %v6100 = vmax.f32 %v5111, 0.0
        %v6101 = vmax.f32 %v5815, 0.0
        %v6102 = vmax.f32 %v5817, 0.0
        %v6103 = vmax.f32 %v5113, 0.0
        %v6104 = vmax.f32 %v5115, 0.0
        %v6105 = vmax.f32 %v5819, 0.0
        %v6106 = vmax.f32 %v5821, 0.0
        %v6107 = vmax.f32 %v5119, 0.0
        %v6108 = vmax.f32 %v5121, 0.0
        %v6109 = vmax.f32 %v5825, 0.0
        %v6110 = vmax.f32 %v5827, 0.0
        %v6111 = vmax.f32 %v5123, 0.0
        %v6112 = vmax.f32 %v5125, 0.0
        %v6113 = vmax.f32 %v5829, 0.0
        %v6114 = vmax.f32 %v5831, 0.0
        %v6115 = vmax.f32 %v5129, 0.0
        %v6116 = vmax.f32 %v5131, 0.0
        %v6117 = vmax.f32 %v5835, 0.0
        %v6118 = vmax.f32 %v5837, 0.0
        %v6119 = vmax.f32 %v5133, 0.0
        %v6120 = vmax.f32 %v5135, 0.0
        %v6121 = vmax.f32 %v5839, 0.0
        %v6122 = vmax.f32 %v5841, 0.0
        %v6123 = vmax.f32 %v5139, 0.0
        %v6124 = vmax.f32 %v5141, 0.0
        %v6125 = vmax.f32 %v5845, 0.0
        %v6126 = vmax.f32 %v5847, 0.0
        %v6127 = vmax.f32 %v5143, 0.0
        %v6128 = vmax.f32 %v5145, 0.0
        %v6129 = vmax.f32 %v5849, 0.0
        %v6130 = vmax.f32 %v5851, 0.0
        %v6131 = vmax.f32 %v5149, 0.0
        %v6132 = vmax.f32 %v5151, 0.0
        %v6133 = vmax.f32 %v5855, 0.0
        %v6134 = vmax.f32 %v5857, 0.0
        %v6135 = vmax.f32 %v5153, 0.0
        %v6136 = vmax.f32 %v5155, 0.0
        %v6137 = vmax.f32 %v5859, 0.0
        %v6138 = vmax.f32 %v5861, 0.0
        %v6139 = vmax.f32 %v5159, 0.0
        %v6140 = vmax.f32 %v5161, 0.0
        %v6141 = vmax.f32 %v5865, 0.0
        %v6142 = vmax.f32 %v5867, 0.0
        %v6143 = vmax.f32 %v5163, 0.0
        %v6144 = vmax.f32 %v5165, 0.0
        %v6145 = vmax.f32 %v5869, 0.0
        %v6146 = vmax.f32 %v5871, 0.0
        %v6147 = vmax.f32 %v5169, 0.0
        %v6148 = vmax.f32 %v5171, 0.0
        %v6149 = vmax.f32 %v5875, 0.0
        %v6150 = vmax.f32 %v5877, 0.0
        %v6151 = vmax.f32 %v5173, 0.0
        %v6152 = vmax.f32 %v5175, 0.0
        %v6153 = vmax.f32 %v5879, 0.0
        %v6154 = vmax.f32 %v5881, 0.0
        %v6155 = vmax.f32 %v5179, 0.0
        %v6156 = vmax.f32 %v5181, 0.0
        %v6157 = vmax.f32 %v5885, 0.0
        %v6158 = vmax.f32 %v5887, 0.0
        %v6159 = vmax.f32 %v5183, 0.0
        %v6160 = vmax.f32 %v5185, 0.0
        %v6161 = vmax.f32 %v5889, 0.0
        %v6162 = vmax.f32 %v5891, 0.0
        %v6163 = vmax.f32 %v5189, 0.0
        %v6164 = vmax.f32 %v5191, 0.0
        %v6165 = vmax.f32 %v5895, 0.0
        %v6166 = vmax.f32 %v5897, 0.0
        %v6167 = vmax.f32 %v5193, 0.0
        %v6168 = vmax.f32 %v5195, 0.0
        %v6169 = vmax.f32 %v5899, 0.0
        %v6170 = vmax.f32 %v5901, 0.0
        %v6171 = vmax.f32 %v5199, 0.0
        %v6172 = vmax.f32 %v5201, 0.0
        %v6173 = vmax.f32 %v5905, 0.0
        %v6174 = vmax.f32 %v5907, 0.0
        %v6175 = vmax.f32 %v5203, 0.0
        %v6176 = vmax.f32 %v5205, 0.0
        %v6177 = vmax.f32 %v5909, 0.0
        %v6178 = vmax.f32 %v5911, 0.0
        %v6179 = vmax.f32 %v5209, 0.0
        %v6180 = vmax.f32 %v5211, 0.0
        %v6181 = vmax.f32 %v5915, 0.0
        %v6182 = vmax.f32 %v5917, 0.0
        %v6183 = vmax.f32 %v5213, 0.0
        %v6184 = vmax.f32 %v5215, 0.0
        %v6185 = vmax.f32 %v5919, 0.0
        %v6186 = vmax.f32 %v5921, 0.0
        %v6187 = vmax.f32 %v5219, 0.0
        %v6188 = vmax.f32 %v5221, 0.0
        %v6189 = vmax.f32 %v5925, 0.0
        %v6190 = vmax.f32 %v5927, 0.0
        %v6191 = vmax.f32 %v5223, 0.0
        %v6192 = vmax.f32 %v5225, 0.0
        %v6193 = vmax.f32 %v5929, 0.0
        %v6194 = vmax.f32 %v5931, 0.0
        %v6195 = vmax.f32 %v5229, 0.0
        %v6196 = vmax.f32 %v5231, 0.0
        %v6197 = vmax.f32 %v5935, 0.0
        %v6198 = vmax.f32 %v5937, 0.0
        %v6199 = vmax.f32 %v5233, 0.0
        %v6200 = vmax.f32 %v5235, 0.0
        %v6201 = vmax.f32 %v5939, 0.0
        %v6202 = vmax.f32 %v5941, 0.0
        %v6203 = vmax.f32 %v5239, 0.0
        %v6204 = vmax.f32 %v5241, 0.0
        %v6205 = vmax.f32 %v5945, 0.0
        %v6206 = vmax.f32 %v5947, 0.0
        %v6207 = vmax.f32 %v5243, 0.0
        %v6208 = vmax.f32 %v5245, 0.0
        %v6209 = vmax.f32 %v5949, 0.0
        %v6210 = vmax.f32 %v5951, 0.0
        %v6211 = vmax.f32 %v5249, 0.0
        %v6212 = vmax.f32 %v5251, 0.0
        %v6213 = vmax.f32 %v5955, 0.0
        %v6214 = vmax.f32 %v5957, 0.0
        %v6215 = vmax.f32 %v5253, 0.0
        %v6216 = vmax.f32 %v5255, 0.0
        %v6217 = vmax.f32 %v5959, 0.0
        %v6218 = vmax.f32 %v5961, 0.0
        %s6219 = smul.u32 %s32, 2
        %s6220 = sadd.s32 %s6219, %s33
        %s6221 = smul.u32 %s6220, 512
        %s6222 = ssub.s32 900, %s6221
        %p6223 = scmp.ge.s32.totalorder %s6222, 512
        // Predicated region
        $region81: #{tpu_custom_call.1} parent=55 // pred_check
          %p6224 = pneg %p6223
        $region82: #{tpu_custom_call.1} parent=55 // pred_check_branch
          %6226 = sbr.rel (%p6224) target = $region84
        $region83: #{tpu_custom_call.1} parent=55 // pred_region
          %v6227 = vld [vmem:[%s446] sm:$0xff]
          %v6228 = vld [vmem:[%s446 + $0x8] sm:$0xff]
          %v6229 = vld [vmem:[%s446 + $0x10] sm:$0xff]
          %v6230 = vld [vmem:[%s446 + $0x18] sm:$0xff]
          %v6231 = vmax.f32 %v5963, %v5967
          %v6232 = vmax.f32 %v6231, %v5971
          %v6233 = vmax.f32 %v6232, %v5975
          %v6234 = vmax.f32 %v6233, %v5979
          %v6235 = vmax.f32 %v6234, %v5983
          %v6236 = vmax.f32 %v6235, %v5987
          %v6237 = vmax.f32 %v6236, %v5991
          %v6238 = vmax.f32 %v6237, %v5995
          %v6239 = vmax.f32 %v6238, %v5999
          %v6240 = vmax.f32 %v6239, %v6003
          %v6241 = vmax.f32 %v6240, %v6007
          %v6242 = vmax.f32 %v6241, %v6011
          %v6243 = vmax.f32 %v6242, %v6015
          %v6244 = vmax.f32 %v6243, %v6019
          %v6245 = vmax.f32 %v6244, %v6023
          %v6246 = vmax.f32 %v6245, %v6027
          %v6247 = vmax.f32 %v6246, %v6031
          %v6248 = vmax.f32 %v6247, %v6035
          %v6249 = vmax.f32 %v6248, %v6039
          %v6250 = vmax.f32 %v6249, %v6043
          %v6251 = vmax.f32 %v6250, %v6047
          %v6252 = vmax.f32 %v6251, %v6051
          %v6253 = vmax.f32 %v6252, %v6055
          %v6254 = vmax.f32 %v6253, %v6059
          %v6255 = vmax.f32 %v6254, %v6063
          %v6256 = vmax.f32 %v6255, %v6067
          %v6257 = vmax.f32 %v6256, %v6071
          %v6258 = vmax.f32 %v6257, %v6075
          %v6259 = vmax.f32 %v6258, %v6079
          %v6260 = vmax.f32 %v6259, %v6083
          %v6261 = vmax.f32 %v6260, %v6087
          %v6262 = vmax.f32 %v6261, %v6091
          %v6263 = vmax.f32 %v6262, %v6095
          %v6264 = vmax.f32 %v6263, %v6099
          %v6265 = vmax.f32 %v6264, %v6103
          %v6266 = vmax.f32 %v6265, %v6107
          %v6267 = vmax.f32 %v6266, %v6111
          %v6268 = vmax.f32 %v6267, %v6115
          %v6269 = vmax.f32 %v6268, %v6119
          %v6270 = vmax.f32 %v6269, %v6123
          %v6271 = vmax.f32 %v6270, %v6127
          %v6272 = vmax.f32 %v6271, %v6131
          %v6273 = vmax.f32 %v6272, %v6135
          %v6274 = vmax.f32 %v6273, %v6139
          %v6275 = vmax.f32 %v6274, %v6143
          %v6276 = vmax.f32 %v6275, %v6147
          %v6277 = vmax.f32 %v6276, %v6151
          %v6278 = vmax.f32 %v6277, %v6155
          %v6279 = vmax.f32 %v6278, %v6159
          %v6280 = vmax.f32 %v6279, %v6163
          %v6281 = vmax.f32 %v6280, %v6167
          %v6282 = vmax.f32 %v6281, %v6171
          %v6283 = vmax.f32 %v6282, %v6175
          %v6284 = vmax.f32 %v6283, %v6179
          %v6285 = vmax.f32 %v6284, %v6183
          %v6286 = vmax.f32 %v6285, %v6187
          %v6287 = vmax.f32 %v6286, %v6191
          %v6288 = vmax.f32 %v6287, %v6195
          %v6289 = vmax.f32 %v6288, %v6199
          %v6290 = vmax.f32 %v6289, %v6203
          %v6291 = vmax.f32 %v6290, %v6207
          %v6292 = vmax.f32 %v6291, %v6211
          %v6293 = vmax.f32 %v6292, %v6215
          %v6294 = vmax.f32 %v5964, %v5968
          %v6295 = vmax.f32 %v6294, %v5972
          %v6296 = vmax.f32 %v6295, %v5976
          %v6297 = vmax.f32 %v6296, %v5980
          %v6298 = vmax.f32 %v6297, %v5984
          %v6299 = vmax.f32 %v6298, %v5988
          %v6300 = vmax.f32 %v6299, %v5992
          %v6301 = vmax.f32 %v6300, %v5996
          %v6302 = vmax.f32 %v6301, %v6000
          %v6303 = vmax.f32 %v6302, %v6004
          %v6304 = vmax.f32 %v6303, %v6008
          %v6305 = vmax.f32 %v6304, %v6012
          %v6306 = vmax.f32 %v6305, %v6016
          %v6307 = vmax.f32 %v6306, %v6020
          %v6308 = vmax.f32 %v6307, %v6024
          %v6309 = vmax.f32 %v6308, %v6028
          %v6310 = vmax.f32 %v6309, %v6032
          %v6311 = vmax.f32 %v6310, %v6036
          %v6312 = vmax.f32 %v6311, %v6040
          %v6313 = vmax.f32 %v6312, %v6044
          %v6314 = vmax.f32 %v6313, %v6048
          %v6315 = vmax.f32 %v6314, %v6052
          %v6316 = vmax.f32 %v6315, %v6056
          %v6317 = vmax.f32 %v6316, %v6060
          %v6318 = vmax.f32 %v6317, %v6064
          %v6319 = vmax.f32 %v6318, %v6068
          %v6320 = vmax.f32 %v6319, %v6072
          %v6321 = vmax.f32 %v6320, %v6076
          %v6322 = vmax.f32 %v6321, %v6080
          %v6323 = vmax.f32 %v6322, %v6084
          %v6324 = vmax.f32 %v6323, %v6088
          %v6325 = vmax.f32 %v6324, %v6092
          %v6326 = vmax.f32 %v6325, %v6096
          %v6327 = vmax.f32 %v6326, %v6100
          %v6328 = vmax.f32 %v6327, %v6104
          %v6329 = vmax.f32 %v6328, %v6108
          %v6330 = vmax.f32 %v6329, %v6112
          %v6331 = vmax.f32 %v6330, %v6116
          %v6332 = vmax.f32 %v6331, %v6120
          %v6333 = vmax.f32 %v6332, %v6124
          %v6334 = vmax.f32 %v6333, %v6128
          %v6335 = vmax.f32 %v6334, %v6132
          %v6336 = vmax.f32 %v6335, %v6136
          %v6337 = vmax.f32 %v6336, %v6140
          %v6338 = vmax.f32 %v6337, %v6144
          %v6339 = vmax.f32 %v6338, %v6148
          %v6340 = vmax.f32 %v6339, %v6152
          %v6341 = vmax.f32 %v6340, %v6156
          %v6342 = vmax.f32 %v6341, %v6160
          %v6343 = vmax.f32 %v6342, %v6164
          %v6344 = vmax.f32 %v6343, %v6168
          %v6345 = vmax.f32 %v6344, %v6172
          %v6346 = vmax.f32 %v6345, %v6176
          %v6347 = vmax.f32 %v6346, %v6180
          %v6348 = vmax.f32 %v6347, %v6184
          %v6349 = vmax.f32 %v6348, %v6188
          %v6350 = vmax.f32 %v6349, %v6192
          %v6351 = vmax.f32 %v6350, %v6196
          %v6352 = vmax.f32 %v6351, %v6200
          %v6353 = vmax.f32 %v6352, %v6204
          %v6354 = vmax.f32 %v6353, %v6208
          %v6355 = vmax.f32 %v6354, %v6212
          %v6356 = vmax.f32 %v6355, %v6216
          %v6357 = vmax.f32 %v5965, %v5969
          %v6358 = vmax.f32 %v6357, %v5973
          %v6359 = vmax.f32 %v6358, %v5977
          %v6360 = vmax.f32 %v6359, %v5981
          %v6361 = vmax.f32 %v6360, %v5985
          %v6362 = vmax.f32 %v6361, %v5989
          %v6363 = vmax.f32 %v6362, %v5993
          %v6364 = vmax.f32 %v6363, %v5997
          %v6365 = vmax.f32 %v6364, %v6001
          %v6366 = vmax.f32 %v6365, %v6005
          %v6367 = vmax.f32 %v6366, %v6009
          %v6368 = vmax.f32 %v6367, %v6013
          %v6369 = vmax.f32 %v6368, %v6017
          %v6370 = vmax.f32 %v6369, %v6021
          %v6371 = vmax.f32 %v6370, %v6025
          %v6372 = vmax.f32 %v6371, %v6029
          %v6373 = vmax.f32 %v6372, %v6033
          %v6374 = vmax.f32 %v6373, %v6037
          %v6375 = vmax.f32 %v6374, %v6041
          %v6376 = vmax.f32 %v6375, %v6045
          %v6377 = vmax.f32 %v6376, %v6049
          %v6378 = vmax.f32 %v6377, %v6053
          %v6379 = vmax.f32 %v6378, %v6057
          %v6380 = vmax.f32 %v6379, %v6061
          %v6381 = vmax.f32 %v6380, %v6065
          %v6382 = vmax.f32 %v6381, %v6069
          %v6383 = vmax.f32 %v6382, %v6073
          %v6384 = vmax.f32 %v6383, %v6077
          %v6385 = vmax.f32 %v6384, %v6081
          %v6386 = vmax.f32 %v6385, %v6085
          %v6387 = vmax.f32 %v6386, %v6089
          %v6388 = vmax.f32 %v6387, %v6093
          %v6389 = vmax.f32 %v6388, %v6097
          %v6390 = vmax.f32 %v6389, %v6101
          %v6391 = vmax.f32 %v6390, %v6105
          %v6392 = vmax.f32 %v6391, %v6109
          %v6393 = vmax.f32 %v6392, %v6113
          %v6394 = vmax.f32 %v6393, %v6117
          %v6395 = vmax.f32 %v6394, %v6121
          %v6396 = vmax.f32 %v6395, %v6125
          %v6397 = vmax.f32 %v6396, %v6129
          %v6398 = vmax.f32 %v6397, %v6133
          %v6399 = vmax.f32 %v6398, %v6137
          %v6400 = vmax.f32 %v6399, %v6141
          %v6401 = vmax.f32 %v6400, %v6145
          %v6402 = vmax.f32 %v6401, %v6149
          %v6403 = vmax.f32 %v6402, %v6153
          %v6404 = vmax.f32 %v6403, %v6157
          %v6405 = vmax.f32 %v6404, %v6161
          %v6406 = vmax.f32 %v6405, %v6165
          %v6407 = vmax.f32 %v6406, %v6169
          %v6408 = vmax.f32 %v6407, %v6173
          %v6409 = vmax.f32 %v6408, %v6177
          %v6410 = vmax.f32 %v6409, %v6181
          %v6411 = vmax.f32 %v6410, %v6185
          %v6412 = vmax.f32 %v6411, %v6189
          %v6413 = vmax.f32 %v6412, %v6193
          %v6414 = vmax.f32 %v6413, %v6197
          %v6415 = vmax.f32 %v6414, %v6201
          %v6416 = vmax.f32 %v6415, %v6205
          %v6417 = vmax.f32 %v6416, %v6209
          %v6418 = vmax.f32 %v6417, %v6213
          %v6419 = vmax.f32 %v6418, %v6217
          %v6420 = vmax.f32 %v5966, %v5970
          %v6421 = vmax.f32 %v6420, %v5974
          %v6422 = vmax.f32 %v6421, %v5978
          %v6423 = vmax.f32 %v6422, %v5982
          %v6424 = vmax.f32 %v6423, %v5986
          %v6425 = vmax.f32 %v6424, %v5990
          %v6426 = vmax.f32 %v6425, %v5994
          %v6427 = vmax.f32 %v6426, %v5998
          %v6428 = vmax.f32 %v6427, %v6002
          %v6429 = vmax.f32 %v6428, %v6006
          %v6430 = vmax.f32 %v6429, %v6010
          %v6431 = vmax.f32 %v6430, %v6014
          %v6432 = vmax.f32 %v6431, %v6018
          %v6433 = vmax.f32 %v6432, %v6022
          %v6434 = vmax.f32 %v6433, %v6026
          %v6435 = vmax.f32 %v6434, %v6030
          %v6436 = vmax.f32 %v6435, %v6034
          %v6437 = vmax.f32 %v6436, %v6038
          %v6438 = vmax.f32 %v6437, %v6042
          %v6439 = vmax.f32 %v6438, %v6046
          %v6440 = vmax.f32 %v6439, %v6050
          %v6441 = vmax.f32 %v6440, %v6054
          %v6442 = vmax.f32 %v6441, %v6058
          %v6443 = vmax.f32 %v6442, %v6062
          %v6444 = vmax.f32 %v6443, %v6066
          %v6445 = vmax.f32 %v6444, %v6070
          %v6446 = vmax.f32 %v6445, %v6074
          %v6447 = vmax.f32 %v6446, %v6078
          %v6448 = vmax.f32 %v6447, %v6082
          %v6449 = vmax.f32 %v6448, %v6086
          %v6450 = vmax.f32 %v6449, %v6090
          %v6451 = vmax.f32 %v6450, %v6094
          %v6452 = vmax.f32 %v6451, %v6098
          %v6453 = vmax.f32 %v6452, %v6102
          %v6454 = vmax.f32 %v6453, %v6106
          %v6455 = vmax.f32 %v6454, %v6110
          %v6456 = vmax.f32 %v6455, %v6114
          %v6457 = vmax.f32 %v6456, %v6118
          %v6458 = vmax.f32 %v6457, %v6122
          %v6459 = vmax.f32 %v6458, %v6126
          %v6460 = vmax.f32 %v6459, %v6130
          %v6461 = vmax.f32 %v6460, %v6134
          %v6462 = vmax.f32 %v6461, %v6138
          %v6463 = vmax.f32 %v6462, %v6142
          %v6464 = vmax.f32 %v6463, %v6146
          %v6465 = vmax.f32 %v6464, %v6150
          %v6466 = vmax.f32 %v6465, %v6154
          %v6467 = vmax.f32 %v6466, %v6158
          %v6468 = vmax.f32 %v6467, %v6162
          %v6469 = vmax.f32 %v6468, %v6166
          %v6470 = vmax.f32 %v6469, %v6170
          %v6471 = vmax.f32 %v6470, %v6174
          %v6472 = vmax.f32 %v6471, %v6178
          %v6473 = vmax.f32 %v6472, %v6182
          %v6474 = vmax.f32 %v6473, %v6186
          %v6475 = vmax.f32 %v6474, %v6190
          %v6476 = vmax.f32 %v6475, %v6194
          %v6477 = vmax.f32 %v6476, %v6198
          %v6478 = vmax.f32 %v6477, %v6202
          %v6479 = vmax.f32 %v6478, %v6206
          %v6480 = vmax.f32 %v6479, %v6210
          %v6481 = vmax.f32 %v6480, %v6214
          %v6482 = vmax.f32 %v6481, %v6218
          %v6483 = vmax.f32 %v6227, %v6293
          %v6484 = vmax.f32 %v6228, %v6356
          %v6485 = vmax.f32 %v6229, %v6419
          %v6486 = vmax.f32 %v6230, %v6482
          %6487 = vst [vmem:[%s446] sm:$0xff] %v6483
          %6488 = vst [vmem:[%s446 + $0x8] sm:$0xff] %v6484
          %6489 = vst [vmem:[%s446 + $0x10] sm:$0xff] %v6485
          %6490 = vst [vmem:[%s446 + $0x18] sm:$0xff] %v6486
        $region84: #{tpu_custom_call.1} parent=55 // pred_fallthru
          _
        %p6491 = scmp.lt.s32.totalorder %s6222, 512
        // Predicated region
        $region85: #{tpu_custom_call.1} parent=55 // pred_check
          %p6492 = pneg %p6491
        $region86: #{tpu_custom_call.1} parent=55 // pred_check_branch
          %6494 = sbr.rel (%p6492) target = $region88
        $region87: #{tpu_custom_call.1} parent=55 // pred_region
          %v6495 = vlaneseq
          %v6496 = vshrl.u32 %v6495, 7
          %v6497 = vadd.s32 %v6496, 8
          %v6498 = vadd.s32 %v6496, 16
          %v6499 = vadd.s32 %v6496, 24
          %v6500 = vadd.s32 %v6496, 32
          %v6501 = vadd.s32 %v6496, 40
          %v6502 = vadd.s32 %v6496, 48
          %v6503 = vadd.s32 %v6496, 56
          %v6504 = vadd.s32 %v6496, 64
          %v6505 = vadd.s32 %v6496, 72
          %v6506 = vadd.s32 %v6496, 80
          %v6507 = vadd.s32 %v6496, 88
          %v6508 = vadd.s32 %v6496, 96
          %v6509 = vadd.s32 %v6496, 104
          %v6510 = vadd.s32 %v6496, 112
          %v6511 = vadd.s32 %v6496, 120
          %v6512 = vadd.s32 %v6496, 128
          %v6513 = vadd.s32 %v6496, 136
          %v6514 = vadd.s32 %v6496, 144
          %v6515 = vadd.s32 %v6496, 152
          %v6516 = vadd.s32 %v6496, 160
          %v6517 = vadd.s32 %v6496, 168
          %v6518 = vadd.s32 %v6496, 176
          %v6519 = vadd.s32 %v6496, 184
          %v6520 = vadd.s32 %v6496, 192
          %v6521 = vadd.s32 %v6496, 200
          %v6522 = vadd.s32 %v6496, 208
          %v6523 = vadd.s32 %v6496, 216
          %v6524 = vadd.s32 %v6496, 224
          %v6525 = vadd.s32 %v6496, 232
          %v6526 = vadd.s32 %v6496, 240
          %v6527 = vadd.s32 %v6496, 248
          %v6528 = vadd.s32 %v6496, 256
          %v6529 = vadd.s32 %v6496, 264
          %v6530 = vadd.s32 %v6496, 272
          %v6531 = vadd.s32 %v6496, 280
          %v6532 = vadd.s32 %v6496, 288
          %v6533 = vadd.s32 %v6496, 296
          %v6534 = vadd.s32 %v6496, 304
          %v6535 = vadd.s32 %v6496, 312
          %v6536 = vadd.s32 %v6496, 320
          %v6537 = vadd.s32 %v6496, 328
          %v6538 = vadd.s32 %v6496, 336
          %v6539 = vadd.s32 %v6496, 344
          %v6540 = vadd.s32 %v6496, 352
          %v6541 = vadd.s32 %v6496, 360
          %v6542 = vadd.s32 %v6496, 368
          %v6543 = vadd.s32 %v6496, 376
          %v6544 = vadd.s32 %v6496, 384
          %v6545 = vadd.s32 %v6496, 392
          %v6546 = vadd.s32 %v6496, 400
          %v6547 = vadd.s32 %v6496, 408
          %v6548 = vadd.s32 %v6496, 416
          %v6549 = vadd.s32 %v6496, 424
          %v6550 = vadd.s32 %v6496, 432
          %v6551 = vadd.s32 %v6496, 440
          %v6552 = vadd.s32 %v6496, 448
          %v6553 = vadd.s32 %v6496, 456
          %v6554 = vadd.s32 %v6496, 464
          %v6555 = vadd.s32 %v6496, 472
          %v6556 = vadd.s32 %v6496, 480
          %v6557 = vadd.s32 %v6496, 488
          %v6558 = vadd.s32 %v6496, 496
          %v6559 = vadd.s32 %v6496, 504
          %v6560 = vld [vmem:[%s446] sm:$0xff]
          %v6561 = vld [vmem:[%s446 + $0x8] sm:$0xff]
          %v6562 = vld [vmem:[%s446 + $0x10] sm:$0xff]
          %v6563 = vld [vmem:[%s446 + $0x18] sm:$0xff]
          %v6564 = vstv %s6222
          %vm6565 = vcmp.lt.s32.totalorder %v6496, %v6564
          %vm6566 = vcmp.lt.s32.totalorder %v6497, %v6564
          %vm6567 = vcmp.lt.s32.totalorder %v6498, %v6564
          %vm6568 = vcmp.lt.s32.totalorder %v6499, %v6564
          %vm6569 = vcmp.lt.s32.totalorder %v6500, %v6564
          %vm6570 = vcmp.lt.s32.totalorder %v6501, %v6564
          %vm6571 = vcmp.lt.s32.totalorder %v6502, %v6564
          %vm6572 = vcmp.lt.s32.totalorder %v6503, %v6564
          %vm6573 = vcmp.lt.s32.totalorder %v6504, %v6564
          %vm6574 = vcmp.lt.s32.totalorder %v6505, %v6564
          %vm6575 = vcmp.lt.s32.totalorder %v6506, %v6564
          %vm6576 = vcmp.lt.s32.totalorder %v6507, %v6564
          %vm6577 = vcmp.lt.s32.totalorder %v6508, %v6564
          %vm6578 = vcmp.lt.s32.totalorder %v6509, %v6564
          %vm6579 = vcmp.lt.s32.totalorder %v6510, %v6564
          %vm6580 = vcmp.lt.s32.totalorder %v6511, %v6564
          %vm6581 = vcmp.lt.s32.totalorder %v6512, %v6564
          %vm6582 = vcmp.lt.s32.totalorder %v6513, %v6564
          %vm6583 = vcmp.lt.s32.totalorder %v6514, %v6564
          %vm6584 = vcmp.lt.s32.totalorder %v6515, %v6564
          %vm6585 = vcmp.lt.s32.totalorder %v6516, %v6564
          %vm6586 = vcmp.lt.s32.totalorder %v6517, %v6564
          %vm6587 = vcmp.lt.s32.totalorder %v6518, %v6564
          %vm6588 = vcmp.lt.s32.totalorder %v6519, %v6564
          %vm6589 = vcmp.lt.s32.totalorder %v6520, %v6564
          %vm6590 = vcmp.lt.s32.totalorder %v6521, %v6564
          %vm6591 = vcmp.lt.s32.totalorder %v6522, %v6564
          %vm6592 = vcmp.lt.s32.totalorder %v6523, %v6564
          %vm6593 = vcmp.lt.s32.totalorder %v6524, %v6564
          %vm6594 = vcmp.lt.s32.totalorder %v6525, %v6564
          %vm6595 = vcmp.lt.s32.totalorder %v6526, %v6564
          %vm6596 = vcmp.lt.s32.totalorder %v6527, %v6564
          %vm6597 = vcmp.lt.s32.totalorder %v6528, %v6564
          %vm6598 = vcmp.lt.s32.totalorder %v6529, %v6564
          %vm6599 = vcmp.lt.s32.totalorder %v6530, %v6564
          %vm6600 = vcmp.lt.s32.totalorder %v6531, %v6564
          %vm6601 = vcmp.lt.s32.totalorder %v6532, %v6564
          %vm6602 = vcmp.lt.s32.totalorder %v6533, %v6564
          %vm6603 = vcmp.lt.s32.totalorder %v6534, %v6564
          %vm6604 = vcmp.lt.s32.totalorder %v6535, %v6564
          %vm6605 = vcmp.lt.s32.totalorder %v6536, %v6564
          %vm6606 = vcmp.lt.s32.totalorder %v6537, %v6564
          %vm6607 = vcmp.lt.s32.totalorder %v6538, %v6564
          %vm6608 = vcmp.lt.s32.totalorder %v6539, %v6564
          %vm6609 = vcmp.lt.s32.totalorder %v6540, %v6564
          %vm6610 = vcmp.lt.s32.totalorder %v6541, %v6564
          %vm6611 = vcmp.lt.s32.totalorder %v6542, %v6564
          %vm6612 = vcmp.lt.s32.totalorder %v6543, %v6564
          %vm6613 = vcmp.lt.s32.totalorder %v6544, %v6564
          %vm6614 = vcmp.lt.s32.totalorder %v6545, %v6564
          %vm6615 = vcmp.lt.s32.totalorder %v6546, %v6564
          %vm6616 = vcmp.lt.s32.totalorder %v6547, %v6564
          %vm6617 = vcmp.lt.s32.totalorder %v6548, %v6564
          %vm6618 = vcmp.lt.s32.totalorder %v6549, %v6564
          %vm6619 = vcmp.lt.s32.totalorder %v6550, %v6564
          %vm6620 = vcmp.lt.s32.totalorder %v6551, %v6564
          %vm6621 = vcmp.lt.s32.totalorder %v6552, %v6564
          %vm6622 = vcmp.lt.s32.totalorder %v6553, %v6564
          %vm6623 = vcmp.lt.s32.totalorder %v6554, %v6564
          %vm6624 = vcmp.lt.s32.totalorder %v6555, %v6564
          %vm6625 = vcmp.lt.s32.totalorder %v6556, %v6564
          %vm6626 = vcmp.lt.s32.totalorder %v6557, %v6564
          %vm6627 = vcmp.lt.s32.totalorder %v6558, %v6564
          %vm6628 = vcmp.lt.s32.totalorder %v6559, %v6564
          %v6629 = vsel %vm6565, 1, 0
          %v6630 = vsel %vm6566, 1, 0
          %v6631 = vsel %vm6567, 1, 0
          %v6632 = vsel %vm6568, 1, 0
          %v6633 = vsel %vm6569, 1, 0
          %v6634 = vsel %vm6570, 1, 0
          %v6635 = vsel %vm6571, 1, 0
          %v6636 = vsel %vm6572, 1, 0
          %v6637 = vsel %vm6573, 1, 0
          %v6638 = vsel %vm6574, 1, 0
          %v6639 = vsel %vm6575, 1, 0
          %v6640 = vsel %vm6576, 1, 0
          %v6641 = vsel %vm6577, 1, 0
          %v6642 = vsel %vm6578, 1, 0
          %v6643 = vsel %vm6579, 1, 0
          %v6644 = vsel %vm6580, 1, 0
          %v6645 = vsel %vm6581, 1, 0
          %v6646 = vsel %vm6582, 1, 0
          %v6647 = vsel %vm6583, 1, 0
          %v6648 = vsel %vm6584, 1, 0
          %v6649 = vsel %vm6585, 1, 0
          %v6650 = vsel %vm6586, 1, 0
          %v6651 = vsel %vm6587, 1, 0
          %v6652 = vsel %vm6588, 1, 0
          %v6653 = vsel %vm6589, 1, 0
          %v6654 = vsel %vm6590, 1, 0
          %v6655 = vsel %vm6591, 1, 0
          %v6656 = vsel %vm6592, 1, 0
          %v6657 = vsel %vm6593, 1, 0
          %v6658 = vsel %vm6594, 1, 0
          %v6659 = vsel %vm6595, 1, 0
          %v6660 = vsel %vm6596, 1, 0
          %v6661 = vsel %vm6597, 1, 0
          %v6662 = vsel %vm6598, 1, 0
          %v6663 = vsel %vm6599, 1, 0
          %v6664 = vsel %vm6600, 1, 0
          %v6665 = vsel %vm6601, 1, 0
          %v6666 = vsel %vm6602, 1, 0
          %v6667 = vsel %vm6603, 1, 0
          %v6668 = vsel %vm6604, 1, 0
          %v6669 = vsel %vm6605, 1, 0
          %v6670 = vsel %vm6606, 1, 0
          %v6671 = vsel %vm6607, 1, 0
          %v6672 = vsel %vm6608, 1, 0
          %v6673 = vsel %vm6609, 1, 0
          %v6674 = vsel %vm6610, 1, 0
          %v6675 = vsel %vm6611, 1, 0
          %v6676 = vsel %vm6612, 1, 0
          %v6677 = vsel %vm6613, 1, 0
          %v6678 = vsel %vm6614, 1, 0
          %v6679 = vsel %vm6615, 1, 0
          %v6680 = vsel %vm6616, 1, 0
          %v6681 = vsel %vm6617, 1, 0
          %v6682 = vsel %vm6618, 1, 0
          %v6683 = vsel %vm6619, 1, 0
          %v6684 = vsel %vm6620, 1, 0
          %v6685 = vsel %vm6621, 1, 0
          %v6686 = vsel %vm6622, 1, 0
          %v6687 = vsel %vm6623, 1, 0
          %v6688 = vsel %vm6624, 1, 0
          %v6689 = vsel %vm6625, 1, 0
          %v6690 = vsel %vm6626, 1, 0
          %v6691 = vsel %vm6627, 1, 0
          %v6692 = vsel %vm6628, 1, 0
          %vm6693 = vcmp.eq.s32.totalorder %v6629, 1
          %vm6694 = vcmp.eq.s32.totalorder %v6630, 1
          %vm6695 = vcmp.eq.s32.totalorder %v6631, 1
          %vm6696 = vcmp.eq.s32.totalorder %v6632, 1
          %vm6697 = vcmp.eq.s32.totalorder %v6633, 1
          %vm6698 = vcmp.eq.s32.totalorder %v6634, 1
          %vm6699 = vcmp.eq.s32.totalorder %v6635, 1
          %vm6700 = vcmp.eq.s32.totalorder %v6636, 1
          %vm6701 = vcmp.eq.s32.totalorder %v6637, 1
          %vm6702 = vcmp.eq.s32.totalorder %v6638, 1
          %vm6703 = vcmp.eq.s32.totalorder %v6639, 1
          %vm6704 = vcmp.eq.s32.totalorder %v6640, 1
          %vm6705 = vcmp.eq.s32.totalorder %v6641, 1
          %vm6706 = vcmp.eq.s32.totalorder %v6642, 1
          %vm6707 = vcmp.eq.s32.totalorder %v6643, 1
          %vm6708 = vcmp.eq.s32.totalorder %v6644, 1
          %vm6709 = vcmp.eq.s32.totalorder %v6645, 1
          %vm6710 = vcmp.eq.s32.totalorder %v6646, 1
          %vm6711 = vcmp.eq.s32.totalorder %v6647, 1
          %vm6712 = vcmp.eq.s32.totalorder %v6648, 1
          %vm6713 = vcmp.eq.s32.totalorder %v6649, 1
          %vm6714 = vcmp.eq.s32.totalorder %v6650, 1
          %vm6715 = vcmp.eq.s32.totalorder %v6651, 1
          %vm6716 = vcmp.eq.s32.totalorder %v6652, 1
          %vm6717 = vcmp.eq.s32.totalorder %v6653, 1
          %vm6718 = vcmp.eq.s32.totalorder %v6654, 1
          %vm6719 = vcmp.eq.s32.totalorder %v6655, 1
          %vm6720 = vcmp.eq.s32.totalorder %v6656, 1
          %vm6721 = vcmp.eq.s32.totalorder %v6657, 1
          %vm6722 = vcmp.eq.s32.totalorder %v6658, 1
          %vm6723 = vcmp.eq.s32.totalorder %v6659, 1
          %vm6724 = vcmp.eq.s32.totalorder %v6660, 1
          %vm6725 = vcmp.eq.s32.totalorder %v6661, 1
          %vm6726 = vcmp.eq.s32.totalorder %v6662, 1
          %vm6727 = vcmp.eq.s32.totalorder %v6663, 1
          %vm6728 = vcmp.eq.s32.totalorder %v6664, 1
          %vm6729 = vcmp.eq.s32.totalorder %v6665, 1
          %vm6730 = vcmp.eq.s32.totalorder %v6666, 1
          %vm6731 = vcmp.eq.s32.totalorder %v6667, 1
          %vm6732 = vcmp.eq.s32.totalorder %v6668, 1
          %vm6733 = vcmp.eq.s32.totalorder %v6669, 1
          %vm6734 = vcmp.eq.s32.totalorder %v6670, 1
          %vm6735 = vcmp.eq.s32.totalorder %v6671, 1
          %vm6736 = vcmp.eq.s32.totalorder %v6672, 1
          %vm6737 = vcmp.eq.s32.totalorder %v6673, 1
          %vm6738 = vcmp.eq.s32.totalorder %v6674, 1
          %vm6739 = vcmp.eq.s32.totalorder %v6675, 1
          %vm6740 = vcmp.eq.s32.totalorder %v6676, 1
          %vm6741 = vcmp.eq.s32.totalorder %v6677, 1
          %vm6742 = vcmp.eq.s32.totalorder %v6678, 1
          %vm6743 = vcmp.eq.s32.totalorder %v6679, 1
          %vm6744 = vcmp.eq.s32.totalorder %v6680, 1
          %vm6745 = vcmp.eq.s32.totalorder %v6681, 1
          %vm6746 = vcmp.eq.s32.totalorder %v6682, 1
          %vm6747 = vcmp.eq.s32.totalorder %v6683, 1
          %vm6748 = vcmp.eq.s32.totalorder %v6684, 1
          %vm6749 = vcmp.eq.s32.totalorder %v6685, 1
          %vm6750 = vcmp.eq.s32.totalorder %v6686, 1
          %vm6751 = vcmp.eq.s32.totalorder %v6687, 1
          %vm6752 = vcmp.eq.s32.totalorder %v6688, 1
          %vm6753 = vcmp.eq.s32.totalorder %v6689, 1
          %vm6754 = vcmp.eq.s32.totalorder %v6690, 1
          %vm6755 = vcmp.eq.s32.totalorder %v6691, 1
          %vm6756 = vcmp.eq.s32.totalorder %v6692, 1
          %v6757 = vsel %vm6693, %v5963, -inf
          %v6758 = vsel %vm6693, %v5964, -inf
          %v6759 = vsel %vm6693, %v5965, -inf
          %v6760 = vsel %vm6693, %v5966, -inf
          %v6761 = vsel %vm6694, %v5967, -inf
          %v6762 = vsel %vm6694, %v5968, -inf
          %v6763 = vsel %vm6694, %v5969, -inf
          %v6764 = vsel %vm6694, %v5970, -inf
          %v6765 = vsel %vm6695, %v5971, -inf
          %v6766 = vsel %vm6695, %v5972, -inf
          %v6767 = vsel %vm6695, %v5973, -inf
          %v6768 = vsel %vm6695, %v5974, -inf
          %v6769 = vsel %vm6696, %v5975, -inf
          %v6770 = vsel %vm6696, %v5976, -inf
          %v6771 = vsel %vm6696, %v5977, -inf
          %v6772 = vsel %vm6696, %v5978, -inf
          %v6773 = vsel %vm6697, %v5979, -inf
          %v6774 = vsel %vm6697, %v5980, -inf
          %v6775 = vsel %vm6697, %v5981, -inf
          %v6776 = vsel %vm6697, %v5982, -inf
          %v6777 = vsel %vm6698, %v5983, -inf
          %v6778 = vsel %vm6698, %v5984, -inf
          %v6779 = vsel %vm6698, %v5985, -inf
          %v6780 = vsel %vm6698, %v5986, -inf
          %v6781 = vsel %vm6699, %v5987, -inf
          %v6782 = vsel %vm6699, %v5988, -inf
          %v6783 = vsel %vm6699, %v5989, -inf
          %v6784 = vsel %vm6699, %v5990, -inf
          %v6785 = vsel %vm6700, %v5991, -inf
          %v6786 = vsel %vm6700, %v5992, -inf
          %v6787 = vsel %vm6700, %v5993, -inf
          %v6788 = vsel %vm6700, %v5994, -inf
          %v6789 = vsel %vm6701, %v5995, -inf
          %v6790 = vsel %vm6701, %v5996, -inf
          %v6791 = vsel %vm6701, %v5997, -inf
          %v6792 = vsel %vm6701, %v5998, -inf
          %v6793 = vsel %vm6702, %v5999, -inf
          %v6794 = vsel %vm6702, %v6000, -inf
          %v6795 = vsel %vm6702, %v6001, -inf
          %v6796 = vsel %vm6702, %v6002, -inf
          %v6797 = vsel %vm6703, %v6003, -inf
          %v6798 = vsel %vm6703, %v6004, -inf
          %v6799 = vsel %vm6703, %v6005, -inf
          %v6800 = vsel %vm6703, %v6006, -inf
          %v6801 = vsel %vm6704, %v6007, -inf
          %v6802 = vsel %vm6704, %v6008, -inf
          %v6803 = vsel %vm6704, %v6009, -inf
          %v6804 = vsel %vm6704, %v6010, -inf
          %v6805 = vsel %vm6705, %v6011, -inf
          %v6806 = vsel %vm6705, %v6012, -inf
          %v6807 = vsel %vm6705, %v6013, -inf
          %v6808 = vsel %vm6705, %v6014, -inf
          %v6809 = vsel %vm6706, %v6015, -inf
          %v6810 = vsel %vm6706, %v6016, -inf
          %v6811 = vsel %vm6706, %v6017, -inf
          %v6812 = vsel %vm6706, %v6018, -inf
          %v6813 = vsel %vm6707, %v6019, -inf
          %v6814 = vsel %vm6707, %v6020, -inf
          %v6815 = vsel %vm6707, %v6021, -inf
          %v6816 = vsel %vm6707, %v6022, -inf
          %v6817 = vsel %vm6708, %v6023, -inf
          %v6818 = vsel %vm6708, %v6024, -inf
          %v6819 = vsel %vm6708, %v6025, -inf
          %v6820 = vsel %vm6708, %v6026, -inf
          %v6821 = vsel %vm6709, %v6027, -inf
          %v6822 = vsel %vm6709, %v6028, -inf
          %v6823 = vsel %vm6709, %v6029, -inf
          %v6824 = vsel %vm6709, %v6030, -inf
          %v6825 = vsel %vm6710, %v6031, -inf
          %v6826 = vsel %vm6710, %v6032, -inf
          %v6827 = vsel %vm6710, %v6033, -inf
          %v6828 = vsel %vm6710, %v6034, -inf
          %v6829 = vsel %vm6711, %v6035, -inf
          %v6830 = vsel %vm6711, %v6036, -inf
          %v6831 = vsel %vm6711, %v6037, -inf
          %v6832 = vsel %vm6711, %v6038, -inf
          %v6833 = vsel %vm6712, %v6039, -inf
          %v6834 = vsel %vm6712, %v6040, -inf
          %v6835 = vsel %vm6712, %v6041, -inf
          %v6836 = vsel %vm6712, %v6042, -inf
          %v6837 = vsel %vm6713, %v6043, -inf
          %v6838 = vsel %vm6713, %v6044, -inf
          %v6839 = vsel %vm6713, %v6045, -inf
          %v6840 = vsel %vm6713, %v6046, -inf
          %v6841 = vsel %vm6714, %v6047, -inf
          %v6842 = vsel %vm6714, %v6048, -inf
          %v6843 = vsel %vm6714, %v6049, -inf
          %v6844 = vsel %vm6714, %v6050, -inf
          %v6845 = vsel %vm6715, %v6051, -inf
          %v6846 = vsel %vm6715, %v6052, -inf
          %v6847 = vsel %vm6715, %v6053, -inf
          %v6848 = vsel %vm6715, %v6054, -inf
          %v6849 = vsel %vm6716, %v6055, -inf
          %v6850 = vsel %vm6716, %v6056, -inf
          %v6851 = vsel %vm6716, %v6057, -inf
          %v6852 = vsel %vm6716, %v6058, -inf
          %v6853 = vsel %vm6717, %v6059, -inf
          %v6854 = vsel %vm6717, %v6060, -inf
          %v6855 = vsel %vm6717, %v6061, -inf
          %v6856 = vsel %vm6717, %v6062, -inf
          %v6857 = vsel %vm6718, %v6063, -inf
          %v6858 = vsel %vm6718, %v6064, -inf
          %v6859 = vsel %vm6718, %v6065, -inf
          %v6860 = vsel %vm6718, %v6066, -inf
          %v6861 = vsel %vm6719, %v6067, -inf
          %v6862 = vsel %vm6719, %v6068, -inf
          %v6863 = vsel %vm6719, %v6069, -inf
          %v6864 = vsel %vm6719, %v6070, -inf
          %v6865 = vsel %vm6720, %v6071, -inf
          %v6866 = vsel %vm6720, %v6072, -inf
          %v6867 = vsel %vm6720, %v6073, -inf
          %v6868 = vsel %vm6720, %v6074, -inf
          %v6869 = vsel %vm6721, %v6075, -inf
          %v6870 = vsel %vm6721, %v6076, -inf
          %v6871 = vsel %vm6721, %v6077, -inf
          %v6872 = vsel %vm6721, %v6078, -inf
          %v6873 = vsel %vm6722, %v6079, -inf
          %v6874 = vsel %vm6722, %v6080, -inf
          %v6875 = vsel %vm6722, %v6081, -inf
          %v6876 = vsel %vm6722, %v6082, -inf
          %v6877 = vsel %vm6723, %v6083, -inf
          %v6878 = vsel %vm6723, %v6084, -inf
          %v6879 = vsel %vm6723, %v6085, -inf
          %v6880 = vsel %vm6723, %v6086, -inf
          %v6881 = vsel %vm6724, %v6087, -inf
          %v6882 = vsel %vm6724, %v6088, -inf
          %v6883 = vsel %vm6724, %v6089, -inf
          %v6884 = vsel %vm6724, %v6090, -inf
          %v6885 = vsel %vm6725, %v6091, -inf
          %v6886 = vsel %vm6725, %v6092, -inf
          %v6887 = vsel %vm6725, %v6093, -inf
          %v6888 = vsel %vm6725, %v6094, -inf
          %v6889 = vsel %vm6726, %v6095, -inf
          %v6890 = vsel %vm6726, %v6096, -inf
          %v6891 = vsel %vm6726, %v6097, -inf
          %v6892 = vsel %vm6726, %v6098, -inf
          %v6893 = vsel %vm6727, %v6099, -inf
          %v6894 = vsel %vm6727, %v6100, -inf
          %v6895 = vsel %vm6727, %v6101, -inf
          %v6896 = vsel %vm6727, %v6102, -inf
          %v6897 = vsel %vm6728, %v6103, -inf
          %v6898 = vsel %vm6728, %v6104, -inf
          %v6899 = vsel %vm6728, %v6105, -inf
          %v6900 = vsel %vm6728, %v6106, -inf
          %v6901 = vsel %vm6729, %v6107, -inf
          %v6902 = vsel %vm6729, %v6108, -inf
          %v6903 = vsel %vm6729, %v6109, -inf
          %v6904 = vsel %vm6729, %v6110, -inf
          %v6905 = vsel %vm6730, %v6111, -inf
          %v6906 = vsel %vm6730, %v6112, -inf
          %v6907 = vsel %vm6730, %v6113, -inf
          %v6908 = vsel %vm6730, %v6114, -inf
          %v6909 = vsel %vm6731, %v6115, -inf
          %v6910 = vsel %vm6731, %v6116, -inf
          %v6911 = vsel %vm6731, %v6117, -inf
          %v6912 = vsel %vm6731, %v6118, -inf
          %v6913 = vsel %vm6732, %v6119, -inf
          %v6914 = vsel %vm6732, %v6120, -inf
          %v6915 = vsel %vm6732, %v6121, -inf
          %v6916 = vsel %vm6732, %v6122, -inf
          %v6917 = vsel %vm6733, %v6123, -inf
          %v6918 = vsel %vm6733, %v6124, -inf
          %v6919 = vsel %vm6733, %v6125, -inf
          %v6920 = vsel %vm6733, %v6126, -inf
          %v6921 = vsel %vm6734, %v6127, -inf
          %v6922 = vsel %vm6734, %v6128, -inf
          %v6923 = vsel %vm6734, %v6129, -inf
          %v6924 = vsel %vm6734, %v6130, -inf
          %v6925 = vsel %vm6735, %v6131, -inf
          %v6926 = vsel %vm6735, %v6132, -inf
          %v6927 = vsel %vm6735, %v6133, -inf
          %v6928 = vsel %vm6735, %v6134, -inf
          %v6929 = vsel %vm6736, %v6135, -inf
          %v6930 = vsel %vm6736, %v6136, -inf
          %v6931 = vsel %vm6736, %v6137, -inf
          %v6932 = vsel %vm6736, %v6138, -inf
          %v6933 = vsel %vm6737, %v6139, -inf
          %v6934 = vsel %vm6737, %v6140, -inf
          %v6935 = vsel %vm6737, %v6141, -inf
          %v6936 = vsel %vm6737, %v6142, -inf
          %v6937 = vsel %vm6738, %v6143, -inf
          %v6938 = vsel %vm6738, %v6144, -inf
          %v6939 = vsel %vm6738, %v6145, -inf
          %v6940 = vsel %vm6738, %v6146, -inf
          %v6941 = vsel %vm6739, %v6147, -inf
          %v6942 = vsel %vm6739, %v6148, -inf
          %v6943 = vsel %vm6739, %v6149, -inf
          %v6944 = vsel %vm6739, %v6150, -inf
          %v6945 = vsel %vm6740, %v6151, -inf
          %v6946 = vsel %vm6740, %v6152, -inf
          %v6947 = vsel %vm6740, %v6153, -inf
          %v6948 = vsel %vm6740, %v6154, -inf
          %v6949 = vsel %vm6741, %v6155, -inf
          %v6950 = vsel %vm6741, %v6156, -inf
          %v6951 = vsel %vm6741, %v6157, -inf
          %v6952 = vsel %vm6741, %v6158, -inf
          %v6953 = vsel %vm6742, %v6159, -inf
          %v6954 = vsel %vm6742, %v6160, -inf
          %v6955 = vsel %vm6742, %v6161, -inf
          %v6956 = vsel %vm6742, %v6162, -inf
          %v6957 = vsel %vm6743, %v6163, -inf
          %v6958 = vsel %vm6743, %v6164, -inf
          %v6959 = vsel %vm6743, %v6165, -inf
          %v6960 = vsel %vm6743, %v6166, -inf
          %v6961 = vsel %vm6744, %v6167, -inf
          %v6962 = vsel %vm6744, %v6168, -inf
          %v6963 = vsel %vm6744, %v6169, -inf
          %v6964 = vsel %vm6744, %v6170, -inf
          %v6965 = vsel %vm6745, %v6171, -inf
          %v6966 = vsel %vm6745, %v6172, -inf
          %v6967 = vsel %vm6745, %v6173, -inf
          %v6968 = vsel %vm6745, %v6174, -inf
          %v6969 = vsel %vm6746, %v6175, -inf
          %v6970 = vsel %vm6746, %v6176, -inf
          %v6971 = vsel %vm6746, %v6177, -inf
          %v6972 = vsel %vm6746, %v6178, -inf
          %v6973 = vsel %vm6747, %v6179, -inf
          %v6974 = vsel %vm6747, %v6180, -inf
          %v6975 = vsel %vm6747, %v6181, -inf
          %v6976 = vsel %vm6747, %v6182, -inf
          %v6977 = vsel %vm6748, %v6183, -inf
          %v6978 = vsel %vm6748, %v6184, -inf
          %v6979 = vsel %vm6748, %v6185, -inf
          %v6980 = vsel %vm6748, %v6186, -inf
          %v6981 = vsel %vm6749, %v6187, -inf
          %v6982 = vsel %vm6749, %v6188, -inf
          %v6983 = vsel %vm6749, %v6189, -inf
          %v6984 = vsel %vm6749, %v6190, -inf
          %v6985 = vsel %vm6750, %v6191, -inf
          %v6986 = vsel %vm6750, %v6192, -inf
          %v6987 = vsel %vm6750, %v6193, -inf
          %v6988 = vsel %vm6750, %v6194, -inf
          %v6989 = vsel %vm6751, %v6195, -inf
          %v6990 = vsel %vm6751, %v6196, -inf
          %v6991 = vsel %vm6751, %v6197, -inf
          %v6992 = vsel %vm6751, %v6198, -inf
          %v6993 = vsel %vm6752, %v6199, -inf
          %v6994 = vsel %vm6752, %v6200, -inf
          %v6995 = vsel %vm6752, %v6201, -inf
          %v6996 = vsel %vm6752, %v6202, -inf
          %v6997 = vsel %vm6753, %v6203, -inf
          %v6998 = vsel %vm6753, %v6204, -inf
          %v6999 = vsel %vm6753, %v6205, -inf
          %v7000 = vsel %vm6753, %v6206, -inf
          %v7001 = vsel %vm6754, %v6207, -inf
          %v7002 = vsel %vm6754, %v6208, -inf
          %v7003 = vsel %vm6754, %v6209, -inf
          %v7004 = vsel %vm6754, %v6210, -inf
          %v7005 = vsel %vm6755, %v6211, -inf
          %v7006 = vsel %vm6755, %v6212, -inf
          %v7007 = vsel %vm6755, %v6213, -inf
          %v7008 = vsel %vm6755, %v6214, -inf
          %v7009 = vsel %vm6756, %v6215, -inf
          %v7010 = vsel %vm6756, %v6216, -inf
          %v7011 = vsel %vm6756, %v6217, -inf
          %v7012 = vsel %vm6756, %v6218, -inf
          %v7013 = vmax.f32 %v6757, %v6761
          %v7014 = vmax.f32 %v7013, %v6765
          %v7015 = vmax.f32 %v7014, %v6769
          %v7016 = vmax.f32 %v7015, %v6773
          %v7017 = vmax.f32 %v7016, %v6777
          %v7018 = vmax.f32 %v7017, %v6781
          %v7019 = vmax.f32 %v7018, %v6785
          %v7020 = vmax.f32 %v7019, %v6789
          %v7021 = vmax.f32 %v7020, %v6793
          %v7022 = vmax.f32 %v7021, %v6797
          %v7023 = vmax.f32 %v7022, %v6801
          %v7024 = vmax.f32 %v7023, %v6805
          %v7025 = vmax.f32 %v7024, %v6809
          %v7026 = vmax.f32 %v7025, %v6813
          %v7027 = vmax.f32 %v7026, %v6817
          %v7028 = vmax.f32 %v7027, %v6821
          %v7029 = vmax.f32 %v7028, %v6825
          %v7030 = vmax.f32 %v7029, %v6829
          %v7031 = vmax.f32 %v7030, %v6833
          %v7032 = vmax.f32 %v7031, %v6837
          %v7033 = vmax.f32 %v7032, %v6841
          %v7034 = vmax.f32 %v7033, %v6845
          %v7035 = vmax.f32 %v7034, %v6849
          %v7036 = vmax.f32 %v7035, %v6853
          %v7037 = vmax.f32 %v7036, %v6857
          %v7038 = vmax.f32 %v7037, %v6861
          %v7039 = vmax.f32 %v7038, %v6865
          %v7040 = vmax.f32 %v7039, %v6869
          %v7041 = vmax.f32 %v7040, %v6873
          %v7042 = vmax.f32 %v7041, %v6877
          %v7043 = vmax.f32 %v7042, %v6881
          %v7044 = vmax.f32 %v7043, %v6885
          %v7045 = vmax.f32 %v7044, %v6889
          %v7046 = vmax.f32 %v7045, %v6893
          %v7047 = vmax.f32 %v7046, %v6897
          %v7048 = vmax.f32 %v7047, %v6901
          %v7049 = vmax.f32 %v7048, %v6905
          %v7050 = vmax.f32 %v7049, %v6909
          %v7051 = vmax.f32 %v7050, %v6913
          %v7052 = vmax.f32 %v7051, %v6917
          %v7053 = vmax.f32 %v7052, %v6921
          %v7054 = vmax.f32 %v7053, %v6925
          %v7055 = vmax.f32 %v7054, %v6929
          %v7056 = vmax.f32 %v7055, %v6933
          %v7057 = vmax.f32 %v7056, %v6937
          %v7058 = vmax.f32 %v7057, %v6941
          %v7059 = vmax.f32 %v7058, %v6945
          %v7060 = vmax.f32 %v7059, %v6949
          %v7061 = vmax.f32 %v7060, %v6953
          %v7062 = vmax.f32 %v7061, %v6957
          %v7063 = vmax.f32 %v7062, %v6961
          %v7064 = vmax.f32 %v7063, %v6965
          %v7065 = vmax.f32 %v7064, %v6969
          %v7066 = vmax.f32 %v7065, %v6973
          %v7067 = vmax.f32 %v7066, %v6977
          %v7068 = vmax.f32 %v7067, %v6981
          %v7069 = vmax.f32 %v7068, %v6985
          %v7070 = vmax.f32 %v7069, %v6989
          %v7071 = vmax.f32 %v7070, %v6993
          %v7072 = vmax.f32 %v7071, %v6997
          %v7073 = vmax.f32 %v7072, %v7001
          %v7074 = vmax.f32 %v7073, %v7005
          %v7075 = vmax.f32 %v7074, %v7009
          %v7076 = vmax.f32 %v6758, %v6762
          %v7077 = vmax.f32 %v7076, %v6766
          %v7078 = vmax.f32 %v7077, %v6770
          %v7079 = vmax.f32 %v7078, %v6774
          %v7080 = vmax.f32 %v7079, %v6778
          %v7081 = vmax.f32 %v7080, %v6782
          %v7082 = vmax.f32 %v7081, %v6786
          %v7083 = vmax.f32 %v7082, %v6790
          %v7084 = vmax.f32 %v7083, %v6794
          %v7085 = vmax.f32 %v7084, %v6798
          %v7086 = vmax.f32 %v7085, %v6802
          %v7087 = vmax.f32 %v7086, %v6806
          %v7088 = vmax.f32 %v7087, %v6810
          %v7089 = vmax.f32 %v7088, %v6814
          %v7090 = vmax.f32 %v7089, %v6818
          %v7091 = vmax.f32 %v7090, %v6822
          %v7092 = vmax.f32 %v7091, %v6826
          %v7093 = vmax.f32 %v7092, %v6830
          %v7094 = vmax.f32 %v7093, %v6834
          %v7095 = vmax.f32 %v7094, %v6838
          %v7096 = vmax.f32 %v7095, %v6842
          %v7097 = vmax.f32 %v7096, %v6846
          %v7098 = vmax.f32 %v7097, %v6850
          %v7099 = vmax.f32 %v7098, %v6854
          %v7100 = vmax.f32 %v7099, %v6858
          %v7101 = vmax.f32 %v7100, %v6862
          %v7102 = vmax.f32 %v7101, %v6866
          %v7103 = vmax.f32 %v7102, %v6870
          %v7104 = vmax.f32 %v7103, %v6874
          %v7105 = vmax.f32 %v7104, %v6878
          %v7106 = vmax.f32 %v7105, %v6882
          %v7107 = vmax.f32 %v7106, %v6886
          %v7108 = vmax.f32 %v7107, %v6890
          %v7109 = vmax.f32 %v7108, %v6894
          %v7110 = vmax.f32 %v7109, %v6898
          %v7111 = vmax.f32 %v7110, %v6902
          %v7112 = vmax.f32 %v7111, %v6906
          %v7113 = vmax.f32 %v7112, %v6910
          %v7114 = vmax.f32 %v7113, %v6914
          %v7115 = vmax.f32 %v7114, %v6918
          %v7116 = vmax.f32 %v7115, %v6922
          %v7117 = vmax.f32 %v7116, %v6926
          %v7118 = vmax.f32 %v7117, %v6930
          %v7119 = vmax.f32 %v7118, %v6934
          %v7120 = vmax.f32 %v7119, %v6938
          %v7121 = vmax.f32 %v7120, %v6942
          %v7122 = vmax.f32 %v7121, %v6946
          %v7123 = vmax.f32 %v7122, %v6950
          %v7124 = vmax.f32 %v7123, %v6954
          %v7125 = vmax.f32 %v7124, %v6958
          %v7126 = vmax.f32 %v7125, %v6962
          %v7127 = vmax.f32 %v7126, %v6966
          %v7128 = vmax.f32 %v7127, %v6970
          %v7129 = vmax.f32 %v7128, %v6974
          %v7130 = vmax.f32 %v7129, %v6978
          %v7131 = vmax.f32 %v7130, %v6982
          %v7132 = vmax.f32 %v7131, %v6986
          %v7133 = vmax.f32 %v7132, %v6990
          %v7134 = vmax.f32 %v7133, %v6994
          %v7135 = vmax.f32 %v7134, %v6998
          %v7136 = vmax.f32 %v7135, %v7002
          %v7137 = vmax.f32 %v7136, %v7006
          %v7138 = vmax.f32 %v7137, %v7010
          %v7139 = vmax.f32 %v6759, %v6763
          %v7140 = vmax.f32 %v7139, %v6767
          %v7141 = vmax.f32 %v7140, %v6771
          %v7142 = vmax.f32 %v7141, %v6775
          %v7143 = vmax.f32 %v7142, %v6779
          %v7144 = vmax.f32 %v7143, %v6783
          %v7145 = vmax.f32 %v7144, %v6787
          %v7146 = vmax.f32 %v7145, %v6791
          %v7147 = vmax.f32 %v7146, %v6795
          %v7148 = vmax.f32 %v7147, %v6799
          %v7149 = vmax.f32 %v7148, %v6803
          %v7150 = vmax.f32 %v7149, %v6807
          %v7151 = vmax.f32 %v7150, %v6811
          %v7152 = vmax.f32 %v7151, %v6815
          %v7153 = vmax.f32 %v7152, %v6819
          %v7154 = vmax.f32 %v7153, %v6823
          %v7155 = vmax.f32 %v7154, %v6827
          %v7156 = vmax.f32 %v7155, %v6831
          %v7157 = vmax.f32 %v7156, %v6835
          %v7158 = vmax.f32 %v7157, %v6839
          %v7159 = vmax.f32 %v7158, %v6843
          %v7160 = vmax.f32 %v7159, %v6847
          %v7161 = vmax.f32 %v7160, %v6851
          %v7162 = vmax.f32 %v7161, %v6855
          %v7163 = vmax.f32 %v7162, %v6859
          %v7164 = vmax.f32 %v7163, %v6863
          %v7165 = vmax.f32 %v7164, %v6867
          %v7166 = vmax.f32 %v7165, %v6871
          %v7167 = vmax.f32 %v7166, %v6875
          %v7168 = vmax.f32 %v7167, %v6879
          %v7169 = vmax.f32 %v7168, %v6883
          %v7170 = vmax.f32 %v7169, %v6887
          %v7171 = vmax.f32 %v7170, %v6891
          %v7172 = vmax.f32 %v7171, %v6895
          %v7173 = vmax.f32 %v7172, %v6899
          %v7174 = vmax.f32 %v7173, %v6903
          %v7175 = vmax.f32 %v7174, %v6907
          %v7176 = vmax.f32 %v7175, %v6911
          %v7177 = vmax.f32 %v7176, %v6915
          %v7178 = vmax.f32 %v7177, %v6919
          %v7179 = vmax.f32 %v7178, %v6923
          %v7180 = vmax.f32 %v7179, %v6927
          %v7181 = vmax.f32 %v7180, %v6931
          %v7182 = vmax.f32 %v7181, %v6935
          %v7183 = vmax.f32 %v7182, %v6939
          %v7184 = vmax.f32 %v7183, %v6943
          %v7185 = vmax.f32 %v7184, %v6947
          %v7186 = vmax.f32 %v7185, %v6951
          %v7187 = vmax.f32 %v7186, %v6955
          %v7188 = vmax.f32 %v7187, %v6959
          %v7189 = vmax.f32 %v7188, %v6963
          %v7190 = vmax.f32 %v7189, %v6967
          %v7191 = vmax.f32 %v7190, %v6971
          %v7192 = vmax.f32 %v7191, %v6975
          %v7193 = vmax.f32 %v7192, %v6979
          %v7194 = vmax.f32 %v7193, %v6983
          %v7195 = vmax.f32 %v7194, %v6987
          %v7196 = vmax.f32 %v7195, %v6991
          %v7197 = vmax.f32 %v7196, %v6995
          %v7198 = vmax.f32 %v7197, %v6999
          %v7199 = vmax.f32 %v7198, %v7003
          %v7200 = vmax.f32 %v7199, %v7007
          %v7201 = vmax.f32 %v7200, %v7011
          %v7202 = vmax.f32 %v6760, %v6764
          %v7203 = vmax.f32 %v7202, %v6768
          %v7204 = vmax.f32 %v7203, %v6772
          %v7205 = vmax.f32 %v7204, %v6776
          %v7206 = vmax.f32 %v7205, %v6780
          %v7207 = vmax.f32 %v7206, %v6784
          %v7208 = vmax.f32 %v7207, %v6788
          %v7209 = vmax.f32 %v7208, %v6792
          %v7210 = vmax.f32 %v7209, %v6796
          %v7211 = vmax.f32 %v7210, %v6800
          %v7212 = vmax.f32 %v7211, %v6804
          %v7213 = vmax.f32 %v7212, %v6808
          %v7214 = vmax.f32 %v7213, %v6812
          %v7215 = vmax.f32 %v7214, %v6816
          %v7216 = vmax.f32 %v7215, %v6820
          %v7217 = vmax.f32 %v7216, %v6824
          %v7218 = vmax.f32 %v7217, %v6828
          %v7219 = vmax.f32 %v7218, %v6832
          %v7220 = vmax.f32 %v7219, %v6836
          %v7221 = vmax.f32 %v7220, %v6840
          %v7222 = vmax.f32 %v7221, %v6844
          %v7223 = vmax.f32 %v7222, %v6848
          %v7224 = vmax.f32 %v7223, %v6852
          %v7225 = vmax.f32 %v7224, %v6856
          %v7226 = vmax.f32 %v7225, %v6860
          %v7227 = vmax.f32 %v7226, %v6864
          %v7228 = vmax.f32 %v7227, %v6868
          %v7229 = vmax.f32 %v7228, %v6872
          %v7230 = vmax.f32 %v7229, %v6876
          %v7231 = vmax.f32 %v7230, %v6880
          %v7232 = vmax.f32 %v7231, %v6884
          %v7233 = vmax.f32 %v7232, %v6888
          %v7234 = vmax.f32 %v7233, %v6892
          %v7235 = vmax.f32 %v7234, %v6896
          %v7236 = vmax.f32 %v7235, %v6900
          %v7237 = vmax.f32 %v7236, %v6904
          %v7238 = vmax.f32 %v7237, %v6908
          %v7239 = vmax.f32 %v7238, %v6912
          %v7240 = vmax.f32 %v7239, %v6916
          %v7241 = vmax.f32 %v7240, %v6920
          %v7242 = vmax.f32 %v7241, %v6924
          %v7243 = vmax.f32 %v7242, %v6928
          %v7244 = vmax.f32 %v7243, %v6932
          %v7245 = vmax.f32 %v7244, %v6936
          %v7246 = vmax.f32 %v7245, %v6940
          %v7247 = vmax.f32 %v7246, %v6944
          %v7248 = vmax.f32 %v7247, %v6948
          %v7249 = vmax.f32 %v7248, %v6952
          %v7250 = vmax.f32 %v7249, %v6956
          %v7251 = vmax.f32 %v7250, %v6960
          %v7252 = vmax.f32 %v7251, %v6964
          %v7253 = vmax.f32 %v7252, %v6968
          %v7254 = vmax.f32 %v7253, %v6972
          %v7255 = vmax.f32 %v7254, %v6976
          %v7256 = vmax.f32 %v7255, %v6980
          %v7257 = vmax.f32 %v7256, %v6984
          %v7258 = vmax.f32 %v7257, %v6988
          %v7259 = vmax.f32 %v7258, %v6992
          %v7260 = vmax.f32 %v7259, %v6996
          %v7261 = vmax.f32 %v7260, %v7000
          %v7262 = vmax.f32 %v7261, %v7004
          %v7263 = vmax.f32 %v7262, %v7008
          %v7264 = vmax.f32 %v7263, %v7012
          %v7265 = vmax.f32 %v6560, %v7075
          %v7266 = vmax.f32 %v6561, %v7138
          %v7267 = vmax.f32 %v6562, %v7201
          %v7268 = vmax.f32 %v6563, %v7264
          %7269 = vst [vmem:[%s446] sm:$0xff] %v7265
          %7270 = vst [vmem:[%s446 + $0x8] sm:$0xff] %v7266
          %7271 = vst [vmem:[%s446 + $0x10] sm:$0xff] %v7267
          %7272 = vst [vmem:[%s446 + $0x18] sm:$0xff] %v7268
        $region88: #{tpu_custom_call.1} parent=55 // pred_fallthru
          _
        %s7273 = sand.u32 %s255, 1
        %s7274 = scalar_lea.sflag [#allocation4], %s7273
        %s7275 = sand.u32 %s255, 1
        %s7276 = smul.addr %s7275, 32
        %s7277 = scalar_lea.vmem [#allocation11], %s7276
        // Predicated region
        $region89: #{tpu_custom_call.1} parent=55 // pred_check
          %p7278 = pneg %p265
        $region90: #{tpu_custom_call.1} parent=55 // pred_check_branch
          %7280 = sbr.rel (%p7278) target = $region92
        $region91: #{tpu_custom_call.1} parent=55 // pred_region
          %s7282 = ssub.s32 512, 512
          %7283 = vsyncadd %s7274, %s7282
          %s7284 = smul.addr %s32, 4
          %s7285 = smul.addr %s31, 4
          %s7286 = sadd.s32 %s7284, %s7285
          %s7287 = smul.addr %s7286, 128
          %s7288 = scalar_lea.hbm %s9, %s7287
          %s7290 = sshll.u32 %s7277, 4
          %s7291 = int_to_ptr.vmem [resolvable:$true] %s7290
          %7293 = dma.vmem_to_hbm [thread:$0]  %s7291, 512, %s7288, %s7274
        $region92: #{tpu_custom_call.1} parent=55 // pred_fallthru
          _
      $region56: #{tpu_custom_call.1} parent=5 // pred_fallthru
        _
      %p7294 = scmp.le.s32.totalorder 2, %s21
      // Predicated region
      $region93: #{tpu_custom_call.1} parent=5 // pred_check
        %p7295 = pneg %p7294
      $region94: #{tpu_custom_call.1} parent=5 // pred_check_branch
        %7297 = sbr.rel (%p7295) target = $region96
      $region95: #{tpu_custom_call.1} parent=5 // pred_region
        %s7298 = ssub.s32 %s21, 2
        // Predicated region
        $region97: #{tpu_custom_call.1} parent=95 // pred_check
          %p7299 = pneg %p271
        $region98: #{tpu_custom_call.1} parent=95 // pred_check_branch
          %7301 = sbr.rel (%p7299) target = $region100
        $region99: #{tpu_custom_call.1} parent=95 // pred_region
          %s7302 = sand.u32 %s256, 1
          %s7303 = scalar_lea.sflag [#allocation4], %s7302
          %s7304 = sand.u32 %s256, 1
          %s7305 = smul.addr %s7304, 32
          %s7306 = scalar_lea.vmem [#allocation11], %s7305
          %7307 = dma.done %s7303, 512
        $region100: #{tpu_custom_call.1} parent=95 // pred_fallthru
          _
      $region96: #{tpu_custom_call.1} parent=5 // pred_fallthru
        _
    $region6: #{tpu_custom_call.1} parent=1 // loop_footer
      %s25 = sadd.s32 1, %s21
    $region7: #{tpu_custom_call.1} parent=1 // loop_footer_branch
      %20 = sbr.rel target = $region3
    $region8: #{tpu_custom_call.1} parent=1 // loop_exit
      _
    %7308 = vsyncpa [#allocation3], 1
    %s7309 = scalar_lea.sflag [#allocation3], 1
    %7310 = vsyncpa %s7309, 1
    %7311 = vsyncpa [#allocation6], 1
    %7312 = vsyncpa [#allocation9], 1
    %7313 = vsyncpa [#allocation4], 1
    %s7314 = scalar_lea.sflag [#allocation4], 1
    %7315 = vsyncpa %s7314, 1

</llo_original>
